<compile_context>
chip_gen: v5e
topology: v5e:2x2
jax: 0.10.0
libtpu: 0.0.40
codegen_flags: <defaults>
</compile_context>

<pallas_src>
import jax
import jax.numpy as jnp
from jax.experimental import pallas as pl
from jax.experimental.pallas import tpu as pltpu

EPS = 1e-5

# Padded (lane-aligned) layer widths.
LAT_P = 128                      # latent 64 -> 128
D1, D2, D3, D4 = 256, 512, 1024, 2048
OUT_P = 128                      # output 80 -> 128

# Static offsets into the single packed f32 vector buffer.
# (b2/b3/b4 intentionally absent -- they cancel under training-mode BN.)
OFF_B1 = 0
OFF_G2 = OFF_B1 + D1
OFF_BE2 = OFF_G2 + D2
OFF_G3 = OFF_BE2 + D2
OFF_BE3 = OFF_G3 + D3
OFF_G4 = OFF_BE3 + D3
OFF_BE4 = OFF_G4 + D4
OFF_B5 = OFF_BE4 + D4
VEC_TOTAL = OFF_B5 + OUT_P       # 7552 = 59 * 128  (lane aligned)


def dcgan_gen_kernel(z_ref, vec_ref, w1_ref, w2_ref, w3_ref,
                     w4_hbm, w5_hbm,            # raw HBM refs (pl.ANY)
                     o_ref,
                     w4_vmem, w5_vmem, sem):    # scratch
    # Kick off the big weight transfers immediately; overlap with layers 1-3.
    cp4 = pltpu.make_async_copy(w4_hbm, w4_vmem, sem.at[0])
    cp5 = pltpu.make_async_copy(w5_hbm, w5_vmem, sem.at[1])
    cp4.start()
    cp5.start()

    def vec(off, width):
        return vec_ref[:, off:off + width]           # static, lane-aligned slice

    def dense(x_f32, w_bf16, bias=None):
        acc = jnp.dot(x_f32.astype(jnp.bfloat16), w_bf16,
                      preferred_element_type=jnp.float32)
        if bias is not None:
            acc = acc + bias
        return acc

    def bn_relu(x, gamma, beta):
        # BatchNorm1d (training mode, biased variance), two-pass centered var,
        # folded into one FMA, followed by ReLU.
        mean = jnp.mean(x, axis=0, keepdims=True)
        centered = x - mean
        var = jnp.mean(centered * centered, axis=0, keepdims=True)
        scale = gamma * jax.lax.rsqrt(var + EPS)
        return jnp.maximum(centered * scale + beta, 0.0)

    x = z_ref[...].astype(jnp.float32)

    # Linear(latent, 256) + ReLU
    h = jnp.maximum(dense(x, w1_ref[...], vec(OFF_B1, D1)), 0.0)

    # Linear(256, 512) -> BN -> ReLU   (bias dropped: cancels in BN)
    h = bn_relu(dense(h, w2_ref[...]), vec(OFF_G2, D2), vec(OFF_BE2, D2))

    # Linear(512, 1024) -> BN -> ReLU
    h = bn_relu(dense(h, w3_ref[...]), vec(OFF_G3, D3), vec(OFF_BE3, D3))

    # Linear(1024, 2048) -> BN -> ReLU   (wait for w4 only now)
    cp4.wait()
    h = bn_relu(dense(h, w4_vmem[...]), vec(OFF_G4, D4), vec(OFF_BE4, D4))

    # Linear(2048, output_dim_padded) + Tanh
    cp5.wait()
    out = dense(h, w5_vmem[...], vec(OFF_B5, OUT_P))
    o_ref[...] = jnp.tanh(out).astype(o_ref.dtype)


def dcgan_generator(z, params, output_dim):
    B, latent = z.shape
    if latent != LAT_P:
        z = jnp.pad(z, ((0, 0), (0, LAT_P - latent)))   # zero-pad latent features

    vmem = pl.BlockSpec(memory_space=pltpu.MemorySpace.VMEM)
    hbm = pl.BlockSpec(memory_space=pl.ANY)

    out = pl.pallas_call(
        dcgan_gen_kernel,
        out_shape=jax.ShapeDtypeStruct((B, OUT_P), jnp.float32),
        in_specs=[vmem, vmem, vmem, vmem, vmem, hbm, hbm],
        out_specs=vmem,
        scratch_shapes=[
            pltpu.VMEM((D3, D4), jnp.bfloat16),      # w4 staging (1024x2048)
            pltpu.VMEM((D4, OUT_P), jnp.bfloat16),   # w5 staging (2048x128)
            pltpu.SemaphoreType.DMA((2,)),
        ],
        compiler_params=pltpu.CompilerParams(vmem_limit_bytes=20 * 1024 * 1024),
    )(z, params["vecs"], params["w1"], params["w2"], params["w3"],
      params["w4"], params["w5"])
    return out[:, :output_dim]


def init_params(key, latent_dim, output_dim):
    """bf16 weights padded to lane-aligned shapes (padding is zero); one packed
    f32 buffer for bias / BN parameters."""
    in_dims = [latent_dim, D1, D2, D3, D4]
    out_dims = [D1, D2, D3, D4, output_dim]
    pad_in = [LAT_P, D1, D2, D3, D4]
    pad_out = [D1, D2, D3, D4, OUT_P]

    params = {}
    keys = jax.random.split(key, 7)
    for i in range(5):
        d_in, d_out = in_dims[i], out_dims[i]
        p_in, p_out = pad_in[i], pad_out[i]
        w = jnp.zeros((p_in, p_out), jnp.float32)
        w = w.at[:d_in, :d_out].set(
            jax.random.normal(keys[i], (d_in, d_out), jnp.float32) * 0.02)
        params[f"w{i + 1}"] = w.astype(jnp.bfloat16)

    vecs = jnp.zeros((1, VEC_TOTAL), jnp.float32)
    # b1 (layer-1 bias) and b5 (output bias); b2/b3/b4 omitted (cancel in BN).
    vecs = vecs.at[0, OFF_B1:OFF_B1 + D1].set(
        jax.random.normal(keys[5], (D1,), jnp.float32) * 0.01)
    vecs = vecs.at[0, OFF_B5:OFF_B5 + output_dim].set(
        jax.random.normal(keys[6], (output_dim,), jnp.float32) * 0.01)
    # BatchNorm affine params: gamma=1, beta=0 (nn.BatchNorm1d default init).
    for off, width in ((OFF_G2, D2), (OFF_G3, D3), (OFF_G4, D4)):
        vecs = vecs.at[0, off:off + width].set(1.0)
    params["vecs"] = vecs
    return params


def reference_forward(z, params, output_dim):
    """Pure-JAX reference mirroring the kernel math (bf16 weights, f32 accum,
    training-mode BN with batch statistics)."""
    if z.shape[1] != LAT_P:
        z = jnp.pad(z, ((0, 0), (0, LAT_P - z.shape[1])))
    v = params["vecs"]

    def dense(x, w, bias=None):
        y = (x.astype(jnp.bfloat16).astype(jnp.float32)
             @ w.astype(jnp.float32))
        return y if bias is None else y + bias

    def bn_relu(x, gamma, beta):
        mean = jnp.mean(x, axis=0, keepdims=True)
        var = jnp.mean((x - mean) ** 2, axis=0, keepdims=True)
        return jnp.maximum((x - mean) / jnp.sqrt(var + EPS) * gamma + beta, 0.0)

    h = jnp.maximum(dense(z, params["w1"], v[:, OFF_B1:OFF_B1 + D1]), 0.0)
    h = bn_relu(dense(h, params["w2"]),
                v[:, OFF_G2:OFF_G2 + D2], v[:, OFF_BE2:OFF_BE2 + D2])
    h = bn_relu(dense(h, params["w3"]),
                v[:, OFF_G3:OFF_G3 + D3], v[:, OFF_BE3:OFF_BE3 + D3])
    h = bn_relu(dense(h, params["w4"]),
                v[:, OFF_G4:OFF_G4 + D4], v[:, OFF_BE4:OFF_BE4 + D4])
    out = jnp.tanh(dense(h, params["w5"], v[:, OFF_B5:OFF_B5 + OUT_P]))
    return out[:, :output_dim]


if __name__ == "__main__":
    latent_dim = 64
    output_dim = 80
    batch = 8

    key = jax.random.PRNGKey(0)
    key_z, key_p = jax.random.split(key)
    z = jax.random.normal(key_z, (batch, latent_dim), jnp.float32)
    params = init_params(key_p, latent_dim, output_dim)

    out = dcgan_generator(z, params, output_dim)
    out = jax.block_until_ready(out)

    ref = reference_forward(z, params, output_dim)
    assert out.shape == (batch, output_dim)
    assert jnp.allclose(out, ref, atol=1e-2, rtol=1e-2), "mismatch vs reference"
    print("KERNEL_OK")
</pallas_src>

<mosaic_0001>
module attributes {stable_mosaic.version = 11 : i64} {
  func.func @dcgan_gen_kernel(%arg0: memref<8x128xf32, #tpu.memory_space<vmem>>, %arg1: memref<1x7552xf32, #tpu.memory_space<vmem>>, %arg2: memref<128x256xbf16, #tpu.memory_space<vmem>>, %arg3: memref<256x512xbf16, #tpu.memory_space<vmem>>, %arg4: memref<512x1024xbf16, #tpu.memory_space<vmem>>, %arg5: memref<1024x2048xbf16, #tpu.memory_space<any>>, %arg6: memref<2048x128xbf16, #tpu.memory_space<any>>, %arg7: memref<8x128xf32, #tpu.memory_space<vmem>>, %arg8: memref<1024x2048xbf16, #tpu.memory_space<vmem>>, %arg9: memref<2048x128xbf16, #tpu.memory_space<vmem>>, %arg10: memref<2x!tpu.dma_semaphore, #tpu.memory_space<semaphore_mem>>) attributes {dimension_semantics = [], scalar_prefetch = 0 : i64, scratch_operands = 3 : i64, tpu.core_type = #tpu.core_type<tc>} {
    %c0_i32 = arith.constant 0 : i32
    %0 = tpu.memref_slice %arg10[%c0_i32] : memref<2x!tpu.dma_semaphore, #tpu.memory_space<semaphore_mem>> -> memref<1x!tpu.dma_semaphore, #tpu.memory_space<semaphore_mem>>
    %1 = tpu.memref_squeeze %0 : memref<1x!tpu.dma_semaphore, #tpu.memory_space<semaphore_mem>> -> memref<!tpu.dma_semaphore, #tpu.memory_space<semaphore_mem>>
    tpu.enqueue_dma source(%arg5 : memref<1024x2048xbf16, #tpu.memory_space<any>>) target(%arg8 : memref<1024x2048xbf16, #tpu.memory_space<vmem>>) target_semaphore(%1 : memref<!tpu.dma_semaphore, #tpu.memory_space<semaphore_mem>>)
    %c1_i32 = arith.constant 1 : i32
    %2 = tpu.memref_slice %arg10[%c1_i32] : memref<2x!tpu.dma_semaphore, #tpu.memory_space<semaphore_mem>> -> memref<1x!tpu.dma_semaphore, #tpu.memory_space<semaphore_mem>>
    %3 = tpu.memref_squeeze %2 : memref<1x!tpu.dma_semaphore, #tpu.memory_space<semaphore_mem>> -> memref<!tpu.dma_semaphore, #tpu.memory_space<semaphore_mem>>
    tpu.enqueue_dma source(%arg6 : memref<2048x128xbf16, #tpu.memory_space<any>>) target(%arg9 : memref<2048x128xbf16, #tpu.memory_space<vmem>>) target_semaphore(%3 : memref<!tpu.dma_semaphore, #tpu.memory_space<semaphore_mem>>)
    %c0 = arith.constant 0 : index
    %c0_0 = arith.constant 0 : index
    %4 = vector.load %arg0[%c0, %c0_0] : memref<8x128xf32, #tpu.memory_space<vmem>>, vector<8x128xf32>
    %c0_1 = arith.constant 0 : index
    %c0_2 = arith.constant 0 : index
    %5 = vector.load %arg2[%c0_1, %c0_2] : memref<128x256xbf16, #tpu.memory_space<vmem>>, vector<128x256xbf16>
    %c0_3 = arith.constant 0 : index
    %c0_4 = arith.constant 0 : index
    %6 = vector.load %arg1[%c0_3, %c0_4] : memref<1x7552xf32, #tpu.memory_space<vmem>>, vector<1x256xf32>
    %7 = arith.truncf %4 : vector<8x128xf32> to vector<8x128xbf16>
    %cst = arith.constant dense<0.000000e+00> : vector<8x256xf32>
    %8 = tpu.matmul %7, %5, %cst {dimension_numbers = #tpu.dot_dimension_numbers<[1], [0], [0], [1], [0, 0, 1, 1], [], []>} : vector<8x128xbf16>, vector<128x256xbf16>, vector<8x256xf32> -> vector<8x256xf32>
    %9 = vector.broadcast %6 : vector<1x256xf32> to vector<8x256xf32>
    %10 = arith.addf %8, %9 : vector<8x256xf32>
    %cst_5 = arith.constant 0.000000e+00 : f32
    %11 = vector.broadcast %cst_5 : f32 to vector<8x256xf32>
    %12 = arith.maximumf %10, %11 : vector<8x256xf32>
    %c0_6 = arith.constant 0 : index
    %c0_7 = arith.constant 0 : index
    %13 = vector.load %arg3[%c0_6, %c0_7] : memref<256x512xbf16, #tpu.memory_space<vmem>>, vector<256x512xbf16>
    %14 = arith.truncf %12 : vector<8x256xf32> to vector<8x256xbf16>
    %cst_8 = arith.constant dense<0.000000e+00> : vector<8x512xf32>
    %15 = tpu.matmul %14, %13, %cst_8 {dimension_numbers = #tpu.dot_dimension_numbers<[1], [0], [0], [1], [0, 0, 1, 1], [], []>} : vector<8x256xbf16>, vector<256x512xbf16>, vector<8x512xf32> -> vector<8x512xf32>
    %c0_9 = arith.constant 0 : index
    %c256 = arith.constant 256 : index
    %16 = vector.load %arg1[%c0_9, %c256] : memref<1x7552xf32, #tpu.memory_space<vmem>>, vector<1x512xf32>
    %c0_10 = arith.constant 0 : index
    %c768 = arith.constant 768 : index
    %17 = vector.load %arg1[%c0_10, %c768] : memref<1x7552xf32, #tpu.memory_space<vmem>>, vector<1x512xf32>
    %cst_11 = arith.constant dense<0.000000e+00> : vector<512xf32>
    %18 = vector.multi_reduction <add>, %15, %cst_11 [0] : vector<8x512xf32> to vector<512xf32>
    %19 = vector.shape_cast %18 : vector<512xf32> to vector<1x512xf32>
    %cst_12 = arith.constant 8.000000e+00 : f32
    %20 = vector.broadcast %cst_12 : f32 to vector<1x512xf32>
    %21 = arith.divf %19, %20 : vector<1x512xf32>
    %22 = vector.broadcast %21 : vector<1x512xf32> to vector<8x512xf32>
    %23 = arith.subf %15, %22 : vector<8x512xf32>
    %24 = arith.mulf %23, %23 : vector<8x512xf32>
    %cst_13 = arith.constant dense<0.000000e+00> : vector<512xf32>
    %25 = vector.multi_reduction <add>, %24, %cst_13 [0] : vector<8x512xf32> to vector<512xf32>
    %26 = vector.shape_cast %25 : vector<512xf32> to vector<1x512xf32>
    %cst_14 = arith.constant 8.000000e+00 : f32
    %27 = vector.broadcast %cst_14 : f32 to vector<1x512xf32>
    %28 = arith.divf %26, %27 : vector<1x512xf32>
    %cst_15 = arith.constant 9.99999974E-6 : f32
    %29 = vector.broadcast %cst_15 : f32 to vector<1x512xf32>
    %30 = arith.addf %28, %29 : vector<1x512xf32>
    %31 = math.rsqrt %30 : vector<1x512xf32>
    %32 = arith.mulf %16, %31 : vector<1x512xf32>
    %33 = vector.broadcast %32 : vector<1x512xf32> to vector<8x512xf32>
    %34 = arith.mulf %23, %33 : vector<8x512xf32>
    %35 = vector.broadcast %17 : vector<1x512xf32> to vector<8x512xf32>
    %36 = arith.addf %34, %35 : vector<8x512xf32>
    %cst_16 = arith.constant 0.000000e+00 : f32
    %37 = vector.broadcast %cst_16 : f32 to vector<8x512xf32>
    %38 = arith.maximumf %36, %37 : vector<8x512xf32>
    %c0_17 = arith.constant 0 : index
    %c0_18 = arith.constant 0 : index
    %39 = vector.load %arg4[%c0_17, %c0_18] : memref<512x1024xbf16, #tpu.memory_space<vmem>>, vector<512x1024xbf16>
    %40 = arith.truncf %38 : vector<8x512xf32> to vector<8x512xbf16>
    %cst_19 = arith.constant dense<0.000000e+00> : vector<8x1024xf32>
    %41 = tpu.matmul %40, %39, %cst_19 {dimension_numbers = #tpu.dot_dimension_numbers<[1], [0], [0], [1], [0, 0, 1, 1], [], []>} : vector<8x512xbf16>, vector<512x1024xbf16>, vector<8x1024xf32> -> vector<8x1024xf32>
    %c0_20 = arith.constant 0 : index
    %c1280 = arith.constant 1280 : index
    %42 = vector.load %arg1[%c0_20, %c1280] : memref<1x7552xf32, #tpu.memory_space<vmem>>, vector<1x1024xf32>
    %c0_21 = arith.constant 0 : index
    %c2304 = arith.constant 2304 : index
    %43 = vector.load %arg1[%c0_21, %c2304] : memref<1x7552xf32, #tpu.memory_space<vmem>>, vector<1x1024xf32>
    %cst_22 = arith.constant dense<0.000000e+00> : vector<1024xf32>
    %44 = vector.multi_reduction <add>, %41, %cst_22 [0] : vector<8x1024xf32> to vector<1024xf32>
    %45 = vector.shape_cast %44 : vector<1024xf32> to vector<1x1024xf32>
    %cst_23 = arith.constant 8.000000e+00 : f32
    %46 = vector.broadcast %cst_23 : f32 to vector<1x1024xf32>
    %47 = arith.divf %45, %46 : vector<1x1024xf32>
    %48 = vector.broadcast %47 : vector<1x1024xf32> to vector<8x1024xf32>
    %49 = arith.subf %41, %48 : vector<8x1024xf32>
    %50 = arith.mulf %49, %49 : vector<8x1024xf32>
    %cst_24 = arith.constant dense<0.000000e+00> : vector<1024xf32>
    %51 = vector.multi_reduction <add>, %50, %cst_24 [0] : vector<8x1024xf32> to vector<1024xf32>
    %52 = vector.shape_cast %51 : vector<1024xf32> to vector<1x1024xf32>
    %cst_25 = arith.constant 8.000000e+00 : f32
    %53 = vector.broadcast %cst_25 : f32 to vector<1x1024xf32>
    %54 = arith.divf %52, %53 : vector<1x1024xf32>
    %cst_26 = arith.constant 9.99999974E-6 : f32
    %55 = vector.broadcast %cst_26 : f32 to vector<1x1024xf32>
    %56 = arith.addf %54, %55 : vector<1x1024xf32>
    %57 = math.rsqrt %56 : vector<1x1024xf32>
    %58 = arith.mulf %42, %57 : vector<1x1024xf32>
    %59 = vector.broadcast %58 : vector<1x1024xf32> to vector<8x1024xf32>
    %60 = arith.mulf %49, %59 : vector<8x1024xf32>
    %61 = vector.broadcast %43 : vector<1x1024xf32> to vector<8x1024xf32>
    %62 = arith.addf %60, %61 : vector<8x1024xf32>
    %cst_27 = arith.constant 0.000000e+00 : f32
    %63 = vector.broadcast %cst_27 : f32 to vector<8x1024xf32>
    %64 = arith.maximumf %62, %63 : vector<8x1024xf32>
    %c0_i32_28 = arith.constant 0 : i32
    %65 = tpu.memref_slice %arg10[%c0_i32_28] : memref<2x!tpu.dma_semaphore, #tpu.memory_space<semaphore_mem>> -> memref<1x!tpu.dma_semaphore, #tpu.memory_space<semaphore_mem>>
    %66 = tpu.memref_squeeze %65 : memref<1x!tpu.dma_semaphore, #tpu.memory_space<semaphore_mem>> -> memref<!tpu.dma_semaphore, #tpu.memory_space<semaphore_mem>>
    tpu.wait_dma2 semaphore(%66 : memref<!tpu.dma_semaphore, #tpu.memory_space<semaphore_mem>>) src(%arg5 : memref<1024x2048xbf16, #tpu.memory_space<any>>) dst(%arg8 : memref<1024x2048xbf16, #tpu.memory_space<vmem>>)
    %c0_29 = arith.constant 0 : index
    %c0_30 = arith.constant 0 : index
    %67 = vector.load %arg8[%c0_29, %c0_30] : memref<1024x2048xbf16, #tpu.memory_space<vmem>>, vector<1024x2048xbf16>
    %68 = arith.truncf %64 : vector<8x1024xf32> to vector<8x1024xbf16>
    %cst_31 = arith.constant dense<0.000000e+00> : vector<8x2048xf32>
    %69 = tpu.matmul %68, %67, %cst_31 {dimension_numbers = #tpu.dot_dimension_numbers<[1], [0], [0], [1], [0, 0, 1, 1], [], []>} : vector<8x1024xbf16>, vector<1024x2048xbf16>, vector<8x2048xf32> -> vector<8x2048xf32>
    %c0_32 = arith.constant 0 : index
    %c3328 = arith.constant 3328 : index
    %70 = vector.load %arg1[%c0_32, %c3328] : memref<1x7552xf32, #tpu.memory_space<vmem>>, vector<1x2048xf32>
    %c0_33 = arith.constant 0 : index
    %c5376 = arith.constant 5376 : index
    %71 = vector.load %arg1[%c0_33, %c5376] : memref<1x7552xf32, #tpu.memory_space<vmem>>, vector<1x2048xf32>
    %cst_34 = arith.constant dense<0.000000e+00> : vector<2048xf32>
    %72 = vector.multi_reduction <add>, %69, %cst_34 [0] : vector<8x2048xf32> to vector<2048xf32>
    %73 = vector.shape_cast %72 : vector<2048xf32> to vector<1x2048xf32>
    %cst_35 = arith.constant 8.000000e+00 : f32
    %74 = vector.broadcast %cst_35 : f32 to vector<1x2048xf32>
    %75 = arith.divf %73, %74 : vector<1x2048xf32>
    %76 = vector.broadcast %75 : vector<1x2048xf32> to vector<8x2048xf32>
    %77 = arith.subf %69, %76 : vector<8x2048xf32>
    %78 = arith.mulf %77, %77 : vector<8x2048xf32>
    %cst_36 = arith.constant dense<0.000000e+00> : vector<2048xf32>
    %79 = vector.multi_reduction <add>, %78, %cst_36 [0] : vector<8x2048xf32> to vector<2048xf32>
    %80 = vector.shape_cast %79 : vector<2048xf32> to vector<1x2048xf32>
    %cst_37 = arith.constant 8.000000e+00 : f32
    %81 = vector.broadcast %cst_37 : f32 to vector<1x2048xf32>
    %82 = arith.divf %80, %81 : vector<1x2048xf32>
    %cst_38 = arith.constant 9.99999974E-6 : f32
    %83 = vector.broadcast %cst_38 : f32 to vector<1x2048xf32>
    %84 = arith.addf %82, %83 : vector<1x2048xf32>
    %85 = math.rsqrt %84 : vector<1x2048xf32>
    %86 = arith.mulf %70, %85 : vector<1x2048xf32>
    %87 = vector.broadcast %86 : vector<1x2048xf32> to vector<8x2048xf32>
    %88 = arith.mulf %77, %87 : vector<8x2048xf32>
    %89 = vector.broadcast %71 : vector<1x2048xf32> to vector<8x2048xf32>
    %90 = arith.addf %88, %89 : vector<8x2048xf32>
    %cst_39 = arith.constant 0.000000e+00 : f32
    %91 = vector.broadcast %cst_39 : f32 to vector<8x2048xf32>
    %92 = arith.maximumf %90, %91 : vector<8x2048xf32>
    %c1_i32_40 = arith.constant 1 : i32
    %93 = tpu.memref_slice %arg10[%c1_i32_40] : memref<2x!tpu.dma_semaphore, #tpu.memory_space<semaphore_mem>> -> memref<1x!tpu.dma_semaphore, #tpu.memory_space<semaphore_mem>>
    %94 = tpu.memref_squeeze %93 : memref<1x!tpu.dma_semaphore, #tpu.memory_space<semaphore_mem>> -> memref<!tpu.dma_semaphore, #tpu.memory_space<semaphore_mem>>
    tpu.wait_dma2 semaphore(%94 : memref<!tpu.dma_semaphore, #tpu.memory_space<semaphore_mem>>) src(%arg6 : memref<2048x128xbf16, #tpu.memory_space<any>>) dst(%arg9 : memref<2048x128xbf16, #tpu.memory_space<vmem>>)
    %c0_41 = arith.constant 0 : index
    %c0_42 = arith.constant 0 : index
    %95 = vector.load %arg9[%c0_41, %c0_42] : memref<2048x128xbf16, #tpu.memory_space<vmem>>, vector<2048x128xbf16>
    %c0_43 = arith.constant 0 : index
    %c7424 = arith.constant 7424 : index
    %96 = vector.load %arg1[%c0_43, %c7424] : memref<1x7552xf32, #tpu.memory_space<vmem>>, vector<1x128xf32>
    %97 = arith.truncf %92 : vector<8x2048xf32> to vector<8x2048xbf16>
    %cst_44 = arith.constant dense<0.000000e+00> : vector<8x128xf32>
    %98 = tpu.matmul %97, %95, %cst_44 {dimension_numbers = #tpu.dot_dimension_numbers<[1], [0], [0], [1], [0, 0, 1, 1], [], []>} : vector<8x2048xbf16>, vector<2048x128xbf16>, vector<8x128xf32> -> vector<8x128xf32>
    %99 = vector.broadcast %96 : vector<1x128xf32> to vector<8x128xf32>
    %100 = arith.addf %98, %99 : vector<8x128xf32>
    %101 = math.tanh %100 : vector<8x128xf32>
    %c0_45 = arith.constant 0 : index
    %c0_46 = arith.constant 0 : index
    %102 = vector.load %arg7[%c0_45, %c0_46] : memref<8x128xf32, #tpu.memory_space<vmem>>, vector<8x128xf32>
    tpu.vector_store %arg7[%c0_45, %c0_46], %101 {strides = array<i32>} : memref<8x128xf32, #tpu.memory_space<vmem>>, vector<8x128xf32>,
    return
  }
}

</mosaic_0001>

<llo_original>
// kernel: tpu_custom_call.1
$region0: #{tpu_custom_call.1}
  #allocation0 [shape = 'u32[]', space=smem, size = 0x4, offset = 0x4, fixed_abs, tag = 'smem constant byte address 0x4 - core index']
  #allocation1 [shape = 'u32[72,128]{1,0:T(1,128)}', space=vmem, size = 0x9000, scoped, tag = 'internal scratch']
  #allocation2 [shape = 'bf16[1024,2048]{1,0:T(8,128)(2,1)}', space=vmem, size = 0x400000, scoped, tag = 'scratch operand']
  #allocation3 [shape = 'bf16[2048,128]{1,0:T(8,128)(2,1)}', space=vmem, size = 0x80000, scoped, tag = 'scratch operand']
  #allocation4 [shape = 's32[2]{0}', space=sflag, size = 0x8, scoped, tag = 'scratch operand']
  #allocation15 [shape = 's32[]', space=sflag, size = 0x4, offset = 0, fixed_abs, tag = 'sflag constant byte address 0x0 - dummy sync flag']
  #allocation16 [shape = 's32[]', space=sflag, size = 0x4, offset = 0, fixed_abs, tag = 'sflag constant byte address 0x0 - dummy sync flag']
  #allocation17 [shape = 'u32[]', space=smem, size = 0x4, offset = 0x44, fixed_abs, tag = 'smem constant byte address 0x44 - assertion arg 0']
  #allocation18 [shape = 'u32[]', space=smem, size = 0x4, offset = 0x48, fixed_abs, tag = 'smem constant byte address 0x48 - assertion arg 1']
  #allocation19 [shape = 's32[]', space=sflag, size = 0x4, offset = 0, fixed_abs, tag = 'sflag constant byte address 0x0 - dummy sync flag']
  #allocation20 [shape = 's32[]', space=sflag, size = 0x4, offset = 0, fixed_abs, tag = 'sflag constant byte address 0x0 - dummy sync flag']
  %s0 = inlined_call_operand.hbm [shape: f32[8,128], index: 0, kind: input, shape index: {}]
  %s1 = inlined_call_operand.hbm [shape: f32[1,7552], index: 1, kind: input, shape index: {}]
  %s2 = inlined_call_operand.hbm [shape: bf16[128,256], index: 2, kind: input, shape index: {}]
  %s3 = inlined_call_operand.hbm [shape: bf16[256,512], index: 3, kind: input, shape index: {}]
  %s4 = inlined_call_operand.hbm [shape: bf16[512,1024], index: 4, kind: input, shape index: {}]
  %s5 = inlined_call_operand.hbm [shape: bf16[1024,2048], index: 5, kind: input, shape index: {}]
  %s6 = inlined_call_operand.hbm [shape: bf16[2048,128], index: 6, kind: input, shape index: {}]
  %s7 = inlined_call_operand.hbm [shape: f32[8,128], index: 7, kind: output, shape index: {}]
  %s8 = sld [smem:[#allocation0]]
  $region58: #{tpu_custom_call.1} parent=0
    _
  %s10 = ssub.s32 1, %s8
  %s11 = scalar_select 0, %s10, %s8
  $region1: #{tpu_custom_call.1} parent=0
    #allocation5 [shape = 'u8[4096]{0}', space=vmem, size = 0x1000, scoped, tag = 'input window, operand 0, single buffered']
    #allocation6 [shape = 's32[1]{0}', space=sflag, size = 0x4, scoped, tag = 'scoped memory for tpu_custom_call.1']
    #allocation7 [shape = 's32[1]{0}', space=sflag, size = 0x4, scoped, tag = 'scoped memory for tpu_custom_call.1']
    #allocation8 [shape = 'u8[30208]{0}', space=vmem, size = 0x7800, scoped, tag = 'input window, operand 1, single buffered']
    #allocation9 [shape = 's32[1]{0}', space=sflag, size = 0x4, scoped, tag = 'scoped memory for tpu_custom_call.1']
    #allocation10 [shape = 'u8[65536]{0}', space=vmem, size = 0x10000, scoped, tag = 'input window, operand 2, single buffered']
    #allocation11 [shape = 'u8[262144]{0}', space=vmem, size = 0x40000, scoped, tag = 'input window, operand 3, single buffered']
    #allocation12 [shape = 's32[1]{0}', space=sflag, size = 0x4, scoped, tag = 'scoped memory for tpu_custom_call.1']
    #allocation13 [shape = 'u8[1048576]{0}', space=vmem, size = 0x100000, scoped, tag = 'input window, operand 4, single buffered']
    #allocation14 [shape = 'u8[4096]{0}', space=vmem, size = 0x1000, scoped, tag = 'output window, operand 0, single buffered']
    %12 = vsyncpa [#allocation6], 0
    %13 = vsyncpa [#allocation9], 0
    %14 = vsyncpa [#allocation12], 0
    %15 = vsyncpa [#allocation7], 0
    // Predicated region
    $region2: #{tpu_custom_call.1} parent=1 // pred_check
      _
    $region3: #{tpu_custom_call.1} parent=1 // pred_check_branch
      %17 = sbr.rel (0) target = $region5
    $region4: #{tpu_custom_call.1} parent=1 // pred_region
      %19 = vsyncadd [#allocation6], 0
      %s21 = sshll.u32 %s0, 4
      %s22 = int_to_ptr.hbm [resolvable:$true] %s21
      %s23 = sshll.u32 [#allocation5], 4
      %s24 = int_to_ptr.vmem [resolvable:$true] %s23
      %26 = dma.hbm_to_vmem [thread:$0]  %s22, 128, %s24, [#allocation6]
    $region5: #{tpu_custom_call.1} parent=1 // pred_fallthru
      _
    // Predicated region
    $region6: #{tpu_custom_call.1} parent=1 // pred_check
      _
    $region7: #{tpu_custom_call.1} parent=1 // pred_check_branch
      %28 = sbr.rel (0) target = $region9
    $region8: #{tpu_custom_call.1} parent=1 // pred_region
      %30 = vsyncadd [#allocation9], 0
      %s32 = sshll.u32 %s1, 4
      %s33 = int_to_ptr.hbm [resolvable:$true] %s32
      %s34 = sshll.u32 [#allocation8], 4
      %s35 = int_to_ptr.vmem [resolvable:$true] %s34
      %37 = dma.hbm_to_vmem [thread:$0]  %s33, 944, %s35, [#allocation9]
    $region9: #{tpu_custom_call.1} parent=1 // pred_fallthru
      _
    // Predicated region
    $region10: #{tpu_custom_call.1} parent=1 // pred_check
      _
    $region11: #{tpu_custom_call.1} parent=1 // pred_check_branch
      %39 = sbr.rel (0) target = $region13
    $region12: #{tpu_custom_call.1} parent=1 // pred_region
      %41 = vsyncadd [#allocation9], 0
      %s42 = sshll.u32 %s2, 4
      %s43 = int_to_ptr.hbm [resolvable:$true] %s42
      %s44 = sshll.u32 [#allocation10], 4
      %s45 = int_to_ptr.vmem [resolvable:$true] %s44
      %50 = dma.hbm_to_vmem [thread:$0]  %s43, 2048, %s45, [#allocation9], 128, 128, 8
    $region13: #{tpu_custom_call.1} parent=1 // pred_fallthru
      _
    // Predicated region
    $region14: #{tpu_custom_call.1} parent=1 // pred_check
      _
    $region15: #{tpu_custom_call.1} parent=1 // pred_check_branch
      %52 = sbr.rel (0) target = $region17
    $region16: #{tpu_custom_call.1} parent=1 // pred_region
      %54 = vsyncadd [#allocation12], 0
      %s55 = sshll.u32 %s3, 4
      %s56 = int_to_ptr.hbm [resolvable:$true] %s55
      %s57 = sshll.u32 [#allocation11], 4
      %s58 = int_to_ptr.vmem [resolvable:$true] %s57
      %63 = dma.hbm_to_vmem [thread:$0]  %s56, 8192, %s58, [#allocation12], 256, 256, 16
    $region17: #{tpu_custom_call.1} parent=1 // pred_fallthru
      _
    // Predicated region
    $region18: #{tpu_custom_call.1} parent=1 // pred_check
      _
    $region19: #{tpu_custom_call.1} parent=1 // pred_check_branch
      %65 = sbr.rel (0) target = $region21
    $region20: #{tpu_custom_call.1} parent=1 // pred_region
      %67 = vsyncadd [#allocation12], 0
      %s68 = sshll.u32 %s4, 4
      %s69 = int_to_ptr.hbm [resolvable:$true] %s68
      %s70 = sshll.u32 [#allocation13], 4
      %s71 = int_to_ptr.vmem [resolvable:$true] %s70
      %76 = dma.hbm_to_vmem [thread:$0]  %s69, 32768, %s71, [#allocation12], 512, 512, 32
    $region21: #{tpu_custom_call.1} parent=1 // pred_fallthru
      _
    // Predicated region
    $region22: #{tpu_custom_call.1} parent=1 // pred_check
      _
    $region23: #{tpu_custom_call.1} parent=1 // pred_check_branch
      %78 = sbr.rel (0) target = $region25
    $region24: #{tpu_custom_call.1} parent=1 // pred_region
      %80 = dma.done [#allocation6], 128
    $region25: #{tpu_custom_call.1} parent=1 // pred_fallthru
      _
    // Predicated region
    $region26: #{tpu_custom_call.1} parent=1 // pred_check
      _
    $region27: #{tpu_custom_call.1} parent=1 // pred_check_branch
      %82 = sbr.rel (0) target = $region29
    $region28: #{tpu_custom_call.1} parent=1 // pred_region
      %84 = dma.done [#allocation9], 944
    $region29: #{tpu_custom_call.1} parent=1 // pred_fallthru
      _
    // Predicated region
    $region30: #{tpu_custom_call.1} parent=1 // pred_check
      _
    $region31: #{tpu_custom_call.1} parent=1 // pred_check_branch
      %86 = sbr.rel (0) target = $region33
    $region32: #{tpu_custom_call.1} parent=1 // pred_region
      %88 = dma.done [#allocation9], 2048
    $region33: #{tpu_custom_call.1} parent=1 // pred_fallthru
      _
    // Predicated region
    $region34: #{tpu_custom_call.1} parent=1 // pred_check
      _
    $region35: #{tpu_custom_call.1} parent=1 // pred_check_branch
      %90 = sbr.rel (0) target = $region37
    $region36: #{tpu_custom_call.1} parent=1 // pred_region
      %92 = dma.done [#allocation12], 8192
    $region37: #{tpu_custom_call.1} parent=1 // pred_fallthru
      _
    // Predicated region
    $region38: #{tpu_custom_call.1} parent=1 // pred_check
      _
    $region39: #{tpu_custom_call.1} parent=1 // pred_check_branch
      %94 = sbr.rel (0) target = $region41
    $region40: #{tpu_custom_call.1} parent=1 // pred_region
      %96 = dma.done [#allocation12], 32768
    $region41: #{tpu_custom_call.1} parent=1 // pred_fallthru
      _
    // Predicated region
    $region42: #{tpu_custom_call.1} parent=1 // pred_check
      _
    $region43: #{tpu_custom_call.1} parent=1 // pred_check_branch
      %98 = sbr.rel target = $region45
    $region44: #{tpu_custom_call.1} parent=1 // pred_region
      %99 = sst [smem:[#allocation17]] [#allocation16]
      %100 = sst [smem:[#allocation18]] [#allocation15]
    $region45: #{tpu_custom_call.1} parent=1 // pred_fallthru
      _
    %102 = shalt.err (0)
    %s104 = sshll.u32 %s5, 4
    %s105 = int_to_ptr.hbm [resolvable:$true] %s104
    %s106 = sshll.u32 [#allocation2], 4
    %s107 = int_to_ptr.vmem [resolvable:$true] %s106
    %109 = dma.hbm_to_vmem [thread:$0]  %s105, 131072, %s107, [#allocation4]
    %s110 = scalar_lea.sflag [#allocation4], 1
    // Predicated region
    $region46: #{tpu_custom_call.1} parent=1 // pred_check
      _
    $region47: #{tpu_custom_call.1} parent=1 // pred_check_branch
      %112 = sbr.rel target = $region49
    $region48: #{tpu_custom_call.1} parent=1 // pred_region
      %113 = sst [smem:[#allocation17]] [#allocation20]
      %114 = sst [smem:[#allocation18]] [#allocation19]
    $region49: #{tpu_custom_call.1} parent=1 // pred_fallthru
      _
    %116 = shalt.err (0)
    %s118 = sshll.u32 %s6, 4
    %s119 = int_to_ptr.hbm [resolvable:$true] %s118
    %s120 = sshll.u32 [#allocation3], 4
    %s121 = int_to_ptr.vmem [resolvable:$true] %s120
    %123 = dma.hbm_to_vmem [thread:$0]  %s119, 16384, %s121, %s110
    %v124 = vld [vmem:[#allocation5] sm:$0xff]
    %v125 = vld [vmem:[#allocation10] sm:$0xff]
    %v126 = vld [vmem:[#allocation10 + $0x8] sm:$0xff]
    %v127 = vld [vmem:[#allocation10 + $0x10] sm:$0xff]
    %v128 = vld [vmem:[#allocation10 + $0x18] sm:$0xff]
    %v129 = vld [vmem:[#allocation10 + $0x20] sm:$0xff]
    %v130 = vld [vmem:[#allocation10 + $0x28] sm:$0xff]
    %v131 = vld [vmem:[#allocation10 + $0x30] sm:$0xff]
    %v132 = vld [vmem:[#allocation10 + $0x38] sm:$0xff]
    %v133 = vld [vmem:[#allocation10 + $0x40] sm:$0xff]
    %v134 = vld [vmem:[#allocation10 + $0x48] sm:$0xff]
    %v135 = vld [vmem:[#allocation10 + $0x50] sm:$0xff]
    %v136 = vld [vmem:[#allocation10 + $0x58] sm:$0xff]
    %v137 = vld [vmem:[#allocation10 + $0x60] sm:$0xff]
    %v138 = vld [vmem:[#allocation10 + $0x68] sm:$0xff]
    %v139 = vld [vmem:[#allocation10 + $0x70] sm:$0xff]
    %v140 = vld [vmem:[#allocation10 + $0x78] sm:$0xff]
    %v141 = vld [vmem:[#allocation8] sm:$0x3]
    %v142 = vpack.c.bf16 %v124, %v124
    %v144 = vperm.slane %v141, 0
    %v145 = vperm.slane %v141, 1
    %v164 = vunpack.c.l.b16 %v125
    %v165 = vunpack.c.h.b16 %v125
    %v166 = vunpack.c.l.b16 %v126
    %v167 = vunpack.c.h.b16 %v126
    %v168 = vunpack.c.l.b16 %v127
    %v169 = vunpack.c.h.b16 %v127
    %v170 = vunpack.c.l.b16 %v128
    %v171 = vunpack.c.h.b16 %v128
    %v172 = vunpack.c.l.b16 %v129
    %v173 = vunpack.c.h.b16 %v129
    %v174 = vunpack.c.l.b16 %v130
    %v175 = vunpack.c.h.b16 %v130
    %v176 = vunpack.c.l.b16 %v131
    %v177 = vunpack.c.h.b16 %v131
    %v178 = vunpack.c.l.b16 %v132
    %v179 = vunpack.c.h.b16 %v132
    %v180 = vunpack.c.l.b16 %v133
    %v181 = vunpack.c.h.b16 %v133
    %v182 = vunpack.c.l.b16 %v134
    %v183 = vunpack.c.h.b16 %v134
    %v184 = vunpack.c.l.b16 %v135
    %v185 = vunpack.c.h.b16 %v135
    %v186 = vunpack.c.l.b16 %v136
    %v187 = vunpack.c.h.b16 %v136
    %v188 = vunpack.c.l.b16 %v137
    %v189 = vunpack.c.h.b16 %v137
    %v190 = vunpack.c.l.b16 %v138
    %v191 = vunpack.c.h.b16 %v138
    %v192 = vunpack.c.l.b16 %v139
    %v193 = vunpack.c.h.b16 %v139
    %v194 = vunpack.c.l.b16 %v140
    %v195 = vunpack.c.h.b16 %v140
    %v196 = vpack.c.b16 %v166, %v164
    %v197 = vpack.c.b16 %v167, %v165
    %v198 = vpack.c.b16 %v170, %v168
    %v199 = vpack.c.b16 %v171, %v169
    %v200 = vpack.c.b16 %v174, %v172
    %v201 = vpack.c.b16 %v175, %v173
    %v202 = vpack.c.b16 %v178, %v176
    %v203 = vpack.c.b16 %v179, %v177
    %v204 = vpack.c.b16 %v182, %v180
    %v205 = vpack.c.b16 %v183, %v181
    %v206 = vpack.c.b16 %v186, %v184
    %v207 = vpack.c.b16 %v187, %v185
    %v208 = vpack.c.b16 %v190, %v188
    %v209 = vpack.c.b16 %v191, %v189
    %v210 = vpack.c.b16 %v194, %v192
    %v211 = vpack.c.b16 %v195, %v193
    %228 = vmatpush.bf16.msra.mxu0 %v210
    %229 = vmatpush.bf16.msra.mxu0 %v208
    %230 = vmatpush.bf16.msra.mxu0 %v206
    %231 = vmatpush.bf16.msra.mxu0 %v204
    %232 = vmatpush.bf16.msra.mxu0 %v202
    %233 = vmatpush.bf16.msra.mxu0 %v200
    %234 = vmatpush.bf16.msra.mxu0 %v198
    %235 = vmatpush.bf16.msra.mxu0 %v196
    %236 = vmatmul.bf16.gmra.mxu0 %v142
    %v237 = vpop.f32.mrf.mxu0
    %v238 = vadd.f32 %v144, %v237
    %v239 = vpop.f32.mrf.mxu0
    %240 = vdwg.mxu0
    %241 = vmatpush.bf16.msra.mxu0 %v211
    %242 = vmatpush.bf16.msra.mxu0 %v209
    %243 = vmatpush.bf16.msra.mxu0 %v207
    %244 = vmatpush.bf16.msra.mxu0 %v205
    %245 = vmatpush.bf16.msra.mxu0 %v203
    %246 = vmatpush.bf16.msra.mxu0 %v201
    %247 = vmatpush.bf16.msra.mxu0 %v199
    %248 = vmatpush.bf16.msra.mxu0 %v197
    %249 = vmatmul.bf16.gmra.mxu0 %v142
    %v250 = vpop.f32.mrf.mxu0
    %v251 = vadd.f32 %v145, %v250
    %v252 = vpop.f32.mrf.mxu0
    %253 = vdwg.mxu0
    %v254 = vmax.f32 %v238, 0.0
    %v255 = vmax.f32 %v251, 0.0
    %v256 = vld [vmem:[#allocation11] sm:$0xff]
    %v257 = vld [vmem:[#allocation11 + $0x8] sm:$0xff]
    %v258 = vld [vmem:[#allocation11 + $0x10] sm:$0xff]
    %v259 = vld [vmem:[#allocation11 + $0x18] sm:$0xff]
    %v260 = vld [vmem:[#allocation11 + $0x20] sm:$0xff]
    %v261 = vld [vmem:[#allocation11 + $0x28] sm:$0xff]
    %v262 = vld [vmem:[#allocation11 + $0x30] sm:$0xff]
    %v263 = vld [vmem:[#allocation11 + $0x38] sm:$0xff]
    %v264 = vld [vmem:[#allocation11 + $0x40] sm:$0xff]
    %v265 = vld [vmem:[#allocation11 + $0x48] sm:$0xff]
    %v266 = vld [vmem:[#allocation11 + $0x50] sm:$0xff]
    %v267 = vld [vmem:[#allocation11 + $0x58] sm:$0xff]
    %v268 = vld [vmem:[#allocation11 + $0x60] sm:$0xff]
    %v269 = vld [vmem:[#allocation11 + $0x68] sm:$0xff]
    %v270 = vld [vmem:[#allocation11 + $0x70] sm:$0xff]
    %v271 = vld [vmem:[#allocation11 + $0x78] sm:$0xff]
    %v272 = vld [vmem:[#allocation11 + $0x80] sm:$0xff]
    %v273 = vld [vmem:[#allocation11 + $0x88] sm:$0xff]
    %v274 = vld [vmem:[#allocation11 + $0x90] sm:$0xff]
    %v275 = vld [vmem:[#allocation11 + $0x98] sm:$0xff]
    %v276 = vld [vmem:[#allocation11 + $0xa0] sm:$0xff]
    %v277 = vld [vmem:[#allocation11 + $0xa8] sm:$0xff]
    %v278 = vld [vmem:[#allocation11 + $0xb0] sm:$0xff]
    %v279 = vld [vmem:[#allocation11 + $0xb8] sm:$0xff]
    %v280 = vld [vmem:[#allocation11 + $0xc0] sm:$0xff]
    %v281 = vld [vmem:[#allocation11 + $0xc8] sm:$0xff]
    %v282 = vld [vmem:[#allocation11 + $0xd0] sm:$0xff]
    %v283 = vld [vmem:[#allocation11 + $0xd8] sm:$0xff]
    %v284 = vld [vmem:[#allocation11 + $0xe0] sm:$0xff]
    %v285 = vld [vmem:[#allocation11 + $0xe8] sm:$0xff]
    %v286 = vld [vmem:[#allocation11 + $0xf0] sm:$0xff]
    %v287 = vld [vmem:[#allocation11 + $0xf8] sm:$0xff]
    %v288 = vld [vmem:[#allocation11 + $0x100] sm:$0xff]
    %v289 = vld [vmem:[#allocation11 + $0x108] sm:$0xff]
    %v290 = vld [vmem:[#allocation11 + $0x110] sm:$0xff]
    %v291 = vld [vmem:[#allocation11 + $0x118] sm:$0xff]
    %v292 = vld [vmem:[#allocation11 + $0x120] sm:$0xff]
    %v293 = vld [vmem:[#allocation11 + $0x128] sm:$0xff]
    %v294 = vld [vmem:[#allocation11 + $0x130] sm:$0xff]
    %v295 = vld [vmem:[#allocation11 + $0x138] sm:$0xff]
    %v296 = vld [vmem:[#allocation11 + $0x140] sm:$0xff]
    %v297 = vld [vmem:[#allocation11 + $0x148] sm:$0xff]
    %v298 = vld [vmem:[#allocation11 + $0x150] sm:$0xff]
    %v299 = vld [vmem:[#allocation11 + $0x158] sm:$0xff]
    %v300 = vld [vmem:[#allocation11 + $0x160] sm:$0xff]
    %v301 = vld [vmem:[#allocation11 + $0x168] sm:$0xff]
    %v302 = vld [vmem:[#allocation11 + $0x170] sm:$0xff]
    %v303 = vld [vmem:[#allocation11 + $0x178] sm:$0xff]
    %v304 = vld [vmem:[#allocation11 + $0x180] sm:$0xff]
    %v305 = vld [vmem:[#allocation11 + $0x188] sm:$0xff]
    %v306 = vld [vmem:[#allocation11 + $0x190] sm:$0xff]
    %v307 = vld [vmem:[#allocation11 + $0x198] sm:$0xff]
    %v308 = vld [vmem:[#allocation11 + $0x1a0] sm:$0xff]
    %v309 = vld [vmem:[#allocation11 + $0x1a8] sm:$0xff]
    %v310 = vld [vmem:[#allocation11 + $0x1b0] sm:$0xff]
    %v311 = vld [vmem:[#allocation11 + $0x1b8] sm:$0xff]
    %v312 = vld [vmem:[#allocation11 + $0x1c0] sm:$0xff]
    %v313 = vld [vmem:[#allocation11 + $0x1c8] sm:$0xff]
    %v314 = vld [vmem:[#allocation11 + $0x1d0] sm:$0xff]
    %v315 = vld [vmem:[#allocation11 + $0x1d8] sm:$0xff]
    %v316 = vld [vmem:[#allocation11 + $0x1e0] sm:$0xff]
    %v317 = vld [vmem:[#allocation11 + $0x1e8] sm:$0xff]
    %v318 = vld [vmem:[#allocation11 + $0x1f0] sm:$0xff]
    %v319 = vld [vmem:[#allocation11 + $0x1f8] sm:$0xff]
    %v320 = vpack.c.bf16 %v254, %v254
    %v321 = vpack.c.bf16 %v255, %v255
    %v386 = vunpack.c.l.b16 %v256
    %v387 = vunpack.c.h.b16 %v256
    %v388 = vunpack.c.l.b16 %v257
    %v389 = vunpack.c.h.b16 %v257
    %v390 = vunpack.c.l.b16 %v258
    %v391 = vunpack.c.h.b16 %v258
    %v392 = vunpack.c.l.b16 %v259
    %v393 = vunpack.c.h.b16 %v259
    %v394 = vunpack.c.l.b16 %v260
    %v395 = vunpack.c.h.b16 %v260
    %v396 = vunpack.c.l.b16 %v261
    %v397 = vunpack.c.h.b16 %v261
    %v398 = vunpack.c.l.b16 %v262
    %v399 = vunpack.c.h.b16 %v262
    %v400 = vunpack.c.l.b16 %v263
    %v401 = vunpack.c.h.b16 %v263
    %v402 = vunpack.c.l.b16 %v264
    %v403 = vunpack.c.h.b16 %v264
    %v404 = vunpack.c.l.b16 %v265
    %v405 = vunpack.c.h.b16 %v265
    %v406 = vunpack.c.l.b16 %v266
    %v407 = vunpack.c.h.b16 %v266
    %v408 = vunpack.c.l.b16 %v267
    %v409 = vunpack.c.h.b16 %v267
    %v410 = vunpack.c.l.b16 %v268
    %v411 = vunpack.c.h.b16 %v268
    %v412 = vunpack.c.l.b16 %v269
    %v413 = vunpack.c.h.b16 %v269
    %v414 = vunpack.c.l.b16 %v270
    %v415 = vunpack.c.h.b16 %v270
    %v416 = vunpack.c.l.b16 %v271
    %v417 = vunpack.c.h.b16 %v271
    %v418 = vunpack.c.l.b16 %v272
    %v419 = vunpack.c.h.b16 %v272
    %v420 = vunpack.c.l.b16 %v273
    %v421 = vunpack.c.h.b16 %v273
    %v422 = vunpack.c.l.b16 %v274
    %v423 = vunpack.c.h.b16 %v274
    %v424 = vunpack.c.l.b16 %v275
    %v425 = vunpack.c.h.b16 %v275
    %v426 = vunpack.c.l.b16 %v276
    %v427 = vunpack.c.h.b16 %v276
    %v428 = vunpack.c.l.b16 %v277
    %v429 = vunpack.c.h.b16 %v277
    %v430 = vunpack.c.l.b16 %v278
    %v431 = vunpack.c.h.b16 %v278
    %v432 = vunpack.c.l.b16 %v279
    %v433 = vunpack.c.h.b16 %v279
    %v434 = vunpack.c.l.b16 %v280
    %v435 = vunpack.c.h.b16 %v280
    %v436 = vunpack.c.l.b16 %v281
    %v437 = vunpack.c.h.b16 %v281
    %v438 = vunpack.c.l.b16 %v282
    %v439 = vunpack.c.h.b16 %v282
    %v440 = vunpack.c.l.b16 %v283
    %v441 = vunpack.c.h.b16 %v283
    %v442 = vunpack.c.l.b16 %v284
    %v443 = vunpack.c.h.b16 %v284
    %v444 = vunpack.c.l.b16 %v285
    %v445 = vunpack.c.h.b16 %v285
    %v446 = vunpack.c.l.b16 %v286
    %v447 = vunpack.c.h.b16 %v286
    %v448 = vunpack.c.l.b16 %v287
    %v449 = vunpack.c.h.b16 %v287
    %v450 = vunpack.c.l.b16 %v288
    %v451 = vunpack.c.h.b16 %v288
    %v452 = vunpack.c.l.b16 %v289
    %v453 = vunpack.c.h.b16 %v289
    %v454 = vunpack.c.l.b16 %v290
    %v455 = vunpack.c.h.b16 %v290
    %v456 = vunpack.c.l.b16 %v291
    %v457 = vunpack.c.h.b16 %v291
    %v458 = vunpack.c.l.b16 %v292
    %v459 = vunpack.c.h.b16 %v292
    %v460 = vunpack.c.l.b16 %v293
    %v461 = vunpack.c.h.b16 %v293
    %v462 = vunpack.c.l.b16 %v294
    %v463 = vunpack.c.h.b16 %v294
    %v464 = vunpack.c.l.b16 %v295
    %v465 = vunpack.c.h.b16 %v295
    %v466 = vunpack.c.l.b16 %v296
    %v467 = vunpack.c.h.b16 %v296
    %v468 = vunpack.c.l.b16 %v297
    %v469 = vunpack.c.h.b16 %v297
    %v470 = vunpack.c.l.b16 %v298
    %v471 = vunpack.c.h.b16 %v298
    %v472 = vunpack.c.l.b16 %v299
    %v473 = vunpack.c.h.b16 %v299
    %v474 = vunpack.c.l.b16 %v300
    %v475 = vunpack.c.h.b16 %v300
    %v476 = vunpack.c.l.b16 %v301
    %v477 = vunpack.c.h.b16 %v301
    %v478 = vunpack.c.l.b16 %v302
    %v479 = vunpack.c.h.b16 %v302
    %v480 = vunpack.c.l.b16 %v303
    %v481 = vunpack.c.h.b16 %v303
    %v482 = vunpack.c.l.b16 %v304
    %v483 = vunpack.c.h.b16 %v304
    %v484 = vunpack.c.l.b16 %v305
    %v485 = vunpack.c.h.b16 %v305
    %v486 = vunpack.c.l.b16 %v306
    %v487 = vunpack.c.h.b16 %v306
    %v488 = vunpack.c.l.b16 %v307
    %v489 = vunpack.c.h.b16 %v307
    %v490 = vunpack.c.l.b16 %v308
    %v491 = vunpack.c.h.b16 %v308
    %v492 = vunpack.c.l.b16 %v309
    %v493 = vunpack.c.h.b16 %v309
    %v494 = vunpack.c.l.b16 %v310
    %v495 = vunpack.c.h.b16 %v310
    %v496 = vunpack.c.l.b16 %v311
    %v497 = vunpack.c.h.b16 %v311
    %v498 = vunpack.c.l.b16 %v312
    %v499 = vunpack.c.h.b16 %v312
    %v500 = vunpack.c.l.b16 %v313
    %v501 = vunpack.c.h.b16 %v313
    %v502 = vunpack.c.l.b16 %v314
    %v503 = vunpack.c.h.b16 %v314
    %v504 = vunpack.c.l.b16 %v315
    %v505 = vunpack.c.h.b16 %v315
    %v506 = vunpack.c.l.b16 %v316
    %v507 = vunpack.c.h.b16 %v316
    %v508 = vunpack.c.l.b16 %v317
    %v509 = vunpack.c.h.b16 %v317
    %v510 = vunpack.c.l.b16 %v318
    %v511 = vunpack.c.h.b16 %v318
    %v512 = vunpack.c.l.b16 %v319
    %v513 = vunpack.c.h.b16 %v319
    %v514 = vpack.c.b16 %v390, %v386
    %v515 = vpack.c.b16 %v391, %v387
    %v516 = vpack.c.b16 %v392, %v388
    %v517 = vpack.c.b16 %v393, %v389
    %v518 = vpack.c.b16 %v398, %v394
    %v519 = vpack.c.b16 %v399, %v395
    %v520 = vpack.c.b16 %v400, %v396
    %v521 = vpack.c.b16 %v401, %v397
    %v522 = vpack.c.b16 %v406, %v402
    %v523 = vpack.c.b16 %v407, %v403
    %v524 = vpack.c.b16 %v408, %v404
    %v525 = vpack.c.b16 %v409, %v405
    %v526 = vpack.c.b16 %v414, %v410
    %v527 = vpack.c.b16 %v415, %v411
    %v528 = vpack.c.b16 %v416, %v412
    %v529 = vpack.c.b16 %v417, %v413
    %v530 = vpack.c.b16 %v422, %v418
    %v531 = vpack.c.b16 %v423, %v419
    %v532 = vpack.c.b16 %v424, %v420
    %v533 = vpack.c.b16 %v425, %v421
    %v534 = vpack.c.b16 %v430, %v426
    %v535 = vpack.c.b16 %v431, %v427
    %v536 = vpack.c.b16 %v432, %v428
    %v537 = vpack.c.b16 %v433, %v429
    %v538 = vpack.c.b16 %v438, %v434
    %v539 = vpack.c.b16 %v439, %v435
    %v540 = vpack.c.b16 %v440, %v436
    %v541 = vpack.c.b16 %v441, %v437
    %v542 = vpack.c.b16 %v446, %v442
    %v543 = vpack.c.b16 %v447, %v443
    %v544 = vpack.c.b16 %v448, %v444
    %v545 = vpack.c.b16 %v449, %v445
    %v546 = vpack.c.b16 %v454, %v450
    %v547 = vpack.c.b16 %v455, %v451
    %v548 = vpack.c.b16 %v456, %v452
    %v549 = vpack.c.b16 %v457, %v453
    %v550 = vpack.c.b16 %v462, %v458
    %v551 = vpack.c.b16 %v463, %v459
    %v552 = vpack.c.b16 %v464, %v460
    %v553 = vpack.c.b16 %v465, %v461
    %v554 = vpack.c.b16 %v470, %v466
    %v555 = vpack.c.b16 %v471, %v467
    %v556 = vpack.c.b16 %v472, %v468
    %v557 = vpack.c.b16 %v473, %v469
    %v558 = vpack.c.b16 %v478, %v474
    %v559 = vpack.c.b16 %v479, %v475
    %v560 = vpack.c.b16 %v480, %v476
    %v561 = vpack.c.b16 %v481, %v477
    %v562 = vpack.c.b16 %v486, %v482
    %v563 = vpack.c.b16 %v487, %v483
    %v564 = vpack.c.b16 %v488, %v484
    %v565 = vpack.c.b16 %v489, %v485
    %v566 = vpack.c.b16 %v494, %v490
    %v567 = vpack.c.b16 %v495, %v491
    %v568 = vpack.c.b16 %v496, %v492
    %v569 = vpack.c.b16 %v497, %v493
    %v570 = vpack.c.b16 %v502, %v498
    %v571 = vpack.c.b16 %v503, %v499
    %v572 = vpack.c.b16 %v504, %v500
    %v573 = vpack.c.b16 %v505, %v501
    %v574 = vpack.c.b16 %v510, %v506
    %v575 = vpack.c.b16 %v511, %v507
    %v576 = vpack.c.b16 %v512, %v508
    %v577 = vpack.c.b16 %v513, %v509
    %642 = vmatpush.bf16.msra.mxu0 %v542
    %643 = vmatpush.bf16.msra.mxu0 %v538
    %644 = vmatpush.bf16.msra.mxu0 %v534
    %645 = vmatpush.bf16.msra.mxu0 %v530
    %646 = vmatpush.bf16.msra.mxu0 %v526
    %647 = vmatpush.bf16.msra.mxu0 %v522
    %648 = vmatpush.bf16.msra.mxu0 %v518
    %649 = vmatpush.bf16.msra.mxu0 %v514
    %650 = vmatmul.bf16.gmra.mxu0 %v320
    %v651 = vpop.f32.mrf.mxu0
    %v652 = vadd.f32 0.0, %v651
    %v653 = vpop.f32.mrf.mxu0
    %654 = vdwg.mxu0
    %655 = vmatpush.bf16.msra.mxu0 %v574
    %656 = vmatpush.bf16.msra.mxu0 %v570
    %657 = vmatpush.bf16.msra.mxu0 %v566
    %658 = vmatpush.bf16.msra.mxu0 %v562
    %659 = vmatpush.bf16.msra.mxu0 %v558
    %660 = vmatpush.bf16.msra.mxu0 %v554
    %661 = vmatpush.bf16.msra.mxu0 %v550
    %662 = vmatpush.bf16.msra.mxu0 %v546
    %663 = vmatmul.bf16.gmra.mxu0 %v321
    %v664 = vpop.f32.mrf.mxu0
    %v665 = vadd.f32 %v652, %v664
    %v666 = vpop.f32.mrf.mxu0
    %667 = vdwg.mxu0
    %668 = vmatpush.bf16.msra.mxu0 %v543
    %669 = vmatpush.bf16.msra.mxu0 %v539
    %670 = vmatpush.bf16.msra.mxu0 %v535
    %671 = vmatpush.bf16.msra.mxu0 %v531
    %672 = vmatpush.bf16.msra.mxu0 %v527
    %673 = vmatpush.bf16.msra.mxu0 %v523
    %674 = vmatpush.bf16.msra.mxu0 %v519
    %675 = vmatpush.bf16.msra.mxu0 %v515
    %676 = vmatmul.bf16.gmra.mxu0 %v320
    %v677 = vpop.f32.mrf.mxu0
    %v678 = vadd.f32 0.0, %v677
    %v679 = vpop.f32.mrf.mxu0
    %680 = vdwg.mxu0
    %681 = vmatpush.bf16.msra.mxu0 %v575
    %682 = vmatpush.bf16.msra.mxu0 %v571
    %683 = vmatpush.bf16.msra.mxu0 %v567
    %684 = vmatpush.bf16.msra.mxu0 %v563
    %685 = vmatpush.bf16.msra.mxu0 %v559
    %686 = vmatpush.bf16.msra.mxu0 %v555
    %687 = vmatpush.bf16.msra.mxu0 %v551
    %688 = vmatpush.bf16.msra.mxu0 %v547
    %689 = vmatmul.bf16.gmra.mxu0 %v321
    %v690 = vpop.f32.mrf.mxu0
    %v691 = vadd.f32 %v678, %v690
    %v692 = vpop.f32.mrf.mxu0
    %693 = vdwg.mxu0
    %694 = vmatpush.bf16.msra.mxu0 %v544
    %695 = vmatpush.bf16.msra.mxu0 %v540
    %696 = vmatpush.bf16.msra.mxu0 %v536
    %697 = vmatpush.bf16.msra.mxu0 %v532
    %698 = vmatpush.bf16.msra.mxu0 %v528
    %699 = vmatpush.bf16.msra.mxu0 %v524
    %700 = vmatpush.bf16.msra.mxu0 %v520
    %701 = vmatpush.bf16.msra.mxu0 %v516
    %702 = vmatmul.bf16.gmra.mxu0 %v320
    %v703 = vpop.f32.mrf.mxu0
    %v704 = vadd.f32 0.0, %v703
    %v705 = vpop.f32.mrf.mxu0
    %706 = vdwg.mxu0
    %707 = vmatpush.bf16.msra.mxu0 %v576
    %708 = vmatpush.bf16.msra.mxu0 %v572
    %709 = vmatpush.bf16.msra.mxu0 %v568
    %710 = vmatpush.bf16.msra.mxu0 %v564
    %711 = vmatpush.bf16.msra.mxu0 %v560
    %712 = vmatpush.bf16.msra.mxu0 %v556
    %713 = vmatpush.bf16.msra.mxu0 %v552
    %714 = vmatpush.bf16.msra.mxu0 %v548
    %715 = vmatmul.bf16.gmra.mxu0 %v321
    %v716 = vpop.f32.mrf.mxu0
    %v717 = vadd.f32 %v704, %v716
    %v718 = vpop.f32.mrf.mxu0
    %719 = vdwg.mxu0
    %720 = vmatpush.bf16.msra.mxu0 %v545
    %721 = vmatpush.bf16.msra.mxu0 %v541
    %722 = vmatpush.bf16.msra.mxu0 %v537
    %723 = vmatpush.bf16.msra.mxu0 %v533
    %724 = vmatpush.bf16.msra.mxu0 %v529
    %725 = vmatpush.bf16.msra.mxu0 %v525
    %726 = vmatpush.bf16.msra.mxu0 %v521
    %727 = vmatpush.bf16.msra.mxu0 %v517
    %728 = vmatmul.bf16.gmra.mxu0 %v320
    %v729 = vpop.f32.mrf.mxu0
    %v730 = vadd.f32 0.0, %v729
    %v731 = vpop.f32.mrf.mxu0
    %732 = vdwg.mxu0
    %733 = vmatpush.bf16.msra.mxu0 %v577
    %734 = vmatpush.bf16.msra.mxu0 %v573
    %735 = vmatpush.bf16.msra.mxu0 %v569
    %736 = vmatpush.bf16.msra.mxu0 %v565
    %737 = vmatpush.bf16.msra.mxu0 %v561
    %738 = vmatpush.bf16.msra.mxu0 %v557
    %739 = vmatpush.bf16.msra.mxu0 %v553
    %740 = vmatpush.bf16.msra.mxu0 %v549
    %741 = vmatmul.bf16.gmra.mxu0 %v321
    %v742 = vpop.f32.mrf.mxu0
    %v743 = vadd.f32 %v730, %v742
    %v744 = vpop.f32.mrf.mxu0
    %745 = vdwg.mxu0
    %v746 = vld [vmem:[#allocation8 + $0x2] sm:$0xf]
    %v747 = vld [vmem:[#allocation8 + $0x6] sm:$0xf]
    %v748 = vrot.slane %v665, 4
    %v749 = vadd.f32 %v665, %v748
    %v750 = vrot.slane %v749, 2
    %v751 = vadd.f32 %v749, %v750
    %v752 = vrot.slane %v751, 1
    %v753 = vadd.f32 %v751, %v752
    %v754 = vrot.slane %v691, 4
    %v755 = vadd.f32 %v691, %v754
    %v756 = vrot.slane %v755, 2
    %v757 = vadd.f32 %v755, %v756
    %v758 = vrot.slane %v757, 1
    %v759 = vadd.f32 %v757, %v758
    %v760 = vrot.slane %v717, 4
    %v761 = vadd.f32 %v717, %v760
    %v762 = vrot.slane %v761, 2
    %v763 = vadd.f32 %v761, %v762
    %v764 = vrot.slane %v763, 1
    %v765 = vadd.f32 %v763, %v764
    %v766 = vrot.slane %v743, 4
    %v767 = vadd.f32 %v743, %v766
    %v768 = vrot.slane %v767, 2
    %v769 = vadd.f32 %v767, %v768
    %v770 = vrot.slane %v769, 1
    %v771 = vadd.f32 %v769, %v770
    %v772 = vrcp.pop 8.0
    %v773 = vmul.f32 8.0, %v772
    %v774 = vsub.f32 1.0, %v773
    %v775 = vmul.f32 %v772, %v774
    %v776 = vadd.f32 %v772, %v775
    %vm777 = vweird.f32 %v772
    %v778 = vsel %vm777, %v772, %v776
    %v779 = vmul.f32 %v753, %v778
    %v780 = vmul.f32 %v759, %v778
    %v781 = vmul.f32 %v765, %v778
    %v782 = vmul.f32 %v771, %v778
    %v783 = vsub.f32 %v665, %v779
    %v784 = vsub.f32 %v691, %v780
    %v785 = vsub.f32 %v717, %v781
    %v786 = vsub.f32 %v743, %v782
    %v787 = vmul.f32 %v783, %v783
    %v788 = vmul.f32 %v784, %v784
    %v789 = vmul.f32 %v785, %v785
    %v790 = vmul.f32 %v786, %v786
    %v791 = vrot.slane %v787, 4
    %v792 = vadd.f32 %v787, %v791
    %v793 = vrot.slane %v792, 2
    %v794 = vadd.f32 %v792, %v793
    %v795 = vrot.slane %v794, 1
    %v796 = vadd.f32 %v794, %v795
    %v797 = vrot.slane %v788, 4
    %v798 = vadd.f32 %v788, %v797
    %v799 = vrot.slane %v798, 2
    %v800 = vadd.f32 %v798, %v799
    %v801 = vrot.slane %v800, 1
    %v802 = vadd.f32 %v800, %v801
    %v803 = vrot.slane %v789, 4
    %v804 = vadd.f32 %v789, %v803
    %v805 = vrot.slane %v804, 2
    %v806 = vadd.f32 %v804, %v805
    %v807 = vrot.slane %v806, 1
    %v808 = vadd.f32 %v806, %v807
    %v809 = vrot.slane %v790, 4
    %v810 = vadd.f32 %v790, %v809
    %v811 = vrot.slane %v810, 2
    %v812 = vadd.f32 %v810, %v811
    %v813 = vrot.slane %v812, 1
    %v814 = vadd.f32 %v812, %v813
    %v815 = vmul.f32 %v796, %v778
    %v816 = vmul.f32 %v802, %v778
    %v817 = vmul.f32 %v808, %v778
    %v818 = vmul.f32 %v814, %v778
    %v819 = vadd.f32 %v815, 1e-05
    %v820 = vadd.f32 %v816, 1e-05
    %v821 = vadd.f32 %v817, 1e-05
    %v822 = vadd.f32 %v818, 1e-05
    %v823 = vrsqrt.pop %v819
    %v824 = vmul.f32 %v823, %v819
    %v825 = vmul.f32 %v824, %v823
    %v826 = vmul.f32 0.5, %v825
    %v827 = vsub.f32 1.5, %v826
    %v828 = vmul.f32 %v823, %v827
    %vm829 = vweird.f32 %v819
    %vm830 = vweird.f32 %v823
    %vm831 = vmor %vm829, %vm830
    %v832 = vsel %vm831, %v823, %v828
    %v833 = vrsqrt.pop %v820
    %v834 = vmul.f32 %v833, %v820
    %v835 = vmul.f32 %v834, %v833
    %v836 = vmul.f32 0.5, %v835
    %v837 = vsub.f32 1.5, %v836
    %v838 = vmul.f32 %v833, %v837
    %vm839 = vweird.f32 %v820
    %vm840 = vweird.f32 %v833
    %vm841 = vmor %vm839, %vm840
    %v842 = vsel %vm841, %v833, %v838
    %v843 = vrsqrt.pop %v821
    %v844 = vmul.f32 %v843, %v821
    %v845 = vmul.f32 %v844, %v843
    %v846 = vmul.f32 0.5, %v845
    %v847 = vsub.f32 1.5, %v846
    %v848 = vmul.f32 %v843, %v847
    %vm849 = vweird.f32 %v821
    %vm850 = vweird.f32 %v843
    %vm851 = vmor %vm849, %vm850
    %v852 = vsel %vm851, %v843, %v848
    %v853 = vrsqrt.pop %v822
    %v854 = vmul.f32 %v853, %v822
    %v855 = vmul.f32 %v854, %v853
    %v856 = vmul.f32 0.5, %v855
    %v857 = vsub.f32 1.5, %v856
    %v858 = vmul.f32 %v853, %v857
    %vm859 = vweird.f32 %v822
    %vm860 = vweird.f32 %v853
    %vm861 = vmor %vm859, %vm860
    %v862 = vsel %vm861, %v853, %v858
    %v867 = vrot.slane %v842, 7
    %v868 = vrot.slane %v852, 6
    %v869 = vrot.slane %v862, 5
    %vm870 = vcmask 1040384
    %v871 = vsel %vm870, %v832, %v867
    %vm872 = vcmask 1042434
    %v873 = vsel %vm872, %v868, %v869
    %vm874 = vcmask 1041408
    %v875 = vsel %vm874, %v871, %v873
    %v877 = vmul.f32 %v746, %v875
    %v879 = vperm.slane %v877, 0
    %v880 = vperm.slane %v877, 1
    %v881 = vperm.slane %v877, 2
    %v882 = vperm.slane %v877, 3
    %v887 = vmul.f32 %v783, %v879
    %v888 = vmul.f32 %v784, %v880
    %v889 = vmul.f32 %v785, %v881
    %v890 = vmul.f32 %v786, %v882
    %v892 = vperm.slane %v747, 0
    %v893 = vperm.slane %v747, 1
    %v894 = vperm.slane %v747, 2
    %v895 = vperm.slane %v747, 3
    %v900 = vadd.f32 %v887, %v892
    %v901 = vadd.f32 %v888, %v893
    %v902 = vadd.f32 %v889, %v894
    %v903 = vadd.f32 %v890, %v895
    %v904 = vmax.f32 %v900, 0.0
    %v905 = vmax.f32 %v901, 0.0
    %v906 = vmax.f32 %v902, 0.0
    %v907 = vmax.f32 %v903, 0.0
    %v908 = vld [vmem:[#allocation13] sm:$0xff]
    %v909 = vld [vmem:[#allocation13 + $0x8] sm:$0xff]
    %v910 = vld [vmem:[#allocation13 + $0x10] sm:$0xff]
    %v911 = vld [vmem:[#allocation13 + $0x18] sm:$0xff]
    %v912 = vld [vmem:[#allocation13 + $0x20] sm:$0xff]
    %v913 = vld [vmem:[#allocation13 + $0x28] sm:$0xff]
    %v914 = vld [vmem:[#allocation13 + $0x30] sm:$0xff]
    %v915 = vld [vmem:[#allocation13 + $0x38] sm:$0xff]
    %v916 = vld [vmem:[#allocation13 + $0x40] sm:$0xff]
    %v917 = vld [vmem:[#allocation13 + $0x48] sm:$0xff]
    %v918 = vld [vmem:[#allocation13 + $0x50] sm:$0xff]
    %v919 = vld [vmem:[#allocation13 + $0x58] sm:$0xff]
    %v920 = vld [vmem:[#allocation13 + $0x60] sm:$0xff]
    %v921 = vld [vmem:[#allocation13 + $0x68] sm:$0xff]
    %v922 = vld [vmem:[#allocation13 + $0x70] sm:$0xff]
    %v923 = vld [vmem:[#allocation13 + $0x78] sm:$0xff]
    %v924 = vld [vmem:[#allocation13 + $0x80] sm:$0xff]
    %v925 = vld [vmem:[#allocation13 + $0x88] sm:$0xff]
    %v926 = vld [vmem:[#allocation13 + $0x90] sm:$0xff]
    %v927 = vld [vmem:[#allocation13 + $0x98] sm:$0xff]
    %v928 = vld [vmem:[#allocation13 + $0xa0] sm:$0xff]
    %v929 = vld [vmem:[#allocation13 + $0xa8] sm:$0xff]
    %v930 = vld [vmem:[#allocation13 + $0xb0] sm:$0xff]
    %v931 = vld [vmem:[#allocation13 + $0xb8] sm:$0xff]
    %v932 = vld [vmem:[#allocation13 + $0xc0] sm:$0xff]
    %v933 = vld [vmem:[#allocation13 + $0xc8] sm:$0xff]
    %v934 = vld [vmem:[#allocation13 + $0xd0] sm:$0xff]
    %v935 = vld [vmem:[#allocation13 + $0xd8] sm:$0xff]
    %v936 = vld [vmem:[#allocation13 + $0xe0] sm:$0xff]
    %v937 = vld [vmem:[#allocation13 + $0xe8] sm:$0xff]
    %v938 = vld [vmem:[#allocation13 + $0xf0] sm:$0xff]
    %v939 = vld [vmem:[#allocation13 + $0xf8] sm:$0xff]
    %v940 = vld [vmem:[#allocation13 + $0x100] sm:$0xff]
    %v941 = vld [vmem:[#allocation13 + $0x108] sm:$0xff]
    %v942 = vld [vmem:[#allocation13 + $0x110] sm:$0xff]
    %v943 = vld [vmem:[#allocation13 + $0x118] sm:$0xff]
    %v944 = vld [vmem:[#allocation13 + $0x120] sm:$0xff]
    %v945 = vld [vmem:[#allocation13 + $0x128] sm:$0xff]
    %v946 = vld [vmem:[#allocation13 + $0x130] sm:$0xff]
    %v947 = vld [vmem:[#allocation13 + $0x138] sm:$0xff]
    %v948 = vld [vmem:[#allocation13 + $0x140] sm:$0xff]
    %v949 = vld [vmem:[#allocation13 + $0x148] sm:$0xff]
    %v950 = vld [vmem:[#allocation13 + $0x150] sm:$0xff]
    %v951 = vld [vmem:[#allocation13 + $0x158] sm:$0xff]
    %v952 = vld [vmem:[#allocation13 + $0x160] sm:$0xff]
    %v953 = vld [vmem:[#allocation13 + $0x168] sm:$0xff]
    %v954 = vld [vmem:[#allocation13 + $0x170] sm:$0xff]
    %v955 = vld [vmem:[#allocation13 + $0x178] sm:$0xff]
    %v956 = vld [vmem:[#allocation13 + $0x180] sm:$0xff]
    %v957 = vld [vmem:[#allocation13 + $0x188] sm:$0xff]
    %v958 = vld [vmem:[#allocation13 + $0x190] sm:$0xff]
    %v959 = vld [vmem:[#allocation13 + $0x198] sm:$0xff]
    %v960 = vld [vmem:[#allocation13 + $0x1a0] sm:$0xff]
    %v961 = vld [vmem:[#allocation13 + $0x1a8] sm:$0xff]
    %v962 = vld [vmem:[#allocation13 + $0x1b0] sm:$0xff]
    %v963 = vld [vmem:[#allocation13 + $0x1b8] sm:$0xff]
    %v964 = vld [vmem:[#allocation13 + $0x1c0] sm:$0xff]
    %v965 = vld [vmem:[#allocation13 + $0x1c8] sm:$0xff]
    %v966 = vld [vmem:[#allocation13 + $0x1d0] sm:$0xff]
    %v967 = vld [vmem:[#allocation13 + $0x1d8] sm:$0xff]
    %v968 = vld [vmem:[#allocation13 + $0x1e0] sm:$0xff]
    %v969 = vld [vmem:[#allocation13 + $0x1e8] sm:$0xff]
    %v970 = vld [vmem:[#allocation13 + $0x1f0] sm:$0xff]
    %v971 = vld [vmem:[#allocation13 + $0x1f8] sm:$0xff]
    %v972 = vld [vmem:[#allocation13 + $0x200] sm:$0xff]
    %v973 = vld [vmem:[#allocation13 + $0x208] sm:$0xff]
    %v974 = vld [vmem:[#allocation13 + $0x210] sm:$0xff]
    %v975 = vld [vmem:[#allocation13 + $0x218] sm:$0xff]
    %v976 = vld [vmem:[#allocation13 + $0x220] sm:$0xff]
    %v977 = vld [vmem:[#allocation13 + $0x228] sm:$0xff]
    %v978 = vld [vmem:[#allocation13 + $0x230] sm:$0xff]
    %v979 = vld [vmem:[#allocation13 + $0x238] sm:$0xff]
    %v980 = vld [vmem:[#allocation13 + $0x240] sm:$0xff]
    %v981 = vld [vmem:[#allocation13 + $0x248] sm:$0xff]
    %v982 = vld [vmem:[#allocation13 + $0x250] sm:$0xff]
    %v983 = vld [vmem:[#allocation13 + $0x258] sm:$0xff]
    %v984 = vld [vmem:[#allocation13 + $0x260] sm:$0xff]
    %v985 = vld [vmem:[#allocation13 + $0x268] sm:$0xff]
    %v986 = vld [vmem:[#allocation13 + $0x270] sm:$0xff]
    %v987 = vld [vmem:[#allocation13 + $0x278] sm:$0xff]
    %v988 = vld [vmem:[#allocation13 + $0x280] sm:$0xff]
    %v989 = vld [vmem:[#allocation13 + $0x288] sm:$0xff]
    %v990 = vld [vmem:[#allocation13 + $0x290] sm:$0xff]
    %v991 = vld [vmem:[#allocation13 + $0x298] sm:$0xff]
    %v992 = vld [vmem:[#allocation13 + $0x2a0] sm:$0xff]
    %v993 = vld [vmem:[#allocation13 + $0x2a8] sm:$0xff]
    %v994 = vld [vmem:[#allocation13 + $0x2b0] sm:$0xff]
    %v995 = vld [vmem:[#allocation13 + $0x2b8] sm:$0xff]
    %v996 = vld [vmem:[#allocation13 + $0x2c0] sm:$0xff]
    %v997 = vld [vmem:[#allocation13 + $0x2c8] sm:$0xff]
    %v998 = vld [vmem:[#allocation13 + $0x2d0] sm:$0xff]
    %v999 = vld [vmem:[#allocation13 + $0x2d8] sm:$0xff]
    %v1000 = vld [vmem:[#allocation13 + $0x2e0] sm:$0xff]
    %v1001 = vld [vmem:[#allocation13 + $0x2e8] sm:$0xff]
    %v1002 = vld [vmem:[#allocation13 + $0x2f0] sm:$0xff]
    %v1003 = vld [vmem:[#allocation13 + $0x2f8] sm:$0xff]
    %v1004 = vld [vmem:[#allocation13 + $0x300] sm:$0xff]
    %v1005 = vld [vmem:[#allocation13 + $0x308] sm:$0xff]
    %v1006 = vld [vmem:[#allocation13 + $0x310] sm:$0xff]
    %v1007 = vld [vmem:[#allocation13 + $0x318] sm:$0xff]
    %v1008 = vld [vmem:[#allocation13 + $0x320] sm:$0xff]
    %v1009 = vld [vmem:[#allocation13 + $0x328] sm:$0xff]
    %v1010 = vld [vmem:[#allocation13 + $0x330] sm:$0xff]
    %v1011 = vld [vmem:[#allocation13 + $0x338] sm:$0xff]
    %v1012 = vld [vmem:[#allocation13 + $0x340] sm:$0xff]
    %v1013 = vld [vmem:[#allocation13 + $0x348] sm:$0xff]
    %v1014 = vld [vmem:[#allocation13 + $0x350] sm:$0xff]
    %v1015 = vld [vmem:[#allocation13 + $0x358] sm:$0xff]
    %v1016 = vld [vmem:[#allocation13 + $0x360] sm:$0xff]
    %v1017 = vld [vmem:[#allocation13 + $0x368] sm:$0xff]
    %v1018 = vld [vmem:[#allocation13 + $0x370] sm:$0xff]
    %v1019 = vld [vmem:[#allocation13 + $0x378] sm:$0xff]
    %v1020 = vld [vmem:[#allocation13 + $0x380] sm:$0xff]
    %v1021 = vld [vmem:[#allocation13 + $0x388] sm:$0xff]
    %v1022 = vld [vmem:[#allocation13 + $0x390] sm:$0xff]
    %v1023 = vld [vmem:[#allocation13 + $0x398] sm:$0xff]
    %v1024 = vld [vmem:[#allocation13 + $0x3a0] sm:$0xff]
    %v1025 = vld [vmem:[#allocation13 + $0x3a8] sm:$0xff]
    %v1026 = vld [vmem:[#allocation13 + $0x3b0] sm:$0xff]
    %v1027 = vld [vmem:[#allocation13 + $0x3b8] sm:$0xff]
    %v1028 = vld [vmem:[#allocation13 + $0x3c0] sm:$0xff]
    %v1029 = vld [vmem:[#allocation13 + $0x3c8] sm:$0xff]
    %v1030 = vld [vmem:[#allocation13 + $0x3d0] sm:$0xff]
    %v1031 = vld [vmem:[#allocation13 + $0x3d8] sm:$0xff]
    %v1032 = vld [vmem:[#allocation13 + $0x3e0] sm:$0xff]
    %v1033 = vld [vmem:[#allocation13 + $0x3e8] sm:$0xff]
    %v1034 = vld [vmem:[#allocation13 + $0x3f0] sm:$0xff]
    %v1035 = vld [vmem:[#allocation13 + $0x3f8] sm:$0xff]
    %v1036 = vld [vmem:[#allocation13 + $0x400] sm:$0xff]
    %v1037 = vld [vmem:[#allocation13 + $0x408] sm:$0xff]
    %v1038 = vld [vmem:[#allocation13 + $0x410] sm:$0xff]
    %v1039 = vld [vmem:[#allocation13 + $0x418] sm:$0xff]
    %v1040 = vld [vmem:[#allocation13 + $0x420] sm:$0xff]
    %v1041 = vld [vmem:[#allocation13 + $0x428] sm:$0xff]
    %v1042 = vld [vmem:[#allocation13 + $0x430] sm:$0xff]
    %v1043 = vld [vmem:[#allocation13 + $0x438] sm:$0xff]
    %v1044 = vld [vmem:[#allocation13 + $0x440] sm:$0xff]
    %v1045 = vld [vmem:[#allocation13 + $0x448] sm:$0xff]
    %v1046 = vld [vmem:[#allocation13 + $0x450] sm:$0xff]
    %v1047 = vld [vmem:[#allocation13 + $0x458] sm:$0xff]
    %v1048 = vld [vmem:[#allocation13 + $0x460] sm:$0xff]
    %v1049 = vld [vmem:[#allocation13 + $0x468] sm:$0xff]
    %v1050 = vld [vmem:[#allocation13 + $0x470] sm:$0xff]
    %v1051 = vld [vmem:[#allocation13 + $0x478] sm:$0xff]
    %v1052 = vld [vmem:[#allocation13 + $0x480] sm:$0xff]
    %v1053 = vld [vmem:[#allocation13 + $0x488] sm:$0xff]
    %v1054 = vld [vmem:[#allocation13 + $0x490] sm:$0xff]
    %v1055 = vld [vmem:[#allocation13 + $0x498] sm:$0xff]
    %v1056 = vld [vmem:[#allocation13 + $0x4a0] sm:$0xff]
    %v1057 = vld [vmem:[#allocation13 + $0x4a8] sm:$0xff]
    %v1058 = vld [vmem:[#allocation13 + $0x4b0] sm:$0xff]
    %v1059 = vld [vmem:[#allocation13 + $0x4b8] sm:$0xff]
    %v1060 = vld [vmem:[#allocation13 + $0x4c0] sm:$0xff]
    %v1061 = vld [vmem:[#allocation13 + $0x4c8] sm:$0xff]
    %v1062 = vld [vmem:[#allocation13 + $0x4d0] sm:$0xff]
    %v1063 = vld [vmem:[#allocation13 + $0x4d8] sm:$0xff]
    %v1064 = vld [vmem:[#allocation13 + $0x4e0] sm:$0xff]
    %v1065 = vld [vmem:[#allocation13 + $0x4e8] sm:$0xff]
    %v1066 = vld [vmem:[#allocation13 + $0x4f0] sm:$0xff]
    %v1067 = vld [vmem:[#allocation13 + $0x4f8] sm:$0xff]
    %v1068 = vld [vmem:[#allocation13 + $0x500] sm:$0xff]
    %v1069 = vld [vmem:[#allocation13 + $0x508] sm:$0xff]
    %v1070 = vld [vmem:[#allocation13 + $0x510] sm:$0xff]
    %v1071 = vld [vmem:[#allocation13 + $0x518] sm:$0xff]
    %v1072 = vld [vmem:[#allocation13 + $0x520] sm:$0xff]
    %v1073 = vld [vmem:[#allocation13 + $0x528] sm:$0xff]
    %v1074 = vld [vmem:[#allocation13 + $0x530] sm:$0xff]
    %v1075 = vld [vmem:[#allocation13 + $0x538] sm:$0xff]
    %v1076 = vld [vmem:[#allocation13 + $0x540] sm:$0xff]
    %v1077 = vld [vmem:[#allocation13 + $0x548] sm:$0xff]
    %v1078 = vld [vmem:[#allocation13 + $0x550] sm:$0xff]
    %v1079 = vld [vmem:[#allocation13 + $0x558] sm:$0xff]
    %v1080 = vld [vmem:[#allocation13 + $0x560] sm:$0xff]
    %v1081 = vld [vmem:[#allocation13 + $0x568] sm:$0xff]
    %v1082 = vld [vmem:[#allocation13 + $0x570] sm:$0xff]
    %v1083 = vld [vmem:[#allocation13 + $0x578] sm:$0xff]
    %v1084 = vld [vmem:[#allocation13 + $0x580] sm:$0xff]
    %v1085 = vld [vmem:[#allocation13 + $0x588] sm:$0xff]
    %v1086 = vld [vmem:[#allocation13 + $0x590] sm:$0xff]
    %v1087 = vld [vmem:[#allocation13 + $0x598] sm:$0xff]
    %v1088 = vld [vmem:[#allocation13 + $0x5a0] sm:$0xff]
    %v1089 = vld [vmem:[#allocation13 + $0x5a8] sm:$0xff]
    %v1090 = vld [vmem:[#allocation13 + $0x5b0] sm:$0xff]
    %v1091 = vld [vmem:[#allocation13 + $0x5b8] sm:$0xff]
    %v1092 = vld [vmem:[#allocation13 + $0x5c0] sm:$0xff]
    %v1093 = vld [vmem:[#allocation13 + $0x5c8] sm:$0xff]
    %v1094 = vld [vmem:[#allocation13 + $0x5d0] sm:$0xff]
    %v1095 = vld [vmem:[#allocation13 + $0x5d8] sm:$0xff]
    %v1096 = vld [vmem:[#allocation13 + $0x5e0] sm:$0xff]
    %v1097 = vld [vmem:[#allocation13 + $0x5e8] sm:$0xff]
    %v1098 = vld [vmem:[#allocation13 + $0x5f0] sm:$0xff]
    %v1099 = vld [vmem:[#allocation13 + $0x5f8] sm:$0xff]
    %v1100 = vld [vmem:[#allocation13 + $0x600] sm:$0xff]
    %v1101 = vld [vmem:[#allocation13 + $0x608] sm:$0xff]
    %v1102 = vld [vmem:[#allocation13 + $0x610] sm:$0xff]
    %v1103 = vld [vmem:[#allocation13 + $0x618] sm:$0xff]
    %v1104 = vld [vmem:[#allocation13 + $0x620] sm:$0xff]
    %v1105 = vld [vmem:[#allocation13 + $0x628] sm:$0xff]
    %v1106 = vld [vmem:[#allocation13 + $0x630] sm:$0xff]
    %v1107 = vld [vmem:[#allocation13 + $0x638] sm:$0xff]
    %v1108 = vld [vmem:[#allocation13 + $0x640] sm:$0xff]
    %v1109 = vld [vmem:[#allocation13 + $0x648] sm:$0xff]
    %v1110 = vld [vmem:[#allocation13 + $0x650] sm:$0xff]
    %v1111 = vld [vmem:[#allocation13 + $0x658] sm:$0xff]
    %v1112 = vld [vmem:[#allocation13 + $0x660] sm:$0xff]
    %v1113 = vld [vmem:[#allocation13 + $0x668] sm:$0xff]
    %v1114 = vld [vmem:[#allocation13 + $0x670] sm:$0xff]
    %v1115 = vld [vmem:[#allocation13 + $0x678] sm:$0xff]
    %v1116 = vld [vmem:[#allocation13 + $0x680] sm:$0xff]
    %v1117 = vld [vmem:[#allocation13 + $0x688] sm:$0xff]
    %v1118 = vld [vmem:[#allocation13 + $0x690] sm:$0xff]
    %v1119 = vld [vmem:[#allocation13 + $0x698] sm:$0xff]
    %v1120 = vld [vmem:[#allocation13 + $0x6a0] sm:$0xff]
    %v1121 = vld [vmem:[#allocation13 + $0x6a8] sm:$0xff]
    %v1122 = vld [vmem:[#allocation13 + $0x6b0] sm:$0xff]
    %v1123 = vld [vmem:[#allocation13 + $0x6b8] sm:$0xff]
    %v1124 = vld [vmem:[#allocation13 + $0x6c0] sm:$0xff]
    %v1125 = vld [vmem:[#allocation13 + $0x6c8] sm:$0xff]
    %v1126 = vld [vmem:[#allocation13 + $0x6d0] sm:$0xff]
    %v1127 = vld [vmem:[#allocation13 + $0x6d8] sm:$0xff]
    %v1128 = vld [vmem:[#allocation13 + $0x6e0] sm:$0xff]
    %v1129 = vld [vmem:[#allocation13 + $0x6e8] sm:$0xff]
    %v1130 = vld [vmem:[#allocation13 + $0x6f0] sm:$0xff]
    %v1131 = vld [vmem:[#allocation13 + $0x6f8] sm:$0xff]
    %v1132 = vld [vmem:[#allocation13 + $0x700] sm:$0xff]
    %v1133 = vld [vmem:[#allocation13 + $0x708] sm:$0xff]
    %v1134 = vld [vmem:[#allocation13 + $0x710] sm:$0xff]
    %v1135 = vld [vmem:[#allocation13 + $0x718] sm:$0xff]
    %v1136 = vld [vmem:[#allocation13 + $0x720] sm:$0xff]
    %v1137 = vld [vmem:[#allocation13 + $0x728] sm:$0xff]
    %v1138 = vld [vmem:[#allocation13 + $0x730] sm:$0xff]
    %v1139 = vld [vmem:[#allocation13 + $0x738] sm:$0xff]
    %v1140 = vld [vmem:[#allocation13 + $0x740] sm:$0xff]
    %v1141 = vld [vmem:[#allocation13 + $0x748] sm:$0xff]
    %v1142 = vld [vmem:[#allocation13 + $0x750] sm:$0xff]
    %v1143 = vld [vmem:[#allocation13 + $0x758] sm:$0xff]
    %v1144 = vld [vmem:[#allocation13 + $0x760] sm:$0xff]
    %v1145 = vld [vmem:[#allocation13 + $0x768] sm:$0xff]
    %v1146 = vld [vmem:[#allocation13 + $0x770] sm:$0xff]
    %v1147 = vld [vmem:[#allocation13 + $0x778] sm:$0xff]
    %v1148 = vld [vmem:[#allocation13 + $0x780] sm:$0xff]
    %v1149 = vld [vmem:[#allocation13 + $0x788] sm:$0xff]
    %v1150 = vld [vmem:[#allocation13 + $0x790] sm:$0xff]
    %v1151 = vld [vmem:[#allocation13 + $0x798] sm:$0xff]
    %v1152 = vld [vmem:[#allocation13 + $0x7a0] sm:$0xff]
    %v1153 = vld [vmem:[#allocation13 + $0x7a8] sm:$0xff]
    %v1154 = vld [vmem:[#allocation13 + $0x7b0] sm:$0xff]
    %v1155 = vld [vmem:[#allocation13 + $0x7b8] sm:$0xff]
    %v1156 = vld [vmem:[#allocation13 + $0x7c0] sm:$0xff]
    %v1157 = vld [vmem:[#allocation13 + $0x7c8] sm:$0xff]
    %v1158 = vld [vmem:[#allocation13 + $0x7d0] sm:$0xff]
    %v1159 = vld [vmem:[#allocation13 + $0x7d8] sm:$0xff]
    %v1160 = vld [vmem:[#allocation13 + $0x7e0] sm:$0xff]
    %v1161 = vld [vmem:[#allocation13 + $0x7e8] sm:$0xff]
    %v1162 = vld [vmem:[#allocation13 + $0x7f0] sm:$0xff]
    %v1163 = vld [vmem:[#allocation13 + $0x7f8] sm:$0xff]
    %v1164 = vpack.c.bf16 %v904, %v904
    %v1165 = vpack.c.bf16 %v905, %v905
    %v1166 = vpack.c.bf16 %v906, %v906
    %v1167 = vpack.c.bf16 %v907, %v907
    %v1424 = vunpack.c.l.b16 %v908
    %v1425 = vunpack.c.h.b16 %v908
    %v1426 = vunpack.c.l.b16 %v909
    %v1427 = vunpack.c.h.b16 %v909
    %v1428 = vunpack.c.l.b16 %v910
    %v1429 = vunpack.c.h.b16 %v910
    %v1430 = vunpack.c.l.b16 %v911
    %v1431 = vunpack.c.h.b16 %v911
    %v1432 = vunpack.c.l.b16 %v912
    %v1433 = vunpack.c.h.b16 %v912
    %v1434 = vunpack.c.l.b16 %v913
    %v1435 = vunpack.c.h.b16 %v913
    %v1436 = vunpack.c.l.b16 %v914
    %v1437 = vunpack.c.h.b16 %v914
    %v1438 = vunpack.c.l.b16 %v915
    %v1439 = vunpack.c.h.b16 %v915
    %v1440 = vunpack.c.l.b16 %v916
    %v1441 = vunpack.c.h.b16 %v916
    %v1442 = vunpack.c.l.b16 %v917
    %v1443 = vunpack.c.h.b16 %v917
    %v1444 = vunpack.c.l.b16 %v918
    %v1445 = vunpack.c.h.b16 %v918
    %v1446 = vunpack.c.l.b16 %v919
    %v1447 = vunpack.c.h.b16 %v919
    %v1448 = vunpack.c.l.b16 %v920
    %v1449 = vunpack.c.h.b16 %v920
    %v1450 = vunpack.c.l.b16 %v921
    %v1451 = vunpack.c.h.b16 %v921
    %v1452 = vunpack.c.l.b16 %v922
    %v1453 = vunpack.c.h.b16 %v922
    %v1454 = vunpack.c.l.b16 %v923
    %v1455 = vunpack.c.h.b16 %v923
    %v1456 = vunpack.c.l.b16 %v924
    %v1457 = vunpack.c.h.b16 %v924
    %v1458 = vunpack.c.l.b16 %v925
    %v1459 = vunpack.c.h.b16 %v925
    %v1460 = vunpack.c.l.b16 %v926
    %v1461 = vunpack.c.h.b16 %v926
    %v1462 = vunpack.c.l.b16 %v927
    %v1463 = vunpack.c.h.b16 %v927
    %v1464 = vunpack.c.l.b16 %v928
    %v1465 = vunpack.c.h.b16 %v928
    %v1466 = vunpack.c.l.b16 %v929
    %v1467 = vunpack.c.h.b16 %v929
    %v1468 = vunpack.c.l.b16 %v930
    %v1469 = vunpack.c.h.b16 %v930
    %v1470 = vunpack.c.l.b16 %v931
    %v1471 = vunpack.c.h.b16 %v931
    %v1472 = vunpack.c.l.b16 %v932
    %v1473 = vunpack.c.h.b16 %v932
    %v1474 = vunpack.c.l.b16 %v933
    %v1475 = vunpack.c.h.b16 %v933
    %v1476 = vunpack.c.l.b16 %v934
    %v1477 = vunpack.c.h.b16 %v934
    %v1478 = vunpack.c.l.b16 %v935
    %v1479 = vunpack.c.h.b16 %v935
    %v1480 = vunpack.c.l.b16 %v936
    %v1481 = vunpack.c.h.b16 %v936
    %v1482 = vunpack.c.l.b16 %v937
    %v1483 = vunpack.c.h.b16 %v937
    %v1484 = vunpack.c.l.b16 %v938
    %v1485 = vunpack.c.h.b16 %v938
    %v1486 = vunpack.c.l.b16 %v939
    %v1487 = vunpack.c.h.b16 %v939
    %v1488 = vunpack.c.l.b16 %v940
    %v1489 = vunpack.c.h.b16 %v940
    %v1490 = vunpack.c.l.b16 %v941
    %v1491 = vunpack.c.h.b16 %v941
    %v1492 = vunpack.c.l.b16 %v942
    %v1493 = vunpack.c.h.b16 %v942
    %v1494 = vunpack.c.l.b16 %v943
    %v1495 = vunpack.c.h.b16 %v943
    %v1496 = vunpack.c.l.b16 %v944
    %v1497 = vunpack.c.h.b16 %v944
    %v1498 = vunpack.c.l.b16 %v945
    %v1499 = vunpack.c.h.b16 %v945
    %v1500 = vunpack.c.l.b16 %v946
    %v1501 = vunpack.c.h.b16 %v946
    %v1502 = vunpack.c.l.b16 %v947
    %v1503 = vunpack.c.h.b16 %v947
    %v1504 = vunpack.c.l.b16 %v948
    %v1505 = vunpack.c.h.b16 %v948
    %v1506 = vunpack.c.l.b16 %v949
    %v1507 = vunpack.c.h.b16 %v949
    %v1508 = vunpack.c.l.b16 %v950
    %v1509 = vunpack.c.h.b16 %v950
    %v1510 = vunpack.c.l.b16 %v951
    %v1511 = vunpack.c.h.b16 %v951
    %v1512 = vunpack.c.l.b16 %v952
    %v1513 = vunpack.c.h.b16 %v952
    %v1514 = vunpack.c.l.b16 %v953
    %v1515 = vunpack.c.h.b16 %v953
    %v1516 = vunpack.c.l.b16 %v954
    %v1517 = vunpack.c.h.b16 %v954
    %v1518 = vunpack.c.l.b16 %v955
    %v1519 = vunpack.c.h.b16 %v955
    %v1520 = vunpack.c.l.b16 %v956
    %v1521 = vunpack.c.h.b16 %v956
    %v1522 = vunpack.c.l.b16 %v957
    %v1523 = vunpack.c.h.b16 %v957
    %v1524 = vunpack.c.l.b16 %v958
    %v1525 = vunpack.c.h.b16 %v958
    %v1526 = vunpack.c.l.b16 %v959
    %v1527 = vunpack.c.h.b16 %v959
    %v1528 = vunpack.c.l.b16 %v960
    %v1529 = vunpack.c.h.b16 %v960
    %v1530 = vunpack.c.l.b16 %v961
    %v1531 = vunpack.c.h.b16 %v961
    %v1532 = vunpack.c.l.b16 %v962
    %v1533 = vunpack.c.h.b16 %v962
    %v1534 = vunpack.c.l.b16 %v963
    %v1535 = vunpack.c.h.b16 %v963
    %v1536 = vunpack.c.l.b16 %v964
    %v1537 = vunpack.c.h.b16 %v964
    %v1538 = vunpack.c.l.b16 %v965
    %v1539 = vunpack.c.h.b16 %v965
    %v1540 = vunpack.c.l.b16 %v966
    %v1541 = vunpack.c.h.b16 %v966
    %v1542 = vunpack.c.l.b16 %v967
    %v1543 = vunpack.c.h.b16 %v967
    %v1544 = vunpack.c.l.b16 %v968
    %v1545 = vunpack.c.h.b16 %v968
    %v1546 = vunpack.c.l.b16 %v969
    %v1547 = vunpack.c.h.b16 %v969
    %v1548 = vunpack.c.l.b16 %v970
    %v1549 = vunpack.c.h.b16 %v970
    %v1550 = vunpack.c.l.b16 %v971
    %v1551 = vunpack.c.h.b16 %v971
    %v1552 = vunpack.c.l.b16 %v972
    %v1553 = vunpack.c.h.b16 %v972
    %v1554 = vunpack.c.l.b16 %v973
    %v1555 = vunpack.c.h.b16 %v973
    %v1556 = vunpack.c.l.b16 %v974
    %v1557 = vunpack.c.h.b16 %v974
    %v1558 = vunpack.c.l.b16 %v975
    %v1559 = vunpack.c.h.b16 %v975
    %v1560 = vunpack.c.l.b16 %v976
    %v1561 = vunpack.c.h.b16 %v976
    %v1562 = vunpack.c.l.b16 %v977
    %v1563 = vunpack.c.h.b16 %v977
    %v1564 = vunpack.c.l.b16 %v978
    %v1565 = vunpack.c.h.b16 %v978
    %v1566 = vunpack.c.l.b16 %v979
    %v1567 = vunpack.c.h.b16 %v979
    %v1568 = vunpack.c.l.b16 %v980
    %v1569 = vunpack.c.h.b16 %v980
    %v1570 = vunpack.c.l.b16 %v981
    %v1571 = vunpack.c.h.b16 %v981
    %v1572 = vunpack.c.l.b16 %v982
    %v1573 = vunpack.c.h.b16 %v982
    %v1574 = vunpack.c.l.b16 %v983
    %v1575 = vunpack.c.h.b16 %v983
    %v1576 = vunpack.c.l.b16 %v984
    %v1577 = vunpack.c.h.b16 %v984
    %v1578 = vunpack.c.l.b16 %v985
    %v1579 = vunpack.c.h.b16 %v985
    %v1580 = vunpack.c.l.b16 %v986
    %v1581 = vunpack.c.h.b16 %v986
    %v1582 = vunpack.c.l.b16 %v987
    %v1583 = vunpack.c.h.b16 %v987
    %v1584 = vunpack.c.l.b16 %v988
    %v1585 = vunpack.c.h.b16 %v988
    %v1586 = vunpack.c.l.b16 %v989
    %v1587 = vunpack.c.h.b16 %v989
    %v1588 = vunpack.c.l.b16 %v990
    %v1589 = vunpack.c.h.b16 %v990
    %v1590 = vunpack.c.l.b16 %v991
    %v1591 = vunpack.c.h.b16 %v991
    %v1592 = vunpack.c.l.b16 %v992
    %v1593 = vunpack.c.h.b16 %v992
    %v1594 = vunpack.c.l.b16 %v993
    %v1595 = vunpack.c.h.b16 %v993
    %v1596 = vunpack.c.l.b16 %v994
    %v1597 = vunpack.c.h.b16 %v994
    %v1598 = vunpack.c.l.b16 %v995
    %v1599 = vunpack.c.h.b16 %v995
    %v1600 = vunpack.c.l.b16 %v996
    %v1601 = vunpack.c.h.b16 %v996
    %v1602 = vunpack.c.l.b16 %v997
    %v1603 = vunpack.c.h.b16 %v997
    %v1604 = vunpack.c.l.b16 %v998
    %v1605 = vunpack.c.h.b16 %v998
    %v1606 = vunpack.c.l.b16 %v999
    %v1607 = vunpack.c.h.b16 %v999
    %v1608 = vunpack.c.l.b16 %v1000
    %v1609 = vunpack.c.h.b16 %v1000
    %v1610 = vunpack.c.l.b16 %v1001
    %v1611 = vunpack.c.h.b16 %v1001
    %v1612 = vunpack.c.l.b16 %v1002
    %v1613 = vunpack.c.h.b16 %v1002
    %v1614 = vunpack.c.l.b16 %v1003
    %v1615 = vunpack.c.h.b16 %v1003
    %v1616 = vunpack.c.l.b16 %v1004
    %v1617 = vunpack.c.h.b16 %v1004
    %v1618 = vunpack.c.l.b16 %v1005
    %v1619 = vunpack.c.h.b16 %v1005
    %v1620 = vunpack.c.l.b16 %v1006
    %v1621 = vunpack.c.h.b16 %v1006
    %v1622 = vunpack.c.l.b16 %v1007
    %v1623 = vunpack.c.h.b16 %v1007
    %v1624 = vunpack.c.l.b16 %v1008
    %v1625 = vunpack.c.h.b16 %v1008
    %v1626 = vunpack.c.l.b16 %v1009
    %v1627 = vunpack.c.h.b16 %v1009
    %v1628 = vunpack.c.l.b16 %v1010
    %v1629 = vunpack.c.h.b16 %v1010
    %v1630 = vunpack.c.l.b16 %v1011
    %v1631 = vunpack.c.h.b16 %v1011
    %v1632 = vunpack.c.l.b16 %v1012
    %v1633 = vunpack.c.h.b16 %v1012
    %v1634 = vunpack.c.l.b16 %v1013
    %v1635 = vunpack.c.h.b16 %v1013
    %v1636 = vunpack.c.l.b16 %v1014
    %v1637 = vunpack.c.h.b16 %v1014
    %v1638 = vunpack.c.l.b16 %v1015
    %v1639 = vunpack.c.h.b16 %v1015
    %v1640 = vunpack.c.l.b16 %v1016
    %v1641 = vunpack.c.h.b16 %v1016
    %v1642 = vunpack.c.l.b16 %v1017
    %v1643 = vunpack.c.h.b16 %v1017
    %v1644 = vunpack.c.l.b16 %v1018
    %v1645 = vunpack.c.h.b16 %v1018
    %v1646 = vunpack.c.l.b16 %v1019
    %v1647 = vunpack.c.h.b16 %v1019
    %v1648 = vunpack.c.l.b16 %v1020
    %v1649 = vunpack.c.h.b16 %v1020
    %v1650 = vunpack.c.l.b16 %v1021
    %v1651 = vunpack.c.h.b16 %v1021
    %v1652 = vunpack.c.l.b16 %v1022
    %v1653 = vunpack.c.h.b16 %v1022
    %v1654 = vunpack.c.l.b16 %v1023
    %v1655 = vunpack.c.h.b16 %v1023
    %v1656 = vunpack.c.l.b16 %v1024
    %v1657 = vunpack.c.h.b16 %v1024
    %v1658 = vunpack.c.l.b16 %v1025
    %v1659 = vunpack.c.h.b16 %v1025
    %v1660 = vunpack.c.l.b16 %v1026
    %v1661 = vunpack.c.h.b16 %v1026
    %v1662 = vunpack.c.l.b16 %v1027
    %v1663 = vunpack.c.h.b16 %v1027
    %v1664 = vunpack.c.l.b16 %v1028
    %v1665 = vunpack.c.h.b16 %v1028
    %v1666 = vunpack.c.l.b16 %v1029
    %v1667 = vunpack.c.h.b16 %v1029
    %v1668 = vunpack.c.l.b16 %v1030
    %v1669 = vunpack.c.h.b16 %v1030
    %v1670 = vunpack.c.l.b16 %v1031
    %v1671 = vunpack.c.h.b16 %v1031
    %v1672 = vunpack.c.l.b16 %v1032
    %v1673 = vunpack.c.h.b16 %v1032
    %v1674 = vunpack.c.l.b16 %v1033
    %v1675 = vunpack.c.h.b16 %v1033
    %v1676 = vunpack.c.l.b16 %v1034
    %v1677 = vunpack.c.h.b16 %v1034
    %v1678 = vunpack.c.l.b16 %v1035
    %v1679 = vunpack.c.h.b16 %v1035
    %v1680 = vunpack.c.l.b16 %v1036
    %v1681 = vunpack.c.h.b16 %v1036
    %v1682 = vunpack.c.l.b16 %v1037
    %v1683 = vunpack.c.h.b16 %v1037
    %v1684 = vunpack.c.l.b16 %v1038
    %v1685 = vunpack.c.h.b16 %v1038
    %v1686 = vunpack.c.l.b16 %v1039
    %v1687 = vunpack.c.h.b16 %v1039
    %v1688 = vunpack.c.l.b16 %v1040
    %v1689 = vunpack.c.h.b16 %v1040
    %v1690 = vunpack.c.l.b16 %v1041
    %v1691 = vunpack.c.h.b16 %v1041
    %v1692 = vunpack.c.l.b16 %v1042
    %v1693 = vunpack.c.h.b16 %v1042
    %v1694 = vunpack.c.l.b16 %v1043
    %v1695 = vunpack.c.h.b16 %v1043
    %v1696 = vunpack.c.l.b16 %v1044
    %v1697 = vunpack.c.h.b16 %v1044
    %v1698 = vunpack.c.l.b16 %v1045
    %v1699 = vunpack.c.h.b16 %v1045
    %v1700 = vunpack.c.l.b16 %v1046
    %v1701 = vunpack.c.h.b16 %v1046
    %v1702 = vunpack.c.l.b16 %v1047
    %v1703 = vunpack.c.h.b16 %v1047
    %v1704 = vunpack.c.l.b16 %v1048
    %v1705 = vunpack.c.h.b16 %v1048
    %v1706 = vunpack.c.l.b16 %v1049
    %v1707 = vunpack.c.h.b16 %v1049
    %v1708 = vunpack.c.l.b16 %v1050
    %v1709 = vunpack.c.h.b16 %v1050
    %v1710 = vunpack.c.l.b16 %v1051
    %v1711 = vunpack.c.h.b16 %v1051
    %v1712 = vunpack.c.l.b16 %v1052
    %v1713 = vunpack.c.h.b16 %v1052
    %v1714 = vunpack.c.l.b16 %v1053
    %v1715 = vunpack.c.h.b16 %v1053
    %v1716 = vunpack.c.l.b16 %v1054
    %v1717 = vunpack.c.h.b16 %v1054
    %v1718 = vunpack.c.l.b16 %v1055
    %v1719 = vunpack.c.h.b16 %v1055
    %v1720 = vunpack.c.l.b16 %v1056
    %v1721 = vunpack.c.h.b16 %v1056
    %v1722 = vunpack.c.l.b16 %v1057
    %v1723 = vunpack.c.h.b16 %v1057
    %v1724 = vunpack.c.l.b16 %v1058
    %v1725 = vunpack.c.h.b16 %v1058
    %v1726 = vunpack.c.l.b16 %v1059
    %v1727 = vunpack.c.h.b16 %v1059
    %v1728 = vunpack.c.l.b16 %v1060
    %v1729 = vunpack.c.h.b16 %v1060
    %v1730 = vunpack.c.l.b16 %v1061
    %v1731 = vunpack.c.h.b16 %v1061
    %v1732 = vunpack.c.l.b16 %v1062
    %v1733 = vunpack.c.h.b16 %v1062
    %v1734 = vunpack.c.l.b16 %v1063
    %v1735 = vunpack.c.h.b16 %v1063
    %v1736 = vunpack.c.l.b16 %v1064
    %v1737 = vunpack.c.h.b16 %v1064
    %v1738 = vunpack.c.l.b16 %v1065
    %v1739 = vunpack.c.h.b16 %v1065
    %v1740 = vunpack.c.l.b16 %v1066
    %v1741 = vunpack.c.h.b16 %v1066
    %v1742 = vunpack.c.l.b16 %v1067
    %v1743 = vunpack.c.h.b16 %v1067
    %v1744 = vunpack.c.l.b16 %v1068
    %v1745 = vunpack.c.h.b16 %v1068
    %v1746 = vunpack.c.l.b16 %v1069
    %v1747 = vunpack.c.h.b16 %v1069
    %v1748 = vunpack.c.l.b16 %v1070
    %v1749 = vunpack.c.h.b16 %v1070
    %v1750 = vunpack.c.l.b16 %v1071
    %v1751 = vunpack.c.h.b16 %v1071
    %v1752 = vunpack.c.l.b16 %v1072
    %v1753 = vunpack.c.h.b16 %v1072
    %v1754 = vunpack.c.l.b16 %v1073
    %v1755 = vunpack.c.h.b16 %v1073
    %v1756 = vunpack.c.l.b16 %v1074
    %v1757 = vunpack.c.h.b16 %v1074
    %v1758 = vunpack.c.l.b16 %v1075
    %v1759 = vunpack.c.h.b16 %v1075
    %v1760 = vunpack.c.l.b16 %v1076
    %v1761 = vunpack.c.h.b16 %v1076
    %v1762 = vunpack.c.l.b16 %v1077
    %v1763 = vunpack.c.h.b16 %v1077
    %v1764 = vunpack.c.l.b16 %v1078
    %v1765 = vunpack.c.h.b16 %v1078
    %v1766 = vunpack.c.l.b16 %v1079
    %v1767 = vunpack.c.h.b16 %v1079
    %v1768 = vunpack.c.l.b16 %v1080
    %v1769 = vunpack.c.h.b16 %v1080
    %v1770 = vunpack.c.l.b16 %v1081
    %v1771 = vunpack.c.h.b16 %v1081
    %v1772 = vunpack.c.l.b16 %v1082
    %v1773 = vunpack.c.h.b16 %v1082
    %v1774 = vunpack.c.l.b16 %v1083
    %v1775 = vunpack.c.h.b16 %v1083
    %v1776 = vunpack.c.l.b16 %v1084
    %v1777 = vunpack.c.h.b16 %v1084
    %v1778 = vunpack.c.l.b16 %v1085
    %v1779 = vunpack.c.h.b16 %v1085
    %v1780 = vunpack.c.l.b16 %v1086
    %v1781 = vunpack.c.h.b16 %v1086
    %v1782 = vunpack.c.l.b16 %v1087
    %v1783 = vunpack.c.h.b16 %v1087
    %v1784 = vunpack.c.l.b16 %v1088
    %v1785 = vunpack.c.h.b16 %v1088
    %v1786 = vunpack.c.l.b16 %v1089
    %v1787 = vunpack.c.h.b16 %v1089
    %v1788 = vunpack.c.l.b16 %v1090
    %v1789 = vunpack.c.h.b16 %v1090
    %v1790 = vunpack.c.l.b16 %v1091
    %v1791 = vunpack.c.h.b16 %v1091
    %v1792 = vunpack.c.l.b16 %v1092
    %v1793 = vunpack.c.h.b16 %v1092
    %v1794 = vunpack.c.l.b16 %v1093
    %v1795 = vunpack.c.h.b16 %v1093
    %v1796 = vunpack.c.l.b16 %v1094
    %v1797 = vunpack.c.h.b16 %v1094
    %v1798 = vunpack.c.l.b16 %v1095
    %v1799 = vunpack.c.h.b16 %v1095
    %v1800 = vunpack.c.l.b16 %v1096
    %v1801 = vunpack.c.h.b16 %v1096
    %v1802 = vunpack.c.l.b16 %v1097
    %v1803 = vunpack.c.h.b16 %v1097
    %v1804 = vunpack.c.l.b16 %v1098
    %v1805 = vunpack.c.h.b16 %v1098
    %v1806 = vunpack.c.l.b16 %v1099
    %v1807 = vunpack.c.h.b16 %v1099
    %v1808 = vunpack.c.l.b16 %v1100
    %v1809 = vunpack.c.h.b16 %v1100
    %v1810 = vunpack.c.l.b16 %v1101
    %v1811 = vunpack.c.h.b16 %v1101
    %v1812 = vunpack.c.l.b16 %v1102
    %v1813 = vunpack.c.h.b16 %v1102
    %v1814 = vunpack.c.l.b16 %v1103
    %v1815 = vunpack.c.h.b16 %v1103
    %v1816 = vunpack.c.l.b16 %v1104
    %v1817 = vunpack.c.h.b16 %v1104
    %v1818 = vunpack.c.l.b16 %v1105
    %v1819 = vunpack.c.h.b16 %v1105
    %v1820 = vunpack.c.l.b16 %v1106
    %v1821 = vunpack.c.h.b16 %v1106
    %v1822 = vunpack.c.l.b16 %v1107
    %v1823 = vunpack.c.h.b16 %v1107
    %v1824 = vunpack.c.l.b16 %v1108
    %v1825 = vunpack.c.h.b16 %v1108
    %v1826 = vunpack.c.l.b16 %v1109
    %v1827 = vunpack.c.h.b16 %v1109
    %v1828 = vunpack.c.l.b16 %v1110
    %v1829 = vunpack.c.h.b16 %v1110
    %v1830 = vunpack.c.l.b16 %v1111
    %v1831 = vunpack.c.h.b16 %v1111
    %v1832 = vunpack.c.l.b16 %v1112
    %v1833 = vunpack.c.h.b16 %v1112
    %v1834 = vunpack.c.l.b16 %v1113
    %v1835 = vunpack.c.h.b16 %v1113
    %v1836 = vunpack.c.l.b16 %v1114
    %v1837 = vunpack.c.h.b16 %v1114
    %v1838 = vunpack.c.l.b16 %v1115
    %v1839 = vunpack.c.h.b16 %v1115
    %v1840 = vunpack.c.l.b16 %v1116
    %v1841 = vunpack.c.h.b16 %v1116
    %v1842 = vunpack.c.l.b16 %v1117
    %v1843 = vunpack.c.h.b16 %v1117
    %v1844 = vunpack.c.l.b16 %v1118
    %v1845 = vunpack.c.h.b16 %v1118
    %v1846 = vunpack.c.l.b16 %v1119
    %v1847 = vunpack.c.h.b16 %v1119
    %v1848 = vunpack.c.l.b16 %v1120
    %v1849 = vunpack.c.h.b16 %v1120
    %v1850 = vunpack.c.l.b16 %v1121
    %v1851 = vunpack.c.h.b16 %v1121
    %v1852 = vunpack.c.l.b16 %v1122
    %v1853 = vunpack.c.h.b16 %v1122
    %v1854 = vunpack.c.l.b16 %v1123
    %v1855 = vunpack.c.h.b16 %v1123
    %v1856 = vunpack.c.l.b16 %v1124
    %v1857 = vunpack.c.h.b16 %v1124
    %v1858 = vunpack.c.l.b16 %v1125
    %v1859 = vunpack.c.h.b16 %v1125
    %v1860 = vunpack.c.l.b16 %v1126
    %v1861 = vunpack.c.h.b16 %v1126
    %v1862 = vunpack.c.l.b16 %v1127
    %v1863 = vunpack.c.h.b16 %v1127
    %v1864 = vunpack.c.l.b16 %v1128
    %v1865 = vunpack.c.h.b16 %v1128
    %v1866 = vunpack.c.l.b16 %v1129
    %v1867 = vunpack.c.h.b16 %v1129
    %v1868 = vunpack.c.l.b16 %v1130
    %v1869 = vunpack.c.h.b16 %v1130
    %v1870 = vunpack.c.l.b16 %v1131
    %v1871 = vunpack.c.h.b16 %v1131
    %v1872 = vunpack.c.l.b16 %v1132
    %v1873 = vunpack.c.h.b16 %v1132
    %v1874 = vunpack.c.l.b16 %v1133
    %v1875 = vunpack.c.h.b16 %v1133
    %v1876 = vunpack.c.l.b16 %v1134
    %v1877 = vunpack.c.h.b16 %v1134
    %v1878 = vunpack.c.l.b16 %v1135
    %v1879 = vunpack.c.h.b16 %v1135
    %v1880 = vunpack.c.l.b16 %v1136
    %v1881 = vunpack.c.h.b16 %v1136
    %v1882 = vunpack.c.l.b16 %v1137
    %v1883 = vunpack.c.h.b16 %v1137
    %v1884 = vunpack.c.l.b16 %v1138
    %v1885 = vunpack.c.h.b16 %v1138
    %v1886 = vunpack.c.l.b16 %v1139
    %v1887 = vunpack.c.h.b16 %v1139
    %v1888 = vunpack.c.l.b16 %v1140
    %v1889 = vunpack.c.h.b16 %v1140
    %v1890 = vunpack.c.l.b16 %v1141
    %v1891 = vunpack.c.h.b16 %v1141
    %v1892 = vunpack.c.l.b16 %v1142
    %v1893 = vunpack.c.h.b16 %v1142
    %v1894 = vunpack.c.l.b16 %v1143
    %v1895 = vunpack.c.h.b16 %v1143
    %v1896 = vunpack.c.l.b16 %v1144
    %v1897 = vunpack.c.h.b16 %v1144
    %v1898 = vunpack.c.l.b16 %v1145
    %v1899 = vunpack.c.h.b16 %v1145
    %v1900 = vunpack.c.l.b16 %v1146
    %v1901 = vunpack.c.h.b16 %v1146
    %v1902 = vunpack.c.l.b16 %v1147
    %v1903 = vunpack.c.h.b16 %v1147
    %v1904 = vunpack.c.l.b16 %v1148
    %v1905 = vunpack.c.h.b16 %v1148
    %v1906 = vunpack.c.l.b16 %v1149
    %v1907 = vunpack.c.h.b16 %v1149
    %v1908 = vunpack.c.l.b16 %v1150
    %v1909 = vunpack.c.h.b16 %v1150
    %v1910 = vunpack.c.l.b16 %v1151
    %v1911 = vunpack.c.h.b16 %v1151
    %v1912 = vunpack.c.l.b16 %v1152
    %v1913 = vunpack.c.h.b16 %v1152
    %v1914 = vunpack.c.l.b16 %v1153
    %v1915 = vunpack.c.h.b16 %v1153
    %v1916 = vunpack.c.l.b16 %v1154
    %v1917 = vunpack.c.h.b16 %v1154
    %v1918 = vunpack.c.l.b16 %v1155
    %v1919 = vunpack.c.h.b16 %v1155
    %v1920 = vunpack.c.l.b16 %v1156
    %v1921 = vunpack.c.h.b16 %v1156
    %v1922 = vunpack.c.l.b16 %v1157
    %v1923 = vunpack.c.h.b16 %v1157
    %v1924 = vunpack.c.l.b16 %v1158
    %v1925 = vunpack.c.h.b16 %v1158
    %v1926 = vunpack.c.l.b16 %v1159
    %v1927 = vunpack.c.h.b16 %v1159
    %v1928 = vunpack.c.l.b16 %v1160
    %v1929 = vunpack.c.h.b16 %v1160
    %v1930 = vunpack.c.l.b16 %v1161
    %v1931 = vunpack.c.h.b16 %v1161
    %v1932 = vunpack.c.l.b16 %v1162
    %v1933 = vunpack.c.h.b16 %v1162
    %v1934 = vunpack.c.l.b16 %v1163
    %v1935 = vunpack.c.h.b16 %v1163
    %v1936 = vpack.c.b16 %v1432, %v1424
    %v1937 = vpack.c.b16 %v1433, %v1425
    %v1938 = vpack.c.b16 %v1434, %v1426
    %v1939 = vpack.c.b16 %v1435, %v1427
    %v1940 = vpack.c.b16 %v1436, %v1428
    %v1941 = vpack.c.b16 %v1437, %v1429
    %v1942 = vpack.c.b16 %v1438, %v1430
    %v1943 = vpack.c.b16 %v1439, %v1431
    %v1944 = vpack.c.b16 %v1448, %v1440
    %v1945 = vpack.c.b16 %v1449, %v1441
    %v1946 = vpack.c.b16 %v1450, %v1442
    %v1947 = vpack.c.b16 %v1451, %v1443
    %v1948 = vpack.c.b16 %v1452, %v1444
    %v1949 = vpack.c.b16 %v1453, %v1445
    %v1950 = vpack.c.b16 %v1454, %v1446
    %v1951 = vpack.c.b16 %v1455, %v1447
    %v1952 = vpack.c.b16 %v1464, %v1456
    %v1953 = vpack.c.b16 %v1465, %v1457
    %v1954 = vpack.c.b16 %v1466, %v1458
    %v1955 = vpack.c.b16 %v1467, %v1459
    %v1956 = vpack.c.b16 %v1468, %v1460
    %v1957 = vpack.c.b16 %v1469, %v1461
    %v1958 = vpack.c.b16 %v1470, %v1462
    %v1959 = vpack.c.b16 %v1471, %v1463
    %v1960 = vpack.c.b16 %v1480, %v1472
    %v1961 = vpack.c.b16 %v1481, %v1473
    %v1962 = vpack.c.b16 %v1482, %v1474
    %v1963 = vpack.c.b16 %v1483, %v1475
    %v1964 = vpack.c.b16 %v1484, %v1476
    %v1965 = vpack.c.b16 %v1485, %v1477
    %v1966 = vpack.c.b16 %v1486, %v1478
    %v1967 = vpack.c.b16 %v1487, %v1479
    %v1968 = vpack.c.b16 %v1496, %v1488
    %v1969 = vpack.c.b16 %v1497, %v1489
    %v1970 = vpack.c.b16 %v1498, %v1490
    %v1971 = vpack.c.b16 %v1499, %v1491
    %v1972 = vpack.c.b16 %v1500, %v1492
    %v1973 = vpack.c.b16 %v1501, %v1493
    %v1974 = vpack.c.b16 %v1502, %v1494
    %v1975 = vpack.c.b16 %v1503, %v1495
    %v1976 = vpack.c.b16 %v1512, %v1504
    %v1977 = vpack.c.b16 %v1513, %v1505
    %v1978 = vpack.c.b16 %v1514, %v1506
    %v1979 = vpack.c.b16 %v1515, %v1507
    %v1980 = vpack.c.b16 %v1516, %v1508
    %v1981 = vpack.c.b16 %v1517, %v1509
    %v1982 = vpack.c.b16 %v1518, %v1510
    %v1983 = vpack.c.b16 %v1519, %v1511
    %v1984 = vpack.c.b16 %v1528, %v1520
    %v1985 = vpack.c.b16 %v1529, %v1521
    %v1986 = vpack.c.b16 %v1530, %v1522
    %v1987 = vpack.c.b16 %v1531, %v1523
    %v1988 = vpack.c.b16 %v1532, %v1524
    %v1989 = vpack.c.b16 %v1533, %v1525
    %v1990 = vpack.c.b16 %v1534, %v1526
    %v1991 = vpack.c.b16 %v1535, %v1527
    %v1992 = vpack.c.b16 %v1544, %v1536
    %v1993 = vpack.c.b16 %v1545, %v1537
    %v1994 = vpack.c.b16 %v1546, %v1538
    %v1995 = vpack.c.b16 %v1547, %v1539
    %v1996 = vpack.c.b16 %v1548, %v1540
    %v1997 = vpack.c.b16 %v1549, %v1541
    %v1998 = vpack.c.b16 %v1550, %v1542
    %v1999 = vpack.c.b16 %v1551, %v1543
    %v2000 = vpack.c.b16 %v1560, %v1552
    %v2001 = vpack.c.b16 %v1561, %v1553
    %v2002 = vpack.c.b16 %v1562, %v1554
    %v2003 = vpack.c.b16 %v1563, %v1555
    %v2004 = vpack.c.b16 %v1564, %v1556
    %v2005 = vpack.c.b16 %v1565, %v1557
    %v2006 = vpack.c.b16 %v1566, %v1558
    %v2007 = vpack.c.b16 %v1567, %v1559
    %v2008 = vpack.c.b16 %v1576, %v1568
    %v2009 = vpack.c.b16 %v1577, %v1569
    %v2010 = vpack.c.b16 %v1578, %v1570
    %v2011 = vpack.c.b16 %v1579, %v1571
    %v2012 = vpack.c.b16 %v1580, %v1572
    %v2013 = vpack.c.b16 %v1581, %v1573
    %v2014 = vpack.c.b16 %v1582, %v1574
    %v2015 = vpack.c.b16 %v1583, %v1575
    %v2016 = vpack.c.b16 %v1592, %v1584
    %v2017 = vpack.c.b16 %v1593, %v1585
    %v2018 = vpack.c.b16 %v1594, %v1586
    %v2019 = vpack.c.b16 %v1595, %v1587
    %v2020 = vpack.c.b16 %v1596, %v1588
    %v2021 = vpack.c.b16 %v1597, %v1589
    %v2022 = vpack.c.b16 %v1598, %v1590
    %v2023 = vpack.c.b16 %v1599, %v1591
    %v2024 = vpack.c.b16 %v1608, %v1600
    %v2025 = vpack.c.b16 %v1609, %v1601
    %v2026 = vpack.c.b16 %v1610, %v1602
    %v2027 = vpack.c.b16 %v1611, %v1603
    %v2028 = vpack.c.b16 %v1612, %v1604
    %v2029 = vpack.c.b16 %v1613, %v1605
    %v2030 = vpack.c.b16 %v1614, %v1606
    %v2031 = vpack.c.b16 %v1615, %v1607
    %v2032 = vpack.c.b16 %v1624, %v1616
    %v2033 = vpack.c.b16 %v1625, %v1617
    %v2034 = vpack.c.b16 %v1626, %v1618
    %v2035 = vpack.c.b16 %v1627, %v1619
    %v2036 = vpack.c.b16 %v1628, %v1620
    %v2037 = vpack.c.b16 %v1629, %v1621
    %v2038 = vpack.c.b16 %v1630, %v1622
    %v2039 = vpack.c.b16 %v1631, %v1623
    %v2040 = vpack.c.b16 %v1640, %v1632
    %v2041 = vpack.c.b16 %v1641, %v1633
    %v2042 = vpack.c.b16 %v1642, %v1634
    %v2043 = vpack.c.b16 %v1643, %v1635
    %v2044 = vpack.c.b16 %v1644, %v1636
    %v2045 = vpack.c.b16 %v1645, %v1637
    %v2046 = vpack.c.b16 %v1646, %v1638
    %v2047 = vpack.c.b16 %v1647, %v1639
    %v2048 = vpack.c.b16 %v1656, %v1648
    %v2049 = vpack.c.b16 %v1657, %v1649
    %v2050 = vpack.c.b16 %v1658, %v1650
    %v2051 = vpack.c.b16 %v1659, %v1651
    %v2052 = vpack.c.b16 %v1660, %v1652
    %v2053 = vpack.c.b16 %v1661, %v1653
    %v2054 = vpack.c.b16 %v1662, %v1654
    %v2055 = vpack.c.b16 %v1663, %v1655
    %v2056 = vpack.c.b16 %v1672, %v1664
    %v2057 = vpack.c.b16 %v1673, %v1665
    %v2058 = vpack.c.b16 %v1674, %v1666
    %v2059 = vpack.c.b16 %v1675, %v1667
    %v2060 = vpack.c.b16 %v1676, %v1668
    %v2061 = vpack.c.b16 %v1677, %v1669
    %v2062 = vpack.c.b16 %v1678, %v1670
    %v2063 = vpack.c.b16 %v1679, %v1671
    %v2064 = vpack.c.b16 %v1688, %v1680
    %v2065 = vpack.c.b16 %v1689, %v1681
    %v2066 = vpack.c.b16 %v1690, %v1682
    %v2067 = vpack.c.b16 %v1691, %v1683
    %v2068 = vpack.c.b16 %v1692, %v1684
    %v2069 = vpack.c.b16 %v1693, %v1685
    %v2070 = vpack.c.b16 %v1694, %v1686
    %v2071 = vpack.c.b16 %v1695, %v1687
    %v2072 = vpack.c.b16 %v1704, %v1696
    %v2073 = vpack.c.b16 %v1705, %v1697
    %v2074 = vpack.c.b16 %v1706, %v1698
    %v2075 = vpack.c.b16 %v1707, %v1699
    %v2076 = vpack.c.b16 %v1708, %v1700
    %v2077 = vpack.c.b16 %v1709, %v1701
    %v2078 = vpack.c.b16 %v1710, %v1702
    %v2079 = vpack.c.b16 %v1711, %v1703
    %v2080 = vpack.c.b16 %v1720, %v1712
    %v2081 = vpack.c.b16 %v1721, %v1713
    %v2082 = vpack.c.b16 %v1722, %v1714
    %v2083 = vpack.c.b16 %v1723, %v1715
    %v2084 = vpack.c.b16 %v1724, %v1716
    %v2085 = vpack.c.b16 %v1725, %v1717
    %v2086 = vpack.c.b16 %v1726, %v1718
    %v2087 = vpack.c.b16 %v1727, %v1719
    %v2088 = vpack.c.b16 %v1736, %v1728
    %v2089 = vpack.c.b16 %v1737, %v1729
    %v2090 = vpack.c.b16 %v1738, %v1730
    %v2091 = vpack.c.b16 %v1739, %v1731
    %v2092 = vpack.c.b16 %v1740, %v1732
    %v2093 = vpack.c.b16 %v1741, %v1733
    %v2094 = vpack.c.b16 %v1742, %v1734
    %v2095 = vpack.c.b16 %v1743, %v1735
    %v2096 = vpack.c.b16 %v1752, %v1744
    %v2097 = vpack.c.b16 %v1753, %v1745
    %v2098 = vpack.c.b16 %v1754, %v1746
    %v2099 = vpack.c.b16 %v1755, %v1747
    %v2100 = vpack.c.b16 %v1756, %v1748
    %v2101 = vpack.c.b16 %v1757, %v1749
    %v2102 = vpack.c.b16 %v1758, %v1750
    %v2103 = vpack.c.b16 %v1759, %v1751
    %v2104 = vpack.c.b16 %v1768, %v1760
    %v2105 = vpack.c.b16 %v1769, %v1761
    %v2106 = vpack.c.b16 %v1770, %v1762
    %v2107 = vpack.c.b16 %v1771, %v1763
    %v2108 = vpack.c.b16 %v1772, %v1764
    %v2109 = vpack.c.b16 %v1773, %v1765
    %v2110 = vpack.c.b16 %v1774, %v1766
    %v2111 = vpack.c.b16 %v1775, %v1767
    %v2112 = vpack.c.b16 %v1784, %v1776
    %v2113 = vpack.c.b16 %v1785, %v1777
    %v2114 = vpack.c.b16 %v1786, %v1778
    %v2115 = vpack.c.b16 %v1787, %v1779
    %v2116 = vpack.c.b16 %v1788, %v1780
    %v2117 = vpack.c.b16 %v1789, %v1781
    %v2118 = vpack.c.b16 %v1790, %v1782
    %v2119 = vpack.c.b16 %v1791, %v1783
    %v2120 = vpack.c.b16 %v1800, %v1792
    %v2121 = vpack.c.b16 %v1801, %v1793
    %v2122 = vpack.c.b16 %v1802, %v1794
    %v2123 = vpack.c.b16 %v1803, %v1795
    %v2124 = vpack.c.b16 %v1804, %v1796
    %v2125 = vpack.c.b16 %v1805, %v1797
    %v2126 = vpack.c.b16 %v1806, %v1798
    %v2127 = vpack.c.b16 %v1807, %v1799
    %v2128 = vpack.c.b16 %v1816, %v1808
    %v2129 = vpack.c.b16 %v1817, %v1809
    %v2130 = vpack.c.b16 %v1818, %v1810
    %v2131 = vpack.c.b16 %v1819, %v1811
    %v2132 = vpack.c.b16 %v1820, %v1812
    %v2133 = vpack.c.b16 %v1821, %v1813
    %v2134 = vpack.c.b16 %v1822, %v1814
    %v2135 = vpack.c.b16 %v1823, %v1815
    %v2136 = vpack.c.b16 %v1832, %v1824
    %v2137 = vpack.c.b16 %v1833, %v1825
    %v2138 = vpack.c.b16 %v1834, %v1826
    %v2139 = vpack.c.b16 %v1835, %v1827
    %v2140 = vpack.c.b16 %v1836, %v1828
    %v2141 = vpack.c.b16 %v1837, %v1829
    %v2142 = vpack.c.b16 %v1838, %v1830
    %v2143 = vpack.c.b16 %v1839, %v1831
    %v2144 = vpack.c.b16 %v1848, %v1840
    %v2145 = vpack.c.b16 %v1849, %v1841
    %v2146 = vpack.c.b16 %v1850, %v1842
    %v2147 = vpack.c.b16 %v1851, %v1843
    %v2148 = vpack.c.b16 %v1852, %v1844
    %v2149 = vpack.c.b16 %v1853, %v1845
    %v2150 = vpack.c.b16 %v1854, %v1846
    %v2151 = vpack.c.b16 %v1855, %v1847
    %v2152 = vpack.c.b16 %v1864, %v1856
    %v2153 = vpack.c.b16 %v1865, %v1857
    %v2154 = vpack.c.b16 %v1866, %v1858
    %v2155 = vpack.c.b16 %v1867, %v1859
    %v2156 = vpack.c.b16 %v1868, %v1860
    %v2157 = vpack.c.b16 %v1869, %v1861
    %v2158 = vpack.c.b16 %v1870, %v1862
    %v2159 = vpack.c.b16 %v1871, %v1863
    %v2160 = vpack.c.b16 %v1880, %v1872
    %v2161 = vpack.c.b16 %v1881, %v1873
    %v2162 = vpack.c.b16 %v1882, %v1874
    %v2163 = vpack.c.b16 %v1883, %v1875
    %v2164 = vpack.c.b16 %v1884, %v1876
    %v2165 = vpack.c.b16 %v1885, %v1877
    %v2166 = vpack.c.b16 %v1886, %v1878
    %v2167 = vpack.c.b16 %v1887, %v1879
    %v2168 = vpack.c.b16 %v1896, %v1888
    %v2169 = vpack.c.b16 %v1897, %v1889
    %v2170 = vpack.c.b16 %v1898, %v1890
    %v2171 = vpack.c.b16 %v1899, %v1891
    %v2172 = vpack.c.b16 %v1900, %v1892
    %v2173 = vpack.c.b16 %v1901, %v1893
    %v2174 = vpack.c.b16 %v1902, %v1894
    %v2175 = vpack.c.b16 %v1903, %v1895
    %v2176 = vpack.c.b16 %v1912, %v1904
    %v2177 = vpack.c.b16 %v1913, %v1905
    %v2178 = vpack.c.b16 %v1914, %v1906
    %v2179 = vpack.c.b16 %v1915, %v1907
    %v2180 = vpack.c.b16 %v1916, %v1908
    %v2181 = vpack.c.b16 %v1917, %v1909
    %v2182 = vpack.c.b16 %v1918, %v1910
    %v2183 = vpack.c.b16 %v1919, %v1911
    %v2184 = vpack.c.b16 %v1928, %v1920
    %v2185 = vpack.c.b16 %v1929, %v1921
    %v2186 = vpack.c.b16 %v1930, %v1922
    %v2187 = vpack.c.b16 %v1931, %v1923
    %v2188 = vpack.c.b16 %v1932, %v1924
    %v2189 = vpack.c.b16 %v1933, %v1925
    %v2190 = vpack.c.b16 %v1934, %v1926
    %v2191 = vpack.c.b16 %v1935, %v1927
    %2448 = vmatpush.bf16.msra.mxu0 %v1992
    %2449 = vmatpush.bf16.msra.mxu0 %v1984
    %2450 = vmatpush.bf16.msra.mxu0 %v1976
    %2451 = vmatpush.bf16.msra.mxu0 %v1968
    %2452 = vmatpush.bf16.msra.mxu0 %v1960
    %2453 = vmatpush.bf16.msra.mxu0 %v1952
    %2454 = vmatpush.bf16.msra.mxu0 %v1944
    %2455 = vmatpush.bf16.msra.mxu0 %v1936
    %2456 = vmatmul.bf16.gmra.mxu0 %v1164
    %v2457 = vpop.f32.mrf.mxu0
    %v2458 = vadd.f32 0.0, %v2457
    %v2459 = vpop.f32.mrf.mxu0
    %2460 = vdwg.mxu0
    %2461 = vmatpush.bf16.msra.mxu0 %v2056
    %2462 = vmatpush.bf16.msra.mxu0 %v2048
    %2463 = vmatpush.bf16.msra.mxu0 %v2040
    %2464 = vmatpush.bf16.msra.mxu0 %v2032
    %2465 = vmatpush.bf16.msra.mxu0 %v2024
    %2466 = vmatpush.bf16.msra.mxu0 %v2016
    %2467 = vmatpush.bf16.msra.mxu0 %v2008
    %2468 = vmatpush.bf16.msra.mxu0 %v2000
    %2469 = vmatmul.bf16.gmra.mxu0 %v1165
    %v2470 = vpop.f32.mrf.mxu0
    %v2471 = vadd.f32 %v2458, %v2470
    %v2472 = vpop.f32.mrf.mxu0
    %2473 = vdwg.mxu0
    %2474 = vmatpush.bf16.msra.mxu0 %v2120
    %2475 = vmatpush.bf16.msra.mxu0 %v2112
    %2476 = vmatpush.bf16.msra.mxu0 %v2104
    %2477 = vmatpush.bf16.msra.mxu0 %v2096
    %2478 = vmatpush.bf16.msra.mxu0 %v2088
    %2479 = vmatpush.bf16.msra.mxu0 %v2080
    %2480 = vmatpush.bf16.msra.mxu0 %v2072
    %2481 = vmatpush.bf16.msra.mxu0 %v2064
    %2482 = vmatmul.bf16.gmra.mxu0 %v1166
    %v2483 = vpop.f32.mrf.mxu0
    %v2484 = vadd.f32 %v2471, %v2483
    %v2485 = vpop.f32.mrf.mxu0
    %2486 = vdwg.mxu0
    %2487 = vmatpush.bf16.msra.mxu0 %v2184
    %2488 = vmatpush.bf16.msra.mxu0 %v2176
    %2489 = vmatpush.bf16.msra.mxu0 %v2168
    %2490 = vmatpush.bf16.msra.mxu0 %v2160
    %2491 = vmatpush.bf16.msra.mxu0 %v2152
    %2492 = vmatpush.bf16.msra.mxu0 %v2144
    %2493 = vmatpush.bf16.msra.mxu0 %v2136
    %2494 = vmatpush.bf16.msra.mxu0 %v2128
    %2495 = vmatmul.bf16.gmra.mxu0 %v1167
    %v2496 = vpop.f32.mrf.mxu0
    %v2497 = vadd.f32 %v2484, %v2496
    %v2498 = vpop.f32.mrf.mxu0
    %2499 = vdwg.mxu0
    %2500 = vmatpush.bf16.msra.mxu0 %v1993
    %2501 = vmatpush.bf16.msra.mxu0 %v1985
    %2502 = vmatpush.bf16.msra.mxu0 %v1977
    %2503 = vmatpush.bf16.msra.mxu0 %v1969
    %2504 = vmatpush.bf16.msra.mxu0 %v1961
    %2505 = vmatpush.bf16.msra.mxu0 %v1953
    %2506 = vmatpush.bf16.msra.mxu0 %v1945
    %2507 = vmatpush.bf16.msra.mxu0 %v1937
    %2508 = vmatmul.bf16.gmra.mxu0 %v1164
    %v2509 = vpop.f32.mrf.mxu0
    %v2510 = vadd.f32 0.0, %v2509
    %v2511 = vpop.f32.mrf.mxu0
    %2512 = vdwg.mxu0
    %2513 = vmatpush.bf16.msra.mxu0 %v2057
    %2514 = vmatpush.bf16.msra.mxu0 %v2049
    %2515 = vmatpush.bf16.msra.mxu0 %v2041
    %2516 = vmatpush.bf16.msra.mxu0 %v2033
    %2517 = vmatpush.bf16.msra.mxu0 %v2025
    %2518 = vmatpush.bf16.msra.mxu0 %v2017
    %2519 = vmatpush.bf16.msra.mxu0 %v2009
    %2520 = vmatpush.bf16.msra.mxu0 %v2001
    %2521 = vmatmul.bf16.gmra.mxu0 %v1165
    %v2522 = vpop.f32.mrf.mxu0
    %v2523 = vadd.f32 %v2510, %v2522
    %v2524 = vpop.f32.mrf.mxu0
    %2525 = vdwg.mxu0
    %2526 = vmatpush.bf16.msra.mxu0 %v2121
    %2527 = vmatpush.bf16.msra.mxu0 %v2113
    %2528 = vmatpush.bf16.msra.mxu0 %v2105
    %2529 = vmatpush.bf16.msra.mxu0 %v2097
    %2530 = vmatpush.bf16.msra.mxu0 %v2089
    %2531 = vmatpush.bf16.msra.mxu0 %v2081
    %2532 = vmatpush.bf16.msra.mxu0 %v2073
    %2533 = vmatpush.bf16.msra.mxu0 %v2065
    %2534 = vmatmul.bf16.gmra.mxu0 %v1166
    %v2535 = vpop.f32.mrf.mxu0
    %v2536 = vadd.f32 %v2523, %v2535
    %v2537 = vpop.f32.mrf.mxu0
    %2538 = vdwg.mxu0
    %2539 = vmatpush.bf16.msra.mxu0 %v2185
    %2540 = vmatpush.bf16.msra.mxu0 %v2177
    %2541 = vmatpush.bf16.msra.mxu0 %v2169
    %2542 = vmatpush.bf16.msra.mxu0 %v2161
    %2543 = vmatpush.bf16.msra.mxu0 %v2153
    %2544 = vmatpush.bf16.msra.mxu0 %v2145
    %2545 = vmatpush.bf16.msra.mxu0 %v2137
    %2546 = vmatpush.bf16.msra.mxu0 %v2129
    %2547 = vmatmul.bf16.gmra.mxu0 %v1167
    %v2548 = vpop.f32.mrf.mxu0
    %v2549 = vadd.f32 %v2536, %v2548
    %v2550 = vpop.f32.mrf.mxu0
    %2551 = vdwg.mxu0
    %2552 = vmatpush.bf16.msra.mxu0 %v1994
    %2553 = vmatpush.bf16.msra.mxu0 %v1986
    %2554 = vmatpush.bf16.msra.mxu0 %v1978
    %2555 = vmatpush.bf16.msra.mxu0 %v1970
    %2556 = vmatpush.bf16.msra.mxu0 %v1962
    %2557 = vmatpush.bf16.msra.mxu0 %v1954
    %2558 = vmatpush.bf16.msra.mxu0 %v1946
    %2559 = vmatpush.bf16.msra.mxu0 %v1938
    %2560 = vmatmul.bf16.gmra.mxu0 %v1164
    %v2561 = vpop.f32.mrf.mxu0
    %v2562 = vadd.f32 0.0, %v2561
    %v2563 = vpop.f32.mrf.mxu0
    %2564 = vdwg.mxu0
    %2565 = vmatpush.bf16.msra.mxu0 %v2058
    %2566 = vmatpush.bf16.msra.mxu0 %v2050
    %2567 = vmatpush.bf16.msra.mxu0 %v2042
    %2568 = vmatpush.bf16.msra.mxu0 %v2034
    %2569 = vmatpush.bf16.msra.mxu0 %v2026
    %2570 = vmatpush.bf16.msra.mxu0 %v2018
    %2571 = vmatpush.bf16.msra.mxu0 %v2010
    %2572 = vmatpush.bf16.msra.mxu0 %v2002
    %2573 = vmatmul.bf16.gmra.mxu0 %v1165
    %v2574 = vpop.f32.mrf.mxu0
    %v2575 = vadd.f32 %v2562, %v2574
    %v2576 = vpop.f32.mrf.mxu0
    %2577 = vdwg.mxu0
    %2578 = vmatpush.bf16.msra.mxu0 %v2122
    %2579 = vmatpush.bf16.msra.mxu0 %v2114
    %2580 = vmatpush.bf16.msra.mxu0 %v2106
    %2581 = vmatpush.bf16.msra.mxu0 %v2098
    %2582 = vmatpush.bf16.msra.mxu0 %v2090
    %2583 = vmatpush.bf16.msra.mxu0 %v2082
    %2584 = vmatpush.bf16.msra.mxu0 %v2074
    %2585 = vmatpush.bf16.msra.mxu0 %v2066
    %2586 = vmatmul.bf16.gmra.mxu0 %v1166
    %v2587 = vpop.f32.mrf.mxu0
    %v2588 = vadd.f32 %v2575, %v2587
    %v2589 = vpop.f32.mrf.mxu0
    %2590 = vdwg.mxu0
    %2591 = vmatpush.bf16.msra.mxu0 %v2186
    %2592 = vmatpush.bf16.msra.mxu0 %v2178
    %2593 = vmatpush.bf16.msra.mxu0 %v2170
    %2594 = vmatpush.bf16.msra.mxu0 %v2162
    %2595 = vmatpush.bf16.msra.mxu0 %v2154
    %2596 = vmatpush.bf16.msra.mxu0 %v2146
    %2597 = vmatpush.bf16.msra.mxu0 %v2138
    %2598 = vmatpush.bf16.msra.mxu0 %v2130
    %2599 = vmatmul.bf16.gmra.mxu0 %v1167
    %v2600 = vpop.f32.mrf.mxu0
    %v2601 = vadd.f32 %v2588, %v2600
    %v2602 = vpop.f32.mrf.mxu0
    %2603 = vdwg.mxu0
    %2604 = vmatpush.bf16.msra.mxu0 %v1995
    %2605 = vmatpush.bf16.msra.mxu0 %v1987
    %2606 = vmatpush.bf16.msra.mxu0 %v1979
    %2607 = vmatpush.bf16.msra.mxu0 %v1971
    %2608 = vmatpush.bf16.msra.mxu0 %v1963
    %2609 = vmatpush.bf16.msra.mxu0 %v1955
    %2610 = vmatpush.bf16.msra.mxu0 %v1947
    %2611 = vmatpush.bf16.msra.mxu0 %v1939
    %2612 = vmatmul.bf16.gmra.mxu0 %v1164
    %v2613 = vpop.f32.mrf.mxu0
    %v2614 = vadd.f32 0.0, %v2613
    %v2615 = vpop.f32.mrf.mxu0
    %2616 = vdwg.mxu0
    %2617 = vmatpush.bf16.msra.mxu0 %v2059
    %2618 = vmatpush.bf16.msra.mxu0 %v2051
    %2619 = vmatpush.bf16.msra.mxu0 %v2043
    %2620 = vmatpush.bf16.msra.mxu0 %v2035
    %2621 = vmatpush.bf16.msra.mxu0 %v2027
    %2622 = vmatpush.bf16.msra.mxu0 %v2019
    %2623 = vmatpush.bf16.msra.mxu0 %v2011
    %2624 = vmatpush.bf16.msra.mxu0 %v2003
    %2625 = vmatmul.bf16.gmra.mxu0 %v1165
    %v2626 = vpop.f32.mrf.mxu0
    %v2627 = vadd.f32 %v2614, %v2626
    %v2628 = vpop.f32.mrf.mxu0
    %2629 = vdwg.mxu0
    %2630 = vmatpush.bf16.msra.mxu0 %v2123
    %2631 = vmatpush.bf16.msra.mxu0 %v2115
    %2632 = vmatpush.bf16.msra.mxu0 %v2107
    %2633 = vmatpush.bf16.msra.mxu0 %v2099
    %2634 = vmatpush.bf16.msra.mxu0 %v2091
    %2635 = vmatpush.bf16.msra.mxu0 %v2083
    %2636 = vmatpush.bf16.msra.mxu0 %v2075
    %2637 = vmatpush.bf16.msra.mxu0 %v2067
    %2638 = vmatmul.bf16.gmra.mxu0 %v1166
    %v2639 = vpop.f32.mrf.mxu0
    %v2640 = vadd.f32 %v2627, %v2639
    %v2641 = vpop.f32.mrf.mxu0
    %2642 = vdwg.mxu0
    %2643 = vmatpush.bf16.msra.mxu0 %v2187
    %2644 = vmatpush.bf16.msra.mxu0 %v2179
    %2645 = vmatpush.bf16.msra.mxu0 %v2171
    %2646 = vmatpush.bf16.msra.mxu0 %v2163
    %2647 = vmatpush.bf16.msra.mxu0 %v2155
    %2648 = vmatpush.bf16.msra.mxu0 %v2147
    %2649 = vmatpush.bf16.msra.mxu0 %v2139
    %2650 = vmatpush.bf16.msra.mxu0 %v2131
    %2651 = vmatmul.bf16.gmra.mxu0 %v1167
    %v2652 = vpop.f32.mrf.mxu0
    %v2653 = vadd.f32 %v2640, %v2652
    %v2654 = vpop.f32.mrf.mxu0
    %2655 = vdwg.mxu0
    %2656 = vmatpush.bf16.msra.mxu0 %v1996
    %2657 = vmatpush.bf16.msra.mxu0 %v1988
    %2658 = vmatpush.bf16.msra.mxu0 %v1980
    %2659 = vmatpush.bf16.msra.mxu0 %v1972
    %2660 = vmatpush.bf16.msra.mxu0 %v1964
    %2661 = vmatpush.bf16.msra.mxu0 %v1956
    %2662 = vmatpush.bf16.msra.mxu0 %v1948
    %2663 = vmatpush.bf16.msra.mxu0 %v1940
    %2664 = vmatmul.bf16.gmra.mxu0 %v1164
    %v2665 = vpop.f32.mrf.mxu0
    %v2666 = vadd.f32 0.0, %v2665
    %v2667 = vpop.f32.mrf.mxu0
    %2668 = vdwg.mxu0
    %2669 = vmatpush.bf16.msra.mxu0 %v2060
    %2670 = vmatpush.bf16.msra.mxu0 %v2052
    %2671 = vmatpush.bf16.msra.mxu0 %v2044
    %2672 = vmatpush.bf16.msra.mxu0 %v2036
    %2673 = vmatpush.bf16.msra.mxu0 %v2028
    %2674 = vmatpush.bf16.msra.mxu0 %v2020
    %2675 = vmatpush.bf16.msra.mxu0 %v2012
    %2676 = vmatpush.bf16.msra.mxu0 %v2004
    %2677 = vmatmul.bf16.gmra.mxu0 %v1165
    %v2678 = vpop.f32.mrf.mxu0
    %v2679 = vadd.f32 %v2666, %v2678
    %v2680 = vpop.f32.mrf.mxu0
    %2681 = vdwg.mxu0
    %2682 = vmatpush.bf16.msra.mxu0 %v2124
    %2683 = vmatpush.bf16.msra.mxu0 %v2116
    %2684 = vmatpush.bf16.msra.mxu0 %v2108
    %2685 = vmatpush.bf16.msra.mxu0 %v2100
    %2686 = vmatpush.bf16.msra.mxu0 %v2092
    %2687 = vmatpush.bf16.msra.mxu0 %v2084
    %2688 = vmatpush.bf16.msra.mxu0 %v2076
    %2689 = vmatpush.bf16.msra.mxu0 %v2068
    %2690 = vmatmul.bf16.gmra.mxu0 %v1166
    %v2691 = vpop.f32.mrf.mxu0
    %v2692 = vadd.f32 %v2679, %v2691
    %v2693 = vpop.f32.mrf.mxu0
    %2694 = vdwg.mxu0
    %2695 = vmatpush.bf16.msra.mxu0 %v2188
    %2696 = vmatpush.bf16.msra.mxu0 %v2180
    %2697 = vmatpush.bf16.msra.mxu0 %v2172
    %2698 = vmatpush.bf16.msra.mxu0 %v2164
    %2699 = vmatpush.bf16.msra.mxu0 %v2156
    %2700 = vmatpush.bf16.msra.mxu0 %v2148
    %2701 = vmatpush.bf16.msra.mxu0 %v2140
    %2702 = vmatpush.bf16.msra.mxu0 %v2132
    %2703 = vmatmul.bf16.gmra.mxu0 %v1167
    %v2704 = vpop.f32.mrf.mxu0
    %v2705 = vadd.f32 %v2692, %v2704
    %v2706 = vpop.f32.mrf.mxu0
    %2707 = vdwg.mxu0
    %2708 = vmatpush.bf16.msra.mxu0 %v1997
    %2709 = vmatpush.bf16.msra.mxu0 %v1989
    %2710 = vmatpush.bf16.msra.mxu0 %v1981
    %2711 = vmatpush.bf16.msra.mxu0 %v1973
    %2712 = vmatpush.bf16.msra.mxu0 %v1965
    %2713 = vmatpush.bf16.msra.mxu0 %v1957
    %2714 = vmatpush.bf16.msra.mxu0 %v1949
    %2715 = vmatpush.bf16.msra.mxu0 %v1941
    %2716 = vmatmul.bf16.gmra.mxu0 %v1164
    %v2717 = vpop.f32.mrf.mxu0
    %v2718 = vadd.f32 0.0, %v2717
    %v2719 = vpop.f32.mrf.mxu0
    %2720 = vdwg.mxu0
    %2721 = vmatpush.bf16.msra.mxu0 %v2061
    %2722 = vmatpush.bf16.msra.mxu0 %v2053
    %2723 = vmatpush.bf16.msra.mxu0 %v2045
    %2724 = vmatpush.bf16.msra.mxu0 %v2037
    %2725 = vmatpush.bf16.msra.mxu0 %v2029
    %2726 = vmatpush.bf16.msra.mxu0 %v2021
    %2727 = vmatpush.bf16.msra.mxu0 %v2013
    %2728 = vmatpush.bf16.msra.mxu0 %v2005
    %2729 = vmatmul.bf16.gmra.mxu0 %v1165
    %v2730 = vpop.f32.mrf.mxu0
    %v2731 = vadd.f32 %v2718, %v2730
    %v2732 = vpop.f32.mrf.mxu0
    %2733 = vdwg.mxu0
    %2734 = vmatpush.bf16.msra.mxu0 %v2125
    %2735 = vmatpush.bf16.msra.mxu0 %v2117
    %2736 = vmatpush.bf16.msra.mxu0 %v2109
    %2737 = vmatpush.bf16.msra.mxu0 %v2101
    %2738 = vmatpush.bf16.msra.mxu0 %v2093
    %2739 = vmatpush.bf16.msra.mxu0 %v2085
    %2740 = vmatpush.bf16.msra.mxu0 %v2077
    %2741 = vmatpush.bf16.msra.mxu0 %v2069
    %2742 = vmatmul.bf16.gmra.mxu0 %v1166
    %v2743 = vpop.f32.mrf.mxu0
    %v2744 = vadd.f32 %v2731, %v2743
    %v2745 = vpop.f32.mrf.mxu0
    %2746 = vdwg.mxu0
    %2747 = vmatpush.bf16.msra.mxu0 %v2189
    %2748 = vmatpush.bf16.msra.mxu0 %v2181
    %2749 = vmatpush.bf16.msra.mxu0 %v2173
    %2750 = vmatpush.bf16.msra.mxu0 %v2165
    %2751 = vmatpush.bf16.msra.mxu0 %v2157
    %2752 = vmatpush.bf16.msra.mxu0 %v2149
    %2753 = vmatpush.bf16.msra.mxu0 %v2141
    %2754 = vmatpush.bf16.msra.mxu0 %v2133
    %2755 = vmatmul.bf16.gmra.mxu0 %v1167
    %v2756 = vpop.f32.mrf.mxu0
    %v2757 = vadd.f32 %v2744, %v2756
    %v2758 = vpop.f32.mrf.mxu0
    %2759 = vdwg.mxu0
    %2760 = vmatpush.bf16.msra.mxu0 %v1998
    %2761 = vmatpush.bf16.msra.mxu0 %v1990
    %2762 = vmatpush.bf16.msra.mxu0 %v1982
    %2763 = vmatpush.bf16.msra.mxu0 %v1974
    %2764 = vmatpush.bf16.msra.mxu0 %v1966
    %2765 = vmatpush.bf16.msra.mxu0 %v1958
    %2766 = vmatpush.bf16.msra.mxu0 %v1950
    %2767 = vmatpush.bf16.msra.mxu0 %v1942
    %2768 = vmatmul.bf16.gmra.mxu0 %v1164
    %v2769 = vpop.f32.mrf.mxu0
    %v2770 = vadd.f32 0.0, %v2769
    %v2771 = vpop.f32.mrf.mxu0
    %2772 = vdwg.mxu0
    %2773 = vmatpush.bf16.msra.mxu0 %v2062
    %2774 = vmatpush.bf16.msra.mxu0 %v2054
    %2775 = vmatpush.bf16.msra.mxu0 %v2046
    %2776 = vmatpush.bf16.msra.mxu0 %v2038
    %2777 = vmatpush.bf16.msra.mxu0 %v2030
    %2778 = vmatpush.bf16.msra.mxu0 %v2022
    %2779 = vmatpush.bf16.msra.mxu0 %v2014
    %2780 = vmatpush.bf16.msra.mxu0 %v2006
    %2781 = vmatmul.bf16.gmra.mxu0 %v1165
    %v2782 = vpop.f32.mrf.mxu0
    %v2783 = vadd.f32 %v2770, %v2782
    %v2784 = vpop.f32.mrf.mxu0
    %2785 = vdwg.mxu0
    %2786 = vmatpush.bf16.msra.mxu0 %v2126
    %2787 = vmatpush.bf16.msra.mxu0 %v2118
    %2788 = vmatpush.bf16.msra.mxu0 %v2110
    %2789 = vmatpush.bf16.msra.mxu0 %v2102
    %2790 = vmatpush.bf16.msra.mxu0 %v2094
    %2791 = vmatpush.bf16.msra.mxu0 %v2086
    %2792 = vmatpush.bf16.msra.mxu0 %v2078
    %2793 = vmatpush.bf16.msra.mxu0 %v2070
    %2794 = vmatmul.bf16.gmra.mxu0 %v1166
    %v2795 = vpop.f32.mrf.mxu0
    %v2796 = vadd.f32 %v2783, %v2795
    %v2797 = vpop.f32.mrf.mxu0
    %2798 = vdwg.mxu0
    %2799 = vmatpush.bf16.msra.mxu0 %v2190
    %2800 = vmatpush.bf16.msra.mxu0 %v2182
    %2801 = vmatpush.bf16.msra.mxu0 %v2174
    %2802 = vmatpush.bf16.msra.mxu0 %v2166
    %2803 = vmatpush.bf16.msra.mxu0 %v2158
    %2804 = vmatpush.bf16.msra.mxu0 %v2150
    %2805 = vmatpush.bf16.msra.mxu0 %v2142
    %2806 = vmatpush.bf16.msra.mxu0 %v2134
    %2807 = vmatmul.bf16.gmra.mxu0 %v1167
    %v2808 = vpop.f32.mrf.mxu0
    %v2809 = vadd.f32 %v2796, %v2808
    %v2810 = vpop.f32.mrf.mxu0
    %2811 = vdwg.mxu0
    %2812 = vmatpush.bf16.msra.mxu0 %v1999
    %2813 = vmatpush.bf16.msra.mxu0 %v1991
    %2814 = vmatpush.bf16.msra.mxu0 %v1983
    %2815 = vmatpush.bf16.msra.mxu0 %v1975
    %2816 = vmatpush.bf16.msra.mxu0 %v1967
    %2817 = vmatpush.bf16.msra.mxu0 %v1959
    %2818 = vmatpush.bf16.msra.mxu0 %v1951
    %2819 = vmatpush.bf16.msra.mxu0 %v1943
    %2820 = vmatmul.bf16.gmra.mxu0 %v1164
    %v2821 = vpop.f32.mrf.mxu0
    %v2822 = vadd.f32 0.0, %v2821
    %v2823 = vpop.f32.mrf.mxu0
    %2824 = vdwg.mxu0
    %2825 = vmatpush.bf16.msra.mxu0 %v2063
    %2826 = vmatpush.bf16.msra.mxu0 %v2055
    %2827 = vmatpush.bf16.msra.mxu0 %v2047
    %2828 = vmatpush.bf16.msra.mxu0 %v2039
    %2829 = vmatpush.bf16.msra.mxu0 %v2031
    %2830 = vmatpush.bf16.msra.mxu0 %v2023
    %2831 = vmatpush.bf16.msra.mxu0 %v2015
    %2832 = vmatpush.bf16.msra.mxu0 %v2007
    %2833 = vmatmul.bf16.gmra.mxu0 %v1165
    %v2834 = vpop.f32.mrf.mxu0
    %v2835 = vadd.f32 %v2822, %v2834
    %v2836 = vpop.f32.mrf.mxu0
    %2837 = vdwg.mxu0
    %2838 = vmatpush.bf16.msra.mxu0 %v2127
    %2839 = vmatpush.bf16.msra.mxu0 %v2119
    %2840 = vmatpush.bf16.msra.mxu0 %v2111
    %2841 = vmatpush.bf16.msra.mxu0 %v2103
    %2842 = vmatpush.bf16.msra.mxu0 %v2095
    %2843 = vmatpush.bf16.msra.mxu0 %v2087
    %2844 = vmatpush.bf16.msra.mxu0 %v2079
    %2845 = vmatpush.bf16.msra.mxu0 %v2071
    %2846 = vmatmul.bf16.gmra.mxu0 %v1166
    %v2847 = vpop.f32.mrf.mxu0
    %v2848 = vadd.f32 %v2835, %v2847
    %v2849 = vpop.f32.mrf.mxu0
    %2850 = vdwg.mxu0
    %2851 = vmatpush.bf16.msra.mxu0 %v2191
    %2852 = vmatpush.bf16.msra.mxu0 %v2183
    %2853 = vmatpush.bf16.msra.mxu0 %v2175
    %2854 = vmatpush.bf16.msra.mxu0 %v2167
    %2855 = vmatpush.bf16.msra.mxu0 %v2159
    %2856 = vmatpush.bf16.msra.mxu0 %v2151
    %2857 = vmatpush.bf16.msra.mxu0 %v2143
    %2858 = vmatpush.bf16.msra.mxu0 %v2135
    %2859 = vmatmul.bf16.gmra.mxu0 %v1167
    %v2860 = vpop.f32.mrf.mxu0
    %v2861 = vadd.f32 %v2848, %v2860
    %v2862 = vpop.f32.mrf.mxu0
    %2863 = vdwg.mxu0
    %v2864 = vld [vmem:[#allocation8 + $0xa] sm:$0xff]
    %v2865 = vld [vmem:[#allocation8 + $0x12] sm:$0xff]
    %v2866 = vrot.slane %v2497, 4
    %v2867 = vadd.f32 %v2497, %v2866
    %v2868 = vrot.slane %v2867, 2
    %v2869 = vadd.f32 %v2867, %v2868
    %v2870 = vrot.slane %v2869, 1
    %v2871 = vadd.f32 %v2869, %v2870
    %v2872 = vrot.slane %v2549, 4
    %v2873 = vadd.f32 %v2549, %v2872
    %v2874 = vrot.slane %v2873, 2
    %v2875 = vadd.f32 %v2873, %v2874
    %v2876 = vrot.slane %v2875, 1
    %v2877 = vadd.f32 %v2875, %v2876
    %v2878 = vrot.slane %v2601, 4
    %v2879 = vadd.f32 %v2601, %v2878
    %v2880 = vrot.slane %v2879, 2
    %v2881 = vadd.f32 %v2879, %v2880
    %v2882 = vrot.slane %v2881, 1
    %v2883 = vadd.f32 %v2881, %v2882
    %v2884 = vrot.slane %v2653, 4
    %v2885 = vadd.f32 %v2653, %v2884
    %v2886 = vrot.slane %v2885, 2
    %v2887 = vadd.f32 %v2885, %v2886
    %v2888 = vrot.slane %v2887, 1
    %v2889 = vadd.f32 %v2887, %v2888
    %v2890 = vrot.slane %v2705, 4
    %v2891 = vadd.f32 %v2705, %v2890
    %v2892 = vrot.slane %v2891, 2
    %v2893 = vadd.f32 %v2891, %v2892
    %v2894 = vrot.slane %v2893, 1
    %v2895 = vadd.f32 %v2893, %v2894
    %v2896 = vrot.slane %v2757, 4
    %v2897 = vadd.f32 %v2757, %v2896
    %v2898 = vrot.slane %v2897, 2
    %v2899 = vadd.f32 %v2897, %v2898
    %v2900 = vrot.slane %v2899, 1
    %v2901 = vadd.f32 %v2899, %v2900
    %v2902 = vrot.slane %v2809, 4
    %v2903 = vadd.f32 %v2809, %v2902
    %v2904 = vrot.slane %v2903, 2
    %v2905 = vadd.f32 %v2903, %v2904
    %v2906 = vrot.slane %v2905, 1
    %v2907 = vadd.f32 %v2905, %v2906
    %v2908 = vrot.slane %v2861, 4
    %v2909 = vadd.f32 %v2861, %v2908
    %v2910 = vrot.slane %v2909, 2
    %v2911 = vadd.f32 %v2909, %v2910
    %v2912 = vrot.slane %v2911, 1
    %v2913 = vadd.f32 %v2911, %v2912
    %v2914 = vmul.f32 %v2871, %v778
    %v2915 = vmul.f32 %v2877, %v778
    %v2916 = vmul.f32 %v2883, %v778
    %v2917 = vmul.f32 %v2889, %v778
    %v2918 = vmul.f32 %v2895, %v778
    %v2919 = vmul.f32 %v2901, %v778
    %v2920 = vmul.f32 %v2907, %v778
    %v2921 = vmul.f32 %v2913, %v778
    %v2922 = vsub.f32 %v2497, %v2914
    %v2923 = vsub.f32 %v2549, %v2915
    %v2924 = vsub.f32 %v2601, %v2916
    %v2925 = vsub.f32 %v2653, %v2917
    %v2926 = vsub.f32 %v2705, %v2918
    %v2927 = vsub.f32 %v2757, %v2919
    %v2928 = vsub.f32 %v2809, %v2920
    %v2929 = vsub.f32 %v2861, %v2921
    %v2930 = vmul.f32 %v2922, %v2922
    %v2931 = vmul.f32 %v2923, %v2923
    %v2932 = vmul.f32 %v2924, %v2924
    %v2933 = vmul.f32 %v2925, %v2925
    %v2934 = vmul.f32 %v2926, %v2926
    %v2935 = vmul.f32 %v2927, %v2927
    %v2936 = vmul.f32 %v2928, %v2928
    %v2937 = vmul.f32 %v2929, %v2929
    %v2938 = vrot.slane %v2930, 4
    %v2939 = vadd.f32 %v2930, %v2938
    %v2940 = vrot.slane %v2939, 2
    %v2941 = vadd.f32 %v2939, %v2940
    %v2942 = vrot.slane %v2941, 1
    %v2943 = vadd.f32 %v2941, %v2942
    %v2944 = vrot.slane %v2931, 4
    %v2945 = vadd.f32 %v2931, %v2944
    %v2946 = vrot.slane %v2945, 2
    %v2947 = vadd.f32 %v2945, %v2946
    %v2948 = vrot.slane %v2947, 1
    %v2949 = vadd.f32 %v2947, %v2948
    %v2950 = vrot.slane %v2932, 4
    %v2951 = vadd.f32 %v2932, %v2950
    %v2952 = vrot.slane %v2951, 2
    %v2953 = vadd.f32 %v2951, %v2952
    %v2954 = vrot.slane %v2953, 1
    %v2955 = vadd.f32 %v2953, %v2954
    %v2956 = vrot.slane %v2933, 4
    %v2957 = vadd.f32 %v2933, %v2956
    %v2958 = vrot.slane %v2957, 2
    %v2959 = vadd.f32 %v2957, %v2958
    %v2960 = vrot.slane %v2959, 1
    %v2961 = vadd.f32 %v2959, %v2960
    %v2962 = vrot.slane %v2934, 4
    %v2963 = vadd.f32 %v2934, %v2962
    %v2964 = vrot.slane %v2963, 2
    %v2965 = vadd.f32 %v2963, %v2964
    %v2966 = vrot.slane %v2965, 1
    %v2967 = vadd.f32 %v2965, %v2966
    %v2968 = vrot.slane %v2935, 4
    %v2969 = vadd.f32 %v2935, %v2968
    %v2970 = vrot.slane %v2969, 2
    %v2971 = vadd.f32 %v2969, %v2970
    %v2972 = vrot.slane %v2971, 1
    %v2973 = vadd.f32 %v2971, %v2972
    %v2974 = vrot.slane %v2936, 4
    %v2975 = vadd.f32 %v2936, %v2974
    %v2976 = vrot.slane %v2975, 2
    %v2977 = vadd.f32 %v2975, %v2976
    %v2978 = vrot.slane %v2977, 1
    %v2979 = vadd.f32 %v2977, %v2978
    %v2980 = vrot.slane %v2937, 4
    %v2981 = vadd.f32 %v2937, %v2980
    %v2982 = vrot.slane %v2981, 2
    %v2983 = vadd.f32 %v2981, %v2982
    %v2984 = vrot.slane %v2983, 1
    %v2985 = vadd.f32 %v2983, %v2984
    %v2986 = vmul.f32 %v2943, %v778
    %v2987 = vmul.f32 %v2949, %v778
    %v2988 = vmul.f32 %v2955, %v778
    %v2989 = vmul.f32 %v2961, %v778
    %v2990 = vmul.f32 %v2967, %v778
    %v2991 = vmul.f32 %v2973, %v778
    %v2992 = vmul.f32 %v2979, %v778
    %v2993 = vmul.f32 %v2985, %v778
    %v2994 = vadd.f32 %v2986, 1e-05
    %v2995 = vadd.f32 %v2987, 1e-05
    %v2996 = vadd.f32 %v2988, 1e-05
    %v2997 = vadd.f32 %v2989, 1e-05
    %v2998 = vadd.f32 %v2990, 1e-05
    %v2999 = vadd.f32 %v2991, 1e-05
    %v3000 = vadd.f32 %v2992, 1e-05
    %v3001 = vadd.f32 %v2993, 1e-05
    %v3002 = vrsqrt.pop %v2994
    %v3003 = vmul.f32 %v3002, %v2994
    %v3004 = vmul.f32 %v3003, %v3002
    %v3005 = vmul.f32 0.5, %v3004
    %v3006 = vsub.f32 1.5, %v3005
    %v3007 = vmul.f32 %v3002, %v3006
    %vm3008 = vweird.f32 %v2994
    %vm3009 = vweird.f32 %v3002
    %vm3010 = vmor %vm3008, %vm3009
    %v3011 = vsel %vm3010, %v3002, %v3007
    %v3012 = vrsqrt.pop %v2995
    %v3013 = vmul.f32 %v3012, %v2995
    %v3014 = vmul.f32 %v3013, %v3012
    %v3015 = vmul.f32 0.5, %v3014
    %v3016 = vsub.f32 1.5, %v3015
    %v3017 = vmul.f32 %v3012, %v3016
    %vm3018 = vweird.f32 %v2995
    %vm3019 = vweird.f32 %v3012
    %vm3020 = vmor %vm3018, %vm3019
    %v3021 = vsel %vm3020, %v3012, %v3017
    %v3022 = vrsqrt.pop %v2996
    %v3023 = vmul.f32 %v3022, %v2996
    %v3024 = vmul.f32 %v3023, %v3022
    %v3025 = vmul.f32 0.5, %v3024
    %v3026 = vsub.f32 1.5, %v3025
    %v3027 = vmul.f32 %v3022, %v3026
    %vm3028 = vweird.f32 %v2996
    %vm3029 = vweird.f32 %v3022
    %vm3030 = vmor %vm3028, %vm3029
    %v3031 = vsel %vm3030, %v3022, %v3027
    %v3032 = vrsqrt.pop %v2997
    %v3033 = vmul.f32 %v3032, %v2997
    %v3034 = vmul.f32 %v3033, %v3032
    %v3035 = vmul.f32 0.5, %v3034
    %v3036 = vsub.f32 1.5, %v3035
    %v3037 = vmul.f32 %v3032, %v3036
    %vm3038 = vweird.f32 %v2997
    %vm3039 = vweird.f32 %v3032
    %vm3040 = vmor %vm3038, %vm3039
    %v3041 = vsel %vm3040, %v3032, %v3037
    %v3042 = vrsqrt.pop %v2998
    %v3043 = vmul.f32 %v3042, %v2998
    %v3044 = vmul.f32 %v3043, %v3042
    %v3045 = vmul.f32 0.5, %v3044
    %v3046 = vsub.f32 1.5, %v3045
    %v3047 = vmul.f32 %v3042, %v3046
    %vm3048 = vweird.f32 %v2998
    %vm3049 = vweird.f32 %v3042
    %vm3050 = vmor %vm3048, %vm3049
    %v3051 = vsel %vm3050, %v3042, %v3047
    %v3052 = vrsqrt.pop %v2999
    %v3053 = vmul.f32 %v3052, %v2999
    %v3054 = vmul.f32 %v3053, %v3052
    %v3055 = vmul.f32 0.5, %v3054
    %v3056 = vsub.f32 1.5, %v3055
    %v3057 = vmul.f32 %v3052, %v3056
    %vm3058 = vweird.f32 %v2999
    %vm3059 = vweird.f32 %v3052
    %vm3060 = vmor %vm3058, %vm3059
    %v3061 = vsel %vm3060, %v3052, %v3057
    %v3062 = vrsqrt.pop %v3000
    %v3063 = vmul.f32 %v3062, %v3000
    %v3064 = vmul.f32 %v3063, %v3062
    %v3065 = vmul.f32 0.5, %v3064
    %v3066 = vsub.f32 1.5, %v3065
    %v3067 = vmul.f32 %v3062, %v3066
    %vm3068 = vweird.f32 %v3000
    %vm3069 = vweird.f32 %v3062
    %vm3070 = vmor %vm3068, %vm3069
    %v3071 = vsel %vm3070, %v3062, %v3067
    %v3072 = vrsqrt.pop %v3001
    %v3073 = vmul.f32 %v3072, %v3001
    %v3074 = vmul.f32 %v3073, %v3072
    %v3075 = vmul.f32 0.5, %v3074
    %v3076 = vsub.f32 1.5, %v3075
    %v3077 = vmul.f32 %v3072, %v3076
    %vm3078 = vweird.f32 %v3001
    %vm3079 = vweird.f32 %v3072
    %vm3080 = vmor %vm3078, %vm3079
    %v3081 = vsel %vm3080, %v3072, %v3077
    %v3090 = vrot.slane %v3021, 7
    %v3091 = vrot.slane %v3031, 6
    %v3092 = vrot.slane %v3041, 5
    %v3093 = vrot.slane %v3051, 4
    %v3094 = vrot.slane %v3061, 3
    %v3095 = vrot.slane %v3071, 2
    %v3096 = vrot.slane %v3081, 1
    %v3097 = vsel %vm870, %v3011, %v3090
    %v3098 = vsel %vm872, %v3091, %v3092
    %v3099 = vsel %vm874, %v3097, %v3098
    %vm3100 = vcmask 1044484
    %v3101 = vsel %vm3100, %v3093, %v3094
    %vm3102 = vcmask 1046534
    %v3103 = vsel %vm3102, %v3095, %v3096
    %vm3104 = vcmask 1045508
    %v3105 = vsel %vm3104, %v3101, %v3103
    %vm3106 = vcmask 1043456
    %v3107 = vsel %vm3106, %v3099, %v3105
    %v3109 = vmul.f32 %v2864, %v3107
    %v3111 = vperm.slane %v3109, 0
    %v3112 = vperm.slane %v3109, 1
    %v3113 = vperm.slane %v3109, 2
    %v3114 = vperm.slane %v3109, 3
    %v3115 = vperm.slane %v3109, 4
    %v3116 = vperm.slane %v3109, 5
    %v3117 = vperm.slane %v3109, 6
    %v3118 = vperm.slane %v3109, 7
    %v3127 = vmul.f32 %v2922, %v3111
    %v3128 = vmul.f32 %v2923, %v3112
    %v3129 = vmul.f32 %v2924, %v3113
    %v3130 = vmul.f32 %v2925, %v3114
    %v3131 = vmul.f32 %v2926, %v3115
    %v3132 = vmul.f32 %v2927, %v3116
    %v3133 = vmul.f32 %v2928, %v3117
    %v3134 = vmul.f32 %v2929, %v3118
    %v3136 = vperm.slane %v2865, 0
    %v3137 = vperm.slane %v2865, 1
    %v3138 = vperm.slane %v2865, 2
    %v3139 = vperm.slane %v2865, 3
    %v3140 = vperm.slane %v2865, 4
    %v3141 = vperm.slane %v2865, 5
    %v3142 = vperm.slane %v2865, 6
    %v3143 = vperm.slane %v2865, 7
    %v3152 = vadd.f32 %v3127, %v3136
    %v3153 = vadd.f32 %v3128, %v3137
    %v3154 = vadd.f32 %v3129, %v3138
    %v3155 = vadd.f32 %v3130, %v3139
    %v3156 = vadd.f32 %v3131, %v3140
    %v3157 = vadd.f32 %v3132, %v3141
    %v3158 = vadd.f32 %v3133, %v3142
    %v3159 = vadd.f32 %v3134, %v3143
    %v3160 = vmax.f32 %v3152, 0.0
    %v3161 = vmax.f32 %v3153, 0.0
    %v3162 = vmax.f32 %v3154, 0.0
    %v3163 = vmax.f32 %v3155, 0.0
    %v3164 = vmax.f32 %v3156, 0.0
    %v3165 = vmax.f32 %v3157, 0.0
    %v3166 = vmax.f32 %v3158, 0.0
    %v3167 = vmax.f32 %v3159, 0.0
    %s3168 = smul.u32 4, 128
    %s3169 = smul.u32 %s3168, 16
    %s3170 = sshll.u32 %s3169, 4
    %3171 = dma.done [#allocation4], %s3170
    %v3172 = vld [vmem:[#allocation2] sm:$0xff]
    %v3173 = vld [vmem:[#allocation2 + $0x8] sm:$0xff]
    %v3174 = vld [vmem:[#allocation2 + $0x10] sm:$0xff]
    %v3175 = vld [vmem:[#allocation2 + $0x18] sm:$0xff]
    %v3176 = vld [vmem:[#allocation2 + $0x20] sm:$0xff]
    %v3177 = vld [vmem:[#allocation2 + $0x28] sm:$0xff]
    %v3178 = vld [vmem:[#allocation2 + $0x30] sm:$0xff]
    %v3179 = vld [vmem:[#allocation2 + $0x38] sm:$0xff]
    %v3180 = vld [vmem:[#allocation2 + $0x40] sm:$0xff]
    %v3181 = vld [vmem:[#allocation2 + $0x48] sm:$0xff]
    %v3182 = vld [vmem:[#allocation2 + $0x50] sm:$0xff]
    %v3183 = vld [vmem:[#allocation2 + $0x58] sm:$0xff]
    %v3184 = vld [vmem:[#allocation2 + $0x60] sm:$0xff]
    %v3185 = vld [vmem:[#allocation2 + $0x68] sm:$0xff]
    %v3186 = vld [vmem:[#allocation2 + $0x70] sm:$0xff]
    %v3187 = vld [vmem:[#allocation2 + $0x78] sm:$0xff]
    %v3188 = vld [vmem:[#allocation2 + $0x80] sm:$0xff]
    %v3189 = vld [vmem:[#allocation2 + $0x88] sm:$0xff]
    %v3190 = vld [vmem:[#allocation2 + $0x90] sm:$0xff]
    %v3191 = vld [vmem:[#allocation2 + $0x98] sm:$0xff]
    %v3192 = vld [vmem:[#allocation2 + $0xa0] sm:$0xff]
    %v3193 = vld [vmem:[#allocation2 + $0xa8] sm:$0xff]
    %v3194 = vld [vmem:[#allocation2 + $0xb0] sm:$0xff]
    %v3195 = vld [vmem:[#allocation2 + $0xb8] sm:$0xff]
    %v3196 = vld [vmem:[#allocation2 + $0xc0] sm:$0xff]
    %v3197 = vld [vmem:[#allocation2 + $0xc8] sm:$0xff]
    %v3198 = vld [vmem:[#allocation2 + $0xd0] sm:$0xff]
    %v3199 = vld [vmem:[#allocation2 + $0xd8] sm:$0xff]
    %v3200 = vld [vmem:[#allocation2 + $0xe0] sm:$0xff]
    %v3201 = vld [vmem:[#allocation2 + $0xe8] sm:$0xff]
    %v3202 = vld [vmem:[#allocation2 + $0xf0] sm:$0xff]
    %v3203 = vld [vmem:[#allocation2 + $0xf8] sm:$0xff]
    %v3204 = vld [vmem:[#allocation2 + $0x100] sm:$0xff]
    %v3205 = vld [vmem:[#allocation2 + $0x108] sm:$0xff]
    %v3206 = vld [vmem:[#allocation2 + $0x110] sm:$0xff]
    %v3207 = vld [vmem:[#allocation2 + $0x118] sm:$0xff]
    %v3208 = vld [vmem:[#allocation2 + $0x120] sm:$0xff]
    %v3209 = vld [vmem:[#allocation2 + $0x128] sm:$0xff]
    %v3210 = vld [vmem:[#allocation2 + $0x130] sm:$0xff]
    %v3211 = vld [vmem:[#allocation2 + $0x138] sm:$0xff]
    %v3212 = vld [vmem:[#allocation2 + $0x140] sm:$0xff]
    %v3213 = vld [vmem:[#allocation2 + $0x148] sm:$0xff]
    %v3214 = vld [vmem:[#allocation2 + $0x150] sm:$0xff]
    %v3215 = vld [vmem:[#allocation2 + $0x158] sm:$0xff]
    %v3216 = vld [vmem:[#allocation2 + $0x160] sm:$0xff]
    %v3217 = vld [vmem:[#allocation2 + $0x168] sm:$0xff]
    %v3218 = vld [vmem:[#allocation2 + $0x170] sm:$0xff]
    %v3219 = vld [vmem:[#allocation2 + $0x178] sm:$0xff]
    %v3220 = vld [vmem:[#allocation2 + $0x180] sm:$0xff]
    %v3221 = vld [vmem:[#allocation2 + $0x188] sm:$0xff]
    %v3222 = vld [vmem:[#allocation2 + $0x190] sm:$0xff]
    %v3223 = vld [vmem:[#allocation2 + $0x198] sm:$0xff]
    %v3224 = vld [vmem:[#allocation2 + $0x1a0] sm:$0xff]
    %v3225 = vld [vmem:[#allocation2 + $0x1a8] sm:$0xff]
    %v3226 = vld [vmem:[#allocation2 + $0x1b0] sm:$0xff]
    %v3227 = vld [vmem:[#allocation2 + $0x1b8] sm:$0xff]
    %v3228 = vld [vmem:[#allocation2 + $0x1c0] sm:$0xff]
    %v3229 = vld [vmem:[#allocation2 + $0x1c8] sm:$0xff]
    %v3230 = vld [vmem:[#allocation2 + $0x1d0] sm:$0xff]
    %v3231 = vld [vmem:[#allocation2 + $0x1d8] sm:$0xff]
    %v3232 = vld [vmem:[#allocation2 + $0x1e0] sm:$0xff]
    %v3233 = vld [vmem:[#allocation2 + $0x1e8] sm:$0xff]
    %v3234 = vld [vmem:[#allocation2 + $0x1f0] sm:$0xff]
    %v3235 = vld [vmem:[#allocation2 + $0x1f8] sm:$0xff]
    %v3236 = vld [vmem:[#allocation2 + $0x200] sm:$0xff]
    %v3237 = vld [vmem:[#allocation2 + $0x208] sm:$0xff]
    %v3238 = vld [vmem:[#allocation2 + $0x210] sm:$0xff]
    %v3239 = vld [vmem:[#allocation2 + $0x218] sm:$0xff]
    %v3240 = vld [vmem:[#allocation2 + $0x220] sm:$0xff]
    %v3241 = vld [vmem:[#allocation2 + $0x228] sm:$0xff]
    %v3242 = vld [vmem:[#allocation2 + $0x230] sm:$0xff]
    %v3243 = vld [vmem:[#allocation2 + $0x238] sm:$0xff]
    %v3244 = vld [vmem:[#allocation2 + $0x240] sm:$0xff]
    %v3245 = vld [vmem:[#allocation2 + $0x248] sm:$0xff]
    %v3246 = vld [vmem:[#allocation2 + $0x250] sm:$0xff]
    %v3247 = vld [vmem:[#allocation2 + $0x258] sm:$0xff]
    %v3248 = vld [vmem:[#allocation2 + $0x260] sm:$0xff]
    %v3249 = vld [vmem:[#allocation2 + $0x268] sm:$0xff]
    %v3250 = vld [vmem:[#allocation2 + $0x270] sm:$0xff]
    %v3251 = vld [vmem:[#allocation2 + $0x278] sm:$0xff]
    %v3252 = vld [vmem:[#allocation2 + $0x280] sm:$0xff]
    %v3253 = vld [vmem:[#allocation2 + $0x288] sm:$0xff]
    %v3254 = vld [vmem:[#allocation2 + $0x290] sm:$0xff]
    %v3255 = vld [vmem:[#allocation2 + $0x298] sm:$0xff]
    %v3256 = vld [vmem:[#allocation2 + $0x2a0] sm:$0xff]
    %v3257 = vld [vmem:[#allocation2 + $0x2a8] sm:$0xff]
    %v3258 = vld [vmem:[#allocation2 + $0x2b0] sm:$0xff]
    %v3259 = vld [vmem:[#allocation2 + $0x2b8] sm:$0xff]
    %v3260 = vld [vmem:[#allocation2 + $0x2c0] sm:$0xff]
    %v3261 = vld [vmem:[#allocation2 + $0x2c8] sm:$0xff]
    %v3262 = vld [vmem:[#allocation2 + $0x2d0] sm:$0xff]
    %v3263 = vld [vmem:[#allocation2 + $0x2d8] sm:$0xff]
    %v3264 = vld [vmem:[#allocation2 + $0x2e0] sm:$0xff]
    %v3265 = vld [vmem:[#allocation2 + $0x2e8] sm:$0xff]
    %v3266 = vld [vmem:[#allocation2 + $0x2f0] sm:$0xff]
    %v3267 = vld [vmem:[#allocation2 + $0x2f8] sm:$0xff]
    %v3268 = vld [vmem:[#allocation2 + $0x300] sm:$0xff]
    %v3269 = vld [vmem:[#allocation2 + $0x308] sm:$0xff]
    %v3270 = vld [vmem:[#allocation2 + $0x310] sm:$0xff]
    %v3271 = vld [vmem:[#allocation2 + $0x318] sm:$0xff]
    %v3272 = vld [vmem:[#allocation2 + $0x320] sm:$0xff]
    %v3273 = vld [vmem:[#allocation2 + $0x328] sm:$0xff]
    %v3274 = vld [vmem:[#allocation2 + $0x330] sm:$0xff]
    %v3275 = vld [vmem:[#allocation2 + $0x338] sm:$0xff]
    %v3276 = vld [vmem:[#allocation2 + $0x340] sm:$0xff]
    %v3277 = vld [vmem:[#allocation2 + $0x348] sm:$0xff]
    %v3278 = vld [vmem:[#allocation2 + $0x350] sm:$0xff]
    %v3279 = vld [vmem:[#allocation2 + $0x358] sm:$0xff]
    %v3280 = vld [vmem:[#allocation2 + $0x360] sm:$0xff]
    %v3281 = vld [vmem:[#allocation2 + $0x368] sm:$0xff]
    %v3282 = vld [vmem:[#allocation2 + $0x370] sm:$0xff]
    %v3283 = vld [vmem:[#allocation2 + $0x378] sm:$0xff]
    %v3284 = vld [vmem:[#allocation2 + $0x380] sm:$0xff]
    %v3285 = vld [vmem:[#allocation2 + $0x388] sm:$0xff]
    %v3286 = vld [vmem:[#allocation2 + $0x390] sm:$0xff]
    %v3287 = vld [vmem:[#allocation2 + $0x398] sm:$0xff]
    %v3288 = vld [vmem:[#allocation2 + $0x3a0] sm:$0xff]
    %v3289 = vld [vmem:[#allocation2 + $0x3a8] sm:$0xff]
    %v3290 = vld [vmem:[#allocation2 + $0x3b0] sm:$0xff]
    %v3291 = vld [vmem:[#allocation2 + $0x3b8] sm:$0xff]
    %v3292 = vld [vmem:[#allocation2 + $0x3c0] sm:$0xff]
    %v3293 = vld [vmem:[#allocation2 + $0x3c8] sm:$0xff]
    %v3294 = vld [vmem:[#allocation2 + $0x3d0] sm:$0xff]
    %v3295 = vld [vmem:[#allocation2 + $0x3d8] sm:$0xff]
    %v3296 = vld [vmem:[#allocation2 + $0x3e0] sm:$0xff]
    %v3297 = vld [vmem:[#allocation2 + $0x3e8] sm:$0xff]
    %v3298 = vld [vmem:[#allocation2 + $0x3f0] sm:$0xff]
    %v3299 = vld [vmem:[#allocation2 + $0x3f8] sm:$0xff]
    %v3300 = vld [vmem:[#allocation2 + $0x400] sm:$0xff]
    %v3301 = vld [vmem:[#allocation2 + $0x408] sm:$0xff]
    %v3302 = vld [vmem:[#allocation2 + $0x410] sm:$0xff]
    %v3303 = vld [vmem:[#allocation2 + $0x418] sm:$0xff]
    %v3304 = vld [vmem:[#allocation2 + $0x420] sm:$0xff]
    %v3305 = vld [vmem:[#allocation2 + $0x428] sm:$0xff]
    %v3306 = vld [vmem:[#allocation2 + $0x430] sm:$0xff]
    %v3307 = vld [vmem:[#allocation2 + $0x438] sm:$0xff]
    %v3308 = vld [vmem:[#allocation2 + $0x440] sm:$0xff]
    %v3309 = vld [vmem:[#allocation2 + $0x448] sm:$0xff]
    %v3310 = vld [vmem:[#allocation2 + $0x450] sm:$0xff]
    %v3311 = vld [vmem:[#allocation2 + $0x458] sm:$0xff]
    %v3312 = vld [vmem:[#allocation2 + $0x460] sm:$0xff]
    %v3313 = vld [vmem:[#allocation2 + $0x468] sm:$0xff]
    %v3314 = vld [vmem:[#allocation2 + $0x470] sm:$0xff]
    %v3315 = vld [vmem:[#allocation2 + $0x478] sm:$0xff]
    %v3316 = vld [vmem:[#allocation2 + $0x480] sm:$0xff]
    %v3317 = vld [vmem:[#allocation2 + $0x488] sm:$0xff]
    %v3318 = vld [vmem:[#allocation2 + $0x490] sm:$0xff]
    %v3319 = vld [vmem:[#allocation2 + $0x498] sm:$0xff]
    %v3320 = vld [vmem:[#allocation2 + $0x4a0] sm:$0xff]
    %v3321 = vld [vmem:[#allocation2 + $0x4a8] sm:$0xff]
    %v3322 = vld [vmem:[#allocation2 + $0x4b0] sm:$0xff]
    %v3323 = vld [vmem:[#allocation2 + $0x4b8] sm:$0xff]
    %v3324 = vld [vmem:[#allocation2 + $0x4c0] sm:$0xff]
    %v3325 = vld [vmem:[#allocation2 + $0x4c8] sm:$0xff]
    %v3326 = vld [vmem:[#allocation2 + $0x4d0] sm:$0xff]
    %v3327 = vld [vmem:[#allocation2 + $0x4d8] sm:$0xff]
    %v3328 = vld [vmem:[#allocation2 + $0x4e0] sm:$0xff]
    %v3329 = vld [vmem:[#allocation2 + $0x4e8] sm:$0xff]
    %v3330 = vld [vmem:[#allocation2 + $0x4f0] sm:$0xff]
    %v3331 = vld [vmem:[#allocation2 + $0x4f8] sm:$0xff]
    %v3332 = vld [vmem:[#allocation2 + $0x500] sm:$0xff]
    %v3333 = vld [vmem:[#allocation2 + $0x508] sm:$0xff]
    %v3334 = vld [vmem:[#allocation2 + $0x510] sm:$0xff]
    %v3335 = vld [vmem:[#allocation2 + $0x518] sm:$0xff]
    %v3336 = vld [vmem:[#allocation2 + $0x520] sm:$0xff]
    %v3337 = vld [vmem:[#allocation2 + $0x528] sm:$0xff]
    %v3338 = vld [vmem:[#allocation2 + $0x530] sm:$0xff]
    %v3339 = vld [vmem:[#allocation2 + $0x538] sm:$0xff]
    %v3340 = vld [vmem:[#allocation2 + $0x540] sm:$0xff]
    %v3341 = vld [vmem:[#allocation2 + $0x548] sm:$0xff]
    %v3342 = vld [vmem:[#allocation2 + $0x550] sm:$0xff]
    %v3343 = vld [vmem:[#allocation2 + $0x558] sm:$0xff]
    %v3344 = vld [vmem:[#allocation2 + $0x560] sm:$0xff]
    %v3345 = vld [vmem:[#allocation2 + $0x568] sm:$0xff]
    %v3346 = vld [vmem:[#allocation2 + $0x570] sm:$0xff]
    %v3347 = vld [vmem:[#allocation2 + $0x578] sm:$0xff]
    %v3348 = vld [vmem:[#allocation2 + $0x580] sm:$0xff]
    %v3349 = vld [vmem:[#allocation2 + $0x588] sm:$0xff]
    %v3350 = vld [vmem:[#allocation2 + $0x590] sm:$0xff]
    %v3351 = vld [vmem:[#allocation2 + $0x598] sm:$0xff]
    %v3352 = vld [vmem:[#allocation2 + $0x5a0] sm:$0xff]
    %v3353 = vld [vmem:[#allocation2 + $0x5a8] sm:$0xff]
    %v3354 = vld [vmem:[#allocation2 + $0x5b0] sm:$0xff]
    %v3355 = vld [vmem:[#allocation2 + $0x5b8] sm:$0xff]
    %v3356 = vld [vmem:[#allocation2 + $0x5c0] sm:$0xff]
    %v3357 = vld [vmem:[#allocation2 + $0x5c8] sm:$0xff]
    %v3358 = vld [vmem:[#allocation2 + $0x5d0] sm:$0xff]
    %v3359 = vld [vmem:[#allocation2 + $0x5d8] sm:$0xff]
    %v3360 = vld [vmem:[#allocation2 + $0x5e0] sm:$0xff]
    %v3361 = vld [vmem:[#allocation2 + $0x5e8] sm:$0xff]
    %v3362 = vld [vmem:[#allocation2 + $0x5f0] sm:$0xff]
    %v3363 = vld [vmem:[#allocation2 + $0x5f8] sm:$0xff]
    %v3364 = vld [vmem:[#allocation2 + $0x600] sm:$0xff]
    %v3365 = vld [vmem:[#allocation2 + $0x608] sm:$0xff]
    %v3366 = vld [vmem:[#allocation2 + $0x610] sm:$0xff]
    %v3367 = vld [vmem:[#allocation2 + $0x618] sm:$0xff]
    %v3368 = vld [vmem:[#allocation2 + $0x620] sm:$0xff]
    %v3369 = vld [vmem:[#allocation2 + $0x628] sm:$0xff]
    %v3370 = vld [vmem:[#allocation2 + $0x630] sm:$0xff]
    %v3371 = vld [vmem:[#allocation2 + $0x638] sm:$0xff]
    %v3372 = vld [vmem:[#allocation2 + $0x640] sm:$0xff]
    %v3373 = vld [vmem:[#allocation2 + $0x648] sm:$0xff]
    %v3374 = vld [vmem:[#allocation2 + $0x650] sm:$0xff]
    %v3375 = vld [vmem:[#allocation2 + $0x658] sm:$0xff]
    %v3376 = vld [vmem:[#allocation2 + $0x660] sm:$0xff]
    %v3377 = vld [vmem:[#allocation2 + $0x668] sm:$0xff]
    %v3378 = vld [vmem:[#allocation2 + $0x670] sm:$0xff]
    %v3379 = vld [vmem:[#allocation2 + $0x678] sm:$0xff]
    %v3380 = vld [vmem:[#allocation2 + $0x680] sm:$0xff]
    %v3381 = vld [vmem:[#allocation2 + $0x688] sm:$0xff]
    %v3382 = vld [vmem:[#allocation2 + $0x690] sm:$0xff]
    %v3383 = vld [vmem:[#allocation2 + $0x698] sm:$0xff]
    %v3384 = vld [vmem:[#allocation2 + $0x6a0] sm:$0xff]
    %v3385 = vld [vmem:[#allocation2 + $0x6a8] sm:$0xff]
    %v3386 = vld [vmem:[#allocation2 + $0x6b0] sm:$0xff]
    %v3387 = vld [vmem:[#allocation2 + $0x6b8] sm:$0xff]
    %v3388 = vld [vmem:[#allocation2 + $0x6c0] sm:$0xff]
    %v3389 = vld [vmem:[#allocation2 + $0x6c8] sm:$0xff]
    %v3390 = vld [vmem:[#allocation2 + $0x6d0] sm:$0xff]
    %v3391 = vld [vmem:[#allocation2 + $0x6d8] sm:$0xff]
    %v3392 = vld [vmem:[#allocation2 + $0x6e0] sm:$0xff]
    %v3393 = vld [vmem:[#allocation2 + $0x6e8] sm:$0xff]
    %v3394 = vld [vmem:[#allocation2 + $0x6f0] sm:$0xff]
    %v3395 = vld [vmem:[#allocation2 + $0x6f8] sm:$0xff]
    %v3396 = vld [vmem:[#allocation2 + $0x700] sm:$0xff]
    %v3397 = vld [vmem:[#allocation2 + $0x708] sm:$0xff]
    %v3398 = vld [vmem:[#allocation2 + $0x710] sm:$0xff]
    %v3399 = vld [vmem:[#allocation2 + $0x718] sm:$0xff]
    %v3400 = vld [vmem:[#allocation2 + $0x720] sm:$0xff]
    %v3401 = vld [vmem:[#allocation2 + $0x728] sm:$0xff]
    %v3402 = vld [vmem:[#allocation2 + $0x730] sm:$0xff]
    %v3403 = vld [vmem:[#allocation2 + $0x738] sm:$0xff]
    %v3404 = vld [vmem:[#allocation2 + $0x740] sm:$0xff]
    %v3405 = vld [vmem:[#allocation2 + $0x748] sm:$0xff]
    %v3406 = vld [vmem:[#allocation2 + $0x750] sm:$0xff]
    %v3407 = vld [vmem:[#allocation2 + $0x758] sm:$0xff]
    %v3408 = vld [vmem:[#allocation2 + $0x760] sm:$0xff]
    %v3409 = vld [vmem:[#allocation2 + $0x768] sm:$0xff]
    %v3410 = vld [vmem:[#allocation2 + $0x770] sm:$0xff]
    %v3411 = vld [vmem:[#allocation2 + $0x778] sm:$0xff]
    %v3412 = vld [vmem:[#allocation2 + $0x780] sm:$0xff]
    %v3413 = vld [vmem:[#allocation2 + $0x788] sm:$0xff]
    %v3414 = vld [vmem:[#allocation2 + $0x790] sm:$0xff]
    %v3415 = vld [vmem:[#allocation2 + $0x798] sm:$0xff]
    %v3416 = vld [vmem:[#allocation2 + $0x7a0] sm:$0xff]
    %v3417 = vld [vmem:[#allocation2 + $0x7a8] sm:$0xff]
    %v3418 = vld [vmem:[#allocation2 + $0x7b0] sm:$0xff]
    %v3419 = vld [vmem:[#allocation2 + $0x7b8] sm:$0xff]
    %v3420 = vld [vmem:[#allocation2 + $0x7c0] sm:$0xff]
    %v3421 = vld [vmem:[#allocation2 + $0x7c8] sm:$0xff]
    %v3422 = vld [vmem:[#allocation2 + $0x7d0] sm:$0xff]
    %v3423 = vld [vmem:[#allocation2 + $0x7d8] sm:$0xff]
    %v3424 = vld [vmem:[#allocation2 + $0x7e0] sm:$0xff]
    %v3425 = vld [vmem:[#allocation2 + $0x7e8] sm:$0xff]
    %v3426 = vld [vmem:[#allocation2 + $0x7f0] sm:$0xff]
    %v3427 = vld [vmem:[#allocation2 + $0x7f8] sm:$0xff]
    %v3428 = vld [vmem:[#allocation2 + $0x800] sm:$0xff]
    %v3429 = vld [vmem:[#allocation2 + $0x808] sm:$0xff]
    %v3430 = vld [vmem:[#allocation2 + $0x810] sm:$0xff]
    %v3431 = vld [vmem:[#allocation2 + $0x818] sm:$0xff]
    %v3432 = vld [vmem:[#allocation2 + $0x820] sm:$0xff]
    %v3433 = vld [vmem:[#allocation2 + $0x828] sm:$0xff]
    %v3434 = vld [vmem:[#allocation2 + $0x830] sm:$0xff]
    %v3435 = vld [vmem:[#allocation2 + $0x838] sm:$0xff]
    %v3436 = vld [vmem:[#allocation2 + $0x840] sm:$0xff]
    %v3437 = vld [vmem:[#allocation2 + $0x848] sm:$0xff]
    %v3438 = vld [vmem:[#allocation2 + $0x850] sm:$0xff]
    %v3439 = vld [vmem:[#allocation2 + $0x858] sm:$0xff]
    %v3440 = vld [vmem:[#allocation2 + $0x860] sm:$0xff]
    %v3441 = vld [vmem:[#allocation2 + $0x868] sm:$0xff]
    %v3442 = vld [vmem:[#allocation2 + $0x870] sm:$0xff]
    %v3443 = vld [vmem:[#allocation2 + $0x878] sm:$0xff]
    %v3444 = vld [vmem:[#allocation2 + $0x880] sm:$0xff]
    %v3445 = vld [vmem:[#allocation2 + $0x888] sm:$0xff]
    %v3446 = vld [vmem:[#allocation2 + $0x890] sm:$0xff]
    %v3447 = vld [vmem:[#allocation2 + $0x898] sm:$0xff]
    %v3448 = vld [vmem:[#allocation2 + $0x8a0] sm:$0xff]
    %v3449 = vld [vmem:[#allocation2 + $0x8a8] sm:$0xff]
    %v3450 = vld [vmem:[#allocation2 + $0x8b0] sm:$0xff]
    %v3451 = vld [vmem:[#allocation2 + $0x8b8] sm:$0xff]
    %v3452 = vld [vmem:[#allocation2 + $0x8c0] sm:$0xff]
    %v3453 = vld [vmem:[#allocation2 + $0x8c8] sm:$0xff]
    %v3454 = vld [vmem:[#allocation2 + $0x8d0] sm:$0xff]
    %v3455 = vld [vmem:[#allocation2 + $0x8d8] sm:$0xff]
    %v3456 = vld [vmem:[#allocation2 + $0x8e0] sm:$0xff]
    %v3457 = vld [vmem:[#allocation2 + $0x8e8] sm:$0xff]
    %v3458 = vld [vmem:[#allocation2 + $0x8f0] sm:$0xff]
    %v3459 = vld [vmem:[#allocation2 + $0x8f8] sm:$0xff]
    %v3460 = vld [vmem:[#allocation2 + $0x900] sm:$0xff]
    %v3461 = vld [vmem:[#allocation2 + $0x908] sm:$0xff]
    %v3462 = vld [vmem:[#allocation2 + $0x910] sm:$0xff]
    %v3463 = vld [vmem:[#allocation2 + $0x918] sm:$0xff]
    %v3464 = vld [vmem:[#allocation2 + $0x920] sm:$0xff]
    %v3465 = vld [vmem:[#allocation2 + $0x928] sm:$0xff]
    %v3466 = vld [vmem:[#allocation2 + $0x930] sm:$0xff]
    %v3467 = vld [vmem:[#allocation2 + $0x938] sm:$0xff]
    %v3468 = vld [vmem:[#allocation2 + $0x940] sm:$0xff]
    %v3469 = vld [vmem:[#allocation2 + $0x948] sm:$0xff]
    %v3470 = vld [vmem:[#allocation2 + $0x950] sm:$0xff]
    %v3471 = vld [vmem:[#allocation2 + $0x958] sm:$0xff]
    %v3472 = vld [vmem:[#allocation2 + $0x960] sm:$0xff]
    %v3473 = vld [vmem:[#allocation2 + $0x968] sm:$0xff]
    %v3474 = vld [vmem:[#allocation2 + $0x970] sm:$0xff]
    %v3475 = vld [vmem:[#allocation2 + $0x978] sm:$0xff]
    %v3476 = vld [vmem:[#allocation2 + $0x980] sm:$0xff]
    %v3477 = vld [vmem:[#allocation2 + $0x988] sm:$0xff]
    %v3478 = vld [vmem:[#allocation2 + $0x990] sm:$0xff]
    %v3479 = vld [vmem:[#allocation2 + $0x998] sm:$0xff]
    %v3480 = vld [vmem:[#allocation2 + $0x9a0] sm:$0xff]
    %v3481 = vld [vmem:[#allocation2 + $0x9a8] sm:$0xff]
    %v3482 = vld [vmem:[#allocation2 + $0x9b0] sm:$0xff]
    %v3483 = vld [vmem:[#allocation2 + $0x9b8] sm:$0xff]
    %v3484 = vld [vmem:[#allocation2 + $0x9c0] sm:$0xff]
    %v3485 = vld [vmem:[#allocation2 + $0x9c8] sm:$0xff]
    %v3486 = vld [vmem:[#allocation2 + $0x9d0] sm:$0xff]
    %v3487 = vld [vmem:[#allocation2 + $0x9d8] sm:$0xff]
    %v3488 = vld [vmem:[#allocation2 + $0x9e0] sm:$0xff]
    %v3489 = vld [vmem:[#allocation2 + $0x9e8] sm:$0xff]
    %v3490 = vld [vmem:[#allocation2 + $0x9f0] sm:$0xff]
    %v3491 = vld [vmem:[#allocation2 + $0x9f8] sm:$0xff]
    %v3492 = vld [vmem:[#allocation2 + $0xa00] sm:$0xff]
    %v3493 = vld [vmem:[#allocation2 + $0xa08] sm:$0xff]
    %v3494 = vld [vmem:[#allocation2 + $0xa10] sm:$0xff]
    %v3495 = vld [vmem:[#allocation2 + $0xa18] sm:$0xff]
    %v3496 = vld [vmem:[#allocation2 + $0xa20] sm:$0xff]
    %v3497 = vld [vmem:[#allocation2 + $0xa28] sm:$0xff]
    %v3498 = vld [vmem:[#allocation2 + $0xa30] sm:$0xff]
    %v3499 = vld [vmem:[#allocation2 + $0xa38] sm:$0xff]
    %v3500 = vld [vmem:[#allocation2 + $0xa40] sm:$0xff]
    %v3501 = vld [vmem:[#allocation2 + $0xa48] sm:$0xff]
    %v3502 = vld [vmem:[#allocation2 + $0xa50] sm:$0xff]
    %v3503 = vld [vmem:[#allocation2 + $0xa58] sm:$0xff]
    %v3504 = vld [vmem:[#allocation2 + $0xa60] sm:$0xff]
    %v3505 = vld [vmem:[#allocation2 + $0xa68] sm:$0xff]
    %v3506 = vld [vmem:[#allocation2 + $0xa70] sm:$0xff]
    %v3507 = vld [vmem:[#allocation2 + $0xa78] sm:$0xff]
    %v3508 = vld [vmem:[#allocation2 + $0xa80] sm:$0xff]
    %v3509 = vld [vmem:[#allocation2 + $0xa88] sm:$0xff]
    %v3510 = vld [vmem:[#allocation2 + $0xa90] sm:$0xff]
    %v3511 = vld [vmem:[#allocation2 + $0xa98] sm:$0xff]
    %v3512 = vld [vmem:[#allocation2 + $0xaa0] sm:$0xff]
    %v3513 = vld [vmem:[#allocation2 + $0xaa8] sm:$0xff]
    %v3514 = vld [vmem:[#allocation2 + $0xab0] sm:$0xff]
    %v3515 = vld [vmem:[#allocation2 + $0xab8] sm:$0xff]
    %v3516 = vld [vmem:[#allocation2 + $0xac0] sm:$0xff]
    %v3517 = vld [vmem:[#allocation2 + $0xac8] sm:$0xff]
    %v3518 = vld [vmem:[#allocation2 + $0xad0] sm:$0xff]
    %v3519 = vld [vmem:[#allocation2 + $0xad8] sm:$0xff]
    %v3520 = vld [vmem:[#allocation2 + $0xae0] sm:$0xff]
    %v3521 = vld [vmem:[#allocation2 + $0xae8] sm:$0xff]
    %v3522 = vld [vmem:[#allocation2 + $0xaf0] sm:$0xff]
    %v3523 = vld [vmem:[#allocation2 + $0xaf8] sm:$0xff]
    %v3524 = vld [vmem:[#allocation2 + $0xb00] sm:$0xff]
    %v3525 = vld [vmem:[#allocation2 + $0xb08] sm:$0xff]
    %v3526 = vld [vmem:[#allocation2 + $0xb10] sm:$0xff]
    %v3527 = vld [vmem:[#allocation2 + $0xb18] sm:$0xff]
    %v3528 = vld [vmem:[#allocation2 + $0xb20] sm:$0xff]
    %v3529 = vld [vmem:[#allocation2 + $0xb28] sm:$0xff]
    %v3530 = vld [vmem:[#allocation2 + $0xb30] sm:$0xff]
    %v3531 = vld [vmem:[#allocation2 + $0xb38] sm:$0xff]
    %v3532 = vld [vmem:[#allocation2 + $0xb40] sm:$0xff]
    %v3533 = vld [vmem:[#allocation2 + $0xb48] sm:$0xff]
    %v3534 = vld [vmem:[#allocation2 + $0xb50] sm:$0xff]
    %v3535 = vld [vmem:[#allocation2 + $0xb58] sm:$0xff]
    %v3536 = vld [vmem:[#allocation2 + $0xb60] sm:$0xff]
    %v3537 = vld [vmem:[#allocation2 + $0xb68] sm:$0xff]
    %v3538 = vld [vmem:[#allocation2 + $0xb70] sm:$0xff]
    %v3539 = vld [vmem:[#allocation2 + $0xb78] sm:$0xff]
    %v3540 = vld [vmem:[#allocation2 + $0xb80] sm:$0xff]
    %v3541 = vld [vmem:[#allocation2 + $0xb88] sm:$0xff]
    %v3542 = vld [vmem:[#allocation2 + $0xb90] sm:$0xff]
    %v3543 = vld [vmem:[#allocation2 + $0xb98] sm:$0xff]
    %v3544 = vld [vmem:[#allocation2 + $0xba0] sm:$0xff]
    %v3545 = vld [vmem:[#allocation2 + $0xba8] sm:$0xff]
    %v3546 = vld [vmem:[#allocation2 + $0xbb0] sm:$0xff]
    %v3547 = vld [vmem:[#allocation2 + $0xbb8] sm:$0xff]
    %v3548 = vld [vmem:[#allocation2 + $0xbc0] sm:$0xff]
    %v3549 = vld [vmem:[#allocation2 + $0xbc8] sm:$0xff]
    %v3550 = vld [vmem:[#allocation2 + $0xbd0] sm:$0xff]
    %v3551 = vld [vmem:[#allocation2 + $0xbd8] sm:$0xff]
    %v3552 = vld [vmem:[#allocation2 + $0xbe0] sm:$0xff]
    %v3553 = vld [vmem:[#allocation2 + $0xbe8] sm:$0xff]
    %v3554 = vld [vmem:[#allocation2 + $0xbf0] sm:$0xff]
    %v3555 = vld [vmem:[#allocation2 + $0xbf8] sm:$0xff]
    %v3556 = vld [vmem:[#allocation2 + $0xc00] sm:$0xff]
    %v3557 = vld [vmem:[#allocation2 + $0xc08] sm:$0xff]
    %v3558 = vld [vmem:[#allocation2 + $0xc10] sm:$0xff]
    %v3559 = vld [vmem:[#allocation2 + $0xc18] sm:$0xff]
    %v3560 = vld [vmem:[#allocation2 + $0xc20] sm:$0xff]
    %v3561 = vld [vmem:[#allocation2 + $0xc28] sm:$0xff]
    %v3562 = vld [vmem:[#allocation2 + $0xc30] sm:$0xff]
    %v3563 = vld [vmem:[#allocation2 + $0xc38] sm:$0xff]
    %v3564 = vld [vmem:[#allocation2 + $0xc40] sm:$0xff]
    %v3565 = vld [vmem:[#allocation2 + $0xc48] sm:$0xff]
    %v3566 = vld [vmem:[#allocation2 + $0xc50] sm:$0xff]
    %v3567 = vld [vmem:[#allocation2 + $0xc58] sm:$0xff]
    %v3568 = vld [vmem:[#allocation2 + $0xc60] sm:$0xff]
    %v3569 = vld [vmem:[#allocation2 + $0xc68] sm:$0xff]
    %v3570 = vld [vmem:[#allocation2 + $0xc70] sm:$0xff]
    %v3571 = vld [vmem:[#allocation2 + $0xc78] sm:$0xff]
    %v3572 = vld [vmem:[#allocation2 + $0xc80] sm:$0xff]
    %v3573 = vld [vmem:[#allocation2 + $0xc88] sm:$0xff]
    %v3574 = vld [vmem:[#allocation2 + $0xc90] sm:$0xff]
    %v3575 = vld [vmem:[#allocation2 + $0xc98] sm:$0xff]
    %v3576 = vld [vmem:[#allocation2 + $0xca0] sm:$0xff]
    %v3577 = vld [vmem:[#allocation2 + $0xca8] sm:$0xff]
    %v3578 = vld [vmem:[#allocation2 + $0xcb0] sm:$0xff]
    %v3579 = vld [vmem:[#allocation2 + $0xcb8] sm:$0xff]
    %v3580 = vld [vmem:[#allocation2 + $0xcc0] sm:$0xff]
    %v3581 = vld [vmem:[#allocation2 + $0xcc8] sm:$0xff]
    %v3582 = vld [vmem:[#allocation2 + $0xcd0] sm:$0xff]
    %v3583 = vld [vmem:[#allocation2 + $0xcd8] sm:$0xff]
    %v3584 = vld [vmem:[#allocation2 + $0xce0] sm:$0xff]
    %v3585 = vld [vmem:[#allocation2 + $0xce8] sm:$0xff]
    %v3586 = vld [vmem:[#allocation2 + $0xcf0] sm:$0xff]
    %v3587 = vld [vmem:[#allocation2 + $0xcf8] sm:$0xff]
    %v3588 = vld [vmem:[#allocation2 + $0xd00] sm:$0xff]
    %v3589 = vld [vmem:[#allocation2 + $0xd08] sm:$0xff]
    %v3590 = vld [vmem:[#allocation2 + $0xd10] sm:$0xff]
    %v3591 = vld [vmem:[#allocation2 + $0xd18] sm:$0xff]
    %v3592 = vld [vmem:[#allocation2 + $0xd20] sm:$0xff]
    %v3593 = vld [vmem:[#allocation2 + $0xd28] sm:$0xff]
    %v3594 = vld [vmem:[#allocation2 + $0xd30] sm:$0xff]
    %v3595 = vld [vmem:[#allocation2 + $0xd38] sm:$0xff]
    %v3596 = vld [vmem:[#allocation2 + $0xd40] sm:$0xff]
    %v3597 = vld [vmem:[#allocation2 + $0xd48] sm:$0xff]
    %v3598 = vld [vmem:[#allocation2 + $0xd50] sm:$0xff]
    %v3599 = vld [vmem:[#allocation2 + $0xd58] sm:$0xff]
    %v3600 = vld [vmem:[#allocation2 + $0xd60] sm:$0xff]
    %v3601 = vld [vmem:[#allocation2 + $0xd68] sm:$0xff]
    %v3602 = vld [vmem:[#allocation2 + $0xd70] sm:$0xff]
    %v3603 = vld [vmem:[#allocation2 + $0xd78] sm:$0xff]
    %v3604 = vld [vmem:[#allocation2 + $0xd80] sm:$0xff]
    %v3605 = vld [vmem:[#allocation2 + $0xd88] sm:$0xff]
    %v3606 = vld [vmem:[#allocation2 + $0xd90] sm:$0xff]
    %v3607 = vld [vmem:[#allocation2 + $0xd98] sm:$0xff]
    %v3608 = vld [vmem:[#allocation2 + $0xda0] sm:$0xff]
    %v3609 = vld [vmem:[#allocation2 + $0xda8] sm:$0xff]
    %v3610 = vld [vmem:[#allocation2 + $0xdb0] sm:$0xff]
    %v3611 = vld [vmem:[#allocation2 + $0xdb8] sm:$0xff]
    %v3612 = vld [vmem:[#allocation2 + $0xdc0] sm:$0xff]
    %v3613 = vld [vmem:[#allocation2 + $0xdc8] sm:$0xff]
    %v3614 = vld [vmem:[#allocation2 + $0xdd0] sm:$0xff]
    %v3615 = vld [vmem:[#allocation2 + $0xdd8] sm:$0xff]
    %v3616 = vld [vmem:[#allocation2 + $0xde0] sm:$0xff]
    %v3617 = vld [vmem:[#allocation2 + $0xde8] sm:$0xff]
    %v3618 = vld [vmem:[#allocation2 + $0xdf0] sm:$0xff]
    %v3619 = vld [vmem:[#allocation2 + $0xdf8] sm:$0xff]
    %v3620 = vld [vmem:[#allocation2 + $0xe00] sm:$0xff]
    %v3621 = vld [vmem:[#allocation2 + $0xe08] sm:$0xff]
    %v3622 = vld [vmem:[#allocation2 + $0xe10] sm:$0xff]
    %v3623 = vld [vmem:[#allocation2 + $0xe18] sm:$0xff]
    %v3624 = vld [vmem:[#allocation2 + $0xe20] sm:$0xff]
    %v3625 = vld [vmem:[#allocation2 + $0xe28] sm:$0xff]
    %v3626 = vld [vmem:[#allocation2 + $0xe30] sm:$0xff]
    %v3627 = vld [vmem:[#allocation2 + $0xe38] sm:$0xff]
    %v3628 = vld [vmem:[#allocation2 + $0xe40] sm:$0xff]
    %v3629 = vld [vmem:[#allocation2 + $0xe48] sm:$0xff]
    %v3630 = vld [vmem:[#allocation2 + $0xe50] sm:$0xff]
    %v3631 = vld [vmem:[#allocation2 + $0xe58] sm:$0xff]
    %v3632 = vld [vmem:[#allocation2 + $0xe60] sm:$0xff]
    %v3633 = vld [vmem:[#allocation2 + $0xe68] sm:$0xff]
    %v3634 = vld [vmem:[#allocation2 + $0xe70] sm:$0xff]
    %v3635 = vld [vmem:[#allocation2 + $0xe78] sm:$0xff]
    %v3636 = vld [vmem:[#allocation2 + $0xe80] sm:$0xff]
    %v3637 = vld [vmem:[#allocation2 + $0xe88] sm:$0xff]
    %v3638 = vld [vmem:[#allocation2 + $0xe90] sm:$0xff]
    %v3639 = vld [vmem:[#allocation2 + $0xe98] sm:$0xff]
    %v3640 = vld [vmem:[#allocation2 + $0xea0] sm:$0xff]
    %v3641 = vld [vmem:[#allocation2 + $0xea8] sm:$0xff]
    %v3642 = vld [vmem:[#allocation2 + $0xeb0] sm:$0xff]
    %v3643 = vld [vmem:[#allocation2 + $0xeb8] sm:$0xff]
    %v3644 = vld [vmem:[#allocation2 + $0xec0] sm:$0xff]
    %v3645 = vld [vmem:[#allocation2 + $0xec8] sm:$0xff]
    %v3646 = vld [vmem:[#allocation2 + $0xed0] sm:$0xff]
    %v3647 = vld [vmem:[#allocation2 + $0xed8] sm:$0xff]
    %v3648 = vld [vmem:[#allocation2 + $0xee0] sm:$0xff]
    %v3649 = vld [vmem:[#allocation2 + $0xee8] sm:$0xff]
    %v3650 = vld [vmem:[#allocation2 + $0xef0] sm:$0xff]
    %v3651 = vld [vmem:[#allocation2 + $0xef8] sm:$0xff]
    %v3652 = vld [vmem:[#allocation2 + $0xf00] sm:$0xff]
    %v3653 = vld [vmem:[#allocation2 + $0xf08] sm:$0xff]
    %v3654 = vld [vmem:[#allocation2 + $0xf10] sm:$0xff]
    %v3655 = vld [vmem:[#allocation2 + $0xf18] sm:$0xff]
    %v3656 = vld [vmem:[#allocation2 + $0xf20] sm:$0xff]
    %v3657 = vld [vmem:[#allocation2 + $0xf28] sm:$0xff]
    %v3658 = vld [vmem:[#allocation2 + $0xf30] sm:$0xff]
    %v3659 = vld [vmem:[#allocation2 + $0xf38] sm:$0xff]
    %v3660 = vld [vmem:[#allocation2 + $0xf40] sm:$0xff]
    %v3661 = vld [vmem:[#allocation2 + $0xf48] sm:$0xff]
    %v3662 = vld [vmem:[#allocation2 + $0xf50] sm:$0xff]
    %v3663 = vld [vmem:[#allocation2 + $0xf58] sm:$0xff]
    %v3664 = vld [vmem:[#allocation2 + $0xf60] sm:$0xff]
    %v3665 = vld [vmem:[#allocation2 + $0xf68] sm:$0xff]
    %v3666 = vld [vmem:[#allocation2 + $0xf70] sm:$0xff]
    %v3667 = vld [vmem:[#allocation2 + $0xf78] sm:$0xff]
    %v3668 = vld [vmem:[#allocation2 + $0xf80] sm:$0xff]
    %v3669 = vld [vmem:[#allocation2 + $0xf88] sm:$0xff]
    %v3670 = vld [vmem:[#allocation2 + $0xf90] sm:$0xff]
    %v3671 = vld [vmem:[#allocation2 + $0xf98] sm:$0xff]
    %v3672 = vld [vmem:[#allocation2 + $0xfa0] sm:$0xff]
    %v3673 = vld [vmem:[#allocation2 + $0xfa8] sm:$0xff]
    %v3674 = vld [vmem:[#allocation2 + $0xfb0] sm:$0xff]
    %v3675 = vld [vmem:[#allocation2 + $0xfb8] sm:$0xff]
    %v3676 = vld [vmem:[#allocation2 + $0xfc0] sm:$0xff]
    %v3677 = vld [vmem:[#allocation2 + $0xfc8] sm:$0xff]
    %v3678 = vld [vmem:[#allocation2 + $0xfd0] sm:$0xff]
    %v3679 = vld [vmem:[#allocation2 + $0xfd8] sm:$0xff]
    %v3680 = vld [vmem:[#allocation2 + $0xfe0] sm:$0xff]
    %v3681 = vld [vmem:[#allocation2 + $0xfe8] sm:$0xff]
    %v3682 = vld [vmem:[#allocation2 + $0xff0] sm:$0xff]
    %v3683 = vld [vmem:[#allocation2 + $0xff8] sm:$0xff]
    %v3684 = vld [vmem:[#allocation2 + $0x1000] sm:$0xff]
    %v3685 = vld [vmem:[#allocation2 + $0x1008] sm:$0xff]
    %v3686 = vld [vmem:[#allocation2 + $0x1010] sm:$0xff]
    %v3687 = vld [vmem:[#allocation2 + $0x1018] sm:$0xff]
    %v3688 = vld [vmem:[#allocation2 + $0x1020] sm:$0xff]
    %v3689 = vld [vmem:[#allocation2 + $0x1028] sm:$0xff]
    %v3690 = vld [vmem:[#allocation2 + $0x1030] sm:$0xff]
    %v3691 = vld [vmem:[#allocation2 + $0x1038] sm:$0xff]
    %v3692 = vld [vmem:[#allocation2 + $0x1040] sm:$0xff]
    %v3693 = vld [vmem:[#allocation2 + $0x1048] sm:$0xff]
    %v3694 = vld [vmem:[#allocation2 + $0x1050] sm:$0xff]
    %v3695 = vld [vmem:[#allocation2 + $0x1058] sm:$0xff]
    %v3696 = vld [vmem:[#allocation2 + $0x1060] sm:$0xff]
    %v3697 = vld [vmem:[#allocation2 + $0x1068] sm:$0xff]
    %v3698 = vld [vmem:[#allocation2 + $0x1070] sm:$0xff]
    %v3699 = vld [vmem:[#allocation2 + $0x1078] sm:$0xff]
    %v3700 = vld [vmem:[#allocation2 + $0x1080] sm:$0xff]
    %v3701 = vld [vmem:[#allocation2 + $0x1088] sm:$0xff]
    %v3702 = vld [vmem:[#allocation2 + $0x1090] sm:$0xff]
    %v3703 = vld [vmem:[#allocation2 + $0x1098] sm:$0xff]
    %v3704 = vld [vmem:[#allocation2 + $0x10a0] sm:$0xff]
    %v3705 = vld [vmem:[#allocation2 + $0x10a8] sm:$0xff]
    %v3706 = vld [vmem:[#allocation2 + $0x10b0] sm:$0xff]
    %v3707 = vld [vmem:[#allocation2 + $0x10b8] sm:$0xff]
    %v3708 = vld [vmem:[#allocation2 + $0x10c0] sm:$0xff]
    %v3709 = vld [vmem:[#allocation2 + $0x10c8] sm:$0xff]
    %v3710 = vld [vmem:[#allocation2 + $0x10d0] sm:$0xff]
    %v3711 = vld [vmem:[#allocation2 + $0x10d8] sm:$0xff]
    %v3712 = vld [vmem:[#allocation2 + $0x10e0] sm:$0xff]
    %v3713 = vld [vmem:[#allocation2 + $0x10e8] sm:$0xff]
    %v3714 = vld [vmem:[#allocation2 + $0x10f0] sm:$0xff]
    %v3715 = vld [vmem:[#allocation2 + $0x10f8] sm:$0xff]
    %v3716 = vld [vmem:[#allocation2 + $0x1100] sm:$0xff]
    %v3717 = vld [vmem:[#allocation2 + $0x1108] sm:$0xff]
    %v3718 = vld [vmem:[#allocation2 + $0x1110] sm:$0xff]
    %v3719 = vld [vmem:[#allocation2 + $0x1118] sm:$0xff]
    %v3720 = vld [vmem:[#allocation2 + $0x1120] sm:$0xff]
    %v3721 = vld [vmem:[#allocation2 + $0x1128] sm:$0xff]
    %v3722 = vld [vmem:[#allocation2 + $0x1130] sm:$0xff]
    %v3723 = vld [vmem:[#allocation2 + $0x1138] sm:$0xff]
    %v3724 = vld [vmem:[#allocation2 + $0x1140] sm:$0xff]
    %v3725 = vld [vmem:[#allocation2 + $0x1148] sm:$0xff]
    %v3726 = vld [vmem:[#allocation2 + $0x1150] sm:$0xff]
    %v3727 = vld [vmem:[#allocation2 + $0x1158] sm:$0xff]
    %v3728 = vld [vmem:[#allocation2 + $0x1160] sm:$0xff]
    %v3729 = vld [vmem:[#allocation2 + $0x1168] sm:$0xff]
    %v3730 = vld [vmem:[#allocation2 + $0x1170] sm:$0xff]
    %v3731 = vld [vmem:[#allocation2 + $0x1178] sm:$0xff]
    %v3732 = vld [vmem:[#allocation2 + $0x1180] sm:$0xff]
    %v3733 = vld [vmem:[#allocation2 + $0x1188] sm:$0xff]
    %v3734 = vld [vmem:[#allocation2 + $0x1190] sm:$0xff]
    %v3735 = vld [vmem:[#allocation2 + $0x1198] sm:$0xff]
    %v3736 = vld [vmem:[#allocation2 + $0x11a0] sm:$0xff]
    %v3737 = vld [vmem:[#allocation2 + $0x11a8] sm:$0xff]
    %v3738 = vld [vmem:[#allocation2 + $0x11b0] sm:$0xff]
    %v3739 = vld [vmem:[#allocation2 + $0x11b8] sm:$0xff]
    %v3740 = vld [vmem:[#allocation2 + $0x11c0] sm:$0xff]
    %v3741 = vld [vmem:[#allocation2 + $0x11c8] sm:$0xff]
    %v3742 = vld [vmem:[#allocation2 + $0x11d0] sm:$0xff]
    %v3743 = vld [vmem:[#allocation2 + $0x11d8] sm:$0xff]
    %v3744 = vld [vmem:[#allocation2 + $0x11e0] sm:$0xff]
    %v3745 = vld [vmem:[#allocation2 + $0x11e8] sm:$0xff]
    %v3746 = vld [vmem:[#allocation2 + $0x11f0] sm:$0xff]
    %v3747 = vld [vmem:[#allocation2 + $0x11f8] sm:$0xff]
    %v3748 = vld [vmem:[#allocation2 + $0x1200] sm:$0xff]
    %v3749 = vld [vmem:[#allocation2 + $0x1208] sm:$0xff]
    %v3750 = vld [vmem:[#allocation2 + $0x1210] sm:$0xff]
    %v3751 = vld [vmem:[#allocation2 + $0x1218] sm:$0xff]
    %v3752 = vld [vmem:[#allocation2 + $0x1220] sm:$0xff]
    %v3753 = vld [vmem:[#allocation2 + $0x1228] sm:$0xff]
    %v3754 = vld [vmem:[#allocation2 + $0x1230] sm:$0xff]
    %v3755 = vld [vmem:[#allocation2 + $0x1238] sm:$0xff]
    %v3756 = vld [vmem:[#allocation2 + $0x1240] sm:$0xff]
    %v3757 = vld [vmem:[#allocation2 + $0x1248] sm:$0xff]
    %v3758 = vld [vmem:[#allocation2 + $0x1250] sm:$0xff]
    %v3759 = vld [vmem:[#allocation2 + $0x1258] sm:$0xff]
    %v3760 = vld [vmem:[#allocation2 + $0x1260] sm:$0xff]
    %v3761 = vld [vmem:[#allocation2 + $0x1268] sm:$0xff]
    %v3762 = vld [vmem:[#allocation2 + $0x1270] sm:$0xff]
    %v3763 = vld [vmem:[#allocation2 + $0x1278] sm:$0xff]
    %v3764 = vld [vmem:[#allocation2 + $0x1280] sm:$0xff]
    %v3765 = vld [vmem:[#allocation2 + $0x1288] sm:$0xff]
    %v3766 = vld [vmem:[#allocation2 + $0x1290] sm:$0xff]
    %v3767 = vld [vmem:[#allocation2 + $0x1298] sm:$0xff]
    %v3768 = vld [vmem:[#allocation2 + $0x12a0] sm:$0xff]
    %v3769 = vld [vmem:[#allocation2 + $0x12a8] sm:$0xff]
    %v3770 = vld [vmem:[#allocation2 + $0x12b0] sm:$0xff]
    %v3771 = vld [vmem:[#allocation2 + $0x12b8] sm:$0xff]
    %v3772 = vld [vmem:[#allocation2 + $0x12c0] sm:$0xff]
    %v3773 = vld [vmem:[#allocation2 + $0x12c8] sm:$0xff]
    %v3774 = vld [vmem:[#allocation2 + $0x12d0] sm:$0xff]
    %v3775 = vld [vmem:[#allocation2 + $0x12d8] sm:$0xff]
    %v3776 = vld [vmem:[#allocation2 + $0x12e0] sm:$0xff]
    %v3777 = vld [vmem:[#allocation2 + $0x12e8] sm:$0xff]
    %v3778 = vld [vmem:[#allocation2 + $0x12f0] sm:$0xff]
    %v3779 = vld [vmem:[#allocation2 + $0x12f8] sm:$0xff]
    %v3780 = vld [vmem:[#allocation2 + $0x1300] sm:$0xff]
    %v3781 = vld [vmem:[#allocation2 + $0x1308] sm:$0xff]
    %v3782 = vld [vmem:[#allocation2 + $0x1310] sm:$0xff]
    %v3783 = vld [vmem:[#allocation2 + $0x1318] sm:$0xff]
    %v3784 = vld [vmem:[#allocation2 + $0x1320] sm:$0xff]
    %v3785 = vld [vmem:[#allocation2 + $0x1328] sm:$0xff]
    %v3786 = vld [vmem:[#allocation2 + $0x1330] sm:$0xff]
    %v3787 = vld [vmem:[#allocation2 + $0x1338] sm:$0xff]
    %v3788 = vld [vmem:[#allocation2 + $0x1340] sm:$0xff]
    %v3789 = vld [vmem:[#allocation2 + $0x1348] sm:$0xff]
    %v3790 = vld [vmem:[#allocation2 + $0x1350] sm:$0xff]
    %v3791 = vld [vmem:[#allocation2 + $0x1358] sm:$0xff]
    %v3792 = vld [vmem:[#allocation2 + $0x1360] sm:$0xff]
    %v3793 = vld [vmem:[#allocation2 + $0x1368] sm:$0xff]
    %v3794 = vld [vmem:[#allocation2 + $0x1370] sm:$0xff]
    %v3795 = vld [vmem:[#allocation2 + $0x1378] sm:$0xff]
    %v3796 = vld [vmem:[#allocation2 + $0x1380] sm:$0xff]
    %v3797 = vld [vmem:[#allocation2 + $0x1388] sm:$0xff]
    %v3798 = vld [vmem:[#allocation2 + $0x1390] sm:$0xff]
    %v3799 = vld [vmem:[#allocation2 + $0x1398] sm:$0xff]
    %v3800 = vld [vmem:[#allocation2 + $0x13a0] sm:$0xff]
    %v3801 = vld [vmem:[#allocation2 + $0x13a8] sm:$0xff]
    %v3802 = vld [vmem:[#allocation2 + $0x13b0] sm:$0xff]
    %v3803 = vld [vmem:[#allocation2 + $0x13b8] sm:$0xff]
    %v3804 = vld [vmem:[#allocation2 + $0x13c0] sm:$0xff]
    %v3805 = vld [vmem:[#allocation2 + $0x13c8] sm:$0xff]
    %v3806 = vld [vmem:[#allocation2 + $0x13d0] sm:$0xff]
    %v3807 = vld [vmem:[#allocation2 + $0x13d8] sm:$0xff]
    %v3808 = vld [vmem:[#allocation2 + $0x13e0] sm:$0xff]
    %v3809 = vld [vmem:[#allocation2 + $0x13e8] sm:$0xff]
    %v3810 = vld [vmem:[#allocation2 + $0x13f0] sm:$0xff]
    %v3811 = vld [vmem:[#allocation2 + $0x13f8] sm:$0xff]
    %v3812 = vld [vmem:[#allocation2 + $0x1400] sm:$0xff]
    %v3813 = vld [vmem:[#allocation2 + $0x1408] sm:$0xff]
    %v3814 = vld [vmem:[#allocation2 + $0x1410] sm:$0xff]
    %v3815 = vld [vmem:[#allocation2 + $0x1418] sm:$0xff]
    %v3816 = vld [vmem:[#allocation2 + $0x1420] sm:$0xff]
    %v3817 = vld [vmem:[#allocation2 + $0x1428] sm:$0xff]
    %v3818 = vld [vmem:[#allocation2 + $0x1430] sm:$0xff]
    %v3819 = vld [vmem:[#allocation2 + $0x1438] sm:$0xff]
    %v3820 = vld [vmem:[#allocation2 + $0x1440] sm:$0xff]
    %v3821 = vld [vmem:[#allocation2 + $0x1448] sm:$0xff]
    %v3822 = vld [vmem:[#allocation2 + $0x1450] sm:$0xff]
    %v3823 = vld [vmem:[#allocation2 + $0x1458] sm:$0xff]
    %v3824 = vld [vmem:[#allocation2 + $0x1460] sm:$0xff]
    %v3825 = vld [vmem:[#allocation2 + $0x1468] sm:$0xff]
    %v3826 = vld [vmem:[#allocation2 + $0x1470] sm:$0xff]
    %v3827 = vld [vmem:[#allocation2 + $0x1478] sm:$0xff]
    %v3828 = vld [vmem:[#allocation2 + $0x1480] sm:$0xff]
    %v3829 = vld [vmem:[#allocation2 + $0x1488] sm:$0xff]
    %v3830 = vld [vmem:[#allocation2 + $0x1490] sm:$0xff]
    %v3831 = vld [vmem:[#allocation2 + $0x1498] sm:$0xff]
    %v3832 = vld [vmem:[#allocation2 + $0x14a0] sm:$0xff]
    %v3833 = vld [vmem:[#allocation2 + $0x14a8] sm:$0xff]
    %v3834 = vld [vmem:[#allocation2 + $0x14b0] sm:$0xff]
    %v3835 = vld [vmem:[#allocation2 + $0x14b8] sm:$0xff]
    %v3836 = vld [vmem:[#allocation2 + $0x14c0] sm:$0xff]
    %v3837 = vld [vmem:[#allocation2 + $0x14c8] sm:$0xff]
    %v3838 = vld [vmem:[#allocation2 + $0x14d0] sm:$0xff]
    %v3839 = vld [vmem:[#allocation2 + $0x14d8] sm:$0xff]
    %v3840 = vld [vmem:[#allocation2 + $0x14e0] sm:$0xff]
    %v3841 = vld [vmem:[#allocation2 + $0x14e8] sm:$0xff]
    %v3842 = vld [vmem:[#allocation2 + $0x14f0] sm:$0xff]
    %v3843 = vld [vmem:[#allocation2 + $0x14f8] sm:$0xff]
    %v3844 = vld [vmem:[#allocation2 + $0x1500] sm:$0xff]
    %v3845 = vld [vmem:[#allocation2 + $0x1508] sm:$0xff]
    %v3846 = vld [vmem:[#allocation2 + $0x1510] sm:$0xff]
    %v3847 = vld [vmem:[#allocation2 + $0x1518] sm:$0xff]
    %v3848 = vld [vmem:[#allocation2 + $0x1520] sm:$0xff]
    %v3849 = vld [vmem:[#allocation2 + $0x1528] sm:$0xff]
    %v3850 = vld [vmem:[#allocation2 + $0x1530] sm:$0xff]
    %v3851 = vld [vmem:[#allocation2 + $0x1538] sm:$0xff]
    %v3852 = vld [vmem:[#allocation2 + $0x1540] sm:$0xff]
    %v3853 = vld [vmem:[#allocation2 + $0x1548] sm:$0xff]
    %v3854 = vld [vmem:[#allocation2 + $0x1550] sm:$0xff]
    %v3855 = vld [vmem:[#allocation2 + $0x1558] sm:$0xff]
    %v3856 = vld [vmem:[#allocation2 + $0x1560] sm:$0xff]
    %v3857 = vld [vmem:[#allocation2 + $0x1568] sm:$0xff]
    %v3858 = vld [vmem:[#allocation2 + $0x1570] sm:$0xff]
    %v3859 = vld [vmem:[#allocation2 + $0x1578] sm:$0xff]
    %v3860 = vld [vmem:[#allocation2 + $0x1580] sm:$0xff]
    %v3861 = vld [vmem:[#allocation2 + $0x1588] sm:$0xff]
    %v3862 = vld [vmem:[#allocation2 + $0x1590] sm:$0xff]
    %v3863 = vld [vmem:[#allocation2 + $0x1598] sm:$0xff]
    %v3864 = vld [vmem:[#allocation2 + $0x15a0] sm:$0xff]
    %v3865 = vld [vmem:[#allocation2 + $0x15a8] sm:$0xff]
    %v3866 = vld [vmem:[#allocation2 + $0x15b0] sm:$0xff]
    %v3867 = vld [vmem:[#allocation2 + $0x15b8] sm:$0xff]
    %v3868 = vld [vmem:[#allocation2 + $0x15c0] sm:$0xff]
    %v3869 = vld [vmem:[#allocation2 + $0x15c8] sm:$0xff]
    %v3870 = vld [vmem:[#allocation2 + $0x15d0] sm:$0xff]
    %v3871 = vld [vmem:[#allocation2 + $0x15d8] sm:$0xff]
    %v3872 = vld [vmem:[#allocation2 + $0x15e0] sm:$0xff]
    %v3873 = vld [vmem:[#allocation2 + $0x15e8] sm:$0xff]
    %v3874 = vld [vmem:[#allocation2 + $0x15f0] sm:$0xff]
    %v3875 = vld [vmem:[#allocation2 + $0x15f8] sm:$0xff]
    %v3876 = vld [vmem:[#allocation2 + $0x1600] sm:$0xff]
    %v3877 = vld [vmem:[#allocation2 + $0x1608] sm:$0xff]
    %v3878 = vld [vmem:[#allocation2 + $0x1610] sm:$0xff]
    %v3879 = vld [vmem:[#allocation2 + $0x1618] sm:$0xff]
    %v3880 = vld [vmem:[#allocation2 + $0x1620] sm:$0xff]
    %v3881 = vld [vmem:[#allocation2 + $0x1628] sm:$0xff]
    %v3882 = vld [vmem:[#allocation2 + $0x1630] sm:$0xff]
    %v3883 = vld [vmem:[#allocation2 + $0x1638] sm:$0xff]
    %v3884 = vld [vmem:[#allocation2 + $0x1640] sm:$0xff]
    %v3885 = vld [vmem:[#allocation2 + $0x1648] sm:$0xff]
    %v3886 = vld [vmem:[#allocation2 + $0x1650] sm:$0xff]
    %v3887 = vld [vmem:[#allocation2 + $0x1658] sm:$0xff]
    %v3888 = vld [vmem:[#allocation2 + $0x1660] sm:$0xff]
    %v3889 = vld [vmem:[#allocation2 + $0x1668] sm:$0xff]
    %v3890 = vld [vmem:[#allocation2 + $0x1670] sm:$0xff]
    %v3891 = vld [vmem:[#allocation2 + $0x1678] sm:$0xff]
    %v3892 = vld [vmem:[#allocation2 + $0x1680] sm:$0xff]
    %v3893 = vld [vmem:[#allocation2 + $0x1688] sm:$0xff]
    %v3894 = vld [vmem:[#allocation2 + $0x1690] sm:$0xff]
    %v3895 = vld [vmem:[#allocation2 + $0x1698] sm:$0xff]
    %v3896 = vld [vmem:[#allocation2 + $0x16a0] sm:$0xff]
    %v3897 = vld [vmem:[#allocation2 + $0x16a8] sm:$0xff]
    %v3898 = vld [vmem:[#allocation2 + $0x16b0] sm:$0xff]
    %v3899 = vld [vmem:[#allocation2 + $0x16b8] sm:$0xff]
    %v3900 = vld [vmem:[#allocation2 + $0x16c0] sm:$0xff]
    %v3901 = vld [vmem:[#allocation2 + $0x16c8] sm:$0xff]
    %v3902 = vld [vmem:[#allocation2 + $0x16d0] sm:$0xff]
    %v3903 = vld [vmem:[#allocation2 + $0x16d8] sm:$0xff]
    %v3904 = vld [vmem:[#allocation2 + $0x16e0] sm:$0xff]
    %v3905 = vld [vmem:[#allocation2 + $0x16e8] sm:$0xff]
    %v3906 = vld [vmem:[#allocation2 + $0x16f0] sm:$0xff]
    %v3907 = vld [vmem:[#allocation2 + $0x16f8] sm:$0xff]
    %v3908 = vld [vmem:[#allocation2 + $0x1700] sm:$0xff]
    %v3909 = vld [vmem:[#allocation2 + $0x1708] sm:$0xff]
    %v3910 = vld [vmem:[#allocation2 + $0x1710] sm:$0xff]
    %v3911 = vld [vmem:[#allocation2 + $0x1718] sm:$0xff]
    %v3912 = vld [vmem:[#allocation2 + $0x1720] sm:$0xff]
    %v3913 = vld [vmem:[#allocation2 + $0x1728] sm:$0xff]
    %v3914 = vld [vmem:[#allocation2 + $0x1730] sm:$0xff]
    %v3915 = vld [vmem:[#allocation2 + $0x1738] sm:$0xff]
    %v3916 = vld [vmem:[#allocation2 + $0x1740] sm:$0xff]
    %v3917 = vld [vmem:[#allocation2 + $0x1748] sm:$0xff]
    %v3918 = vld [vmem:[#allocation2 + $0x1750] sm:$0xff]
    %v3919 = vld [vmem:[#allocation2 + $0x1758] sm:$0xff]
    %v3920 = vld [vmem:[#allocation2 + $0x1760] sm:$0xff]
    %v3921 = vld [vmem:[#allocation2 + $0x1768] sm:$0xff]
    %v3922 = vld [vmem:[#allocation2 + $0x1770] sm:$0xff]
    %v3923 = vld [vmem:[#allocation2 + $0x1778] sm:$0xff]
    %v3924 = vld [vmem:[#allocation2 + $0x1780] sm:$0xff]
    %v3925 = vld [vmem:[#allocation2 + $0x1788] sm:$0xff]
    %v3926 = vld [vmem:[#allocation2 + $0x1790] sm:$0xff]
    %v3927 = vld [vmem:[#allocation2 + $0x1798] sm:$0xff]
    %v3928 = vld [vmem:[#allocation2 + $0x17a0] sm:$0xff]
    %v3929 = vld [vmem:[#allocation2 + $0x17a8] sm:$0xff]
    %v3930 = vld [vmem:[#allocation2 + $0x17b0] sm:$0xff]
    %v3931 = vld [vmem:[#allocation2 + $0x17b8] sm:$0xff]
    %v3932 = vld [vmem:[#allocation2 + $0x17c0] sm:$0xff]
    %v3933 = vld [vmem:[#allocation2 + $0x17c8] sm:$0xff]
    %v3934 = vld [vmem:[#allocation2 + $0x17d0] sm:$0xff]
    %v3935 = vld [vmem:[#allocation2 + $0x17d8] sm:$0xff]
    %v3936 = vld [vmem:[#allocation2 + $0x17e0] sm:$0xff]
    %v3937 = vld [vmem:[#allocation2 + $0x17e8] sm:$0xff]
    %v3938 = vld [vmem:[#allocation2 + $0x17f0] sm:$0xff]
    %v3939 = vld [vmem:[#allocation2 + $0x17f8] sm:$0xff]
    %v3940 = vld [vmem:[#allocation2 + $0x1800] sm:$0xff]
    %v3941 = vld [vmem:[#allocation2 + $0x1808] sm:$0xff]
    %v3942 = vld [vmem:[#allocation2 + $0x1810] sm:$0xff]
    %v3943 = vld [vmem:[#allocation2 + $0x1818] sm:$0xff]
    %v3944 = vld [vmem:[#allocation2 + $0x1820] sm:$0xff]
    %v3945 = vld [vmem:[#allocation2 + $0x1828] sm:$0xff]
    %v3946 = vld [vmem:[#allocation2 + $0x1830] sm:$0xff]
    %v3947 = vld [vmem:[#allocation2 + $0x1838] sm:$0xff]
    %v3948 = vld [vmem:[#allocation2 + $0x1840] sm:$0xff]
    %v3949 = vld [vmem:[#allocation2 + $0x1848] sm:$0xff]
    %v3950 = vld [vmem:[#allocation2 + $0x1850] sm:$0xff]
    %v3951 = vld [vmem:[#allocation2 + $0x1858] sm:$0xff]
    %v3952 = vld [vmem:[#allocation2 + $0x1860] sm:$0xff]
    %v3953 = vld [vmem:[#allocation2 + $0x1868] sm:$0xff]
    %v3954 = vld [vmem:[#allocation2 + $0x1870] sm:$0xff]
    %v3955 = vld [vmem:[#allocation2 + $0x1878] sm:$0xff]
    %v3956 = vld [vmem:[#allocation2 + $0x1880] sm:$0xff]
    %v3957 = vld [vmem:[#allocation2 + $0x1888] sm:$0xff]
    %v3958 = vld [vmem:[#allocation2 + $0x1890] sm:$0xff]
    %v3959 = vld [vmem:[#allocation2 + $0x1898] sm:$0xff]
    %v3960 = vld [vmem:[#allocation2 + $0x18a0] sm:$0xff]
    %v3961 = vld [vmem:[#allocation2 + $0x18a8] sm:$0xff]
    %v3962 = vld [vmem:[#allocation2 + $0x18b0] sm:$0xff]
    %v3963 = vld [vmem:[#allocation2 + $0x18b8] sm:$0xff]
    %v3964 = vld [vmem:[#allocation2 + $0x18c0] sm:$0xff]
    %v3965 = vld [vmem:[#allocation2 + $0x18c8] sm:$0xff]
    %v3966 = vld [vmem:[#allocation2 + $0x18d0] sm:$0xff]
    %v3967 = vld [vmem:[#allocation2 + $0x18d8] sm:$0xff]
    %v3968 = vld [vmem:[#allocation2 + $0x18e0] sm:$0xff]
    %v3969 = vld [vmem:[#allocation2 + $0x18e8] sm:$0xff]
    %v3970 = vld [vmem:[#allocation2 + $0x18f0] sm:$0xff]
    %v3971 = vld [vmem:[#allocation2 + $0x18f8] sm:$0xff]
    %v3972 = vld [vmem:[#allocation2 + $0x1900] sm:$0xff]
    %v3973 = vld [vmem:[#allocation2 + $0x1908] sm:$0xff]
    %v3974 = vld [vmem:[#allocation2 + $0x1910] sm:$0xff]
    %v3975 = vld [vmem:[#allocation2 + $0x1918] sm:$0xff]
    %v3976 = vld [vmem:[#allocation2 + $0x1920] sm:$0xff]
    %v3977 = vld [vmem:[#allocation2 + $0x1928] sm:$0xff]
    %v3978 = vld [vmem:[#allocation2 + $0x1930] sm:$0xff]
    %v3979 = vld [vmem:[#allocation2 + $0x1938] sm:$0xff]
    %v3980 = vld [vmem:[#allocation2 + $0x1940] sm:$0xff]
    %v3981 = vld [vmem:[#allocation2 + $0x1948] sm:$0xff]
    %v3982 = vld [vmem:[#allocation2 + $0x1950] sm:$0xff]
    %v3983 = vld [vmem:[#allocation2 + $0x1958] sm:$0xff]
    %v3984 = vld [vmem:[#allocation2 + $0x1960] sm:$0xff]
    %v3985 = vld [vmem:[#allocation2 + $0x1968] sm:$0xff]
    %v3986 = vld [vmem:[#allocation2 + $0x1970] sm:$0xff]
    %v3987 = vld [vmem:[#allocation2 + $0x1978] sm:$0xff]
    %v3988 = vld [vmem:[#allocation2 + $0x1980] sm:$0xff]
    %v3989 = vld [vmem:[#allocation2 + $0x1988] sm:$0xff]
    %v3990 = vld [vmem:[#allocation2 + $0x1990] sm:$0xff]
    %v3991 = vld [vmem:[#allocation2 + $0x1998] sm:$0xff]
    %v3992 = vld [vmem:[#allocation2 + $0x19a0] sm:$0xff]
    %v3993 = vld [vmem:[#allocation2 + $0x19a8] sm:$0xff]
    %v3994 = vld [vmem:[#allocation2 + $0x19b0] sm:$0xff]
    %v3995 = vld [vmem:[#allocation2 + $0x19b8] sm:$0xff]
    %v3996 = vld [vmem:[#allocation2 + $0x19c0] sm:$0xff]
    %v3997 = vld [vmem:[#allocation2 + $0x19c8] sm:$0xff]
    %v3998 = vld [vmem:[#allocation2 + $0x19d0] sm:$0xff]
    %v3999 = vld [vmem:[#allocation2 + $0x19d8] sm:$0xff]
    %v4000 = vld [vmem:[#allocation2 + $0x19e0] sm:$0xff]
    %v4001 = vld [vmem:[#allocation2 + $0x19e8] sm:$0xff]
    %v4002 = vld [vmem:[#allocation2 + $0x19f0] sm:$0xff]
    %v4003 = vld [vmem:[#allocation2 + $0x19f8] sm:$0xff]
    %v4004 = vld [vmem:[#allocation2 + $0x1a00] sm:$0xff]
    %v4005 = vld [vmem:[#allocation2 + $0x1a08] sm:$0xff]
    %v4006 = vld [vmem:[#allocation2 + $0x1a10] sm:$0xff]
    %v4007 = vld [vmem:[#allocation2 + $0x1a18] sm:$0xff]
    %v4008 = vld [vmem:[#allocation2 + $0x1a20] sm:$0xff]
    %v4009 = vld [vmem:[#allocation2 + $0x1a28] sm:$0xff]
    %v4010 = vld [vmem:[#allocation2 + $0x1a30] sm:$0xff]
    %v4011 = vld [vmem:[#allocation2 + $0x1a38] sm:$0xff]
    %v4012 = vld [vmem:[#allocation2 + $0x1a40] sm:$0xff]
    %v4013 = vld [vmem:[#allocation2 + $0x1a48] sm:$0xff]
    %v4014 = vld [vmem:[#allocation2 + $0x1a50] sm:$0xff]
    %v4015 = vld [vmem:[#allocation2 + $0x1a58] sm:$0xff]
    %v4016 = vld [vmem:[#allocation2 + $0x1a60] sm:$0xff]
    %v4017 = vld [vmem:[#allocation2 + $0x1a68] sm:$0xff]
    %v4018 = vld [vmem:[#allocation2 + $0x1a70] sm:$0xff]
    %v4019 = vld [vmem:[#allocation2 + $0x1a78] sm:$0xff]
    %v4020 = vld [vmem:[#allocation2 + $0x1a80] sm:$0xff]
    %v4021 = vld [vmem:[#allocation2 + $0x1a88] sm:$0xff]
    %v4022 = vld [vmem:[#allocation2 + $0x1a90] sm:$0xff]
    %v4023 = vld [vmem:[#allocation2 + $0x1a98] sm:$0xff]
    %v4024 = vld [vmem:[#allocation2 + $0x1aa0] sm:$0xff]
    %v4025 = vld [vmem:[#allocation2 + $0x1aa8] sm:$0xff]
    %v4026 = vld [vmem:[#allocation2 + $0x1ab0] sm:$0xff]
    %v4027 = vld [vmem:[#allocation2 + $0x1ab8] sm:$0xff]
    %v4028 = vld [vmem:[#allocation2 + $0x1ac0] sm:$0xff]
    %v4029 = vld [vmem:[#allocation2 + $0x1ac8] sm:$0xff]
    %v4030 = vld [vmem:[#allocation2 + $0x1ad0] sm:$0xff]
    %v4031 = vld [vmem:[#allocation2 + $0x1ad8] sm:$0xff]
    %v4032 = vld [vmem:[#allocation2 + $0x1ae0] sm:$0xff]
    %v4033 = vld [vmem:[#allocation2 + $0x1ae8] sm:$0xff]
    %v4034 = vld [vmem:[#allocation2 + $0x1af0] sm:$0xff]
    %v4035 = vld [vmem:[#allocation2 + $0x1af8] sm:$0xff]
    %v4036 = vld [vmem:[#allocation2 + $0x1b00] sm:$0xff]
    %v4037 = vld [vmem:[#allocation2 + $0x1b08] sm:$0xff]
    %v4038 = vld [vmem:[#allocation2 + $0x1b10] sm:$0xff]
    %v4039 = vld [vmem:[#allocation2 + $0x1b18] sm:$0xff]
    %v4040 = vld [vmem:[#allocation2 + $0x1b20] sm:$0xff]
    %v4041 = vld [vmem:[#allocation2 + $0x1b28] sm:$0xff]
    %v4042 = vld [vmem:[#allocation2 + $0x1b30] sm:$0xff]
    %v4043 = vld [vmem:[#allocation2 + $0x1b38] sm:$0xff]
    %v4044 = vld [vmem:[#allocation2 + $0x1b40] sm:$0xff]
    %v4045 = vld [vmem:[#allocation2 + $0x1b48] sm:$0xff]
    %v4046 = vld [vmem:[#allocation2 + $0x1b50] sm:$0xff]
    %v4047 = vld [vmem:[#allocation2 + $0x1b58] sm:$0xff]
    %v4048 = vld [vmem:[#allocation2 + $0x1b60] sm:$0xff]
    %v4049 = vld [vmem:[#allocation2 + $0x1b68] sm:$0xff]
    %v4050 = vld [vmem:[#allocation2 + $0x1b70] sm:$0xff]
    %v4051 = vld [vmem:[#allocation2 + $0x1b78] sm:$0xff]
    %v4052 = vld [vmem:[#allocation2 + $0x1b80] sm:$0xff]
    %v4053 = vld [vmem:[#allocation2 + $0x1b88] sm:$0xff]
    %v4054 = vld [vmem:[#allocation2 + $0x1b90] sm:$0xff]
    %v4055 = vld [vmem:[#allocation2 + $0x1b98] sm:$0xff]
    %v4056 = vld [vmem:[#allocation2 + $0x1ba0] sm:$0xff]
    %v4057 = vld [vmem:[#allocation2 + $0x1ba8] sm:$0xff]
    %v4058 = vld [vmem:[#allocation2 + $0x1bb0] sm:$0xff]
    %v4059 = vld [vmem:[#allocation2 + $0x1bb8] sm:$0xff]
    %v4060 = vld [vmem:[#allocation2 + $0x1bc0] sm:$0xff]
    %v4061 = vld [vmem:[#allocation2 + $0x1bc8] sm:$0xff]
    %v4062 = vld [vmem:[#allocation2 + $0x1bd0] sm:$0xff]
    %v4063 = vld [vmem:[#allocation2 + $0x1bd8] sm:$0xff]
    %v4064 = vld [vmem:[#allocation2 + $0x1be0] sm:$0xff]
    %v4065 = vld [vmem:[#allocation2 + $0x1be8] sm:$0xff]
    %v4066 = vld [vmem:[#allocation2 + $0x1bf0] sm:$0xff]
    %v4067 = vld [vmem:[#allocation2 + $0x1bf8] sm:$0xff]
    %v4068 = vld [vmem:[#allocation2 + $0x1c00] sm:$0xff]
    %v4069 = vld [vmem:[#allocation2 + $0x1c08] sm:$0xff]
    %v4070 = vld [vmem:[#allocation2 + $0x1c10] sm:$0xff]
    %v4071 = vld [vmem:[#allocation2 + $0x1c18] sm:$0xff]
    %v4072 = vld [vmem:[#allocation2 + $0x1c20] sm:$0xff]
    %v4073 = vld [vmem:[#allocation2 + $0x1c28] sm:$0xff]
    %v4074 = vld [vmem:[#allocation2 + $0x1c30] sm:$0xff]
    %v4075 = vld [vmem:[#allocation2 + $0x1c38] sm:$0xff]
    %v4076 = vld [vmem:[#allocation2 + $0x1c40] sm:$0xff]
    %v4077 = vld [vmem:[#allocation2 + $0x1c48] sm:$0xff]
    %v4078 = vld [vmem:[#allocation2 + $0x1c50] sm:$0xff]
    %v4079 = vld [vmem:[#allocation2 + $0x1c58] sm:$0xff]
    %v4080 = vld [vmem:[#allocation2 + $0x1c60] sm:$0xff]
    %v4081 = vld [vmem:[#allocation2 + $0x1c68] sm:$0xff]
    %v4082 = vld [vmem:[#allocation2 + $0x1c70] sm:$0xff]
    %v4083 = vld [vmem:[#allocation2 + $0x1c78] sm:$0xff]
    %v4084 = vld [vmem:[#allocation2 + $0x1c80] sm:$0xff]
    %v4085 = vld [vmem:[#allocation2 + $0x1c88] sm:$0xff]
    %v4086 = vld [vmem:[#allocation2 + $0x1c90] sm:$0xff]
    %v4087 = vld [vmem:[#allocation2 + $0x1c98] sm:$0xff]
    %v4088 = vld [vmem:[#allocation2 + $0x1ca0] sm:$0xff]
    %v4089 = vld [vmem:[#allocation2 + $0x1ca8] sm:$0xff]
    %v4090 = vld [vmem:[#allocation2 + $0x1cb0] sm:$0xff]
    %v4091 = vld [vmem:[#allocation2 + $0x1cb8] sm:$0xff]
    %v4092 = vld [vmem:[#allocation2 + $0x1cc0] sm:$0xff]
    %v4093 = vld [vmem:[#allocation2 + $0x1cc8] sm:$0xff]
    %v4094 = vld [vmem:[#allocation2 + $0x1cd0] sm:$0xff]
    %v4095 = vld [vmem:[#allocation2 + $0x1cd8] sm:$0xff]
    %v4096 = vld [vmem:[#allocation2 + $0x1ce0] sm:$0xff]
    %v4097 = vld [vmem:[#allocation2 + $0x1ce8] sm:$0xff]
    %v4098 = vld [vmem:[#allocation2 + $0x1cf0] sm:$0xff]
    %v4099 = vld [vmem:[#allocation2 + $0x1cf8] sm:$0xff]
    %v4100 = vld [vmem:[#allocation2 + $0x1d00] sm:$0xff]
    %v4101 = vld [vmem:[#allocation2 + $0x1d08] sm:$0xff]
    %v4102 = vld [vmem:[#allocation2 + $0x1d10] sm:$0xff]
    %v4103 = vld [vmem:[#allocation2 + $0x1d18] sm:$0xff]
    %v4104 = vld [vmem:[#allocation2 + $0x1d20] sm:$0xff]
    %v4105 = vld [vmem:[#allocation2 + $0x1d28] sm:$0xff]
    %v4106 = vld [vmem:[#allocation2 + $0x1d30] sm:$0xff]
    %v4107 = vld [vmem:[#allocation2 + $0x1d38] sm:$0xff]
    %v4108 = vld [vmem:[#allocation2 + $0x1d40] sm:$0xff]
    %v4109 = vld [vmem:[#allocation2 + $0x1d48] sm:$0xff]
    %v4110 = vld [vmem:[#allocation2 + $0x1d50] sm:$0xff]
    %v4111 = vld [vmem:[#allocation2 + $0x1d58] sm:$0xff]
    %v4112 = vld [vmem:[#allocation2 + $0x1d60] sm:$0xff]
    %v4113 = vld [vmem:[#allocation2 + $0x1d68] sm:$0xff]
    %v4114 = vld [vmem:[#allocation2 + $0x1d70] sm:$0xff]
    %v4115 = vld [vmem:[#allocation2 + $0x1d78] sm:$0xff]
    %v4116 = vld [vmem:[#allocation2 + $0x1d80] sm:$0xff]
    %v4117 = vld [vmem:[#allocation2 + $0x1d88] sm:$0xff]
    %v4118 = vld [vmem:[#allocation2 + $0x1d90] sm:$0xff]
    %v4119 = vld [vmem:[#allocation2 + $0x1d98] sm:$0xff]
    %v4120 = vld [vmem:[#allocation2 + $0x1da0] sm:$0xff]
    %v4121 = vld [vmem:[#allocation2 + $0x1da8] sm:$0xff]
    %v4122 = vld [vmem:[#allocation2 + $0x1db0] sm:$0xff]
    %v4123 = vld [vmem:[#allocation2 + $0x1db8] sm:$0xff]
    %v4124 = vld [vmem:[#allocation2 + $0x1dc0] sm:$0xff]
    %v4125 = vld [vmem:[#allocation2 + $0x1dc8] sm:$0xff]
    %v4126 = vld [vmem:[#allocation2 + $0x1dd0] sm:$0xff]
    %v4127 = vld [vmem:[#allocation2 + $0x1dd8] sm:$0xff]
    %v4128 = vld [vmem:[#allocation2 + $0x1de0] sm:$0xff]
    %v4129 = vld [vmem:[#allocation2 + $0x1de8] sm:$0xff]
    %v4130 = vld [vmem:[#allocation2 + $0x1df0] sm:$0xff]
    %v4131 = vld [vmem:[#allocation2 + $0x1df8] sm:$0xff]
    %v4132 = vld [vmem:[#allocation2 + $0x1e00] sm:$0xff]
    %v4133 = vld [vmem:[#allocation2 + $0x1e08] sm:$0xff]
    %v4134 = vld [vmem:[#allocation2 + $0x1e10] sm:$0xff]
    %v4135 = vld [vmem:[#allocation2 + $0x1e18] sm:$0xff]
    %v4136 = vld [vmem:[#allocation2 + $0x1e20] sm:$0xff]
    %v4137 = vld [vmem:[#allocation2 + $0x1e28] sm:$0xff]
    %v4138 = vld [vmem:[#allocation2 + $0x1e30] sm:$0xff]
    %v4139 = vld [vmem:[#allocation2 + $0x1e38] sm:$0xff]
    %v4140 = vld [vmem:[#allocation2 + $0x1e40] sm:$0xff]
    %v4141 = vld [vmem:[#allocation2 + $0x1e48] sm:$0xff]
    %v4142 = vld [vmem:[#allocation2 + $0x1e50] sm:$0xff]
    %v4143 = vld [vmem:[#allocation2 + $0x1e58] sm:$0xff]
    %v4144 = vld [vmem:[#allocation2 + $0x1e60] sm:$0xff]
    %v4145 = vld [vmem:[#allocation2 + $0x1e68] sm:$0xff]
    %v4146 = vld [vmem:[#allocation2 + $0x1e70] sm:$0xff]
    %v4147 = vld [vmem:[#allocation2 + $0x1e78] sm:$0xff]
    %v4148 = vld [vmem:[#allocation2 + $0x1e80] sm:$0xff]
    %v4149 = vld [vmem:[#allocation2 + $0x1e88] sm:$0xff]
    %v4150 = vld [vmem:[#allocation2 + $0x1e90] sm:$0xff]
    %v4151 = vld [vmem:[#allocation2 + $0x1e98] sm:$0xff]
    %v4152 = vld [vmem:[#allocation2 + $0x1ea0] sm:$0xff]
    %v4153 = vld [vmem:[#allocation2 + $0x1ea8] sm:$0xff]
    %v4154 = vld [vmem:[#allocation2 + $0x1eb0] sm:$0xff]
    %v4155 = vld [vmem:[#allocation2 + $0x1eb8] sm:$0xff]
    %v4156 = vld [vmem:[#allocation2 + $0x1ec0] sm:$0xff]
    %v4157 = vld [vmem:[#allocation2 + $0x1ec8] sm:$0xff]
    %v4158 = vld [vmem:[#allocation2 + $0x1ed0] sm:$0xff]
    %v4159 = vld [vmem:[#allocation2 + $0x1ed8] sm:$0xff]
    %v4160 = vld [vmem:[#allocation2 + $0x1ee0] sm:$0xff]
    %v4161 = vld [vmem:[#allocation2 + $0x1ee8] sm:$0xff]
    %v4162 = vld [vmem:[#allocation2 + $0x1ef0] sm:$0xff]
    %v4163 = vld [vmem:[#allocation2 + $0x1ef8] sm:$0xff]
    %v4164 = vld [vmem:[#allocation2 + $0x1f00] sm:$0xff]
    %v4165 = vld [vmem:[#allocation2 + $0x1f08] sm:$0xff]
    %v4166 = vld [vmem:[#allocation2 + $0x1f10] sm:$0xff]
    %v4167 = vld [vmem:[#allocation2 + $0x1f18] sm:$0xff]
    %v4168 = vld [vmem:[#allocation2 + $0x1f20] sm:$0xff]
    %v4169 = vld [vmem:[#allocation2 + $0x1f28] sm:$0xff]
    %v4170 = vld [vmem:[#allocation2 + $0x1f30] sm:$0xff]
    %v4171 = vld [vmem:[#allocation2 + $0x1f38] sm:$0xff]
    %v4172 = vld [vmem:[#allocation2 + $0x1f40] sm:$0xff]
    %v4173 = vld [vmem:[#allocation2 + $0x1f48] sm:$0xff]
    %v4174 = vld [vmem:[#allocation2 + $0x1f50] sm:$0xff]
    %v4175 = vld [vmem:[#allocation2 + $0x1f58] sm:$0xff]
    %v4176 = vld [vmem:[#allocation2 + $0x1f60] sm:$0xff]
    %v4177 = vld [vmem:[#allocation2 + $0x1f68] sm:$0xff]
    %v4178 = vld [vmem:[#allocation2 + $0x1f70] sm:$0xff]
    %v4179 = vld [vmem:[#allocation2 + $0x1f78] sm:$0xff]
    %v4180 = vld [vmem:[#allocation2 + $0x1f80] sm:$0xff]
    %v4181 = vld [vmem:[#allocation2 + $0x1f88] sm:$0xff]
    %v4182 = vld [vmem:[#allocation2 + $0x1f90] sm:$0xff]
    %v4183 = vld [vmem:[#allocation2 + $0x1f98] sm:$0xff]
    %v4184 = vld [vmem:[#allocation2 + $0x1fa0] sm:$0xff]
    %v4185 = vld [vmem:[#allocation2 + $0x1fa8] sm:$0xff]
    %v4186 = vld [vmem:[#allocation2 + $0x1fb0] sm:$0xff]
    %v4187 = vld [vmem:[#allocation2 + $0x1fb8] sm:$0xff]
    %v4188 = vld [vmem:[#allocation2 + $0x1fc0] sm:$0xff]
    %v4189 = vld [vmem:[#allocation2 + $0x1fc8] sm:$0xff]
    %v4190 = vld [vmem:[#allocation2 + $0x1fd0] sm:$0xff]
    %v4191 = vld [vmem:[#allocation2 + $0x1fd8] sm:$0xff]
    %v4192 = vld [vmem:[#allocation2 + $0x1fe0] sm:$0xff]
    %v4193 = vld [vmem:[#allocation2 + $0x1fe8] sm:$0xff]
    %v4194 = vld [vmem:[#allocation2 + $0x1ff0] sm:$0xff]
    %v4195 = vld [vmem:[#allocation2 + $0x1ff8] sm:$0xff]
    %v4196 = vpack.c.bf16 %v3160, %v3160
    %v4197 = vpack.c.bf16 %v3161, %v3161
    %v4198 = vpack.c.bf16 %v3162, %v3162
    %v4199 = vpack.c.bf16 %v3163, %v3163
    %v4200 = vpack.c.bf16 %v3164, %v3164
    %v4201 = vpack.c.bf16 %v3165, %v3165
    %v4202 = vpack.c.bf16 %v3166, %v3166
    %v4203 = vpack.c.bf16 %v3167, %v3167
    %v5228 = vunpack.c.l.b16 %v3172
    %v5229 = vunpack.c.h.b16 %v3172
    %v5230 = vunpack.c.l.b16 %v3173
    %v5231 = vunpack.c.h.b16 %v3173
    %v5232 = vunpack.c.l.b16 %v3174
    %v5233 = vunpack.c.h.b16 %v3174
    %v5234 = vunpack.c.l.b16 %v3175
    %v5235 = vunpack.c.h.b16 %v3175
    %v5236 = vunpack.c.l.b16 %v3176
    %v5237 = vunpack.c.h.b16 %v3176
    %v5238 = vunpack.c.l.b16 %v3177
    %v5239 = vunpack.c.h.b16 %v3177
    %v5240 = vunpack.c.l.b16 %v3178
    %v5241 = vunpack.c.h.b16 %v3178
    %v5242 = vunpack.c.l.b16 %v3179
    %v5243 = vunpack.c.h.b16 %v3179
    %v5244 = vunpack.c.l.b16 %v3180
    %v5245 = vunpack.c.h.b16 %v3180
    %v5246 = vunpack.c.l.b16 %v3181
    %v5247 = vunpack.c.h.b16 %v3181
    %v5248 = vunpack.c.l.b16 %v3182
    %v5249 = vunpack.c.h.b16 %v3182
    %v5250 = vunpack.c.l.b16 %v3183
    %v5251 = vunpack.c.h.b16 %v3183
    %v5252 = vunpack.c.l.b16 %v3184
    %v5253 = vunpack.c.h.b16 %v3184
    %v5254 = vunpack.c.l.b16 %v3185
    %v5255 = vunpack.c.h.b16 %v3185
    %v5256 = vunpack.c.l.b16 %v3186
    %v5257 = vunpack.c.h.b16 %v3186
    %v5258 = vunpack.c.l.b16 %v3187
    %v5259 = vunpack.c.h.b16 %v3187
    %v5260 = vunpack.c.l.b16 %v3188
    %v5261 = vunpack.c.h.b16 %v3188
    %v5262 = vunpack.c.l.b16 %v3189
    %v5263 = vunpack.c.h.b16 %v3189
    %v5264 = vunpack.c.l.b16 %v3190
    %v5265 = vunpack.c.h.b16 %v3190
    %v5266 = vunpack.c.l.b16 %v3191
    %v5267 = vunpack.c.h.b16 %v3191
    %v5268 = vunpack.c.l.b16 %v3192
    %v5269 = vunpack.c.h.b16 %v3192
    %v5270 = vunpack.c.l.b16 %v3193
    %v5271 = vunpack.c.h.b16 %v3193
    %v5272 = vunpack.c.l.b16 %v3194
    %v5273 = vunpack.c.h.b16 %v3194
    %v5274 = vunpack.c.l.b16 %v3195
    %v5275 = vunpack.c.h.b16 %v3195
    %v5276 = vunpack.c.l.b16 %v3196
    %v5277 = vunpack.c.h.b16 %v3196
    %v5278 = vunpack.c.l.b16 %v3197
    %v5279 = vunpack.c.h.b16 %v3197
    %v5280 = vunpack.c.l.b16 %v3198
    %v5281 = vunpack.c.h.b16 %v3198
    %v5282 = vunpack.c.l.b16 %v3199
    %v5283 = vunpack.c.h.b16 %v3199
    %v5284 = vunpack.c.l.b16 %v3200
    %v5285 = vunpack.c.h.b16 %v3200
    %v5286 = vunpack.c.l.b16 %v3201
    %v5287 = vunpack.c.h.b16 %v3201
    %v5288 = vunpack.c.l.b16 %v3202
    %v5289 = vunpack.c.h.b16 %v3202
    %v5290 = vunpack.c.l.b16 %v3203
    %v5291 = vunpack.c.h.b16 %v3203
    %v5292 = vunpack.c.l.b16 %v3204
    %v5293 = vunpack.c.h.b16 %v3204
    %v5294 = vunpack.c.l.b16 %v3205
    %v5295 = vunpack.c.h.b16 %v3205
    %v5296 = vunpack.c.l.b16 %v3206
    %v5297 = vunpack.c.h.b16 %v3206
    %v5298 = vunpack.c.l.b16 %v3207
    %v5299 = vunpack.c.h.b16 %v3207
    %v5300 = vunpack.c.l.b16 %v3208
    %v5301 = vunpack.c.h.b16 %v3208
    %v5302 = vunpack.c.l.b16 %v3209
    %v5303 = vunpack.c.h.b16 %v3209
    %v5304 = vunpack.c.l.b16 %v3210
    %v5305 = vunpack.c.h.b16 %v3210
    %v5306 = vunpack.c.l.b16 %v3211
    %v5307 = vunpack.c.h.b16 %v3211
    %v5308 = vunpack.c.l.b16 %v3212
    %v5309 = vunpack.c.h.b16 %v3212
    %v5310 = vunpack.c.l.b16 %v3213
    %v5311 = vunpack.c.h.b16 %v3213
    %v5312 = vunpack.c.l.b16 %v3214
    %v5313 = vunpack.c.h.b16 %v3214
    %v5314 = vunpack.c.l.b16 %v3215
    %v5315 = vunpack.c.h.b16 %v3215
    %v5316 = vunpack.c.l.b16 %v3216
    %v5317 = vunpack.c.h.b16 %v3216
    %v5318 = vunpack.c.l.b16 %v3217
    %v5319 = vunpack.c.h.b16 %v3217
    %v5320 = vunpack.c.l.b16 %v3218
    %v5321 = vunpack.c.h.b16 %v3218
    %v5322 = vunpack.c.l.b16 %v3219
    %v5323 = vunpack.c.h.b16 %v3219
    %v5324 = vunpack.c.l.b16 %v3220
    %v5325 = vunpack.c.h.b16 %v3220
    %v5326 = vunpack.c.l.b16 %v3221
    %v5327 = vunpack.c.h.b16 %v3221
    %v5328 = vunpack.c.l.b16 %v3222
    %v5329 = vunpack.c.h.b16 %v3222
    %v5330 = vunpack.c.l.b16 %v3223
    %v5331 = vunpack.c.h.b16 %v3223
    %v5332 = vunpack.c.l.b16 %v3224
    %v5333 = vunpack.c.h.b16 %v3224
    %v5334 = vunpack.c.l.b16 %v3225
    %v5335 = vunpack.c.h.b16 %v3225
    %v5336 = vunpack.c.l.b16 %v3226
    %v5337 = vunpack.c.h.b16 %v3226
    %v5338 = vunpack.c.l.b16 %v3227
    %v5339 = vunpack.c.h.b16 %v3227
    %v5340 = vunpack.c.l.b16 %v3228
    %v5341 = vunpack.c.h.b16 %v3228
    %v5342 = vunpack.c.l.b16 %v3229
    %v5343 = vunpack.c.h.b16 %v3229
    %v5344 = vunpack.c.l.b16 %v3230
    %v5345 = vunpack.c.h.b16 %v3230
    %v5346 = vunpack.c.l.b16 %v3231
    %v5347 = vunpack.c.h.b16 %v3231
    %v5348 = vunpack.c.l.b16 %v3232
    %v5349 = vunpack.c.h.b16 %v3232
    %v5350 = vunpack.c.l.b16 %v3233
    %v5351 = vunpack.c.h.b16 %v3233
    %v5352 = vunpack.c.l.b16 %v3234
    %v5353 = vunpack.c.h.b16 %v3234
    %v5354 = vunpack.c.l.b16 %v3235
    %v5355 = vunpack.c.h.b16 %v3235
    %v5356 = vunpack.c.l.b16 %v3236
    %v5357 = vunpack.c.h.b16 %v3236
    %v5358 = vunpack.c.l.b16 %v3237
    %v5359 = vunpack.c.h.b16 %v3237
    %v5360 = vunpack.c.l.b16 %v3238
    %v5361 = vunpack.c.h.b16 %v3238
    %v5362 = vunpack.c.l.b16 %v3239
    %v5363 = vunpack.c.h.b16 %v3239
    %v5364 = vunpack.c.l.b16 %v3240
    %v5365 = vunpack.c.h.b16 %v3240
    %v5366 = vunpack.c.l.b16 %v3241
    %v5367 = vunpack.c.h.b16 %v3241
    %v5368 = vunpack.c.l.b16 %v3242
    %v5369 = vunpack.c.h.b16 %v3242
    %v5370 = vunpack.c.l.b16 %v3243
    %v5371 = vunpack.c.h.b16 %v3243
    %v5372 = vunpack.c.l.b16 %v3244
    %v5373 = vunpack.c.h.b16 %v3244
    %v5374 = vunpack.c.l.b16 %v3245
    %v5375 = vunpack.c.h.b16 %v3245
    %v5376 = vunpack.c.l.b16 %v3246
    %v5377 = vunpack.c.h.b16 %v3246
    %v5378 = vunpack.c.l.b16 %v3247
    %v5379 = vunpack.c.h.b16 %v3247
    %v5380 = vunpack.c.l.b16 %v3248
    %v5381 = vunpack.c.h.b16 %v3248
    %v5382 = vunpack.c.l.b16 %v3249
    %v5383 = vunpack.c.h.b16 %v3249
    %v5384 = vunpack.c.l.b16 %v3250
    %v5385 = vunpack.c.h.b16 %v3250
    %v5386 = vunpack.c.l.b16 %v3251
    %v5387 = vunpack.c.h.b16 %v3251
    %v5388 = vunpack.c.l.b16 %v3252
    %v5389 = vunpack.c.h.b16 %v3252
    %v5390 = vunpack.c.l.b16 %v3253
    %v5391 = vunpack.c.h.b16 %v3253
    %v5392 = vunpack.c.l.b16 %v3254
    %v5393 = vunpack.c.h.b16 %v3254
    %v5394 = vunpack.c.l.b16 %v3255
    %v5395 = vunpack.c.h.b16 %v3255
    %v5396 = vunpack.c.l.b16 %v3256
    %v5397 = vunpack.c.h.b16 %v3256
    %v5398 = vunpack.c.l.b16 %v3257
    %v5399 = vunpack.c.h.b16 %v3257
    %v5400 = vunpack.c.l.b16 %v3258
    %v5401 = vunpack.c.h.b16 %v3258
    %v5402 = vunpack.c.l.b16 %v3259
    %v5403 = vunpack.c.h.b16 %v3259
    %v5404 = vunpack.c.l.b16 %v3260
    %v5405 = vunpack.c.h.b16 %v3260
    %v5406 = vunpack.c.l.b16 %v3261
    %v5407 = vunpack.c.h.b16 %v3261
    %v5408 = vunpack.c.l.b16 %v3262
    %v5409 = vunpack.c.h.b16 %v3262
    %v5410 = vunpack.c.l.b16 %v3263
    %v5411 = vunpack.c.h.b16 %v3263
    %v5412 = vunpack.c.l.b16 %v3264
    %v5413 = vunpack.c.h.b16 %v3264
    %v5414 = vunpack.c.l.b16 %v3265
    %v5415 = vunpack.c.h.b16 %v3265
    %v5416 = vunpack.c.l.b16 %v3266
    %v5417 = vunpack.c.h.b16 %v3266
    %v5418 = vunpack.c.l.b16 %v3267
    %v5419 = vunpack.c.h.b16 %v3267
    %v5420 = vunpack.c.l.b16 %v3268
    %v5421 = vunpack.c.h.b16 %v3268
    %v5422 = vunpack.c.l.b16 %v3269
    %v5423 = vunpack.c.h.b16 %v3269
    %v5424 = vunpack.c.l.b16 %v3270
    %v5425 = vunpack.c.h.b16 %v3270
    %v5426 = vunpack.c.l.b16 %v3271
    %v5427 = vunpack.c.h.b16 %v3271
    %v5428 = vunpack.c.l.b16 %v3272
    %v5429 = vunpack.c.h.b16 %v3272
    %v5430 = vunpack.c.l.b16 %v3273
    %v5431 = vunpack.c.h.b16 %v3273
    %v5432 = vunpack.c.l.b16 %v3274
    %v5433 = vunpack.c.h.b16 %v3274
    %v5434 = vunpack.c.l.b16 %v3275
    %v5435 = vunpack.c.h.b16 %v3275
    %v5436 = vunpack.c.l.b16 %v3276
    %v5437 = vunpack.c.h.b16 %v3276
    %v5438 = vunpack.c.l.b16 %v3277
    %v5439 = vunpack.c.h.b16 %v3277
    %v5440 = vunpack.c.l.b16 %v3278
    %v5441 = vunpack.c.h.b16 %v3278
    %v5442 = vunpack.c.l.b16 %v3279
    %v5443 = vunpack.c.h.b16 %v3279
    %v5444 = vunpack.c.l.b16 %v3280
    %v5445 = vunpack.c.h.b16 %v3280
    %v5446 = vunpack.c.l.b16 %v3281
    %v5447 = vunpack.c.h.b16 %v3281
    %v5448 = vunpack.c.l.b16 %v3282
    %v5449 = vunpack.c.h.b16 %v3282
    %v5450 = vunpack.c.l.b16 %v3283
    %v5451 = vunpack.c.h.b16 %v3283
    %v5452 = vunpack.c.l.b16 %v3284
    %v5453 = vunpack.c.h.b16 %v3284
    %v5454 = vunpack.c.l.b16 %v3285
    %v5455 = vunpack.c.h.b16 %v3285
    %v5456 = vunpack.c.l.b16 %v3286
    %v5457 = vunpack.c.h.b16 %v3286
    %v5458 = vunpack.c.l.b16 %v3287
    %v5459 = vunpack.c.h.b16 %v3287
    %v5460 = vunpack.c.l.b16 %v3288
    %v5461 = vunpack.c.h.b16 %v3288
    %v5462 = vunpack.c.l.b16 %v3289
    %v5463 = vunpack.c.h.b16 %v3289
    %v5464 = vunpack.c.l.b16 %v3290
    %v5465 = vunpack.c.h.b16 %v3290
    %v5466 = vunpack.c.l.b16 %v3291
    %v5467 = vunpack.c.h.b16 %v3291
    %v5468 = vunpack.c.l.b16 %v3292
    %v5469 = vunpack.c.h.b16 %v3292
    %v5470 = vunpack.c.l.b16 %v3293
    %v5471 = vunpack.c.h.b16 %v3293
    %v5472 = vunpack.c.l.b16 %v3294
    %v5473 = vunpack.c.h.b16 %v3294
    %v5474 = vunpack.c.l.b16 %v3295
    %v5475 = vunpack.c.h.b16 %v3295
    %v5476 = vunpack.c.l.b16 %v3296
    %v5477 = vunpack.c.h.b16 %v3296
    %v5478 = vunpack.c.l.b16 %v3297
    %v5479 = vunpack.c.h.b16 %v3297
    %v5480 = vunpack.c.l.b16 %v3298
    %v5481 = vunpack.c.h.b16 %v3298
    %v5482 = vunpack.c.l.b16 %v3299
    %v5483 = vunpack.c.h.b16 %v3299
    %v5484 = vunpack.c.l.b16 %v3300
    %v5485 = vunpack.c.h.b16 %v3300
    %v5486 = vunpack.c.l.b16 %v3301
    %v5487 = vunpack.c.h.b16 %v3301
    %v5488 = vunpack.c.l.b16 %v3302
    %v5489 = vunpack.c.h.b16 %v3302
    %v5490 = vunpack.c.l.b16 %v3303
    %v5491 = vunpack.c.h.b16 %v3303
    %v5492 = vunpack.c.l.b16 %v3304
    %v5493 = vunpack.c.h.b16 %v3304
    %v5494 = vunpack.c.l.b16 %v3305
    %v5495 = vunpack.c.h.b16 %v3305
    %v5496 = vunpack.c.l.b16 %v3306
    %v5497 = vunpack.c.h.b16 %v3306
    %v5498 = vunpack.c.l.b16 %v3307
    %v5499 = vunpack.c.h.b16 %v3307
    %v5500 = vunpack.c.l.b16 %v3308
    %v5501 = vunpack.c.h.b16 %v3308
    %v5502 = vunpack.c.l.b16 %v3309
    %v5503 = vunpack.c.h.b16 %v3309
    %v5504 = vunpack.c.l.b16 %v3310
    %v5505 = vunpack.c.h.b16 %v3310
    %v5506 = vunpack.c.l.b16 %v3311
    %v5507 = vunpack.c.h.b16 %v3311
    %v5508 = vunpack.c.l.b16 %v3312
    %v5509 = vunpack.c.h.b16 %v3312
    %v5510 = vunpack.c.l.b16 %v3313
    %v5511 = vunpack.c.h.b16 %v3313
    %v5512 = vunpack.c.l.b16 %v3314
    %v5513 = vunpack.c.h.b16 %v3314
    %v5514 = vunpack.c.l.b16 %v3315
    %v5515 = vunpack.c.h.b16 %v3315
    %v5516 = vunpack.c.l.b16 %v3316
    %v5517 = vunpack.c.h.b16 %v3316
    %v5518 = vunpack.c.l.b16 %v3317
    %v5519 = vunpack.c.h.b16 %v3317
    %v5520 = vunpack.c.l.b16 %v3318
    %v5521 = vunpack.c.h.b16 %v3318
    %v5522 = vunpack.c.l.b16 %v3319
    %v5523 = vunpack.c.h.b16 %v3319
    %v5524 = vunpack.c.l.b16 %v3320
    %v5525 = vunpack.c.h.b16 %v3320
    %v5526 = vunpack.c.l.b16 %v3321
    %v5527 = vunpack.c.h.b16 %v3321
    %v5528 = vunpack.c.l.b16 %v3322
    %v5529 = vunpack.c.h.b16 %v3322
    %v5530 = vunpack.c.l.b16 %v3323
    %v5531 = vunpack.c.h.b16 %v3323
    %v5532 = vunpack.c.l.b16 %v3324
    %v5533 = vunpack.c.h.b16 %v3324
    %v5534 = vunpack.c.l.b16 %v3325
    %v5535 = vunpack.c.h.b16 %v3325
    %v5536 = vunpack.c.l.b16 %v3326
    %v5537 = vunpack.c.h.b16 %v3326
    %v5538 = vunpack.c.l.b16 %v3327
    %v5539 = vunpack.c.h.b16 %v3327
    %v5540 = vunpack.c.l.b16 %v3328
    %v5541 = vunpack.c.h.b16 %v3328
    %v5542 = vunpack.c.l.b16 %v3329
    %v5543 = vunpack.c.h.b16 %v3329
    %v5544 = vunpack.c.l.b16 %v3330
    %v5545 = vunpack.c.h.b16 %v3330
    %v5546 = vunpack.c.l.b16 %v3331
    %v5547 = vunpack.c.h.b16 %v3331
    %v5548 = vunpack.c.l.b16 %v3332
    %v5549 = vunpack.c.h.b16 %v3332
    %v5550 = vunpack.c.l.b16 %v3333
    %v5551 = vunpack.c.h.b16 %v3333
    %v5552 = vunpack.c.l.b16 %v3334
    %v5553 = vunpack.c.h.b16 %v3334
    %v5554 = vunpack.c.l.b16 %v3335
    %v5555 = vunpack.c.h.b16 %v3335
    %v5556 = vunpack.c.l.b16 %v3336
    %v5557 = vunpack.c.h.b16 %v3336
    %v5558 = vunpack.c.l.b16 %v3337
    %v5559 = vunpack.c.h.b16 %v3337
    %v5560 = vunpack.c.l.b16 %v3338
    %v5561 = vunpack.c.h.b16 %v3338
    %v5562 = vunpack.c.l.b16 %v3339
    %v5563 = vunpack.c.h.b16 %v3339
    %v5564 = vunpack.c.l.b16 %v3340
    %v5565 = vunpack.c.h.b16 %v3340
    %v5566 = vunpack.c.l.b16 %v3341
    %v5567 = vunpack.c.h.b16 %v3341
    %v5568 = vunpack.c.l.b16 %v3342
    %v5569 = vunpack.c.h.b16 %v3342
    %v5570 = vunpack.c.l.b16 %v3343
    %v5571 = vunpack.c.h.b16 %v3343
    %v5572 = vunpack.c.l.b16 %v3344
    %v5573 = vunpack.c.h.b16 %v3344
    %v5574 = vunpack.c.l.b16 %v3345
    %v5575 = vunpack.c.h.b16 %v3345
    %v5576 = vunpack.c.l.b16 %v3346
    %v5577 = vunpack.c.h.b16 %v3346
    %v5578 = vunpack.c.l.b16 %v3347
    %v5579 = vunpack.c.h.b16 %v3347
    %v5580 = vunpack.c.l.b16 %v3348
    %v5581 = vunpack.c.h.b16 %v3348
    %v5582 = vunpack.c.l.b16 %v3349
    %v5583 = vunpack.c.h.b16 %v3349
    %v5584 = vunpack.c.l.b16 %v3350
    %v5585 = vunpack.c.h.b16 %v3350
    %v5586 = vunpack.c.l.b16 %v3351
    %v5587 = vunpack.c.h.b16 %v3351
    %v5588 = vunpack.c.l.b16 %v3352
    %v5589 = vunpack.c.h.b16 %v3352
    %v5590 = vunpack.c.l.b16 %v3353
    %v5591 = vunpack.c.h.b16 %v3353
    %v5592 = vunpack.c.l.b16 %v3354
    %v5593 = vunpack.c.h.b16 %v3354
    %v5594 = vunpack.c.l.b16 %v3355
    %v5595 = vunpack.c.h.b16 %v3355
    %v5596 = vunpack.c.l.b16 %v3356
    %v5597 = vunpack.c.h.b16 %v3356
    %v5598 = vunpack.c.l.b16 %v3357
    %v5599 = vunpack.c.h.b16 %v3357
    %v5600 = vunpack.c.l.b16 %v3358
    %v5601 = vunpack.c.h.b16 %v3358
    %v5602 = vunpack.c.l.b16 %v3359
    %v5603 = vunpack.c.h.b16 %v3359
    %v5604 = vunpack.c.l.b16 %v3360
    %v5605 = vunpack.c.h.b16 %v3360
    %v5606 = vunpack.c.l.b16 %v3361
    %v5607 = vunpack.c.h.b16 %v3361
    %v5608 = vunpack.c.l.b16 %v3362
    %v5609 = vunpack.c.h.b16 %v3362
    %v5610 = vunpack.c.l.b16 %v3363
    %v5611 = vunpack.c.h.b16 %v3363
    %v5612 = vunpack.c.l.b16 %v3364
    %v5613 = vunpack.c.h.b16 %v3364
    %v5614 = vunpack.c.l.b16 %v3365
    %v5615 = vunpack.c.h.b16 %v3365
    %v5616 = vunpack.c.l.b16 %v3366
    %v5617 = vunpack.c.h.b16 %v3366
    %v5618 = vunpack.c.l.b16 %v3367
    %v5619 = vunpack.c.h.b16 %v3367
    %v5620 = vunpack.c.l.b16 %v3368
    %v5621 = vunpack.c.h.b16 %v3368
    %v5622 = vunpack.c.l.b16 %v3369
    %v5623 = vunpack.c.h.b16 %v3369
    %v5624 = vunpack.c.l.b16 %v3370
    %v5625 = vunpack.c.h.b16 %v3370
    %v5626 = vunpack.c.l.b16 %v3371
    %v5627 = vunpack.c.h.b16 %v3371
    %v5628 = vunpack.c.l.b16 %v3372
    %v5629 = vunpack.c.h.b16 %v3372
    %v5630 = vunpack.c.l.b16 %v3373
    %v5631 = vunpack.c.h.b16 %v3373
    %v5632 = vunpack.c.l.b16 %v3374
    %v5633 = vunpack.c.h.b16 %v3374
    %v5634 = vunpack.c.l.b16 %v3375
    %v5635 = vunpack.c.h.b16 %v3375
    %v5636 = vunpack.c.l.b16 %v3376
    %v5637 = vunpack.c.h.b16 %v3376
    %v5638 = vunpack.c.l.b16 %v3377
    %v5639 = vunpack.c.h.b16 %v3377
    %v5640 = vunpack.c.l.b16 %v3378
    %v5641 = vunpack.c.h.b16 %v3378
    %v5642 = vunpack.c.l.b16 %v3379
    %v5643 = vunpack.c.h.b16 %v3379
    %v5644 = vunpack.c.l.b16 %v3380
    %v5645 = vunpack.c.h.b16 %v3380
    %v5646 = vunpack.c.l.b16 %v3381
    %v5647 = vunpack.c.h.b16 %v3381
    %v5648 = vunpack.c.l.b16 %v3382
    %v5649 = vunpack.c.h.b16 %v3382
    %v5650 = vunpack.c.l.b16 %v3383
    %v5651 = vunpack.c.h.b16 %v3383
    %v5652 = vunpack.c.l.b16 %v3384
    %v5653 = vunpack.c.h.b16 %v3384
    %v5654 = vunpack.c.l.b16 %v3385
    %v5655 = vunpack.c.h.b16 %v3385
    %v5656 = vunpack.c.l.b16 %v3386
    %v5657 = vunpack.c.h.b16 %v3386
    %v5658 = vunpack.c.l.b16 %v3387
    %v5659 = vunpack.c.h.b16 %v3387
    %v5660 = vunpack.c.l.b16 %v3388
    %v5661 = vunpack.c.h.b16 %v3388
    %v5662 = vunpack.c.l.b16 %v3389
    %v5663 = vunpack.c.h.b16 %v3389
    %v5664 = vunpack.c.l.b16 %v3390
    %v5665 = vunpack.c.h.b16 %v3390
    %v5666 = vunpack.c.l.b16 %v3391
    %v5667 = vunpack.c.h.b16 %v3391
    %v5668 = vunpack.c.l.b16 %v3392
    %v5669 = vunpack.c.h.b16 %v3392
    %v5670 = vunpack.c.l.b16 %v3393
    %v5671 = vunpack.c.h.b16 %v3393
    %v5672 = vunpack.c.l.b16 %v3394
    %v5673 = vunpack.c.h.b16 %v3394
    %v5674 = vunpack.c.l.b16 %v3395
    %v5675 = vunpack.c.h.b16 %v3395
    %v5676 = vunpack.c.l.b16 %v3396
    %v5677 = vunpack.c.h.b16 %v3396
    %v5678 = vunpack.c.l.b16 %v3397
    %v5679 = vunpack.c.h.b16 %v3397
    %v5680 = vunpack.c.l.b16 %v3398
    %v5681 = vunpack.c.h.b16 %v3398
    %v5682 = vunpack.c.l.b16 %v3399
    %v5683 = vunpack.c.h.b16 %v3399
    %v5684 = vunpack.c.l.b16 %v3400
    %v5685 = vunpack.c.h.b16 %v3400
    %v5686 = vunpack.c.l.b16 %v3401
    %v5687 = vunpack.c.h.b16 %v3401
    %v5688 = vunpack.c.l.b16 %v3402
    %v5689 = vunpack.c.h.b16 %v3402
    %v5690 = vunpack.c.l.b16 %v3403
    %v5691 = vunpack.c.h.b16 %v3403
    %v5692 = vunpack.c.l.b16 %v3404
    %v5693 = vunpack.c.h.b16 %v3404
    %v5694 = vunpack.c.l.b16 %v3405
    %v5695 = vunpack.c.h.b16 %v3405
    %v5696 = vunpack.c.l.b16 %v3406
    %v5697 = vunpack.c.h.b16 %v3406
    %v5698 = vunpack.c.l.b16 %v3407
    %v5699 = vunpack.c.h.b16 %v3407
    %v5700 = vunpack.c.l.b16 %v3408
    %v5701 = vunpack.c.h.b16 %v3408
    %v5702 = vunpack.c.l.b16 %v3409
    %v5703 = vunpack.c.h.b16 %v3409
    %v5704 = vunpack.c.l.b16 %v3410
    %v5705 = vunpack.c.h.b16 %v3410
    %v5706 = vunpack.c.l.b16 %v3411
    %v5707 = vunpack.c.h.b16 %v3411
    %v5708 = vunpack.c.l.b16 %v3412
    %v5709 = vunpack.c.h.b16 %v3412
    %v5710 = vunpack.c.l.b16 %v3413
    %v5711 = vunpack.c.h.b16 %v3413
    %v5712 = vunpack.c.l.b16 %v3414
    %v5713 = vunpack.c.h.b16 %v3414
    %v5714 = vunpack.c.l.b16 %v3415
    %v5715 = vunpack.c.h.b16 %v3415
    %v5716 = vunpack.c.l.b16 %v3416
    %v5717 = vunpack.c.h.b16 %v3416
    %v5718 = vunpack.c.l.b16 %v3417
    %v5719 = vunpack.c.h.b16 %v3417
    %v5720 = vunpack.c.l.b16 %v3418
    %v5721 = vunpack.c.h.b16 %v3418
    %v5722 = vunpack.c.l.b16 %v3419
    %v5723 = vunpack.c.h.b16 %v3419
    %v5724 = vunpack.c.l.b16 %v3420
    %v5725 = vunpack.c.h.b16 %v3420
    %v5726 = vunpack.c.l.b16 %v3421
    %v5727 = vunpack.c.h.b16 %v3421
    %v5728 = vunpack.c.l.b16 %v3422
    %v5729 = vunpack.c.h.b16 %v3422
    %v5730 = vunpack.c.l.b16 %v3423
    %v5731 = vunpack.c.h.b16 %v3423
    %v5732 = vunpack.c.l.b16 %v3424
    %v5733 = vunpack.c.h.b16 %v3424
    %v5734 = vunpack.c.l.b16 %v3425
    %v5735 = vunpack.c.h.b16 %v3425
    %v5736 = vunpack.c.l.b16 %v3426
    %v5737 = vunpack.c.h.b16 %v3426
    %v5738 = vunpack.c.l.b16 %v3427
    %v5739 = vunpack.c.h.b16 %v3427
    %v5740 = vunpack.c.l.b16 %v3428
    %v5741 = vunpack.c.h.b16 %v3428
    %v5742 = vunpack.c.l.b16 %v3429
    %v5743 = vunpack.c.h.b16 %v3429
    %v5744 = vunpack.c.l.b16 %v3430
    %v5745 = vunpack.c.h.b16 %v3430
    %v5746 = vunpack.c.l.b16 %v3431
    %v5747 = vunpack.c.h.b16 %v3431
    %v5748 = vunpack.c.l.b16 %v3432
    %v5749 = vunpack.c.h.b16 %v3432
    %v5750 = vunpack.c.l.b16 %v3433
    %v5751 = vunpack.c.h.b16 %v3433
    %v5752 = vunpack.c.l.b16 %v3434
    %v5753 = vunpack.c.h.b16 %v3434
    %v5754 = vunpack.c.l.b16 %v3435
    %v5755 = vunpack.c.h.b16 %v3435
    %v5756 = vunpack.c.l.b16 %v3436
    %v5757 = vunpack.c.h.b16 %v3436
    %v5758 = vunpack.c.l.b16 %v3437
    %v5759 = vunpack.c.h.b16 %v3437
    %v5760 = vunpack.c.l.b16 %v3438
    %v5761 = vunpack.c.h.b16 %v3438
    %v5762 = vunpack.c.l.b16 %v3439
    %v5763 = vunpack.c.h.b16 %v3439
    %v5764 = vunpack.c.l.b16 %v3440
    %v5765 = vunpack.c.h.b16 %v3440
    %v5766 = vunpack.c.l.b16 %v3441
    %v5767 = vunpack.c.h.b16 %v3441
    %v5768 = vunpack.c.l.b16 %v3442
    %v5769 = vunpack.c.h.b16 %v3442
    %v5770 = vunpack.c.l.b16 %v3443
    %v5771 = vunpack.c.h.b16 %v3443
    %v5772 = vunpack.c.l.b16 %v3444
    %v5773 = vunpack.c.h.b16 %v3444
    %v5774 = vunpack.c.l.b16 %v3445
    %v5775 = vunpack.c.h.b16 %v3445
    %v5776 = vunpack.c.l.b16 %v3446
    %v5777 = vunpack.c.h.b16 %v3446
    %v5778 = vunpack.c.l.b16 %v3447
    %v5779 = vunpack.c.h.b16 %v3447
    %v5780 = vunpack.c.l.b16 %v3448
    %v5781 = vunpack.c.h.b16 %v3448
    %v5782 = vunpack.c.l.b16 %v3449
    %v5783 = vunpack.c.h.b16 %v3449
    %v5784 = vunpack.c.l.b16 %v3450
    %v5785 = vunpack.c.h.b16 %v3450
    %v5786 = vunpack.c.l.b16 %v3451
    %v5787 = vunpack.c.h.b16 %v3451
    %v5788 = vunpack.c.l.b16 %v3452
    %v5789 = vunpack.c.h.b16 %v3452
    %v5790 = vunpack.c.l.b16 %v3453
    %v5791 = vunpack.c.h.b16 %v3453
    %v5792 = vunpack.c.l.b16 %v3454
    %v5793 = vunpack.c.h.b16 %v3454
    %v5794 = vunpack.c.l.b16 %v3455
    %v5795 = vunpack.c.h.b16 %v3455
    %v5796 = vunpack.c.l.b16 %v3456
    %v5797 = vunpack.c.h.b16 %v3456
    %v5798 = vunpack.c.l.b16 %v3457
    %v5799 = vunpack.c.h.b16 %v3457
    %v5800 = vunpack.c.l.b16 %v3458
    %v5801 = vunpack.c.h.b16 %v3458
    %v5802 = vunpack.c.l.b16 %v3459
    %v5803 = vunpack.c.h.b16 %v3459
    %v5804 = vunpack.c.l.b16 %v3460
    %v5805 = vunpack.c.h.b16 %v3460
    %v5806 = vunpack.c.l.b16 %v3461
    %v5807 = vunpack.c.h.b16 %v3461
    %v5808 = vunpack.c.l.b16 %v3462
    %v5809 = vunpack.c.h.b16 %v3462
    %v5810 = vunpack.c.l.b16 %v3463
    %v5811 = vunpack.c.h.b16 %v3463
    %v5812 = vunpack.c.l.b16 %v3464
    %v5813 = vunpack.c.h.b16 %v3464
    %v5814 = vunpack.c.l.b16 %v3465
    %v5815 = vunpack.c.h.b16 %v3465
    %v5816 = vunpack.c.l.b16 %v3466
    %v5817 = vunpack.c.h.b16 %v3466
    %v5818 = vunpack.c.l.b16 %v3467
    %v5819 = vunpack.c.h.b16 %v3467
    %v5820 = vunpack.c.l.b16 %v3468
    %v5821 = vunpack.c.h.b16 %v3468
    %v5822 = vunpack.c.l.b16 %v3469
    %v5823 = vunpack.c.h.b16 %v3469
    %v5824 = vunpack.c.l.b16 %v3470
    %v5825 = vunpack.c.h.b16 %v3470
    %v5826 = vunpack.c.l.b16 %v3471
    %v5827 = vunpack.c.h.b16 %v3471
    %v5828 = vunpack.c.l.b16 %v3472
    %v5829 = vunpack.c.h.b16 %v3472
    %v5830 = vunpack.c.l.b16 %v3473
    %v5831 = vunpack.c.h.b16 %v3473
    %v5832 = vunpack.c.l.b16 %v3474
    %v5833 = vunpack.c.h.b16 %v3474
    %v5834 = vunpack.c.l.b16 %v3475
    %v5835 = vunpack.c.h.b16 %v3475
    %v5836 = vunpack.c.l.b16 %v3476
    %v5837 = vunpack.c.h.b16 %v3476
    %v5838 = vunpack.c.l.b16 %v3477
    %v5839 = vunpack.c.h.b16 %v3477
    %v5840 = vunpack.c.l.b16 %v3478
    %v5841 = vunpack.c.h.b16 %v3478
    %v5842 = vunpack.c.l.b16 %v3479
    %v5843 = vunpack.c.h.b16 %v3479
    %v5844 = vunpack.c.l.b16 %v3480
    %v5845 = vunpack.c.h.b16 %v3480
    %v5846 = vunpack.c.l.b16 %v3481
    %v5847 = vunpack.c.h.b16 %v3481
    %v5848 = vunpack.c.l.b16 %v3482
    %v5849 = vunpack.c.h.b16 %v3482
    %v5850 = vunpack.c.l.b16 %v3483
    %v5851 = vunpack.c.h.b16 %v3483
    %v5852 = vunpack.c.l.b16 %v3484
    %v5853 = vunpack.c.h.b16 %v3484
    %v5854 = vunpack.c.l.b16 %v3485
    %v5855 = vunpack.c.h.b16 %v3485
    %v5856 = vunpack.c.l.b16 %v3486
    %v5857 = vunpack.c.h.b16 %v3486
    %v5858 = vunpack.c.l.b16 %v3487
    %v5859 = vunpack.c.h.b16 %v3487
    %v5860 = vunpack.c.l.b16 %v3488
    %v5861 = vunpack.c.h.b16 %v3488
    %v5862 = vunpack.c.l.b16 %v3489
    %v5863 = vunpack.c.h.b16 %v3489
    %v5864 = vunpack.c.l.b16 %v3490
    %v5865 = vunpack.c.h.b16 %v3490
    %v5866 = vunpack.c.l.b16 %v3491
    %v5867 = vunpack.c.h.b16 %v3491
    %v5868 = vunpack.c.l.b16 %v3492
    %v5869 = vunpack.c.h.b16 %v3492
    %v5870 = vunpack.c.l.b16 %v3493
    %v5871 = vunpack.c.h.b16 %v3493
    %v5872 = vunpack.c.l.b16 %v3494
    %v5873 = vunpack.c.h.b16 %v3494
    %v5874 = vunpack.c.l.b16 %v3495
    %v5875 = vunpack.c.h.b16 %v3495
    %v5876 = vunpack.c.l.b16 %v3496
    %v5877 = vunpack.c.h.b16 %v3496
    %v5878 = vunpack.c.l.b16 %v3497
    %v5879 = vunpack.c.h.b16 %v3497
    %v5880 = vunpack.c.l.b16 %v3498
    %v5881 = vunpack.c.h.b16 %v3498
    %v5882 = vunpack.c.l.b16 %v3499
    %v5883 = vunpack.c.h.b16 %v3499
    %v5884 = vunpack.c.l.b16 %v3500
    %v5885 = vunpack.c.h.b16 %v3500
    %v5886 = vunpack.c.l.b16 %v3501
    %v5887 = vunpack.c.h.b16 %v3501
    %v5888 = vunpack.c.l.b16 %v3502
    %v5889 = vunpack.c.h.b16 %v3502
    %v5890 = vunpack.c.l.b16 %v3503
    %v5891 = vunpack.c.h.b16 %v3503
    %v5892 = vunpack.c.l.b16 %v3504
    %v5893 = vunpack.c.h.b16 %v3504
    %v5894 = vunpack.c.l.b16 %v3505
    %v5895 = vunpack.c.h.b16 %v3505
    %v5896 = vunpack.c.l.b16 %v3506
    %v5897 = vunpack.c.h.b16 %v3506
    %v5898 = vunpack.c.l.b16 %v3507
    %v5899 = vunpack.c.h.b16 %v3507
    %v5900 = vunpack.c.l.b16 %v3508
    %v5901 = vunpack.c.h.b16 %v3508
    %v5902 = vunpack.c.l.b16 %v3509
    %v5903 = vunpack.c.h.b16 %v3509
    %v5904 = vunpack.c.l.b16 %v3510
    %v5905 = vunpack.c.h.b16 %v3510
    %v5906 = vunpack.c.l.b16 %v3511
    %v5907 = vunpack.c.h.b16 %v3511
    %v5908 = vunpack.c.l.b16 %v3512
    %v5909 = vunpack.c.h.b16 %v3512
    %v5910 = vunpack.c.l.b16 %v3513
    %v5911 = vunpack.c.h.b16 %v3513
    %v5912 = vunpack.c.l.b16 %v3514
    %v5913 = vunpack.c.h.b16 %v3514
    %v5914 = vunpack.c.l.b16 %v3515
    %v5915 = vunpack.c.h.b16 %v3515
    %v5916 = vunpack.c.l.b16 %v3516
    %v5917 = vunpack.c.h.b16 %v3516
    %v5918 = vunpack.c.l.b16 %v3517
    %v5919 = vunpack.c.h.b16 %v3517
    %v5920 = vunpack.c.l.b16 %v3518
    %v5921 = vunpack.c.h.b16 %v3518
    %v5922 = vunpack.c.l.b16 %v3519
    %v5923 = vunpack.c.h.b16 %v3519
    %v5924 = vunpack.c.l.b16 %v3520
    %v5925 = vunpack.c.h.b16 %v3520
    %v5926 = vunpack.c.l.b16 %v3521
    %v5927 = vunpack.c.h.b16 %v3521
    %v5928 = vunpack.c.l.b16 %v3522
    %v5929 = vunpack.c.h.b16 %v3522
    %v5930 = vunpack.c.l.b16 %v3523
    %v5931 = vunpack.c.h.b16 %v3523
    %v5932 = vunpack.c.l.b16 %v3524
    %v5933 = vunpack.c.h.b16 %v3524
    %v5934 = vunpack.c.l.b16 %v3525
    %v5935 = vunpack.c.h.b16 %v3525
    %v5936 = vunpack.c.l.b16 %v3526
    %v5937 = vunpack.c.h.b16 %v3526
    %v5938 = vunpack.c.l.b16 %v3527
    %v5939 = vunpack.c.h.b16 %v3527
    %v5940 = vunpack.c.l.b16 %v3528
    %v5941 = vunpack.c.h.b16 %v3528
    %v5942 = vunpack.c.l.b16 %v3529
    %v5943 = vunpack.c.h.b16 %v3529
    %v5944 = vunpack.c.l.b16 %v3530
    %v5945 = vunpack.c.h.b16 %v3530
    %v5946 = vunpack.c.l.b16 %v3531
    %v5947 = vunpack.c.h.b16 %v3531
    %v5948 = vunpack.c.l.b16 %v3532
    %v5949 = vunpack.c.h.b16 %v3532
    %v5950 = vunpack.c.l.b16 %v3533
    %v5951 = vunpack.c.h.b16 %v3533
    %v5952 = vunpack.c.l.b16 %v3534
    %v5953 = vunpack.c.h.b16 %v3534
    %v5954 = vunpack.c.l.b16 %v3535
    %v5955 = vunpack.c.h.b16 %v3535
    %v5956 = vunpack.c.l.b16 %v3536
    %v5957 = vunpack.c.h.b16 %v3536
    %v5958 = vunpack.c.l.b16 %v3537
    %v5959 = vunpack.c.h.b16 %v3537
    %v5960 = vunpack.c.l.b16 %v3538
    %v5961 = vunpack.c.h.b16 %v3538
    %v5962 = vunpack.c.l.b16 %v3539
    %v5963 = vunpack.c.h.b16 %v3539
    %v5964 = vunpack.c.l.b16 %v3540
    %v5965 = vunpack.c.h.b16 %v3540
    %v5966 = vunpack.c.l.b16 %v3541
    %v5967 = vunpack.c.h.b16 %v3541
    %v5968 = vunpack.c.l.b16 %v3542
    %v5969 = vunpack.c.h.b16 %v3542
    %v5970 = vunpack.c.l.b16 %v3543
    %v5971 = vunpack.c.h.b16 %v3543
    %v5972 = vunpack.c.l.b16 %v3544
    %v5973 = vunpack.c.h.b16 %v3544
    %v5974 = vunpack.c.l.b16 %v3545
    %v5975 = vunpack.c.h.b16 %v3545
    %v5976 = vunpack.c.l.b16 %v3546
    %v5977 = vunpack.c.h.b16 %v3546
    %v5978 = vunpack.c.l.b16 %v3547
    %v5979 = vunpack.c.h.b16 %v3547
    %v5980 = vunpack.c.l.b16 %v3548
    %v5981 = vunpack.c.h.b16 %v3548
    %v5982 = vunpack.c.l.b16 %v3549
    %v5983 = vunpack.c.h.b16 %v3549
    %v5984 = vunpack.c.l.b16 %v3550
    %v5985 = vunpack.c.h.b16 %v3550
    %v5986 = vunpack.c.l.b16 %v3551
    %v5987 = vunpack.c.h.b16 %v3551
    %v5988 = vunpack.c.l.b16 %v3552
    %v5989 = vunpack.c.h.b16 %v3552
    %v5990 = vunpack.c.l.b16 %v3553
    %v5991 = vunpack.c.h.b16 %v3553
    %v5992 = vunpack.c.l.b16 %v3554
    %v5993 = vunpack.c.h.b16 %v3554
    %v5994 = vunpack.c.l.b16 %v3555
    %v5995 = vunpack.c.h.b16 %v3555
    %v5996 = vunpack.c.l.b16 %v3556
    %v5997 = vunpack.c.h.b16 %v3556
    %v5998 = vunpack.c.l.b16 %v3557
    %v5999 = vunpack.c.h.b16 %v3557
    %v6000 = vunpack.c.l.b16 %v3558
    %v6001 = vunpack.c.h.b16 %v3558
    %v6002 = vunpack.c.l.b16 %v3559
    %v6003 = vunpack.c.h.b16 %v3559
    %v6004 = vunpack.c.l.b16 %v3560
    %v6005 = vunpack.c.h.b16 %v3560
    %v6006 = vunpack.c.l.b16 %v3561
    %v6007 = vunpack.c.h.b16 %v3561
    %v6008 = vunpack.c.l.b16 %v3562
    %v6009 = vunpack.c.h.b16 %v3562
    %v6010 = vunpack.c.l.b16 %v3563
    %v6011 = vunpack.c.h.b16 %v3563
    %v6012 = vunpack.c.l.b16 %v3564
    %v6013 = vunpack.c.h.b16 %v3564
    %v6014 = vunpack.c.l.b16 %v3565
    %v6015 = vunpack.c.h.b16 %v3565
    %v6016 = vunpack.c.l.b16 %v3566
    %v6017 = vunpack.c.h.b16 %v3566
    %v6018 = vunpack.c.l.b16 %v3567
    %v6019 = vunpack.c.h.b16 %v3567
    %v6020 = vunpack.c.l.b16 %v3568
    %v6021 = vunpack.c.h.b16 %v3568
    %v6022 = vunpack.c.l.b16 %v3569
    %v6023 = vunpack.c.h.b16 %v3569
    %v6024 = vunpack.c.l.b16 %v3570
    %v6025 = vunpack.c.h.b16 %v3570
    %v6026 = vunpack.c.l.b16 %v3571
    %v6027 = vunpack.c.h.b16 %v3571
    %v6028 = vunpack.c.l.b16 %v3572
    %v6029 = vunpack.c.h.b16 %v3572
    %v6030 = vunpack.c.l.b16 %v3573
    %v6031 = vunpack.c.h.b16 %v3573
    %v6032 = vunpack.c.l.b16 %v3574
    %v6033 = vunpack.c.h.b16 %v3574
    %v6034 = vunpack.c.l.b16 %v3575
    %v6035 = vunpack.c.h.b16 %v3575
    %v6036 = vunpack.c.l.b16 %v3576
    %v6037 = vunpack.c.h.b16 %v3576
    %v6038 = vunpack.c.l.b16 %v3577
    %v6039 = vunpack.c.h.b16 %v3577
    %v6040 = vunpack.c.l.b16 %v3578
    %v6041 = vunpack.c.h.b16 %v3578
    %v6042 = vunpack.c.l.b16 %v3579
    %v6043 = vunpack.c.h.b16 %v3579
    %v6044 = vunpack.c.l.b16 %v3580
    %v6045 = vunpack.c.h.b16 %v3580
    %v6046 = vunpack.c.l.b16 %v3581
    %v6047 = vunpack.c.h.b16 %v3581
    %v6048 = vunpack.c.l.b16 %v3582
    %v6049 = vunpack.c.h.b16 %v3582
    %v6050 = vunpack.c.l.b16 %v3583
    %v6051 = vunpack.c.h.b16 %v3583
    %v6052 = vunpack.c.l.b16 %v3584
    %v6053 = vunpack.c.h.b16 %v3584
    %v6054 = vunpack.c.l.b16 %v3585
    %v6055 = vunpack.c.h.b16 %v3585
    %v6056 = vunpack.c.l.b16 %v3586
    %v6057 = vunpack.c.h.b16 %v3586
    %v6058 = vunpack.c.l.b16 %v3587
    %v6059 = vunpack.c.h.b16 %v3587
    %v6060 = vunpack.c.l.b16 %v3588
    %v6061 = vunpack.c.h.b16 %v3588
    %v6062 = vunpack.c.l.b16 %v3589
    %v6063 = vunpack.c.h.b16 %v3589
    %v6064 = vunpack.c.l.b16 %v3590
    %v6065 = vunpack.c.h.b16 %v3590
    %v6066 = vunpack.c.l.b16 %v3591
    %v6067 = vunpack.c.h.b16 %v3591
    %v6068 = vunpack.c.l.b16 %v3592
    %v6069 = vunpack.c.h.b16 %v3592
    %v6070 = vunpack.c.l.b16 %v3593
    %v6071 = vunpack.c.h.b16 %v3593
    %v6072 = vunpack.c.l.b16 %v3594
    %v6073 = vunpack.c.h.b16 %v3594
    %v6074 = vunpack.c.l.b16 %v3595
    %v6075 = vunpack.c.h.b16 %v3595
    %v6076 = vunpack.c.l.b16 %v3596
    %v6077 = vunpack.c.h.b16 %v3596
    %v6078 = vunpack.c.l.b16 %v3597
    %v6079 = vunpack.c.h.b16 %v3597
    %v6080 = vunpack.c.l.b16 %v3598
    %v6081 = vunpack.c.h.b16 %v3598
    %v6082 = vunpack.c.l.b16 %v3599
    %v6083 = vunpack.c.h.b16 %v3599
    %v6084 = vunpack.c.l.b16 %v3600
    %v6085 = vunpack.c.h.b16 %v3600
    %v6086 = vunpack.c.l.b16 %v3601
    %v6087 = vunpack.c.h.b16 %v3601
    %v6088 = vunpack.c.l.b16 %v3602
    %v6089 = vunpack.c.h.b16 %v3602
    %v6090 = vunpack.c.l.b16 %v3603
    %v6091 = vunpack.c.h.b16 %v3603
    %v6092 = vunpack.c.l.b16 %v3604
    %v6093 = vunpack.c.h.b16 %v3604
    %v6094 = vunpack.c.l.b16 %v3605
    %v6095 = vunpack.c.h.b16 %v3605
    %v6096 = vunpack.c.l.b16 %v3606
    %v6097 = vunpack.c.h.b16 %v3606
    %v6098 = vunpack.c.l.b16 %v3607
    %v6099 = vunpack.c.h.b16 %v3607
    %v6100 = vunpack.c.l.b16 %v3608
    %v6101 = vunpack.c.h.b16 %v3608
    %v6102 = vunpack.c.l.b16 %v3609
    %v6103 = vunpack.c.h.b16 %v3609
    %v6104 = vunpack.c.l.b16 %v3610
    %v6105 = vunpack.c.h.b16 %v3610
    %v6106 = vunpack.c.l.b16 %v3611
    %v6107 = vunpack.c.h.b16 %v3611
    %v6108 = vunpack.c.l.b16 %v3612
    %v6109 = vunpack.c.h.b16 %v3612
    %v6110 = vunpack.c.l.b16 %v3613
    %v6111 = vunpack.c.h.b16 %v3613
    %v6112 = vunpack.c.l.b16 %v3614
    %v6113 = vunpack.c.h.b16 %v3614
    %v6114 = vunpack.c.l.b16 %v3615
    %v6115 = vunpack.c.h.b16 %v3615
    %v6116 = vunpack.c.l.b16 %v3616
    %v6117 = vunpack.c.h.b16 %v3616
    %v6118 = vunpack.c.l.b16 %v3617
    %v6119 = vunpack.c.h.b16 %v3617
    %v6120 = vunpack.c.l.b16 %v3618
    %v6121 = vunpack.c.h.b16 %v3618
    %v6122 = vunpack.c.l.b16 %v3619
    %v6123 = vunpack.c.h.b16 %v3619
    %v6124 = vunpack.c.l.b16 %v3620
    %v6125 = vunpack.c.h.b16 %v3620
    %v6126 = vunpack.c.l.b16 %v3621
    %v6127 = vunpack.c.h.b16 %v3621
    %v6128 = vunpack.c.l.b16 %v3622
    %v6129 = vunpack.c.h.b16 %v3622
    %v6130 = vunpack.c.l.b16 %v3623
    %v6131 = vunpack.c.h.b16 %v3623
    %v6132 = vunpack.c.l.b16 %v3624
    %v6133 = vunpack.c.h.b16 %v3624
    %v6134 = vunpack.c.l.b16 %v3625
    %v6135 = vunpack.c.h.b16 %v3625
    %v6136 = vunpack.c.l.b16 %v3626
    %v6137 = vunpack.c.h.b16 %v3626
    %v6138 = vunpack.c.l.b16 %v3627
    %v6139 = vunpack.c.h.b16 %v3627
    %v6140 = vunpack.c.l.b16 %v3628
    %v6141 = vunpack.c.h.b16 %v3628
    %v6142 = vunpack.c.l.b16 %v3629
    %v6143 = vunpack.c.h.b16 %v3629
    %v6144 = vunpack.c.l.b16 %v3630
    %v6145 = vunpack.c.h.b16 %v3630
    %v6146 = vunpack.c.l.b16 %v3631
    %v6147 = vunpack.c.h.b16 %v3631
    %v6148 = vunpack.c.l.b16 %v3632
    %v6149 = vunpack.c.h.b16 %v3632
    %v6150 = vunpack.c.l.b16 %v3633
    %v6151 = vunpack.c.h.b16 %v3633
    %v6152 = vunpack.c.l.b16 %v3634
    %v6153 = vunpack.c.h.b16 %v3634
    %v6154 = vunpack.c.l.b16 %v3635
    %v6155 = vunpack.c.h.b16 %v3635
    %v6156 = vunpack.c.l.b16 %v3636
    %v6157 = vunpack.c.h.b16 %v3636
    %v6158 = vunpack.c.l.b16 %v3637
    %v6159 = vunpack.c.h.b16 %v3637
    %v6160 = vunpack.c.l.b16 %v3638
    %v6161 = vunpack.c.h.b16 %v3638
    %v6162 = vunpack.c.l.b16 %v3639
    %v6163 = vunpack.c.h.b16 %v3639
    %v6164 = vunpack.c.l.b16 %v3640
    %v6165 = vunpack.c.h.b16 %v3640
    %v6166 = vunpack.c.l.b16 %v3641
    %v6167 = vunpack.c.h.b16 %v3641
    %v6168 = vunpack.c.l.b16 %v3642
    %v6169 = vunpack.c.h.b16 %v3642
    %v6170 = vunpack.c.l.b16 %v3643
    %v6171 = vunpack.c.h.b16 %v3643
    %v6172 = vunpack.c.l.b16 %v3644
    %v6173 = vunpack.c.h.b16 %v3644
    %v6174 = vunpack.c.l.b16 %v3645
    %v6175 = vunpack.c.h.b16 %v3645
    %v6176 = vunpack.c.l.b16 %v3646
    %v6177 = vunpack.c.h.b16 %v3646
    %v6178 = vunpack.c.l.b16 %v3647
    %v6179 = vunpack.c.h.b16 %v3647
    %v6180 = vunpack.c.l.b16 %v3648
    %v6181 = vunpack.c.h.b16 %v3648
    %v6182 = vunpack.c.l.b16 %v3649
    %v6183 = vunpack.c.h.b16 %v3649
    %v6184 = vunpack.c.l.b16 %v3650
    %v6185 = vunpack.c.h.b16 %v3650
    %v6186 = vunpack.c.l.b16 %v3651
    %v6187 = vunpack.c.h.b16 %v3651
    %v6188 = vunpack.c.l.b16 %v3652
    %v6189 = vunpack.c.h.b16 %v3652
    %v6190 = vunpack.c.l.b16 %v3653
    %v6191 = vunpack.c.h.b16 %v3653
    %v6192 = vunpack.c.l.b16 %v3654
    %v6193 = vunpack.c.h.b16 %v3654
    %v6194 = vunpack.c.l.b16 %v3655
    %v6195 = vunpack.c.h.b16 %v3655
    %v6196 = vunpack.c.l.b16 %v3656
    %v6197 = vunpack.c.h.b16 %v3656
    %v6198 = vunpack.c.l.b16 %v3657
    %v6199 = vunpack.c.h.b16 %v3657
    %v6200 = vunpack.c.l.b16 %v3658
    %v6201 = vunpack.c.h.b16 %v3658
    %v6202 = vunpack.c.l.b16 %v3659
    %v6203 = vunpack.c.h.b16 %v3659
    %v6204 = vunpack.c.l.b16 %v3660
    %v6205 = vunpack.c.h.b16 %v3660
    %v6206 = vunpack.c.l.b16 %v3661
    %v6207 = vunpack.c.h.b16 %v3661
    %v6208 = vunpack.c.l.b16 %v3662
    %v6209 = vunpack.c.h.b16 %v3662
    %v6210 = vunpack.c.l.b16 %v3663
    %v6211 = vunpack.c.h.b16 %v3663
    %v6212 = vunpack.c.l.b16 %v3664
    %v6213 = vunpack.c.h.b16 %v3664
    %v6214 = vunpack.c.l.b16 %v3665
    %v6215 = vunpack.c.h.b16 %v3665
    %v6216 = vunpack.c.l.b16 %v3666
    %v6217 = vunpack.c.h.b16 %v3666
    %v6218 = vunpack.c.l.b16 %v3667
    %v6219 = vunpack.c.h.b16 %v3667
    %v6220 = vunpack.c.l.b16 %v3668
    %v6221 = vunpack.c.h.b16 %v3668
    %v6222 = vunpack.c.l.b16 %v3669
    %v6223 = vunpack.c.h.b16 %v3669
    %v6224 = vunpack.c.l.b16 %v3670
    %v6225 = vunpack.c.h.b16 %v3670
    %v6226 = vunpack.c.l.b16 %v3671
    %v6227 = vunpack.c.h.b16 %v3671
    %v6228 = vunpack.c.l.b16 %v3672
    %v6229 = vunpack.c.h.b16 %v3672
    %v6230 = vunpack.c.l.b16 %v3673
    %v6231 = vunpack.c.h.b16 %v3673
    %v6232 = vunpack.c.l.b16 %v3674
    %v6233 = vunpack.c.h.b16 %v3674
    %v6234 = vunpack.c.l.b16 %v3675
    %v6235 = vunpack.c.h.b16 %v3675
    %v6236 = vunpack.c.l.b16 %v3676
    %v6237 = vunpack.c.h.b16 %v3676
    %v6238 = vunpack.c.l.b16 %v3677
    %v6239 = vunpack.c.h.b16 %v3677
    %v6240 = vunpack.c.l.b16 %v3678
    %v6241 = vunpack.c.h.b16 %v3678
    %v6242 = vunpack.c.l.b16 %v3679
    %v6243 = vunpack.c.h.b16 %v3679
    %v6244 = vunpack.c.l.b16 %v3680
    %v6245 = vunpack.c.h.b16 %v3680
    %v6246 = vunpack.c.l.b16 %v3681
    %v6247 = vunpack.c.h.b16 %v3681
    %v6248 = vunpack.c.l.b16 %v3682
    %v6249 = vunpack.c.h.b16 %v3682
    %v6250 = vunpack.c.l.b16 %v3683
    %v6251 = vunpack.c.h.b16 %v3683
    %v6252 = vunpack.c.l.b16 %v3684
    %v6253 = vunpack.c.h.b16 %v3684
    %v6254 = vunpack.c.l.b16 %v3685
    %v6255 = vunpack.c.h.b16 %v3685
    %v6256 = vunpack.c.l.b16 %v3686
    %v6257 = vunpack.c.h.b16 %v3686
    %v6258 = vunpack.c.l.b16 %v3687
    %v6259 = vunpack.c.h.b16 %v3687
    %v6260 = vunpack.c.l.b16 %v3688
    %v6261 = vunpack.c.h.b16 %v3688
    %v6262 = vunpack.c.l.b16 %v3689
    %v6263 = vunpack.c.h.b16 %v3689
    %v6264 = vunpack.c.l.b16 %v3690
    %v6265 = vunpack.c.h.b16 %v3690
    %v6266 = vunpack.c.l.b16 %v3691
    %v6267 = vunpack.c.h.b16 %v3691
    %v6268 = vunpack.c.l.b16 %v3692
    %v6269 = vunpack.c.h.b16 %v3692
    %v6270 = vunpack.c.l.b16 %v3693
    %v6271 = vunpack.c.h.b16 %v3693
    %v6272 = vunpack.c.l.b16 %v3694
    %v6273 = vunpack.c.h.b16 %v3694
    %v6274 = vunpack.c.l.b16 %v3695
    %v6275 = vunpack.c.h.b16 %v3695
    %v6276 = vunpack.c.l.b16 %v3696
    %v6277 = vunpack.c.h.b16 %v3696
    %v6278 = vunpack.c.l.b16 %v3697
    %v6279 = vunpack.c.h.b16 %v3697
    %v6280 = vunpack.c.l.b16 %v3698
    %v6281 = vunpack.c.h.b16 %v3698
    %v6282 = vunpack.c.l.b16 %v3699
    %v6283 = vunpack.c.h.b16 %v3699
    %v6284 = vunpack.c.l.b16 %v3700
    %v6285 = vunpack.c.h.b16 %v3700
    %v6286 = vunpack.c.l.b16 %v3701
    %v6287 = vunpack.c.h.b16 %v3701
    %v6288 = vunpack.c.l.b16 %v3702
    %v6289 = vunpack.c.h.b16 %v3702
    %v6290 = vunpack.c.l.b16 %v3703
    %v6291 = vunpack.c.h.b16 %v3703
    %v6292 = vunpack.c.l.b16 %v3704
    %v6293 = vunpack.c.h.b16 %v3704
    %v6294 = vunpack.c.l.b16 %v3705
    %v6295 = vunpack.c.h.b16 %v3705
    %v6296 = vunpack.c.l.b16 %v3706
    %v6297 = vunpack.c.h.b16 %v3706
    %v6298 = vunpack.c.l.b16 %v3707
    %v6299 = vunpack.c.h.b16 %v3707
    %v6300 = vunpack.c.l.b16 %v3708
    %v6301 = vunpack.c.h.b16 %v3708
    %v6302 = vunpack.c.l.b16 %v3709
    %v6303 = vunpack.c.h.b16 %v3709
    %v6304 = vunpack.c.l.b16 %v3710
    %v6305 = vunpack.c.h.b16 %v3710
    %v6306 = vunpack.c.l.b16 %v3711
    %v6307 = vunpack.c.h.b16 %v3711
    %v6308 = vunpack.c.l.b16 %v3712
    %v6309 = vunpack.c.h.b16 %v3712
    %v6310 = vunpack.c.l.b16 %v3713
    %v6311 = vunpack.c.h.b16 %v3713
    %v6312 = vunpack.c.l.b16 %v3714
    %v6313 = vunpack.c.h.b16 %v3714
    %v6314 = vunpack.c.l.b16 %v3715
    %v6315 = vunpack.c.h.b16 %v3715
    %v6316 = vunpack.c.l.b16 %v3716
    %v6317 = vunpack.c.h.b16 %v3716
    %v6318 = vunpack.c.l.b16 %v3717
    %v6319 = vunpack.c.h.b16 %v3717
    %v6320 = vunpack.c.l.b16 %v3718
    %v6321 = vunpack.c.h.b16 %v3718
    %v6322 = vunpack.c.l.b16 %v3719
    %v6323 = vunpack.c.h.b16 %v3719
    %v6324 = vunpack.c.l.b16 %v3720
    %v6325 = vunpack.c.h.b16 %v3720
    %v6326 = vunpack.c.l.b16 %v3721
    %v6327 = vunpack.c.h.b16 %v3721
    %v6328 = vunpack.c.l.b16 %v3722
    %v6329 = vunpack.c.h.b16 %v3722
    %v6330 = vunpack.c.l.b16 %v3723
    %v6331 = vunpack.c.h.b16 %v3723
    %v6332 = vunpack.c.l.b16 %v3724
    %v6333 = vunpack.c.h.b16 %v3724
    %v6334 = vunpack.c.l.b16 %v3725
    %v6335 = vunpack.c.h.b16 %v3725
    %v6336 = vunpack.c.l.b16 %v3726
    %v6337 = vunpack.c.h.b16 %v3726
    %v6338 = vunpack.c.l.b16 %v3727
    %v6339 = vunpack.c.h.b16 %v3727
    %v6340 = vunpack.c.l.b16 %v3728
    %v6341 = vunpack.c.h.b16 %v3728
    %v6342 = vunpack.c.l.b16 %v3729
    %v6343 = vunpack.c.h.b16 %v3729
    %v6344 = vunpack.c.l.b16 %v3730
    %v6345 = vunpack.c.h.b16 %v3730
    %v6346 = vunpack.c.l.b16 %v3731
    %v6347 = vunpack.c.h.b16 %v3731
    %v6348 = vunpack.c.l.b16 %v3732
    %v6349 = vunpack.c.h.b16 %v3732
    %v6350 = vunpack.c.l.b16 %v3733
    %v6351 = vunpack.c.h.b16 %v3733
    %v6352 = vunpack.c.l.b16 %v3734
    %v6353 = vunpack.c.h.b16 %v3734
    %v6354 = vunpack.c.l.b16 %v3735
    %v6355 = vunpack.c.h.b16 %v3735
    %v6356 = vunpack.c.l.b16 %v3736
    %v6357 = vunpack.c.h.b16 %v3736
    %v6358 = vunpack.c.l.b16 %v3737
    %v6359 = vunpack.c.h.b16 %v3737
    %v6360 = vunpack.c.l.b16 %v3738
    %v6361 = vunpack.c.h.b16 %v3738
    %v6362 = vunpack.c.l.b16 %v3739
    %v6363 = vunpack.c.h.b16 %v3739
    %v6364 = vunpack.c.l.b16 %v3740
    %v6365 = vunpack.c.h.b16 %v3740
    %v6366 = vunpack.c.l.b16 %v3741
    %v6367 = vunpack.c.h.b16 %v3741
    %v6368 = vunpack.c.l.b16 %v3742
    %v6369 = vunpack.c.h.b16 %v3742
    %v6370 = vunpack.c.l.b16 %v3743
    %v6371 = vunpack.c.h.b16 %v3743
    %v6372 = vunpack.c.l.b16 %v3744
    %v6373 = vunpack.c.h.b16 %v3744
    %v6374 = vunpack.c.l.b16 %v3745
    %v6375 = vunpack.c.h.b16 %v3745
    %v6376 = vunpack.c.l.b16 %v3746
    %v6377 = vunpack.c.h.b16 %v3746
    %v6378 = vunpack.c.l.b16 %v3747
    %v6379 = vunpack.c.h.b16 %v3747
    %v6380 = vunpack.c.l.b16 %v3748
    %v6381 = vunpack.c.h.b16 %v3748
    %v6382 = vunpack.c.l.b16 %v3749
    %v6383 = vunpack.c.h.b16 %v3749
    %v6384 = vunpack.c.l.b16 %v3750
    %v6385 = vunpack.c.h.b16 %v3750
    %v6386 = vunpack.c.l.b16 %v3751
    %v6387 = vunpack.c.h.b16 %v3751
    %v6388 = vunpack.c.l.b16 %v3752
    %v6389 = vunpack.c.h.b16 %v3752
    %v6390 = vunpack.c.l.b16 %v3753
    %v6391 = vunpack.c.h.b16 %v3753
    %v6392 = vunpack.c.l.b16 %v3754
    %v6393 = vunpack.c.h.b16 %v3754
    %v6394 = vunpack.c.l.b16 %v3755
    %v6395 = vunpack.c.h.b16 %v3755
    %v6396 = vunpack.c.l.b16 %v3756
    %v6397 = vunpack.c.h.b16 %v3756
    %v6398 = vunpack.c.l.b16 %v3757
    %v6399 = vunpack.c.h.b16 %v3757
    %v6400 = vunpack.c.l.b16 %v3758
    %v6401 = vunpack.c.h.b16 %v3758
    %v6402 = vunpack.c.l.b16 %v3759
    %v6403 = vunpack.c.h.b16 %v3759
    %v6404 = vunpack.c.l.b16 %v3760
    %v6405 = vunpack.c.h.b16 %v3760
    %v6406 = vunpack.c.l.b16 %v3761
    %v6407 = vunpack.c.h.b16 %v3761
    %v6408 = vunpack.c.l.b16 %v3762
    %v6409 = vunpack.c.h.b16 %v3762
    %v6410 = vunpack.c.l.b16 %v3763
    %v6411 = vunpack.c.h.b16 %v3763
    %v6412 = vunpack.c.l.b16 %v3764
    %v6413 = vunpack.c.h.b16 %v3764
    %v6414 = vunpack.c.l.b16 %v3765
    %v6415 = vunpack.c.h.b16 %v3765
    %v6416 = vunpack.c.l.b16 %v3766
    %v6417 = vunpack.c.h.b16 %v3766
    %v6418 = vunpack.c.l.b16 %v3767
    %v6419 = vunpack.c.h.b16 %v3767
    %v6420 = vunpack.c.l.b16 %v3768
    %v6421 = vunpack.c.h.b16 %v3768
    %v6422 = vunpack.c.l.b16 %v3769
    %v6423 = vunpack.c.h.b16 %v3769
    %v6424 = vunpack.c.l.b16 %v3770
    %v6425 = vunpack.c.h.b16 %v3770
    %v6426 = vunpack.c.l.b16 %v3771
    %v6427 = vunpack.c.h.b16 %v3771
    %v6428 = vunpack.c.l.b16 %v3772
    %v6429 = vunpack.c.h.b16 %v3772
    %v6430 = vunpack.c.l.b16 %v3773
    %v6431 = vunpack.c.h.b16 %v3773
    %v6432 = vunpack.c.l.b16 %v3774
    %v6433 = vunpack.c.h.b16 %v3774
    %v6434 = vunpack.c.l.b16 %v3775
    %v6435 = vunpack.c.h.b16 %v3775
    %v6436 = vunpack.c.l.b16 %v3776
    %v6437 = vunpack.c.h.b16 %v3776
    %v6438 = vunpack.c.l.b16 %v3777
    %v6439 = vunpack.c.h.b16 %v3777
    %v6440 = vunpack.c.l.b16 %v3778
    %v6441 = vunpack.c.h.b16 %v3778
    %v6442 = vunpack.c.l.b16 %v3779
    %v6443 = vunpack.c.h.b16 %v3779
    %v6444 = vunpack.c.l.b16 %v3780
    %v6445 = vunpack.c.h.b16 %v3780
    %v6446 = vunpack.c.l.b16 %v3781
    %v6447 = vunpack.c.h.b16 %v3781
    %v6448 = vunpack.c.l.b16 %v3782
    %v6449 = vunpack.c.h.b16 %v3782
    %v6450 = vunpack.c.l.b16 %v3783
    %v6451 = vunpack.c.h.b16 %v3783
    %v6452 = vunpack.c.l.b16 %v3784
    %v6453 = vunpack.c.h.b16 %v3784
    %v6454 = vunpack.c.l.b16 %v3785
    %v6455 = vunpack.c.h.b16 %v3785
    %v6456 = vunpack.c.l.b16 %v3786
    %v6457 = vunpack.c.h.b16 %v3786
    %v6458 = vunpack.c.l.b16 %v3787
    %v6459 = vunpack.c.h.b16 %v3787
    %v6460 = vunpack.c.l.b16 %v3788
    %v6461 = vunpack.c.h.b16 %v3788
    %v6462 = vunpack.c.l.b16 %v3789
    %v6463 = vunpack.c.h.b16 %v3789
    %v6464 = vunpack.c.l.b16 %v3790
    %v6465 = vunpack.c.h.b16 %v3790
    %v6466 = vunpack.c.l.b16 %v3791
    %v6467 = vunpack.c.h.b16 %v3791
    %v6468 = vunpack.c.l.b16 %v3792
    %v6469 = vunpack.c.h.b16 %v3792
    %v6470 = vunpack.c.l.b16 %v3793
    %v6471 = vunpack.c.h.b16 %v3793
    %v6472 = vunpack.c.l.b16 %v3794
    %v6473 = vunpack.c.h.b16 %v3794
    %v6474 = vunpack.c.l.b16 %v3795
    %v6475 = vunpack.c.h.b16 %v3795
    %v6476 = vunpack.c.l.b16 %v3796
    %v6477 = vunpack.c.h.b16 %v3796
    %v6478 = vunpack.c.l.b16 %v3797
    %v6479 = vunpack.c.h.b16 %v3797
    %v6480 = vunpack.c.l.b16 %v3798
    %v6481 = vunpack.c.h.b16 %v3798
    %v6482 = vunpack.c.l.b16 %v3799
    %v6483 = vunpack.c.h.b16 %v3799
    %v6484 = vunpack.c.l.b16 %v3800
    %v6485 = vunpack.c.h.b16 %v3800
    %v6486 = vunpack.c.l.b16 %v3801
    %v6487 = vunpack.c.h.b16 %v3801
    %v6488 = vunpack.c.l.b16 %v3802
    %v6489 = vunpack.c.h.b16 %v3802
    %v6490 = vunpack.c.l.b16 %v3803
    %v6491 = vunpack.c.h.b16 %v3803
    %v6492 = vunpack.c.l.b16 %v3804
    %v6493 = vunpack.c.h.b16 %v3804
    %v6494 = vunpack.c.l.b16 %v3805
    %v6495 = vunpack.c.h.b16 %v3805
    %v6496 = vunpack.c.l.b16 %v3806
    %v6497 = vunpack.c.h.b16 %v3806
    %v6498 = vunpack.c.l.b16 %v3807
    %v6499 = vunpack.c.h.b16 %v3807
    %v6500 = vunpack.c.l.b16 %v3808
    %v6501 = vunpack.c.h.b16 %v3808
    %v6502 = vunpack.c.l.b16 %v3809
    %v6503 = vunpack.c.h.b16 %v3809
    %v6504 = vunpack.c.l.b16 %v3810
    %v6505 = vunpack.c.h.b16 %v3810
    %v6506 = vunpack.c.l.b16 %v3811
    %v6507 = vunpack.c.h.b16 %v3811
    %v6508 = vunpack.c.l.b16 %v3812
    %v6509 = vunpack.c.h.b16 %v3812
    %v6510 = vunpack.c.l.b16 %v3813
    %v6511 = vunpack.c.h.b16 %v3813
    %v6512 = vunpack.c.l.b16 %v3814
    %v6513 = vunpack.c.h.b16 %v3814
    %v6514 = vunpack.c.l.b16 %v3815
    %v6515 = vunpack.c.h.b16 %v3815
    %v6516 = vunpack.c.l.b16 %v3816
    %v6517 = vunpack.c.h.b16 %v3816
    %v6518 = vunpack.c.l.b16 %v3817
    %v6519 = vunpack.c.h.b16 %v3817
    %v6520 = vunpack.c.l.b16 %v3818
    %v6521 = vunpack.c.h.b16 %v3818
    %v6522 = vunpack.c.l.b16 %v3819
    %v6523 = vunpack.c.h.b16 %v3819
    %v6524 = vunpack.c.l.b16 %v3820
    %v6525 = vunpack.c.h.b16 %v3820
    %v6526 = vunpack.c.l.b16 %v3821
    %v6527 = vunpack.c.h.b16 %v3821
    %v6528 = vunpack.c.l.b16 %v3822
    %v6529 = vunpack.c.h.b16 %v3822
    %v6530 = vunpack.c.l.b16 %v3823
    %v6531 = vunpack.c.h.b16 %v3823
    %v6532 = vunpack.c.l.b16 %v3824
    %v6533 = vunpack.c.h.b16 %v3824
    %v6534 = vunpack.c.l.b16 %v3825
    %v6535 = vunpack.c.h.b16 %v3825
    %v6536 = vunpack.c.l.b16 %v3826
    %v6537 = vunpack.c.h.b16 %v3826
    %v6538 = vunpack.c.l.b16 %v3827
    %v6539 = vunpack.c.h.b16 %v3827
    %v6540 = vunpack.c.l.b16 %v3828
    %v6541 = vunpack.c.h.b16 %v3828
    %v6542 = vunpack.c.l.b16 %v3829
    %v6543 = vunpack.c.h.b16 %v3829
    %v6544 = vunpack.c.l.b16 %v3830
    %v6545 = vunpack.c.h.b16 %v3830
    %v6546 = vunpack.c.l.b16 %v3831
    %v6547 = vunpack.c.h.b16 %v3831
    %v6548 = vunpack.c.l.b16 %v3832
    %v6549 = vunpack.c.h.b16 %v3832
    %v6550 = vunpack.c.l.b16 %v3833
    %v6551 = vunpack.c.h.b16 %v3833
    %v6552 = vunpack.c.l.b16 %v3834
    %v6553 = vunpack.c.h.b16 %v3834
    %v6554 = vunpack.c.l.b16 %v3835
    %v6555 = vunpack.c.h.b16 %v3835
    %v6556 = vunpack.c.l.b16 %v3836
    %v6557 = vunpack.c.h.b16 %v3836
    %v6558 = vunpack.c.l.b16 %v3837
    %v6559 = vunpack.c.h.b16 %v3837
    %v6560 = vunpack.c.l.b16 %v3838
    %v6561 = vunpack.c.h.b16 %v3838
    %v6562 = vunpack.c.l.b16 %v3839
    %v6563 = vunpack.c.h.b16 %v3839
    %v6564 = vunpack.c.l.b16 %v3840
    %v6565 = vunpack.c.h.b16 %v3840
    %v6566 = vunpack.c.l.b16 %v3841
    %v6567 = vunpack.c.h.b16 %v3841
    %v6568 = vunpack.c.l.b16 %v3842
    %v6569 = vunpack.c.h.b16 %v3842
    %v6570 = vunpack.c.l.b16 %v3843
    %v6571 = vunpack.c.h.b16 %v3843
    %v6572 = vunpack.c.l.b16 %v3844
    %v6573 = vunpack.c.h.b16 %v3844
    %v6574 = vunpack.c.l.b16 %v3845
    %v6575 = vunpack.c.h.b16 %v3845
    %v6576 = vunpack.c.l.b16 %v3846
    %v6577 = vunpack.c.h.b16 %v3846
    %v6578 = vunpack.c.l.b16 %v3847
    %v6579 = vunpack.c.h.b16 %v3847
    %v6580 = vunpack.c.l.b16 %v3848
    %v6581 = vunpack.c.h.b16 %v3848
    %v6582 = vunpack.c.l.b16 %v3849
    %v6583 = vunpack.c.h.b16 %v3849
    %v6584 = vunpack.c.l.b16 %v3850
    %v6585 = vunpack.c.h.b16 %v3850
    %v6586 = vunpack.c.l.b16 %v3851
    %v6587 = vunpack.c.h.b16 %v3851
    %v6588 = vunpack.c.l.b16 %v3852
    %v6589 = vunpack.c.h.b16 %v3852
    %v6590 = vunpack.c.l.b16 %v3853
    %v6591 = vunpack.c.h.b16 %v3853
    %v6592 = vunpack.c.l.b16 %v3854
    %v6593 = vunpack.c.h.b16 %v3854
    %v6594 = vunpack.c.l.b16 %v3855
    %v6595 = vunpack.c.h.b16 %v3855
    %v6596 = vunpack.c.l.b16 %v3856
    %v6597 = vunpack.c.h.b16 %v3856
    %v6598 = vunpack.c.l.b16 %v3857
    %v6599 = vunpack.c.h.b16 %v3857
    %v6600 = vunpack.c.l.b16 %v3858
    %v6601 = vunpack.c.h.b16 %v3858
    %v6602 = vunpack.c.l.b16 %v3859
    %v6603 = vunpack.c.h.b16 %v3859
    %v6604 = vunpack.c.l.b16 %v3860
    %v6605 = vunpack.c.h.b16 %v3860
    %v6606 = vunpack.c.l.b16 %v3861
    %v6607 = vunpack.c.h.b16 %v3861
    %v6608 = vunpack.c.l.b16 %v3862
    %v6609 = vunpack.c.h.b16 %v3862
    %v6610 = vunpack.c.l.b16 %v3863
    %v6611 = vunpack.c.h.b16 %v3863
    %v6612 = vunpack.c.l.b16 %v3864
    %v6613 = vunpack.c.h.b16 %v3864
    %v6614 = vunpack.c.l.b16 %v3865
    %v6615 = vunpack.c.h.b16 %v3865
    %v6616 = vunpack.c.l.b16 %v3866
    %v6617 = vunpack.c.h.b16 %v3866
    %v6618 = vunpack.c.l.b16 %v3867
    %v6619 = vunpack.c.h.b16 %v3867
    %v6620 = vunpack.c.l.b16 %v3868
    %v6621 = vunpack.c.h.b16 %v3868
    %v6622 = vunpack.c.l.b16 %v3869
    %v6623 = vunpack.c.h.b16 %v3869
    %v6624 = vunpack.c.l.b16 %v3870
    %v6625 = vunpack.c.h.b16 %v3870
    %v6626 = vunpack.c.l.b16 %v3871
    %v6627 = vunpack.c.h.b16 %v3871
    %v6628 = vunpack.c.l.b16 %v3872
    %v6629 = vunpack.c.h.b16 %v3872
    %v6630 = vunpack.c.l.b16 %v3873
    %v6631 = vunpack.c.h.b16 %v3873
    %v6632 = vunpack.c.l.b16 %v3874
    %v6633 = vunpack.c.h.b16 %v3874
    %v6634 = vunpack.c.l.b16 %v3875
    %v6635 = vunpack.c.h.b16 %v3875
    %v6636 = vunpack.c.l.b16 %v3876
    %v6637 = vunpack.c.h.b16 %v3876
    %v6638 = vunpack.c.l.b16 %v3877
    %v6639 = vunpack.c.h.b16 %v3877
    %v6640 = vunpack.c.l.b16 %v3878
    %v6641 = vunpack.c.h.b16 %v3878
    %v6642 = vunpack.c.l.b16 %v3879
    %v6643 = vunpack.c.h.b16 %v3879
    %v6644 = vunpack.c.l.b16 %v3880
    %v6645 = vunpack.c.h.b16 %v3880
    %v6646 = vunpack.c.l.b16 %v3881
    %v6647 = vunpack.c.h.b16 %v3881
    %v6648 = vunpack.c.l.b16 %v3882
    %v6649 = vunpack.c.h.b16 %v3882
    %v6650 = vunpack.c.l.b16 %v3883
    %v6651 = vunpack.c.h.b16 %v3883
    %v6652 = vunpack.c.l.b16 %v3884
    %v6653 = vunpack.c.h.b16 %v3884
    %v6654 = vunpack.c.l.b16 %v3885
    %v6655 = vunpack.c.h.b16 %v3885
    %v6656 = vunpack.c.l.b16 %v3886
    %v6657 = vunpack.c.h.b16 %v3886
    %v6658 = vunpack.c.l.b16 %v3887
    %v6659 = vunpack.c.h.b16 %v3887
    %v6660 = vunpack.c.l.b16 %v3888
    %v6661 = vunpack.c.h.b16 %v3888
    %v6662 = vunpack.c.l.b16 %v3889
    %v6663 = vunpack.c.h.b16 %v3889
    %v6664 = vunpack.c.l.b16 %v3890
    %v6665 = vunpack.c.h.b16 %v3890
    %v6666 = vunpack.c.l.b16 %v3891
    %v6667 = vunpack.c.h.b16 %v3891
    %v6668 = vunpack.c.l.b16 %v3892
    %v6669 = vunpack.c.h.b16 %v3892
    %v6670 = vunpack.c.l.b16 %v3893
    %v6671 = vunpack.c.h.b16 %v3893
    %v6672 = vunpack.c.l.b16 %v3894
    %v6673 = vunpack.c.h.b16 %v3894
    %v6674 = vunpack.c.l.b16 %v3895
    %v6675 = vunpack.c.h.b16 %v3895
    %v6676 = vunpack.c.l.b16 %v3896
    %v6677 = vunpack.c.h.b16 %v3896
    %v6678 = vunpack.c.l.b16 %v3897
    %v6679 = vunpack.c.h.b16 %v3897
    %v6680 = vunpack.c.l.b16 %v3898
    %v6681 = vunpack.c.h.b16 %v3898
    %v6682 = vunpack.c.l.b16 %v3899
    %v6683 = vunpack.c.h.b16 %v3899
    %v6684 = vunpack.c.l.b16 %v3900
    %v6685 = vunpack.c.h.b16 %v3900
    %v6686 = vunpack.c.l.b16 %v3901
    %v6687 = vunpack.c.h.b16 %v3901
    %v6688 = vunpack.c.l.b16 %v3902
    %v6689 = vunpack.c.h.b16 %v3902
    %v6690 = vunpack.c.l.b16 %v3903
    %v6691 = vunpack.c.h.b16 %v3903
    %v6692 = vunpack.c.l.b16 %v3904
    %v6693 = vunpack.c.h.b16 %v3904
    %v6694 = vunpack.c.l.b16 %v3905
    %v6695 = vunpack.c.h.b16 %v3905
    %v6696 = vunpack.c.l.b16 %v3906
    %v6697 = vunpack.c.h.b16 %v3906
    %v6698 = vunpack.c.l.b16 %v3907
    %v6699 = vunpack.c.h.b16 %v3907
    %v6700 = vunpack.c.l.b16 %v3908
    %v6701 = vunpack.c.h.b16 %v3908
    %v6702 = vunpack.c.l.b16 %v3909
    %v6703 = vunpack.c.h.b16 %v3909
    %v6704 = vunpack.c.l.b16 %v3910
    %v6705 = vunpack.c.h.b16 %v3910
    %v6706 = vunpack.c.l.b16 %v3911
    %v6707 = vunpack.c.h.b16 %v3911
    %v6708 = vunpack.c.l.b16 %v3912
    %v6709 = vunpack.c.h.b16 %v3912
    %v6710 = vunpack.c.l.b16 %v3913
    %v6711 = vunpack.c.h.b16 %v3913
    %v6712 = vunpack.c.l.b16 %v3914
    %v6713 = vunpack.c.h.b16 %v3914
    %v6714 = vunpack.c.l.b16 %v3915
    %v6715 = vunpack.c.h.b16 %v3915
    %v6716 = vunpack.c.l.b16 %v3916
    %v6717 = vunpack.c.h.b16 %v3916
    %v6718 = vunpack.c.l.b16 %v3917
    %v6719 = vunpack.c.h.b16 %v3917
    %v6720 = vunpack.c.l.b16 %v3918
    %v6721 = vunpack.c.h.b16 %v3918
    %v6722 = vunpack.c.l.b16 %v3919
    %v6723 = vunpack.c.h.b16 %v3919
    %v6724 = vunpack.c.l.b16 %v3920
    %v6725 = vunpack.c.h.b16 %v3920
    %v6726 = vunpack.c.l.b16 %v3921
    %v6727 = vunpack.c.h.b16 %v3921
    %v6728 = vunpack.c.l.b16 %v3922
    %v6729 = vunpack.c.h.b16 %v3922
    %v6730 = vunpack.c.l.b16 %v3923
    %v6731 = vunpack.c.h.b16 %v3923
    %v6732 = vunpack.c.l.b16 %v3924
    %v6733 = vunpack.c.h.b16 %v3924
    %v6734 = vunpack.c.l.b16 %v3925
    %v6735 = vunpack.c.h.b16 %v3925
    %v6736 = vunpack.c.l.b16 %v3926
    %v6737 = vunpack.c.h.b16 %v3926
    %v6738 = vunpack.c.l.b16 %v3927
    %v6739 = vunpack.c.h.b16 %v3927
    %v6740 = vunpack.c.l.b16 %v3928
    %v6741 = vunpack.c.h.b16 %v3928
    %v6742 = vunpack.c.l.b16 %v3929
    %v6743 = vunpack.c.h.b16 %v3929
    %v6744 = vunpack.c.l.b16 %v3930
    %v6745 = vunpack.c.h.b16 %v3930
    %v6746 = vunpack.c.l.b16 %v3931
    %v6747 = vunpack.c.h.b16 %v3931
    %v6748 = vunpack.c.l.b16 %v3932
    %v6749 = vunpack.c.h.b16 %v3932
    %v6750 = vunpack.c.l.b16 %v3933
    %v6751 = vunpack.c.h.b16 %v3933
    %v6752 = vunpack.c.l.b16 %v3934
    %v6753 = vunpack.c.h.b16 %v3934
    %v6754 = vunpack.c.l.b16 %v3935
    %v6755 = vunpack.c.h.b16 %v3935
    %v6756 = vunpack.c.l.b16 %v3936
    %v6757 = vunpack.c.h.b16 %v3936
    %v6758 = vunpack.c.l.b16 %v3937
    %v6759 = vunpack.c.h.b16 %v3937
    %v6760 = vunpack.c.l.b16 %v3938
    %v6761 = vunpack.c.h.b16 %v3938
    %v6762 = vunpack.c.l.b16 %v3939
    %v6763 = vunpack.c.h.b16 %v3939
    %v6764 = vunpack.c.l.b16 %v3940
    %v6765 = vunpack.c.h.b16 %v3940
    %v6766 = vunpack.c.l.b16 %v3941
    %v6767 = vunpack.c.h.b16 %v3941
    %v6768 = vunpack.c.l.b16 %v3942
    %v6769 = vunpack.c.h.b16 %v3942
    %v6770 = vunpack.c.l.b16 %v3943
    %v6771 = vunpack.c.h.b16 %v3943
    %v6772 = vunpack.c.l.b16 %v3944
    %v6773 = vunpack.c.h.b16 %v3944
    %v6774 = vunpack.c.l.b16 %v3945
    %v6775 = vunpack.c.h.b16 %v3945
    %v6776 = vunpack.c.l.b16 %v3946
    %v6777 = vunpack.c.h.b16 %v3946
    %v6778 = vunpack.c.l.b16 %v3947
    %v6779 = vunpack.c.h.b16 %v3947
    %v6780 = vunpack.c.l.b16 %v3948
    %v6781 = vunpack.c.h.b16 %v3948
    %v6782 = vunpack.c.l.b16 %v3949
    %v6783 = vunpack.c.h.b16 %v3949
    %v6784 = vunpack.c.l.b16 %v3950
    %v6785 = vunpack.c.h.b16 %v3950
    %v6786 = vunpack.c.l.b16 %v3951
    %v6787 = vunpack.c.h.b16 %v3951
    %v6788 = vunpack.c.l.b16 %v3952
    %v6789 = vunpack.c.h.b16 %v3952
    %v6790 = vunpack.c.l.b16 %v3953
    %v6791 = vunpack.c.h.b16 %v3953
    %v6792 = vunpack.c.l.b16 %v3954
    %v6793 = vunpack.c.h.b16 %v3954
    %v6794 = vunpack.c.l.b16 %v3955
    %v6795 = vunpack.c.h.b16 %v3955
    %v6796 = vunpack.c.l.b16 %v3956
    %v6797 = vunpack.c.h.b16 %v3956
    %v6798 = vunpack.c.l.b16 %v3957
    %v6799 = vunpack.c.h.b16 %v3957
    %v6800 = vunpack.c.l.b16 %v3958
    %v6801 = vunpack.c.h.b16 %v3958
    %v6802 = vunpack.c.l.b16 %v3959
    %v6803 = vunpack.c.h.b16 %v3959
    %v6804 = vunpack.c.l.b16 %v3960
    %v6805 = vunpack.c.h.b16 %v3960
    %v6806 = vunpack.c.l.b16 %v3961
    %v6807 = vunpack.c.h.b16 %v3961
    %v6808 = vunpack.c.l.b16 %v3962
    %v6809 = vunpack.c.h.b16 %v3962
    %v6810 = vunpack.c.l.b16 %v3963
    %v6811 = vunpack.c.h.b16 %v3963
    %v6812 = vunpack.c.l.b16 %v3964
    %v6813 = vunpack.c.h.b16 %v3964
    %v6814 = vunpack.c.l.b16 %v3965
    %v6815 = vunpack.c.h.b16 %v3965
    %v6816 = vunpack.c.l.b16 %v3966
    %v6817 = vunpack.c.h.b16 %v3966
    %v6818 = vunpack.c.l.b16 %v3967
    %v6819 = vunpack.c.h.b16 %v3967
    %v6820 = vunpack.c.l.b16 %v3968
    %v6821 = vunpack.c.h.b16 %v3968
    %v6822 = vunpack.c.l.b16 %v3969
    %v6823 = vunpack.c.h.b16 %v3969
    %v6824 = vunpack.c.l.b16 %v3970
    %v6825 = vunpack.c.h.b16 %v3970
    %v6826 = vunpack.c.l.b16 %v3971
    %v6827 = vunpack.c.h.b16 %v3971
    %v6828 = vunpack.c.l.b16 %v3972
    %v6829 = vunpack.c.h.b16 %v3972
    %v6830 = vunpack.c.l.b16 %v3973
    %v6831 = vunpack.c.h.b16 %v3973
    %v6832 = vunpack.c.l.b16 %v3974
    %v6833 = vunpack.c.h.b16 %v3974
    %v6834 = vunpack.c.l.b16 %v3975
    %v6835 = vunpack.c.h.b16 %v3975
    %v6836 = vunpack.c.l.b16 %v3976
    %v6837 = vunpack.c.h.b16 %v3976
    %v6838 = vunpack.c.l.b16 %v3977
    %v6839 = vunpack.c.h.b16 %v3977
    %v6840 = vunpack.c.l.b16 %v3978
    %v6841 = vunpack.c.h.b16 %v3978
    %v6842 = vunpack.c.l.b16 %v3979
    %v6843 = vunpack.c.h.b16 %v3979
    %v6844 = vunpack.c.l.b16 %v3980
    %v6845 = vunpack.c.h.b16 %v3980
    %v6846 = vunpack.c.l.b16 %v3981
    %v6847 = vunpack.c.h.b16 %v3981
    %v6848 = vunpack.c.l.b16 %v3982
    %v6849 = vunpack.c.h.b16 %v3982
    %v6850 = vunpack.c.l.b16 %v3983
    %v6851 = vunpack.c.h.b16 %v3983
    %v6852 = vunpack.c.l.b16 %v3984
    %v6853 = vunpack.c.h.b16 %v3984
    %v6854 = vunpack.c.l.b16 %v3985
    %v6855 = vunpack.c.h.b16 %v3985
    %v6856 = vunpack.c.l.b16 %v3986
    %v6857 = vunpack.c.h.b16 %v3986
    %v6858 = vunpack.c.l.b16 %v3987
    %v6859 = vunpack.c.h.b16 %v3987
    %v6860 = vunpack.c.l.b16 %v3988
    %v6861 = vunpack.c.h.b16 %v3988
    %v6862 = vunpack.c.l.b16 %v3989
    %v6863 = vunpack.c.h.b16 %v3989
    %v6864 = vunpack.c.l.b16 %v3990
    %v6865 = vunpack.c.h.b16 %v3990
    %v6866 = vunpack.c.l.b16 %v3991
    %v6867 = vunpack.c.h.b16 %v3991
    %v6868 = vunpack.c.l.b16 %v3992
    %v6869 = vunpack.c.h.b16 %v3992
    %v6870 = vunpack.c.l.b16 %v3993
    %v6871 = vunpack.c.h.b16 %v3993
    %v6872 = vunpack.c.l.b16 %v3994
    %v6873 = vunpack.c.h.b16 %v3994
    %v6874 = vunpack.c.l.b16 %v3995
    %v6875 = vunpack.c.h.b16 %v3995
    %v6876 = vunpack.c.l.b16 %v3996
    %v6877 = vunpack.c.h.b16 %v3996
    %v6878 = vunpack.c.l.b16 %v3997
    %v6879 = vunpack.c.h.b16 %v3997
    %v6880 = vunpack.c.l.b16 %v3998
    %v6881 = vunpack.c.h.b16 %v3998
    %v6882 = vunpack.c.l.b16 %v3999
    %v6883 = vunpack.c.h.b16 %v3999
    %v6884 = vunpack.c.l.b16 %v4000
    %v6885 = vunpack.c.h.b16 %v4000
    %v6886 = vunpack.c.l.b16 %v4001
    %v6887 = vunpack.c.h.b16 %v4001
    %v6888 = vunpack.c.l.b16 %v4002
    %v6889 = vunpack.c.h.b16 %v4002
    %v6890 = vunpack.c.l.b16 %v4003
    %v6891 = vunpack.c.h.b16 %v4003
    %v6892 = vunpack.c.l.b16 %v4004
    %v6893 = vunpack.c.h.b16 %v4004
    %v6894 = vunpack.c.l.b16 %v4005
    %v6895 = vunpack.c.h.b16 %v4005
    %v6896 = vunpack.c.l.b16 %v4006
    %v6897 = vunpack.c.h.b16 %v4006
    %v6898 = vunpack.c.l.b16 %v4007
    %v6899 = vunpack.c.h.b16 %v4007
    %v6900 = vunpack.c.l.b16 %v4008
    %v6901 = vunpack.c.h.b16 %v4008
    %v6902 = vunpack.c.l.b16 %v4009
    %v6903 = vunpack.c.h.b16 %v4009
    %v6904 = vunpack.c.l.b16 %v4010
    %v6905 = vunpack.c.h.b16 %v4010
    %v6906 = vunpack.c.l.b16 %v4011
    %v6907 = vunpack.c.h.b16 %v4011
    %v6908 = vunpack.c.l.b16 %v4012
    %v6909 = vunpack.c.h.b16 %v4012
    %v6910 = vunpack.c.l.b16 %v4013
    %v6911 = vunpack.c.h.b16 %v4013
    %v6912 = vunpack.c.l.b16 %v4014
    %v6913 = vunpack.c.h.b16 %v4014
    %v6914 = vunpack.c.l.b16 %v4015
    %v6915 = vunpack.c.h.b16 %v4015
    %v6916 = vunpack.c.l.b16 %v4016
    %v6917 = vunpack.c.h.b16 %v4016
    %v6918 = vunpack.c.l.b16 %v4017
    %v6919 = vunpack.c.h.b16 %v4017
    %v6920 = vunpack.c.l.b16 %v4018
    %v6921 = vunpack.c.h.b16 %v4018
    %v6922 = vunpack.c.l.b16 %v4019
    %v6923 = vunpack.c.h.b16 %v4019
    %v6924 = vunpack.c.l.b16 %v4020
    %v6925 = vunpack.c.h.b16 %v4020
    %v6926 = vunpack.c.l.b16 %v4021
    %v6927 = vunpack.c.h.b16 %v4021
    %v6928 = vunpack.c.l.b16 %v4022
    %v6929 = vunpack.c.h.b16 %v4022
    %v6930 = vunpack.c.l.b16 %v4023
    %v6931 = vunpack.c.h.b16 %v4023
    %v6932 = vunpack.c.l.b16 %v4024
    %v6933 = vunpack.c.h.b16 %v4024
    %v6934 = vunpack.c.l.b16 %v4025
    %v6935 = vunpack.c.h.b16 %v4025
    %v6936 = vunpack.c.l.b16 %v4026
    %v6937 = vunpack.c.h.b16 %v4026
    %v6938 = vunpack.c.l.b16 %v4027
    %v6939 = vunpack.c.h.b16 %v4027
    %v6940 = vunpack.c.l.b16 %v4028
    %v6941 = vunpack.c.h.b16 %v4028
    %v6942 = vunpack.c.l.b16 %v4029
    %v6943 = vunpack.c.h.b16 %v4029
    %v6944 = vunpack.c.l.b16 %v4030
    %v6945 = vunpack.c.h.b16 %v4030
    %v6946 = vunpack.c.l.b16 %v4031
    %v6947 = vunpack.c.h.b16 %v4031
    %v6948 = vunpack.c.l.b16 %v4032
    %v6949 = vunpack.c.h.b16 %v4032
    %v6950 = vunpack.c.l.b16 %v4033
    %v6951 = vunpack.c.h.b16 %v4033
    %v6952 = vunpack.c.l.b16 %v4034
    %v6953 = vunpack.c.h.b16 %v4034
    %v6954 = vunpack.c.l.b16 %v4035
    %v6955 = vunpack.c.h.b16 %v4035
    %v6956 = vunpack.c.l.b16 %v4036
    %v6957 = vunpack.c.h.b16 %v4036
    %v6958 = vunpack.c.l.b16 %v4037
    %v6959 = vunpack.c.h.b16 %v4037
    %v6960 = vunpack.c.l.b16 %v4038
    %v6961 = vunpack.c.h.b16 %v4038
    %v6962 = vunpack.c.l.b16 %v4039
    %v6963 = vunpack.c.h.b16 %v4039
    %v6964 = vunpack.c.l.b16 %v4040
    %v6965 = vunpack.c.h.b16 %v4040
    %v6966 = vunpack.c.l.b16 %v4041
    %v6967 = vunpack.c.h.b16 %v4041
    %v6968 = vunpack.c.l.b16 %v4042
    %v6969 = vunpack.c.h.b16 %v4042
    %v6970 = vunpack.c.l.b16 %v4043
    %v6971 = vunpack.c.h.b16 %v4043
    %v6972 = vunpack.c.l.b16 %v4044
    %v6973 = vunpack.c.h.b16 %v4044
    %v6974 = vunpack.c.l.b16 %v4045
    %v6975 = vunpack.c.h.b16 %v4045
    %v6976 = vunpack.c.l.b16 %v4046
    %v6977 = vunpack.c.h.b16 %v4046
    %v6978 = vunpack.c.l.b16 %v4047
    %v6979 = vunpack.c.h.b16 %v4047
    %v6980 = vunpack.c.l.b16 %v4048
    %v6981 = vunpack.c.h.b16 %v4048
    %v6982 = vunpack.c.l.b16 %v4049
    %v6983 = vunpack.c.h.b16 %v4049
    %v6984 = vunpack.c.l.b16 %v4050
    %v6985 = vunpack.c.h.b16 %v4050
    %v6986 = vunpack.c.l.b16 %v4051
    %v6987 = vunpack.c.h.b16 %v4051
    %v6988 = vunpack.c.l.b16 %v4052
    %v6989 = vunpack.c.h.b16 %v4052
    %v6990 = vunpack.c.l.b16 %v4053
    %v6991 = vunpack.c.h.b16 %v4053
    %v6992 = vunpack.c.l.b16 %v4054
    %v6993 = vunpack.c.h.b16 %v4054
    %v6994 = vunpack.c.l.b16 %v4055
    %v6995 = vunpack.c.h.b16 %v4055
    %v6996 = vunpack.c.l.b16 %v4056
    %v6997 = vunpack.c.h.b16 %v4056
    %v6998 = vunpack.c.l.b16 %v4057
    %v6999 = vunpack.c.h.b16 %v4057
    %v7000 = vunpack.c.l.b16 %v4058
    %v7001 = vunpack.c.h.b16 %v4058
    %v7002 = vunpack.c.l.b16 %v4059
    %v7003 = vunpack.c.h.b16 %v4059
    %v7004 = vunpack.c.l.b16 %v4060
    %v7005 = vunpack.c.h.b16 %v4060
    %v7006 = vunpack.c.l.b16 %v4061
    %v7007 = vunpack.c.h.b16 %v4061
    %v7008 = vunpack.c.l.b16 %v4062
    %v7009 = vunpack.c.h.b16 %v4062
    %v7010 = vunpack.c.l.b16 %v4063
    %v7011 = vunpack.c.h.b16 %v4063
    %v7012 = vunpack.c.l.b16 %v4064
    %v7013 = vunpack.c.h.b16 %v4064
    %v7014 = vunpack.c.l.b16 %v4065
    %v7015 = vunpack.c.h.b16 %v4065
    %v7016 = vunpack.c.l.b16 %v4066
    %v7017 = vunpack.c.h.b16 %v4066
    %v7018 = vunpack.c.l.b16 %v4067
    %v7019 = vunpack.c.h.b16 %v4067
    %v7020 = vunpack.c.l.b16 %v4068
    %v7021 = vunpack.c.h.b16 %v4068
    %v7022 = vunpack.c.l.b16 %v4069
    %v7023 = vunpack.c.h.b16 %v4069
    %v7024 = vunpack.c.l.b16 %v4070
    %v7025 = vunpack.c.h.b16 %v4070
    %v7026 = vunpack.c.l.b16 %v4071
    %v7027 = vunpack.c.h.b16 %v4071
    %v7028 = vunpack.c.l.b16 %v4072
    %v7029 = vunpack.c.h.b16 %v4072
    %v7030 = vunpack.c.l.b16 %v4073
    %v7031 = vunpack.c.h.b16 %v4073
    %v7032 = vunpack.c.l.b16 %v4074
    %v7033 = vunpack.c.h.b16 %v4074
    %v7034 = vunpack.c.l.b16 %v4075
    %v7035 = vunpack.c.h.b16 %v4075
    %v7036 = vunpack.c.l.b16 %v4076
    %v7037 = vunpack.c.h.b16 %v4076
    %v7038 = vunpack.c.l.b16 %v4077
    %v7039 = vunpack.c.h.b16 %v4077
    %v7040 = vunpack.c.l.b16 %v4078
    %v7041 = vunpack.c.h.b16 %v4078
    %v7042 = vunpack.c.l.b16 %v4079
    %v7043 = vunpack.c.h.b16 %v4079
    %v7044 = vunpack.c.l.b16 %v4080
    %v7045 = vunpack.c.h.b16 %v4080
    %v7046 = vunpack.c.l.b16 %v4081
    %v7047 = vunpack.c.h.b16 %v4081
    %v7048 = vunpack.c.l.b16 %v4082
    %v7049 = vunpack.c.h.b16 %v4082
    %v7050 = vunpack.c.l.b16 %v4083
    %v7051 = vunpack.c.h.b16 %v4083
    %v7052 = vunpack.c.l.b16 %v4084
    %v7053 = vunpack.c.h.b16 %v4084
    %v7054 = vunpack.c.l.b16 %v4085
    %v7055 = vunpack.c.h.b16 %v4085
    %v7056 = vunpack.c.l.b16 %v4086
    %v7057 = vunpack.c.h.b16 %v4086
    %v7058 = vunpack.c.l.b16 %v4087
    %v7059 = vunpack.c.h.b16 %v4087
    %v7060 = vunpack.c.l.b16 %v4088
    %v7061 = vunpack.c.h.b16 %v4088
    %v7062 = vunpack.c.l.b16 %v4089
    %v7063 = vunpack.c.h.b16 %v4089
    %v7064 = vunpack.c.l.b16 %v4090
    %v7065 = vunpack.c.h.b16 %v4090
    %v7066 = vunpack.c.l.b16 %v4091
    %v7067 = vunpack.c.h.b16 %v4091
    %v7068 = vunpack.c.l.b16 %v4092
    %v7069 = vunpack.c.h.b16 %v4092
    %v7070 = vunpack.c.l.b16 %v4093
    %v7071 = vunpack.c.h.b16 %v4093
    %v7072 = vunpack.c.l.b16 %v4094
    %v7073 = vunpack.c.h.b16 %v4094
    %v7074 = vunpack.c.l.b16 %v4095
    %v7075 = vunpack.c.h.b16 %v4095
    %v7076 = vunpack.c.l.b16 %v4096
    %v7077 = vunpack.c.h.b16 %v4096
    %v7078 = vunpack.c.l.b16 %v4097
    %v7079 = vunpack.c.h.b16 %v4097
    %v7080 = vunpack.c.l.b16 %v4098
    %v7081 = vunpack.c.h.b16 %v4098
    %v7082 = vunpack.c.l.b16 %v4099
    %v7083 = vunpack.c.h.b16 %v4099
    %v7084 = vunpack.c.l.b16 %v4100
    %v7085 = vunpack.c.h.b16 %v4100
    %v7086 = vunpack.c.l.b16 %v4101
    %v7087 = vunpack.c.h.b16 %v4101
    %v7088 = vunpack.c.l.b16 %v4102
    %v7089 = vunpack.c.h.b16 %v4102
    %v7090 = vunpack.c.l.b16 %v4103
    %v7091 = vunpack.c.h.b16 %v4103
    %v7092 = vunpack.c.l.b16 %v4104
    %v7093 = vunpack.c.h.b16 %v4104
    %v7094 = vunpack.c.l.b16 %v4105
    %v7095 = vunpack.c.h.b16 %v4105
    %v7096 = vunpack.c.l.b16 %v4106
    %v7097 = vunpack.c.h.b16 %v4106
    %v7098 = vunpack.c.l.b16 %v4107
    %v7099 = vunpack.c.h.b16 %v4107
    %v7100 = vunpack.c.l.b16 %v4108
    %v7101 = vunpack.c.h.b16 %v4108
    %v7102 = vunpack.c.l.b16 %v4109
    %v7103 = vunpack.c.h.b16 %v4109
    %v7104 = vunpack.c.l.b16 %v4110
    %v7105 = vunpack.c.h.b16 %v4110
    %v7106 = vunpack.c.l.b16 %v4111
    %v7107 = vunpack.c.h.b16 %v4111
    %v7108 = vunpack.c.l.b16 %v4112
    %v7109 = vunpack.c.h.b16 %v4112
    %v7110 = vunpack.c.l.b16 %v4113
    %v7111 = vunpack.c.h.b16 %v4113
    %v7112 = vunpack.c.l.b16 %v4114
    %v7113 = vunpack.c.h.b16 %v4114
    %v7114 = vunpack.c.l.b16 %v4115
    %v7115 = vunpack.c.h.b16 %v4115
    %v7116 = vunpack.c.l.b16 %v4116
    %v7117 = vunpack.c.h.b16 %v4116
    %v7118 = vunpack.c.l.b16 %v4117
    %v7119 = vunpack.c.h.b16 %v4117
    %v7120 = vunpack.c.l.b16 %v4118
    %v7121 = vunpack.c.h.b16 %v4118
    %v7122 = vunpack.c.l.b16 %v4119
    %v7123 = vunpack.c.h.b16 %v4119
    %v7124 = vunpack.c.l.b16 %v4120
    %v7125 = vunpack.c.h.b16 %v4120
    %v7126 = vunpack.c.l.b16 %v4121
    %v7127 = vunpack.c.h.b16 %v4121
    %v7128 = vunpack.c.l.b16 %v4122
    %v7129 = vunpack.c.h.b16 %v4122
    %v7130 = vunpack.c.l.b16 %v4123
    %v7131 = vunpack.c.h.b16 %v4123
    %v7132 = vunpack.c.l.b16 %v4124
    %v7133 = vunpack.c.h.b16 %v4124
    %v7134 = vunpack.c.l.b16 %v4125
    %v7135 = vunpack.c.h.b16 %v4125
    %v7136 = vunpack.c.l.b16 %v4126
    %v7137 = vunpack.c.h.b16 %v4126
    %v7138 = vunpack.c.l.b16 %v4127
    %v7139 = vunpack.c.h.b16 %v4127
    %v7140 = vunpack.c.l.b16 %v4128
    %v7141 = vunpack.c.h.b16 %v4128
    %v7142 = vunpack.c.l.b16 %v4129
    %v7143 = vunpack.c.h.b16 %v4129
    %v7144 = vunpack.c.l.b16 %v4130
    %v7145 = vunpack.c.h.b16 %v4130
    %v7146 = vunpack.c.l.b16 %v4131
    %v7147 = vunpack.c.h.b16 %v4131
    %v7148 = vunpack.c.l.b16 %v4132
    %v7149 = vunpack.c.h.b16 %v4132
    %v7150 = vunpack.c.l.b16 %v4133
    %v7151 = vunpack.c.h.b16 %v4133
    %v7152 = vunpack.c.l.b16 %v4134
    %v7153 = vunpack.c.h.b16 %v4134
    %v7154 = vunpack.c.l.b16 %v4135
    %v7155 = vunpack.c.h.b16 %v4135
    %v7156 = vunpack.c.l.b16 %v4136
    %v7157 = vunpack.c.h.b16 %v4136
    %v7158 = vunpack.c.l.b16 %v4137
    %v7159 = vunpack.c.h.b16 %v4137
    %v7160 = vunpack.c.l.b16 %v4138
    %v7161 = vunpack.c.h.b16 %v4138
    %v7162 = vunpack.c.l.b16 %v4139
    %v7163 = vunpack.c.h.b16 %v4139
    %v7164 = vunpack.c.l.b16 %v4140
    %v7165 = vunpack.c.h.b16 %v4140
    %v7166 = vunpack.c.l.b16 %v4141
    %v7167 = vunpack.c.h.b16 %v4141
    %v7168 = vunpack.c.l.b16 %v4142
    %v7169 = vunpack.c.h.b16 %v4142
    %v7170 = vunpack.c.l.b16 %v4143
    %v7171 = vunpack.c.h.b16 %v4143
    %v7172 = vunpack.c.l.b16 %v4144
    %v7173 = vunpack.c.h.b16 %v4144
    %v7174 = vunpack.c.l.b16 %v4145
    %v7175 = vunpack.c.h.b16 %v4145
    %v7176 = vunpack.c.l.b16 %v4146
    %v7177 = vunpack.c.h.b16 %v4146
    %v7178 = vunpack.c.l.b16 %v4147
    %v7179 = vunpack.c.h.b16 %v4147
    %v7180 = vunpack.c.l.b16 %v4148
    %v7181 = vunpack.c.h.b16 %v4148
    %v7182 = vunpack.c.l.b16 %v4149
    %v7183 = vunpack.c.h.b16 %v4149
    %v7184 = vunpack.c.l.b16 %v4150
    %v7185 = vunpack.c.h.b16 %v4150
    %v7186 = vunpack.c.l.b16 %v4151
    %v7187 = vunpack.c.h.b16 %v4151
    %v7188 = vunpack.c.l.b16 %v4152
    %v7189 = vunpack.c.h.b16 %v4152
    %v7190 = vunpack.c.l.b16 %v4153
    %v7191 = vunpack.c.h.b16 %v4153
    %v7192 = vunpack.c.l.b16 %v4154
    %v7193 = vunpack.c.h.b16 %v4154
    %v7194 = vunpack.c.l.b16 %v4155
    %v7195 = vunpack.c.h.b16 %v4155
    %v7196 = vunpack.c.l.b16 %v4156
    %v7197 = vunpack.c.h.b16 %v4156
    %v7198 = vunpack.c.l.b16 %v4157
    %v7199 = vunpack.c.h.b16 %v4157
    %v7200 = vunpack.c.l.b16 %v4158
    %v7201 = vunpack.c.h.b16 %v4158
    %v7202 = vunpack.c.l.b16 %v4159
    %v7203 = vunpack.c.h.b16 %v4159
    %v7204 = vunpack.c.l.b16 %v4160
    %v7205 = vunpack.c.h.b16 %v4160
    %v7206 = vunpack.c.l.b16 %v4161
    %v7207 = vunpack.c.h.b16 %v4161
    %v7208 = vunpack.c.l.b16 %v4162
    %v7209 = vunpack.c.h.b16 %v4162
    %v7210 = vunpack.c.l.b16 %v4163
    %v7211 = vunpack.c.h.b16 %v4163
    %v7212 = vunpack.c.l.b16 %v4164
    %v7213 = vunpack.c.h.b16 %v4164
    %v7214 = vunpack.c.l.b16 %v4165
    %v7215 = vunpack.c.h.b16 %v4165
    %v7216 = vunpack.c.l.b16 %v4166
    %v7217 = vunpack.c.h.b16 %v4166
    %v7218 = vunpack.c.l.b16 %v4167
    %v7219 = vunpack.c.h.b16 %v4167
    %v7220 = vunpack.c.l.b16 %v4168
    %v7221 = vunpack.c.h.b16 %v4168
    %v7222 = vunpack.c.l.b16 %v4169
    %v7223 = vunpack.c.h.b16 %v4169
    %v7224 = vunpack.c.l.b16 %v4170
    %v7225 = vunpack.c.h.b16 %v4170
    %v7226 = vunpack.c.l.b16 %v4171
    %v7227 = vunpack.c.h.b16 %v4171
    %v7228 = vunpack.c.l.b16 %v4172
    %v7229 = vunpack.c.h.b16 %v4172
    %v7230 = vunpack.c.l.b16 %v4173
    %v7231 = vunpack.c.h.b16 %v4173
    %v7232 = vunpack.c.l.b16 %v4174
    %v7233 = vunpack.c.h.b16 %v4174
    %v7234 = vunpack.c.l.b16 %v4175
    %v7235 = vunpack.c.h.b16 %v4175
    %v7236 = vunpack.c.l.b16 %v4176
    %v7237 = vunpack.c.h.b16 %v4176
    %v7238 = vunpack.c.l.b16 %v4177
    %v7239 = vunpack.c.h.b16 %v4177
    %v7240 = vunpack.c.l.b16 %v4178
    %v7241 = vunpack.c.h.b16 %v4178
    %v7242 = vunpack.c.l.b16 %v4179
    %v7243 = vunpack.c.h.b16 %v4179
    %v7244 = vunpack.c.l.b16 %v4180
    %v7245 = vunpack.c.h.b16 %v4180
    %v7246 = vunpack.c.l.b16 %v4181
    %v7247 = vunpack.c.h.b16 %v4181
    %v7248 = vunpack.c.l.b16 %v4182
    %v7249 = vunpack.c.h.b16 %v4182
    %v7250 = vunpack.c.l.b16 %v4183
    %v7251 = vunpack.c.h.b16 %v4183
    %v7252 = vunpack.c.l.b16 %v4184
    %v7253 = vunpack.c.h.b16 %v4184
    %v7254 = vunpack.c.l.b16 %v4185
    %v7255 = vunpack.c.h.b16 %v4185
    %v7256 = vunpack.c.l.b16 %v4186
    %v7257 = vunpack.c.h.b16 %v4186
    %v7258 = vunpack.c.l.b16 %v4187
    %v7259 = vunpack.c.h.b16 %v4187
    %v7260 = vunpack.c.l.b16 %v4188
    %v7261 = vunpack.c.h.b16 %v4188
    %v7262 = vunpack.c.l.b16 %v4189
    %v7263 = vunpack.c.h.b16 %v4189
    %v7264 = vunpack.c.l.b16 %v4190
    %v7265 = vunpack.c.h.b16 %v4190
    %v7266 = vunpack.c.l.b16 %v4191
    %v7267 = vunpack.c.h.b16 %v4191
    %v7268 = vunpack.c.l.b16 %v4192
    %v7269 = vunpack.c.h.b16 %v4192
    %v7270 = vunpack.c.l.b16 %v4193
    %v7271 = vunpack.c.h.b16 %v4193
    %v7272 = vunpack.c.l.b16 %v4194
    %v7273 = vunpack.c.h.b16 %v4194
    %v7274 = vunpack.c.l.b16 %v4195
    %v7275 = vunpack.c.h.b16 %v4195
    %v7276 = vpack.c.b16 %v5244, %v5228
    %v7277 = vpack.c.b16 %v5245, %v5229
    %v7278 = vpack.c.b16 %v5246, %v5230
    %v7279 = vpack.c.b16 %v5247, %v5231
    %v7280 = vpack.c.b16 %v5248, %v5232
    %v7281 = vpack.c.b16 %v5249, %v5233
    %v7282 = vpack.c.b16 %v5250, %v5234
    %v7283 = vpack.c.b16 %v5251, %v5235
    %v7284 = vpack.c.b16 %v5252, %v5236
    %v7285 = vpack.c.b16 %v5253, %v5237
    %v7286 = vpack.c.b16 %v5254, %v5238
    %v7287 = vpack.c.b16 %v5255, %v5239
    %v7288 = vpack.c.b16 %v5256, %v5240
    %v7289 = vpack.c.b16 %v5257, %v5241
    %v7290 = vpack.c.b16 %v5258, %v5242
    %v7291 = vpack.c.b16 %v5259, %v5243
    %v7292 = vpack.c.b16 %v5276, %v5260
    %v7293 = vpack.c.b16 %v5277, %v5261
    %v7294 = vpack.c.b16 %v5278, %v5262
    %v7295 = vpack.c.b16 %v5279, %v5263
    %v7296 = vpack.c.b16 %v5280, %v5264
    %v7297 = vpack.c.b16 %v5281, %v5265
    %v7298 = vpack.c.b16 %v5282, %v5266
    %v7299 = vpack.c.b16 %v5283, %v5267
    %v7300 = vpack.c.b16 %v5284, %v5268
    %v7301 = vpack.c.b16 %v5285, %v5269
    %v7302 = vpack.c.b16 %v5286, %v5270
    %v7303 = vpack.c.b16 %v5287, %v5271
    %v7304 = vpack.c.b16 %v5288, %v5272
    %v7305 = vpack.c.b16 %v5289, %v5273
    %v7306 = vpack.c.b16 %v5290, %v5274
    %v7307 = vpack.c.b16 %v5291, %v5275
    %v7308 = vpack.c.b16 %v5308, %v5292
    %v7309 = vpack.c.b16 %v5309, %v5293
    %v7310 = vpack.c.b16 %v5310, %v5294
    %v7311 = vpack.c.b16 %v5311, %v5295
    %v7312 = vpack.c.b16 %v5312, %v5296
    %v7313 = vpack.c.b16 %v5313, %v5297
    %v7314 = vpack.c.b16 %v5314, %v5298
    %v7315 = vpack.c.b16 %v5315, %v5299
    %v7316 = vpack.c.b16 %v5316, %v5300
    %v7317 = vpack.c.b16 %v5317, %v5301
    %v7318 = vpack.c.b16 %v5318, %v5302
    %v7319 = vpack.c.b16 %v5319, %v5303
    %v7320 = vpack.c.b16 %v5320, %v5304
    %v7321 = vpack.c.b16 %v5321, %v5305
    %v7322 = vpack.c.b16 %v5322, %v5306
    %v7323 = vpack.c.b16 %v5323, %v5307
    %v7324 = vpack.c.b16 %v5340, %v5324
    %v7325 = vpack.c.b16 %v5341, %v5325
    %v7326 = vpack.c.b16 %v5342, %v5326
    %v7327 = vpack.c.b16 %v5343, %v5327
    %v7328 = vpack.c.b16 %v5344, %v5328
    %v7329 = vpack.c.b16 %v5345, %v5329
    %v7330 = vpack.c.b16 %v5346, %v5330
    %v7331 = vpack.c.b16 %v5347, %v5331
    %v7332 = vpack.c.b16 %v5348, %v5332
    %v7333 = vpack.c.b16 %v5349, %v5333
    %v7334 = vpack.c.b16 %v5350, %v5334
    %v7335 = vpack.c.b16 %v5351, %v5335
    %v7336 = vpack.c.b16 %v5352, %v5336
    %v7337 = vpack.c.b16 %v5353, %v5337
    %v7338 = vpack.c.b16 %v5354, %v5338
    %v7339 = vpack.c.b16 %v5355, %v5339
    %v7340 = vpack.c.b16 %v5372, %v5356
    %v7341 = vpack.c.b16 %v5373, %v5357
    %v7342 = vpack.c.b16 %v5374, %v5358
    %v7343 = vpack.c.b16 %v5375, %v5359
    %v7344 = vpack.c.b16 %v5376, %v5360
    %v7345 = vpack.c.b16 %v5377, %v5361
    %v7346 = vpack.c.b16 %v5378, %v5362
    %v7347 = vpack.c.b16 %v5379, %v5363
    %v7348 = vpack.c.b16 %v5380, %v5364
    %v7349 = vpack.c.b16 %v5381, %v5365
    %v7350 = vpack.c.b16 %v5382, %v5366
    %v7351 = vpack.c.b16 %v5383, %v5367
    %v7352 = vpack.c.b16 %v5384, %v5368
    %v7353 = vpack.c.b16 %v5385, %v5369
    %v7354 = vpack.c.b16 %v5386, %v5370
    %v7355 = vpack.c.b16 %v5387, %v5371
    %v7356 = vpack.c.b16 %v5404, %v5388
    %v7357 = vpack.c.b16 %v5405, %v5389
    %v7358 = vpack.c.b16 %v5406, %v5390
    %v7359 = vpack.c.b16 %v5407, %v5391
    %v7360 = vpack.c.b16 %v5408, %v5392
    %v7361 = vpack.c.b16 %v5409, %v5393
    %v7362 = vpack.c.b16 %v5410, %v5394
    %v7363 = vpack.c.b16 %v5411, %v5395
    %v7364 = vpack.c.b16 %v5412, %v5396
    %v7365 = vpack.c.b16 %v5413, %v5397
    %v7366 = vpack.c.b16 %v5414, %v5398
    %v7367 = vpack.c.b16 %v5415, %v5399
    %v7368 = vpack.c.b16 %v5416, %v5400
    %v7369 = vpack.c.b16 %v5417, %v5401
    %v7370 = vpack.c.b16 %v5418, %v5402
    %v7371 = vpack.c.b16 %v5419, %v5403
    %v7372 = vpack.c.b16 %v5436, %v5420
    %v7373 = vpack.c.b16 %v5437, %v5421
    %v7374 = vpack.c.b16 %v5438, %v5422
    %v7375 = vpack.c.b16 %v5439, %v5423
    %v7376 = vpack.c.b16 %v5440, %v5424
    %v7377 = vpack.c.b16 %v5441, %v5425
    %v7378 = vpack.c.b16 %v5442, %v5426
    %v7379 = vpack.c.b16 %v5443, %v5427
    %v7380 = vpack.c.b16 %v5444, %v5428
    %v7381 = vpack.c.b16 %v5445, %v5429
    %v7382 = vpack.c.b16 %v5446, %v5430
    %v7383 = vpack.c.b16 %v5447, %v5431
    %v7384 = vpack.c.b16 %v5448, %v5432
    %v7385 = vpack.c.b16 %v5449, %v5433
    %v7386 = vpack.c.b16 %v5450, %v5434
    %v7387 = vpack.c.b16 %v5451, %v5435
    %v7388 = vpack.c.b16 %v5468, %v5452
    %v7389 = vpack.c.b16 %v5469, %v5453
    %v7390 = vpack.c.b16 %v5470, %v5454
    %v7391 = vpack.c.b16 %v5471, %v5455
    %v7392 = vpack.c.b16 %v5472, %v5456
    %v7393 = vpack.c.b16 %v5473, %v5457
    %v7394 = vpack.c.b16 %v5474, %v5458
    %v7395 = vpack.c.b16 %v5475, %v5459
    %v7396 = vpack.c.b16 %v5476, %v5460
    %v7397 = vpack.c.b16 %v5477, %v5461
    %v7398 = vpack.c.b16 %v5478, %v5462
    %v7399 = vpack.c.b16 %v5479, %v5463
    %v7400 = vpack.c.b16 %v5480, %v5464
    %v7401 = vpack.c.b16 %v5481, %v5465
    %v7402 = vpack.c.b16 %v5482, %v5466
    %v7403 = vpack.c.b16 %v5483, %v5467
    %v7404 = vpack.c.b16 %v5500, %v5484
    %v7405 = vpack.c.b16 %v5501, %v5485
    %v7406 = vpack.c.b16 %v5502, %v5486
    %v7407 = vpack.c.b16 %v5503, %v5487
    %v7408 = vpack.c.b16 %v5504, %v5488
    %v7409 = vpack.c.b16 %v5505, %v5489
    %v7410 = vpack.c.b16 %v5506, %v5490
    %v7411 = vpack.c.b16 %v5507, %v5491
    %v7412 = vpack.c.b16 %v5508, %v5492
    %v7413 = vpack.c.b16 %v5509, %v5493
    %v7414 = vpack.c.b16 %v5510, %v5494
    %v7415 = vpack.c.b16 %v5511, %v5495
    %v7416 = vpack.c.b16 %v5512, %v5496
    %v7417 = vpack.c.b16 %v5513, %v5497
    %v7418 = vpack.c.b16 %v5514, %v5498
    %v7419 = vpack.c.b16 %v5515, %v5499
    %v7420 = vpack.c.b16 %v5532, %v5516
    %v7421 = vpack.c.b16 %v5533, %v5517
    %v7422 = vpack.c.b16 %v5534, %v5518
    %v7423 = vpack.c.b16 %v5535, %v5519
    %v7424 = vpack.c.b16 %v5536, %v5520
    %v7425 = vpack.c.b16 %v5537, %v5521
    %v7426 = vpack.c.b16 %v5538, %v5522
    %v7427 = vpack.c.b16 %v5539, %v5523
    %v7428 = vpack.c.b16 %v5540, %v5524
    %v7429 = vpack.c.b16 %v5541, %v5525
    %v7430 = vpack.c.b16 %v5542, %v5526
    %v7431 = vpack.c.b16 %v5543, %v5527
    %v7432 = vpack.c.b16 %v5544, %v5528
    %v7433 = vpack.c.b16 %v5545, %v5529
    %v7434 = vpack.c.b16 %v5546, %v5530
    %v7435 = vpack.c.b16 %v5547, %v5531
    %v7436 = vpack.c.b16 %v5564, %v5548
    %v7437 = vpack.c.b16 %v5565, %v5549
    %v7438 = vpack.c.b16 %v5566, %v5550
    %v7439 = vpack.c.b16 %v5567, %v5551
    %v7440 = vpack.c.b16 %v5568, %v5552
    %v7441 = vpack.c.b16 %v5569, %v5553
    %v7442 = vpack.c.b16 %v5570, %v5554
    %v7443 = vpack.c.b16 %v5571, %v5555
    %v7444 = vpack.c.b16 %v5572, %v5556
    %v7445 = vpack.c.b16 %v5573, %v5557
    %v7446 = vpack.c.b16 %v5574, %v5558
    %v7447 = vpack.c.b16 %v5575, %v5559
    %v7448 = vpack.c.b16 %v5576, %v5560
    %v7449 = vpack.c.b16 %v5577, %v5561
    %v7450 = vpack.c.b16 %v5578, %v5562
    %v7451 = vpack.c.b16 %v5579, %v5563
    %v7452 = vpack.c.b16 %v5596, %v5580
    %v7453 = vpack.c.b16 %v5597, %v5581
    %v7454 = vpack.c.b16 %v5598, %v5582
    %v7455 = vpack.c.b16 %v5599, %v5583
    %v7456 = vpack.c.b16 %v5600, %v5584
    %v7457 = vpack.c.b16 %v5601, %v5585
    %v7458 = vpack.c.b16 %v5602, %v5586
    %v7459 = vpack.c.b16 %v5603, %v5587
    %v7460 = vpack.c.b16 %v5604, %v5588
    %v7461 = vpack.c.b16 %v5605, %v5589
    %v7462 = vpack.c.b16 %v5606, %v5590
    %v7463 = vpack.c.b16 %v5607, %v5591
    %v7464 = vpack.c.b16 %v5608, %v5592
    %v7465 = vpack.c.b16 %v5609, %v5593
    %v7466 = vpack.c.b16 %v5610, %v5594
    %v7467 = vpack.c.b16 %v5611, %v5595
    %v7468 = vpack.c.b16 %v5628, %v5612
    %v7469 = vpack.c.b16 %v5629, %v5613
    %v7470 = vpack.c.b16 %v5630, %v5614
    %v7471 = vpack.c.b16 %v5631, %v5615
    %v7472 = vpack.c.b16 %v5632, %v5616
    %v7473 = vpack.c.b16 %v5633, %v5617
    %v7474 = vpack.c.b16 %v5634, %v5618
    %v7475 = vpack.c.b16 %v5635, %v5619
    %v7476 = vpack.c.b16 %v5636, %v5620
    %v7477 = vpack.c.b16 %v5637, %v5621
    %v7478 = vpack.c.b16 %v5638, %v5622
    %v7479 = vpack.c.b16 %v5639, %v5623
    %v7480 = vpack.c.b16 %v5640, %v5624
    %v7481 = vpack.c.b16 %v5641, %v5625
    %v7482 = vpack.c.b16 %v5642, %v5626
    %v7483 = vpack.c.b16 %v5643, %v5627
    %v7484 = vpack.c.b16 %v5660, %v5644
    %v7485 = vpack.c.b16 %v5661, %v5645
    %v7486 = vpack.c.b16 %v5662, %v5646
    %v7487 = vpack.c.b16 %v5663, %v5647
    %v7488 = vpack.c.b16 %v5664, %v5648
    %v7489 = vpack.c.b16 %v5665, %v5649
    %v7490 = vpack.c.b16 %v5666, %v5650
    %v7491 = vpack.c.b16 %v5667, %v5651
    %v7492 = vpack.c.b16 %v5668, %v5652
    %v7493 = vpack.c.b16 %v5669, %v5653
    %v7494 = vpack.c.b16 %v5670, %v5654
    %v7495 = vpack.c.b16 %v5671, %v5655
    %v7496 = vpack.c.b16 %v5672, %v5656
    %v7497 = vpack.c.b16 %v5673, %v5657
    %v7498 = vpack.c.b16 %v5674, %v5658
    %v7499 = vpack.c.b16 %v5675, %v5659
    %v7500 = vpack.c.b16 %v5692, %v5676
    %v7501 = vpack.c.b16 %v5693, %v5677
    %v7502 = vpack.c.b16 %v5694, %v5678
    %v7503 = vpack.c.b16 %v5695, %v5679
    %v7504 = vpack.c.b16 %v5696, %v5680
    %v7505 = vpack.c.b16 %v5697, %v5681
    %v7506 = vpack.c.b16 %v5698, %v5682
    %v7507 = vpack.c.b16 %v5699, %v5683
    %v7508 = vpack.c.b16 %v5700, %v5684
    %v7509 = vpack.c.b16 %v5701, %v5685
    %v7510 = vpack.c.b16 %v5702, %v5686
    %v7511 = vpack.c.b16 %v5703, %v5687
    %v7512 = vpack.c.b16 %v5704, %v5688
    %v7513 = vpack.c.b16 %v5705, %v5689
    %v7514 = vpack.c.b16 %v5706, %v5690
    %v7515 = vpack.c.b16 %v5707, %v5691
    %v7516 = vpack.c.b16 %v5724, %v5708
    %v7517 = vpack.c.b16 %v5725, %v5709
    %v7518 = vpack.c.b16 %v5726, %v5710
    %v7519 = vpack.c.b16 %v5727, %v5711
    %v7520 = vpack.c.b16 %v5728, %v5712
    %v7521 = vpack.c.b16 %v5729, %v5713
    %v7522 = vpack.c.b16 %v5730, %v5714
    %v7523 = vpack.c.b16 %v5731, %v5715
    %v7524 = vpack.c.b16 %v5732, %v5716
    %v7525 = vpack.c.b16 %v5733, %v5717
    %v7526 = vpack.c.b16 %v5734, %v5718
    %v7527 = vpack.c.b16 %v5735, %v5719
    %v7528 = vpack.c.b16 %v5736, %v5720
    %v7529 = vpack.c.b16 %v5737, %v5721
    %v7530 = vpack.c.b16 %v5738, %v5722
    %v7531 = vpack.c.b16 %v5739, %v5723
    %v7532 = vpack.c.b16 %v5756, %v5740
    %v7533 = vpack.c.b16 %v5757, %v5741
    %v7534 = vpack.c.b16 %v5758, %v5742
    %v7535 = vpack.c.b16 %v5759, %v5743
    %v7536 = vpack.c.b16 %v5760, %v5744
    %v7537 = vpack.c.b16 %v5761, %v5745
    %v7538 = vpack.c.b16 %v5762, %v5746
    %v7539 = vpack.c.b16 %v5763, %v5747
    %v7540 = vpack.c.b16 %v5764, %v5748
    %v7541 = vpack.c.b16 %v5765, %v5749
    %v7542 = vpack.c.b16 %v5766, %v5750
    %v7543 = vpack.c.b16 %v5767, %v5751
    %v7544 = vpack.c.b16 %v5768, %v5752
    %v7545 = vpack.c.b16 %v5769, %v5753
    %v7546 = vpack.c.b16 %v5770, %v5754
    %v7547 = vpack.c.b16 %v5771, %v5755
    %v7548 = vpack.c.b16 %v5788, %v5772
    %v7549 = vpack.c.b16 %v5789, %v5773
    %v7550 = vpack.c.b16 %v5790, %v5774
    %v7551 = vpack.c.b16 %v5791, %v5775
    %v7552 = vpack.c.b16 %v5792, %v5776
    %v7553 = vpack.c.b16 %v5793, %v5777
    %v7554 = vpack.c.b16 %v5794, %v5778
    %v7555 = vpack.c.b16 %v5795, %v5779
    %v7556 = vpack.c.b16 %v5796, %v5780
    %v7557 = vpack.c.b16 %v5797, %v5781
    %v7558 = vpack.c.b16 %v5798, %v5782
    %v7559 = vpack.c.b16 %v5799, %v5783
    %v7560 = vpack.c.b16 %v5800, %v5784
    %v7561 = vpack.c.b16 %v5801, %v5785
    %v7562 = vpack.c.b16 %v5802, %v5786
    %v7563 = vpack.c.b16 %v5803, %v5787
    %v7564 = vpack.c.b16 %v5820, %v5804
    %v7565 = vpack.c.b16 %v5821, %v5805
    %v7566 = vpack.c.b16 %v5822, %v5806
    %v7567 = vpack.c.b16 %v5823, %v5807
    %v7568 = vpack.c.b16 %v5824, %v5808
    %v7569 = vpack.c.b16 %v5825, %v5809
    %v7570 = vpack.c.b16 %v5826, %v5810
    %v7571 = vpack.c.b16 %v5827, %v5811
    %v7572 = vpack.c.b16 %v5828, %v5812
    %v7573 = vpack.c.b16 %v5829, %v5813
    %v7574 = vpack.c.b16 %v5830, %v5814
    %v7575 = vpack.c.b16 %v5831, %v5815
    %v7576 = vpack.c.b16 %v5832, %v5816
    %v7577 = vpack.c.b16 %v5833, %v5817
    %v7578 = vpack.c.b16 %v5834, %v5818
    %v7579 = vpack.c.b16 %v5835, %v5819
    %v7580 = vpack.c.b16 %v5852, %v5836
    %v7581 = vpack.c.b16 %v5853, %v5837
    %v7582 = vpack.c.b16 %v5854, %v5838
    %v7583 = vpack.c.b16 %v5855, %v5839
    %v7584 = vpack.c.b16 %v5856, %v5840
    %v7585 = vpack.c.b16 %v5857, %v5841
    %v7586 = vpack.c.b16 %v5858, %v5842
    %v7587 = vpack.c.b16 %v5859, %v5843
    %v7588 = vpack.c.b16 %v5860, %v5844
    %v7589 = vpack.c.b16 %v5861, %v5845
    %v7590 = vpack.c.b16 %v5862, %v5846
    %v7591 = vpack.c.b16 %v5863, %v5847
    %v7592 = vpack.c.b16 %v5864, %v5848
    %v7593 = vpack.c.b16 %v5865, %v5849
    %v7594 = vpack.c.b16 %v5866, %v5850
    %v7595 = vpack.c.b16 %v5867, %v5851
    %v7596 = vpack.c.b16 %v5884, %v5868
    %v7597 = vpack.c.b16 %v5885, %v5869
    %v7598 = vpack.c.b16 %v5886, %v5870
    %v7599 = vpack.c.b16 %v5887, %v5871
    %v7600 = vpack.c.b16 %v5888, %v5872
    %v7601 = vpack.c.b16 %v5889, %v5873
    %v7602 = vpack.c.b16 %v5890, %v5874
    %v7603 = vpack.c.b16 %v5891, %v5875
    %v7604 = vpack.c.b16 %v5892, %v5876
    %v7605 = vpack.c.b16 %v5893, %v5877
    %v7606 = vpack.c.b16 %v5894, %v5878
    %v7607 = vpack.c.b16 %v5895, %v5879
    %v7608 = vpack.c.b16 %v5896, %v5880
    %v7609 = vpack.c.b16 %v5897, %v5881
    %v7610 = vpack.c.b16 %v5898, %v5882
    %v7611 = vpack.c.b16 %v5899, %v5883
    %v7612 = vpack.c.b16 %v5916, %v5900
    %v7613 = vpack.c.b16 %v5917, %v5901
    %v7614 = vpack.c.b16 %v5918, %v5902
    %v7615 = vpack.c.b16 %v5919, %v5903
    %v7616 = vpack.c.b16 %v5920, %v5904
    %v7617 = vpack.c.b16 %v5921, %v5905
    %v7618 = vpack.c.b16 %v5922, %v5906
    %v7619 = vpack.c.b16 %v5923, %v5907
    %v7620 = vpack.c.b16 %v5924, %v5908
    %v7621 = vpack.c.b16 %v5925, %v5909
    %v7622 = vpack.c.b16 %v5926, %v5910
    %v7623 = vpack.c.b16 %v5927, %v5911
    %v7624 = vpack.c.b16 %v5928, %v5912
    %v7625 = vpack.c.b16 %v5929, %v5913
    %v7626 = vpack.c.b16 %v5930, %v5914
    %v7627 = vpack.c.b16 %v5931, %v5915
    %v7628 = vpack.c.b16 %v5948, %v5932
    %v7629 = vpack.c.b16 %v5949, %v5933
    %v7630 = vpack.c.b16 %v5950, %v5934
    %v7631 = vpack.c.b16 %v5951, %v5935
    %v7632 = vpack.c.b16 %v5952, %v5936
    %v7633 = vpack.c.b16 %v5953, %v5937
    %v7634 = vpack.c.b16 %v5954, %v5938
    %v7635 = vpack.c.b16 %v5955, %v5939
    %v7636 = vpack.c.b16 %v5956, %v5940
    %v7637 = vpack.c.b16 %v5957, %v5941
    %v7638 = vpack.c.b16 %v5958, %v5942
    %v7639 = vpack.c.b16 %v5959, %v5943
    %v7640 = vpack.c.b16 %v5960, %v5944
    %v7641 = vpack.c.b16 %v5961, %v5945
    %v7642 = vpack.c.b16 %v5962, %v5946
    %v7643 = vpack.c.b16 %v5963, %v5947
    %v7644 = vpack.c.b16 %v5980, %v5964
    %v7645 = vpack.c.b16 %v5981, %v5965
    %v7646 = vpack.c.b16 %v5982, %v5966
    %v7647 = vpack.c.b16 %v5983, %v5967
    %v7648 = vpack.c.b16 %v5984, %v5968
    %v7649 = vpack.c.b16 %v5985, %v5969
    %v7650 = vpack.c.b16 %v5986, %v5970
    %v7651 = vpack.c.b16 %v5987, %v5971
    %v7652 = vpack.c.b16 %v5988, %v5972
    %v7653 = vpack.c.b16 %v5989, %v5973
    %v7654 = vpack.c.b16 %v5990, %v5974
    %v7655 = vpack.c.b16 %v5991, %v5975
    %v7656 = vpack.c.b16 %v5992, %v5976
    %v7657 = vpack.c.b16 %v5993, %v5977
    %v7658 = vpack.c.b16 %v5994, %v5978
    %v7659 = vpack.c.b16 %v5995, %v5979
    %v7660 = vpack.c.b16 %v6012, %v5996
    %v7661 = vpack.c.b16 %v6013, %v5997
    %v7662 = vpack.c.b16 %v6014, %v5998
    %v7663 = vpack.c.b16 %v6015, %v5999
    %v7664 = vpack.c.b16 %v6016, %v6000
    %v7665 = vpack.c.b16 %v6017, %v6001
    %v7666 = vpack.c.b16 %v6018, %v6002
    %v7667 = vpack.c.b16 %v6019, %v6003
    %v7668 = vpack.c.b16 %v6020, %v6004
    %v7669 = vpack.c.b16 %v6021, %v6005
    %v7670 = vpack.c.b16 %v6022, %v6006
    %v7671 = vpack.c.b16 %v6023, %v6007
    %v7672 = vpack.c.b16 %v6024, %v6008
    %v7673 = vpack.c.b16 %v6025, %v6009
    %v7674 = vpack.c.b16 %v6026, %v6010
    %v7675 = vpack.c.b16 %v6027, %v6011
    %v7676 = vpack.c.b16 %v6044, %v6028
    %v7677 = vpack.c.b16 %v6045, %v6029
    %v7678 = vpack.c.b16 %v6046, %v6030
    %v7679 = vpack.c.b16 %v6047, %v6031
    %v7680 = vpack.c.b16 %v6048, %v6032
    %v7681 = vpack.c.b16 %v6049, %v6033
    %v7682 = vpack.c.b16 %v6050, %v6034
    %v7683 = vpack.c.b16 %v6051, %v6035
    %v7684 = vpack.c.b16 %v6052, %v6036
    %v7685 = vpack.c.b16 %v6053, %v6037
    %v7686 = vpack.c.b16 %v6054, %v6038
    %v7687 = vpack.c.b16 %v6055, %v6039
    %v7688 = vpack.c.b16 %v6056, %v6040
    %v7689 = vpack.c.b16 %v6057, %v6041
    %v7690 = vpack.c.b16 %v6058, %v6042
    %v7691 = vpack.c.b16 %v6059, %v6043
    %v7692 = vpack.c.b16 %v6076, %v6060
    %v7693 = vpack.c.b16 %v6077, %v6061
    %v7694 = vpack.c.b16 %v6078, %v6062
    %v7695 = vpack.c.b16 %v6079, %v6063
    %v7696 = vpack.c.b16 %v6080, %v6064
    %v7697 = vpack.c.b16 %v6081, %v6065
    %v7698 = vpack.c.b16 %v6082, %v6066
    %v7699 = vpack.c.b16 %v6083, %v6067
    %v7700 = vpack.c.b16 %v6084, %v6068
    %v7701 = vpack.c.b16 %v6085, %v6069
    %v7702 = vpack.c.b16 %v6086, %v6070
    %v7703 = vpack.c.b16 %v6087, %v6071
    %v7704 = vpack.c.b16 %v6088, %v6072
    %v7705 = vpack.c.b16 %v6089, %v6073
    %v7706 = vpack.c.b16 %v6090, %v6074
    %v7707 = vpack.c.b16 %v6091, %v6075
    %v7708 = vpack.c.b16 %v6108, %v6092
    %v7709 = vpack.c.b16 %v6109, %v6093
    %v7710 = vpack.c.b16 %v6110, %v6094
    %v7711 = vpack.c.b16 %v6111, %v6095
    %v7712 = vpack.c.b16 %v6112, %v6096
    %v7713 = vpack.c.b16 %v6113, %v6097
    %v7714 = vpack.c.b16 %v6114, %v6098
    %v7715 = vpack.c.b16 %v6115, %v6099
    %v7716 = vpack.c.b16 %v6116, %v6100
    %v7717 = vpack.c.b16 %v6117, %v6101
    %v7718 = vpack.c.b16 %v6118, %v6102
    %v7719 = vpack.c.b16 %v6119, %v6103
    %v7720 = vpack.c.b16 %v6120, %v6104
    %v7721 = vpack.c.b16 %v6121, %v6105
    %v7722 = vpack.c.b16 %v6122, %v6106
    %v7723 = vpack.c.b16 %v6123, %v6107
    %v7724 = vpack.c.b16 %v6140, %v6124
    %v7725 = vpack.c.b16 %v6141, %v6125
    %v7726 = vpack.c.b16 %v6142, %v6126
    %v7727 = vpack.c.b16 %v6143, %v6127
    %v7728 = vpack.c.b16 %v6144, %v6128
    %v7729 = vpack.c.b16 %v6145, %v6129
    %v7730 = vpack.c.b16 %v6146, %v6130
    %v7731 = vpack.c.b16 %v6147, %v6131
    %v7732 = vpack.c.b16 %v6148, %v6132
    %v7733 = vpack.c.b16 %v6149, %v6133
    %v7734 = vpack.c.b16 %v6150, %v6134
    %v7735 = vpack.c.b16 %v6151, %v6135
    %v7736 = vpack.c.b16 %v6152, %v6136
    %v7737 = vpack.c.b16 %v6153, %v6137
    %v7738 = vpack.c.b16 %v6154, %v6138
    %v7739 = vpack.c.b16 %v6155, %v6139
    %v7740 = vpack.c.b16 %v6172, %v6156
    %v7741 = vpack.c.b16 %v6173, %v6157
    %v7742 = vpack.c.b16 %v6174, %v6158
    %v7743 = vpack.c.b16 %v6175, %v6159
    %v7744 = vpack.c.b16 %v6176, %v6160
    %v7745 = vpack.c.b16 %v6177, %v6161
    %v7746 = vpack.c.b16 %v6178, %v6162
    %v7747 = vpack.c.b16 %v6179, %v6163
    %v7748 = vpack.c.b16 %v6180, %v6164
    %v7749 = vpack.c.b16 %v6181, %v6165
    %v7750 = vpack.c.b16 %v6182, %v6166
    %v7751 = vpack.c.b16 %v6183, %v6167
    %v7752 = vpack.c.b16 %v6184, %v6168
    %v7753 = vpack.c.b16 %v6185, %v6169
    %v7754 = vpack.c.b16 %v6186, %v6170
    %v7755 = vpack.c.b16 %v6187, %v6171
    %v7756 = vpack.c.b16 %v6204, %v6188
    %v7757 = vpack.c.b16 %v6205, %v6189
    %v7758 = vpack.c.b16 %v6206, %v6190
    %v7759 = vpack.c.b16 %v6207, %v6191
    %v7760 = vpack.c.b16 %v6208, %v6192
    %v7761 = vpack.c.b16 %v6209, %v6193
    %v7762 = vpack.c.b16 %v6210, %v6194
    %v7763 = vpack.c.b16 %v6211, %v6195
    %v7764 = vpack.c.b16 %v6212, %v6196
    %v7765 = vpack.c.b16 %v6213, %v6197
    %v7766 = vpack.c.b16 %v6214, %v6198
    %v7767 = vpack.c.b16 %v6215, %v6199
    %v7768 = vpack.c.b16 %v6216, %v6200
    %v7769 = vpack.c.b16 %v6217, %v6201
    %v7770 = vpack.c.b16 %v6218, %v6202
    %v7771 = vpack.c.b16 %v6219, %v6203
    %v7772 = vpack.c.b16 %v6236, %v6220
    %v7773 = vpack.c.b16 %v6237, %v6221
    %v7774 = vpack.c.b16 %v6238, %v6222
    %v7775 = vpack.c.b16 %v6239, %v6223
    %v7776 = vpack.c.b16 %v6240, %v6224
    %v7777 = vpack.c.b16 %v6241, %v6225
    %v7778 = vpack.c.b16 %v6242, %v6226
    %v7779 = vpack.c.b16 %v6243, %v6227
    %v7780 = vpack.c.b16 %v6244, %v6228
    %v7781 = vpack.c.b16 %v6245, %v6229
    %v7782 = vpack.c.b16 %v6246, %v6230
    %v7783 = vpack.c.b16 %v6247, %v6231
    %v7784 = vpack.c.b16 %v6248, %v6232
    %v7785 = vpack.c.b16 %v6249, %v6233
    %v7786 = vpack.c.b16 %v6250, %v6234
    %v7787 = vpack.c.b16 %v6251, %v6235
    %v7788 = vpack.c.b16 %v6268, %v6252
    %v7789 = vpack.c.b16 %v6269, %v6253
    %v7790 = vpack.c.b16 %v6270, %v6254
    %v7791 = vpack.c.b16 %v6271, %v6255
    %v7792 = vpack.c.b16 %v6272, %v6256
    %v7793 = vpack.c.b16 %v6273, %v6257
    %v7794 = vpack.c.b16 %v6274, %v6258
    %v7795 = vpack.c.b16 %v6275, %v6259
    %v7796 = vpack.c.b16 %v6276, %v6260
    %v7797 = vpack.c.b16 %v6277, %v6261
    %v7798 = vpack.c.b16 %v6278, %v6262
    %v7799 = vpack.c.b16 %v6279, %v6263
    %v7800 = vpack.c.b16 %v6280, %v6264
    %v7801 = vpack.c.b16 %v6281, %v6265
    %v7802 = vpack.c.b16 %v6282, %v6266
    %v7803 = vpack.c.b16 %v6283, %v6267
    %v7804 = vpack.c.b16 %v6300, %v6284
    %v7805 = vpack.c.b16 %v6301, %v6285
    %v7806 = vpack.c.b16 %v6302, %v6286
    %v7807 = vpack.c.b16 %v6303, %v6287
    %v7808 = vpack.c.b16 %v6304, %v6288
    %v7809 = vpack.c.b16 %v6305, %v6289
    %v7810 = vpack.c.b16 %v6306, %v6290
    %v7811 = vpack.c.b16 %v6307, %v6291
    %v7812 = vpack.c.b16 %v6308, %v6292
    %v7813 = vpack.c.b16 %v6309, %v6293
    %v7814 = vpack.c.b16 %v6310, %v6294
    %v7815 = vpack.c.b16 %v6311, %v6295
    %v7816 = vpack.c.b16 %v6312, %v6296
    %v7817 = vpack.c.b16 %v6313, %v6297
    %v7818 = vpack.c.b16 %v6314, %v6298
    %v7819 = vpack.c.b16 %v6315, %v6299
    %v7820 = vpack.c.b16 %v6332, %v6316
    %v7821 = vpack.c.b16 %v6333, %v6317
    %v7822 = vpack.c.b16 %v6334, %v6318
    %v7823 = vpack.c.b16 %v6335, %v6319
    %v7824 = vpack.c.b16 %v6336, %v6320
    %v7825 = vpack.c.b16 %v6337, %v6321
    %v7826 = vpack.c.b16 %v6338, %v6322
    %v7827 = vpack.c.b16 %v6339, %v6323
    %v7828 = vpack.c.b16 %v6340, %v6324
    %v7829 = vpack.c.b16 %v6341, %v6325
    %v7830 = vpack.c.b16 %v6342, %v6326
    %v7831 = vpack.c.b16 %v6343, %v6327
    %v7832 = vpack.c.b16 %v6344, %v6328
    %v7833 = vpack.c.b16 %v6345, %v6329
    %v7834 = vpack.c.b16 %v6346, %v6330
    %v7835 = vpack.c.b16 %v6347, %v6331
    %v7836 = vpack.c.b16 %v6364, %v6348
    %v7837 = vpack.c.b16 %v6365, %v6349
    %v7838 = vpack.c.b16 %v6366, %v6350
    %v7839 = vpack.c.b16 %v6367, %v6351
    %v7840 = vpack.c.b16 %v6368, %v6352
    %v7841 = vpack.c.b16 %v6369, %v6353
    %v7842 = vpack.c.b16 %v6370, %v6354
    %v7843 = vpack.c.b16 %v6371, %v6355
    %v7844 = vpack.c.b16 %v6372, %v6356
    %v7845 = vpack.c.b16 %v6373, %v6357
    %v7846 = vpack.c.b16 %v6374, %v6358
    %v7847 = vpack.c.b16 %v6375, %v6359
    %v7848 = vpack.c.b16 %v6376, %v6360
    %v7849 = vpack.c.b16 %v6377, %v6361
    %v7850 = vpack.c.b16 %v6378, %v6362
    %v7851 = vpack.c.b16 %v6379, %v6363
    %v7852 = vpack.c.b16 %v6396, %v6380
    %v7853 = vpack.c.b16 %v6397, %v6381
    %v7854 = vpack.c.b16 %v6398, %v6382
    %v7855 = vpack.c.b16 %v6399, %v6383
    %v7856 = vpack.c.b16 %v6400, %v6384
    %v7857 = vpack.c.b16 %v6401, %v6385
    %v7858 = vpack.c.b16 %v6402, %v6386
    %v7859 = vpack.c.b16 %v6403, %v6387
    %v7860 = vpack.c.b16 %v6404, %v6388
    %v7861 = vpack.c.b16 %v6405, %v6389
    %v7862 = vpack.c.b16 %v6406, %v6390
    %v7863 = vpack.c.b16 %v6407, %v6391
    %v7864 = vpack.c.b16 %v6408, %v6392
    %v7865 = vpack.c.b16 %v6409, %v6393
    %v7866 = vpack.c.b16 %v6410, %v6394
    %v7867 = vpack.c.b16 %v6411, %v6395
    %v7868 = vpack.c.b16 %v6428, %v6412
    %v7869 = vpack.c.b16 %v6429, %v6413
    %v7870 = vpack.c.b16 %v6430, %v6414
    %v7871 = vpack.c.b16 %v6431, %v6415
    %v7872 = vpack.c.b16 %v6432, %v6416
    %v7873 = vpack.c.b16 %v6433, %v6417
    %v7874 = vpack.c.b16 %v6434, %v6418
    %v7875 = vpack.c.b16 %v6435, %v6419
    %v7876 = vpack.c.b16 %v6436, %v6420
    %v7877 = vpack.c.b16 %v6437, %v6421
    %v7878 = vpack.c.b16 %v6438, %v6422
    %v7879 = vpack.c.b16 %v6439, %v6423
    %v7880 = vpack.c.b16 %v6440, %v6424
    %v7881 = vpack.c.b16 %v6441, %v6425
    %v7882 = vpack.c.b16 %v6442, %v6426
    %v7883 = vpack.c.b16 %v6443, %v6427
    %v7884 = vpack.c.b16 %v6460, %v6444
    %v7885 = vpack.c.b16 %v6461, %v6445
    %v7886 = vpack.c.b16 %v6462, %v6446
    %v7887 = vpack.c.b16 %v6463, %v6447
    %v7888 = vpack.c.b16 %v6464, %v6448
    %v7889 = vpack.c.b16 %v6465, %v6449
    %v7890 = vpack.c.b16 %v6466, %v6450
    %v7891 = vpack.c.b16 %v6467, %v6451
    %v7892 = vpack.c.b16 %v6468, %v6452
    %v7893 = vpack.c.b16 %v6469, %v6453
    %v7894 = vpack.c.b16 %v6470, %v6454
    %v7895 = vpack.c.b16 %v6471, %v6455
    %v7896 = vpack.c.b16 %v6472, %v6456
    %v7897 = vpack.c.b16 %v6473, %v6457
    %v7898 = vpack.c.b16 %v6474, %v6458
    %v7899 = vpack.c.b16 %v6475, %v6459
    %v7900 = vpack.c.b16 %v6492, %v6476
    %v7901 = vpack.c.b16 %v6493, %v6477
    %v7902 = vpack.c.b16 %v6494, %v6478
    %v7903 = vpack.c.b16 %v6495, %v6479
    %v7904 = vpack.c.b16 %v6496, %v6480
    %v7905 = vpack.c.b16 %v6497, %v6481
    %v7906 = vpack.c.b16 %v6498, %v6482
    %v7907 = vpack.c.b16 %v6499, %v6483
    %v7908 = vpack.c.b16 %v6500, %v6484
    %v7909 = vpack.c.b16 %v6501, %v6485
    %v7910 = vpack.c.b16 %v6502, %v6486
    %v7911 = vpack.c.b16 %v6503, %v6487
    %v7912 = vpack.c.b16 %v6504, %v6488
    %v7913 = vpack.c.b16 %v6505, %v6489
    %v7914 = vpack.c.b16 %v6506, %v6490
    %v7915 = vpack.c.b16 %v6507, %v6491
    %v7916 = vpack.c.b16 %v6524, %v6508
    %v7917 = vpack.c.b16 %v6525, %v6509
    %v7918 = vpack.c.b16 %v6526, %v6510
    %v7919 = vpack.c.b16 %v6527, %v6511
    %v7920 = vpack.c.b16 %v6528, %v6512
    %v7921 = vpack.c.b16 %v6529, %v6513
    %v7922 = vpack.c.b16 %v6530, %v6514
    %v7923 = vpack.c.b16 %v6531, %v6515
    %v7924 = vpack.c.b16 %v6532, %v6516
    %v7925 = vpack.c.b16 %v6533, %v6517
    %v7926 = vpack.c.b16 %v6534, %v6518
    %v7927 = vpack.c.b16 %v6535, %v6519
    %v7928 = vpack.c.b16 %v6536, %v6520
    %v7929 = vpack.c.b16 %v6537, %v6521
    %v7930 = vpack.c.b16 %v6538, %v6522
    %v7931 = vpack.c.b16 %v6539, %v6523
    %v7932 = vpack.c.b16 %v6556, %v6540
    %v7933 = vpack.c.b16 %v6557, %v6541
    %v7934 = vpack.c.b16 %v6558, %v6542
    %v7935 = vpack.c.b16 %v6559, %v6543
    %v7936 = vpack.c.b16 %v6560, %v6544
    %v7937 = vpack.c.b16 %v6561, %v6545
    %v7938 = vpack.c.b16 %v6562, %v6546
    %v7939 = vpack.c.b16 %v6563, %v6547
    %v7940 = vpack.c.b16 %v6564, %v6548
    %v7941 = vpack.c.b16 %v6565, %v6549
    %v7942 = vpack.c.b16 %v6566, %v6550
    %v7943 = vpack.c.b16 %v6567, %v6551
    %v7944 = vpack.c.b16 %v6568, %v6552
    %v7945 = vpack.c.b16 %v6569, %v6553
    %v7946 = vpack.c.b16 %v6570, %v6554
    %v7947 = vpack.c.b16 %v6571, %v6555
    %v7948 = vpack.c.b16 %v6588, %v6572
    %v7949 = vpack.c.b16 %v6589, %v6573
    %v7950 = vpack.c.b16 %v6590, %v6574
    %v7951 = vpack.c.b16 %v6591, %v6575
    %v7952 = vpack.c.b16 %v6592, %v6576
    %v7953 = vpack.c.b16 %v6593, %v6577
    %v7954 = vpack.c.b16 %v6594, %v6578
    %v7955 = vpack.c.b16 %v6595, %v6579
    %v7956 = vpack.c.b16 %v6596, %v6580
    %v7957 = vpack.c.b16 %v6597, %v6581
    %v7958 = vpack.c.b16 %v6598, %v6582
    %v7959 = vpack.c.b16 %v6599, %v6583
    %v7960 = vpack.c.b16 %v6600, %v6584
    %v7961 = vpack.c.b16 %v6601, %v6585
    %v7962 = vpack.c.b16 %v6602, %v6586
    %v7963 = vpack.c.b16 %v6603, %v6587
    %v7964 = vpack.c.b16 %v6620, %v6604
    %v7965 = vpack.c.b16 %v6621, %v6605
    %v7966 = vpack.c.b16 %v6622, %v6606
    %v7967 = vpack.c.b16 %v6623, %v6607
    %v7968 = vpack.c.b16 %v6624, %v6608
    %v7969 = vpack.c.b16 %v6625, %v6609
    %v7970 = vpack.c.b16 %v6626, %v6610
    %v7971 = vpack.c.b16 %v6627, %v6611
    %v7972 = vpack.c.b16 %v6628, %v6612
    %v7973 = vpack.c.b16 %v6629, %v6613
    %v7974 = vpack.c.b16 %v6630, %v6614
    %v7975 = vpack.c.b16 %v6631, %v6615
    %v7976 = vpack.c.b16 %v6632, %v6616
    %v7977 = vpack.c.b16 %v6633, %v6617
    %v7978 = vpack.c.b16 %v6634, %v6618
    %v7979 = vpack.c.b16 %v6635, %v6619
    %v7980 = vpack.c.b16 %v6652, %v6636
    %v7981 = vpack.c.b16 %v6653, %v6637
    %v7982 = vpack.c.b16 %v6654, %v6638
    %v7983 = vpack.c.b16 %v6655, %v6639
    %v7984 = vpack.c.b16 %v6656, %v6640
    %v7985 = vpack.c.b16 %v6657, %v6641
    %v7986 = vpack.c.b16 %v6658, %v6642
    %v7987 = vpack.c.b16 %v6659, %v6643
    %v7988 = vpack.c.b16 %v6660, %v6644
    %v7989 = vpack.c.b16 %v6661, %v6645
    %v7990 = vpack.c.b16 %v6662, %v6646
    %v7991 = vpack.c.b16 %v6663, %v6647
    %v7992 = vpack.c.b16 %v6664, %v6648
    %v7993 = vpack.c.b16 %v6665, %v6649
    %v7994 = vpack.c.b16 %v6666, %v6650
    %v7995 = vpack.c.b16 %v6667, %v6651
    %v7996 = vpack.c.b16 %v6684, %v6668
    %v7997 = vpack.c.b16 %v6685, %v6669
    %v7998 = vpack.c.b16 %v6686, %v6670
    %v7999 = vpack.c.b16 %v6687, %v6671
    %v8000 = vpack.c.b16 %v6688, %v6672
    %v8001 = vpack.c.b16 %v6689, %v6673
    %v8002 = vpack.c.b16 %v6690, %v6674
    %v8003 = vpack.c.b16 %v6691, %v6675
    %v8004 = vpack.c.b16 %v6692, %v6676
    %v8005 = vpack.c.b16 %v6693, %v6677
    %v8006 = vpack.c.b16 %v6694, %v6678
    %v8007 = vpack.c.b16 %v6695, %v6679
    %v8008 = vpack.c.b16 %v6696, %v6680
    %v8009 = vpack.c.b16 %v6697, %v6681
    %v8010 = vpack.c.b16 %v6698, %v6682
    %v8011 = vpack.c.b16 %v6699, %v6683
    %v8012 = vpack.c.b16 %v6716, %v6700
    %v8013 = vpack.c.b16 %v6717, %v6701
    %v8014 = vpack.c.b16 %v6718, %v6702
    %v8015 = vpack.c.b16 %v6719, %v6703
    %v8016 = vpack.c.b16 %v6720, %v6704
    %v8017 = vpack.c.b16 %v6721, %v6705
    %v8018 = vpack.c.b16 %v6722, %v6706
    %v8019 = vpack.c.b16 %v6723, %v6707
    %v8020 = vpack.c.b16 %v6724, %v6708
    %v8021 = vpack.c.b16 %v6725, %v6709
    %v8022 = vpack.c.b16 %v6726, %v6710
    %v8023 = vpack.c.b16 %v6727, %v6711
    %v8024 = vpack.c.b16 %v6728, %v6712
    %v8025 = vpack.c.b16 %v6729, %v6713
    %v8026 = vpack.c.b16 %v6730, %v6714
    %v8027 = vpack.c.b16 %v6731, %v6715
    %v8028 = vpack.c.b16 %v6748, %v6732
    %v8029 = vpack.c.b16 %v6749, %v6733
    %v8030 = vpack.c.b16 %v6750, %v6734
    %v8031 = vpack.c.b16 %v6751, %v6735
    %v8032 = vpack.c.b16 %v6752, %v6736
    %v8033 = vpack.c.b16 %v6753, %v6737
    %v8034 = vpack.c.b16 %v6754, %v6738
    %v8035 = vpack.c.b16 %v6755, %v6739
    %v8036 = vpack.c.b16 %v6756, %v6740
    %v8037 = vpack.c.b16 %v6757, %v6741
    %v8038 = vpack.c.b16 %v6758, %v6742
    %v8039 = vpack.c.b16 %v6759, %v6743
    %v8040 = vpack.c.b16 %v6760, %v6744
    %v8041 = vpack.c.b16 %v6761, %v6745
    %v8042 = vpack.c.b16 %v6762, %v6746
    %v8043 = vpack.c.b16 %v6763, %v6747
    %v8044 = vpack.c.b16 %v6780, %v6764
    %v8045 = vpack.c.b16 %v6781, %v6765
    %v8046 = vpack.c.b16 %v6782, %v6766
    %v8047 = vpack.c.b16 %v6783, %v6767
    %v8048 = vpack.c.b16 %v6784, %v6768
    %v8049 = vpack.c.b16 %v6785, %v6769
    %v8050 = vpack.c.b16 %v6786, %v6770
    %v8051 = vpack.c.b16 %v6787, %v6771
    %v8052 = vpack.c.b16 %v6788, %v6772
    %v8053 = vpack.c.b16 %v6789, %v6773
    %v8054 = vpack.c.b16 %v6790, %v6774
    %v8055 = vpack.c.b16 %v6791, %v6775
    %v8056 = vpack.c.b16 %v6792, %v6776
    %v8057 = vpack.c.b16 %v6793, %v6777
    %v8058 = vpack.c.b16 %v6794, %v6778
    %v8059 = vpack.c.b16 %v6795, %v6779
    %v8060 = vpack.c.b16 %v6812, %v6796
    %v8061 = vpack.c.b16 %v6813, %v6797
    %v8062 = vpack.c.b16 %v6814, %v6798
    %v8063 = vpack.c.b16 %v6815, %v6799
    %v8064 = vpack.c.b16 %v6816, %v6800
    %v8065 = vpack.c.b16 %v6817, %v6801
    %v8066 = vpack.c.b16 %v6818, %v6802
    %v8067 = vpack.c.b16 %v6819, %v6803
    %v8068 = vpack.c.b16 %v6820, %v6804
    %v8069 = vpack.c.b16 %v6821, %v6805
    %v8070 = vpack.c.b16 %v6822, %v6806
    %v8071 = vpack.c.b16 %v6823, %v6807
    %v8072 = vpack.c.b16 %v6824, %v6808
    %v8073 = vpack.c.b16 %v6825, %v6809
    %v8074 = vpack.c.b16 %v6826, %v6810
    %v8075 = vpack.c.b16 %v6827, %v6811
    %v8076 = vpack.c.b16 %v6844, %v6828
    %v8077 = vpack.c.b16 %v6845, %v6829
    %v8078 = vpack.c.b16 %v6846, %v6830
    %v8079 = vpack.c.b16 %v6847, %v6831
    %v8080 = vpack.c.b16 %v6848, %v6832
    %v8081 = vpack.c.b16 %v6849, %v6833
    %v8082 = vpack.c.b16 %v6850, %v6834
    %v8083 = vpack.c.b16 %v6851, %v6835
    %v8084 = vpack.c.b16 %v6852, %v6836
    %v8085 = vpack.c.b16 %v6853, %v6837
    %v8086 = vpack.c.b16 %v6854, %v6838
    %v8087 = vpack.c.b16 %v6855, %v6839
    %v8088 = vpack.c.b16 %v6856, %v6840
    %v8089 = vpack.c.b16 %v6857, %v6841
    %v8090 = vpack.c.b16 %v6858, %v6842
    %v8091 = vpack.c.b16 %v6859, %v6843
    %v8092 = vpack.c.b16 %v6876, %v6860
    %v8093 = vpack.c.b16 %v6877, %v6861
    %v8094 = vpack.c.b16 %v6878, %v6862
    %v8095 = vpack.c.b16 %v6879, %v6863
    %v8096 = vpack.c.b16 %v6880, %v6864
    %v8097 = vpack.c.b16 %v6881, %v6865
    %v8098 = vpack.c.b16 %v6882, %v6866
    %v8099 = vpack.c.b16 %v6883, %v6867
    %v8100 = vpack.c.b16 %v6884, %v6868
    %v8101 = vpack.c.b16 %v6885, %v6869
    %v8102 = vpack.c.b16 %v6886, %v6870
    %v8103 = vpack.c.b16 %v6887, %v6871
    %v8104 = vpack.c.b16 %v6888, %v6872
    %v8105 = vpack.c.b16 %v6889, %v6873
    %v8106 = vpack.c.b16 %v6890, %v6874
    %v8107 = vpack.c.b16 %v6891, %v6875
    %v8108 = vpack.c.b16 %v6908, %v6892
    %v8109 = vpack.c.b16 %v6909, %v6893
    %v8110 = vpack.c.b16 %v6910, %v6894
    %v8111 = vpack.c.b16 %v6911, %v6895
    %v8112 = vpack.c.b16 %v6912, %v6896
    %v8113 = vpack.c.b16 %v6913, %v6897
    %v8114 = vpack.c.b16 %v6914, %v6898
    %v8115 = vpack.c.b16 %v6915, %v6899
    %v8116 = vpack.c.b16 %v6916, %v6900
    %v8117 = vpack.c.b16 %v6917, %v6901
    %v8118 = vpack.c.b16 %v6918, %v6902
    %v8119 = vpack.c.b16 %v6919, %v6903
    %v8120 = vpack.c.b16 %v6920, %v6904
    %v8121 = vpack.c.b16 %v6921, %v6905
    %v8122 = vpack.c.b16 %v6922, %v6906
    %v8123 = vpack.c.b16 %v6923, %v6907
    %v8124 = vpack.c.b16 %v6940, %v6924
    %v8125 = vpack.c.b16 %v6941, %v6925
    %v8126 = vpack.c.b16 %v6942, %v6926
    %v8127 = vpack.c.b16 %v6943, %v6927
    %v8128 = vpack.c.b16 %v6944, %v6928
    %v8129 = vpack.c.b16 %v6945, %v6929
    %v8130 = vpack.c.b16 %v6946, %v6930
    %v8131 = vpack.c.b16 %v6947, %v6931
    %v8132 = vpack.c.b16 %v6948, %v6932
    %v8133 = vpack.c.b16 %v6949, %v6933
    %v8134 = vpack.c.b16 %v6950, %v6934
    %v8135 = vpack.c.b16 %v6951, %v6935
    %v8136 = vpack.c.b16 %v6952, %v6936
    %v8137 = vpack.c.b16 %v6953, %v6937
    %v8138 = vpack.c.b16 %v6954, %v6938
    %v8139 = vpack.c.b16 %v6955, %v6939
    %v8140 = vpack.c.b16 %v6972, %v6956
    %v8141 = vpack.c.b16 %v6973, %v6957
    %v8142 = vpack.c.b16 %v6974, %v6958
    %v8143 = vpack.c.b16 %v6975, %v6959
    %v8144 = vpack.c.b16 %v6976, %v6960
    %v8145 = vpack.c.b16 %v6977, %v6961
    %v8146 = vpack.c.b16 %v6978, %v6962
    %v8147 = vpack.c.b16 %v6979, %v6963
    %v8148 = vpack.c.b16 %v6980, %v6964
    %v8149 = vpack.c.b16 %v6981, %v6965
    %v8150 = vpack.c.b16 %v6982, %v6966
    %v8151 = vpack.c.b16 %v6983, %v6967
    %v8152 = vpack.c.b16 %v6984, %v6968
    %v8153 = vpack.c.b16 %v6985, %v6969
    %v8154 = vpack.c.b16 %v6986, %v6970
    %v8155 = vpack.c.b16 %v6987, %v6971
    %v8156 = vpack.c.b16 %v7004, %v6988
    %v8157 = vpack.c.b16 %v7005, %v6989
    %v8158 = vpack.c.b16 %v7006, %v6990
    %v8159 = vpack.c.b16 %v7007, %v6991
    %v8160 = vpack.c.b16 %v7008, %v6992
    %v8161 = vpack.c.b16 %v7009, %v6993
    %v8162 = vpack.c.b16 %v7010, %v6994
    %v8163 = vpack.c.b16 %v7011, %v6995
    %v8164 = vpack.c.b16 %v7012, %v6996
    %v8165 = vpack.c.b16 %v7013, %v6997
    %v8166 = vpack.c.b16 %v7014, %v6998
    %v8167 = vpack.c.b16 %v7015, %v6999
    %v8168 = vpack.c.b16 %v7016, %v7000
    %v8169 = vpack.c.b16 %v7017, %v7001
    %v8170 = vpack.c.b16 %v7018, %v7002
    %v8171 = vpack.c.b16 %v7019, %v7003
    %v8172 = vpack.c.b16 %v7036, %v7020
    %v8173 = vpack.c.b16 %v7037, %v7021
    %v8174 = vpack.c.b16 %v7038, %v7022
    %v8175 = vpack.c.b16 %v7039, %v7023
    %v8176 = vpack.c.b16 %v7040, %v7024
    %v8177 = vpack.c.b16 %v7041, %v7025
    %v8178 = vpack.c.b16 %v7042, %v7026
    %v8179 = vpack.c.b16 %v7043, %v7027
    %v8180 = vpack.c.b16 %v7044, %v7028
    %v8181 = vpack.c.b16 %v7045, %v7029
    %v8182 = vpack.c.b16 %v7046, %v7030
    %v8183 = vpack.c.b16 %v7047, %v7031
    %v8184 = vpack.c.b16 %v7048, %v7032
    %v8185 = vpack.c.b16 %v7049, %v7033
    %v8186 = vpack.c.b16 %v7050, %v7034
    %v8187 = vpack.c.b16 %v7051, %v7035
    %v8188 = vpack.c.b16 %v7068, %v7052
    %v8189 = vpack.c.b16 %v7069, %v7053
    %v8190 = vpack.c.b16 %v7070, %v7054
    %v8191 = vpack.c.b16 %v7071, %v7055
    %v8192 = vpack.c.b16 %v7072, %v7056
    %v8193 = vpack.c.b16 %v7073, %v7057
    %v8194 = vpack.c.b16 %v7074, %v7058
    %v8195 = vpack.c.b16 %v7075, %v7059
    %v8196 = vpack.c.b16 %v7076, %v7060
    %v8197 = vpack.c.b16 %v7077, %v7061
    %v8198 = vpack.c.b16 %v7078, %v7062
    %v8199 = vpack.c.b16 %v7079, %v7063
    %v8200 = vpack.c.b16 %v7080, %v7064
    %v8201 = vpack.c.b16 %v7081, %v7065
    %v8202 = vpack.c.b16 %v7082, %v7066
    %v8203 = vpack.c.b16 %v7083, %v7067
    %v8204 = vpack.c.b16 %v7100, %v7084
    %v8205 = vpack.c.b16 %v7101, %v7085
    %v8206 = vpack.c.b16 %v7102, %v7086
    %v8207 = vpack.c.b16 %v7103, %v7087
    %v8208 = vpack.c.b16 %v7104, %v7088
    %v8209 = vpack.c.b16 %v7105, %v7089
    %v8210 = vpack.c.b16 %v7106, %v7090
    %v8211 = vpack.c.b16 %v7107, %v7091
    %v8212 = vpack.c.b16 %v7108, %v7092
    %v8213 = vpack.c.b16 %v7109, %v7093
    %v8214 = vpack.c.b16 %v7110, %v7094
    %v8215 = vpack.c.b16 %v7111, %v7095
    %v8216 = vpack.c.b16 %v7112, %v7096
    %v8217 = vpack.c.b16 %v7113, %v7097
    %v8218 = vpack.c.b16 %v7114, %v7098
    %v8219 = vpack.c.b16 %v7115, %v7099
    %v8220 = vpack.c.b16 %v7132, %v7116
    %v8221 = vpack.c.b16 %v7133, %v7117
    %v8222 = vpack.c.b16 %v7134, %v7118
    %v8223 = vpack.c.b16 %v7135, %v7119
    %v8224 = vpack.c.b16 %v7136, %v7120
    %v8225 = vpack.c.b16 %v7137, %v7121
    %v8226 = vpack.c.b16 %v7138, %v7122
    %v8227 = vpack.c.b16 %v7139, %v7123
    %v8228 = vpack.c.b16 %v7140, %v7124
    %v8229 = vpack.c.b16 %v7141, %v7125
    %v8230 = vpack.c.b16 %v7142, %v7126
    %v8231 = vpack.c.b16 %v7143, %v7127
    %v8232 = vpack.c.b16 %v7144, %v7128
    %v8233 = vpack.c.b16 %v7145, %v7129
    %v8234 = vpack.c.b16 %v7146, %v7130
    %v8235 = vpack.c.b16 %v7147, %v7131
    %v8236 = vpack.c.b16 %v7164, %v7148
    %v8237 = vpack.c.b16 %v7165, %v7149
    %v8238 = vpack.c.b16 %v7166, %v7150
    %v8239 = vpack.c.b16 %v7167, %v7151
    %v8240 = vpack.c.b16 %v7168, %v7152
    %v8241 = vpack.c.b16 %v7169, %v7153
    %v8242 = vpack.c.b16 %v7170, %v7154
    %v8243 = vpack.c.b16 %v7171, %v7155
    %v8244 = vpack.c.b16 %v7172, %v7156
    %v8245 = vpack.c.b16 %v7173, %v7157
    %v8246 = vpack.c.b16 %v7174, %v7158
    %v8247 = vpack.c.b16 %v7175, %v7159
    %v8248 = vpack.c.b16 %v7176, %v7160
    %v8249 = vpack.c.b16 %v7177, %v7161
    %v8250 = vpack.c.b16 %v7178, %v7162
    %v8251 = vpack.c.b16 %v7179, %v7163
    %v8252 = vpack.c.b16 %v7196, %v7180
    %v8253 = vpack.c.b16 %v7197, %v7181
    %v8254 = vpack.c.b16 %v7198, %v7182
    %v8255 = vpack.c.b16 %v7199, %v7183
    %v8256 = vpack.c.b16 %v7200, %v7184
    %v8257 = vpack.c.b16 %v7201, %v7185
    %v8258 = vpack.c.b16 %v7202, %v7186
    %v8259 = vpack.c.b16 %v7203, %v7187
    %v8260 = vpack.c.b16 %v7204, %v7188
    %v8261 = vpack.c.b16 %v7205, %v7189
    %v8262 = vpack.c.b16 %v7206, %v7190
    %v8263 = vpack.c.b16 %v7207, %v7191
    %v8264 = vpack.c.b16 %v7208, %v7192
    %v8265 = vpack.c.b16 %v7209, %v7193
    %v8266 = vpack.c.b16 %v7210, %v7194
    %v8267 = vpack.c.b16 %v7211, %v7195
    %v8268 = vpack.c.b16 %v7228, %v7212
    %v8269 = vpack.c.b16 %v7229, %v7213
    %v8270 = vpack.c.b16 %v7230, %v7214
    %v8271 = vpack.c.b16 %v7231, %v7215
    %v8272 = vpack.c.b16 %v7232, %v7216
    %v8273 = vpack.c.b16 %v7233, %v7217
    %v8274 = vpack.c.b16 %v7234, %v7218
    %v8275 = vpack.c.b16 %v7235, %v7219
    %v8276 = vpack.c.b16 %v7236, %v7220
    %v8277 = vpack.c.b16 %v7237, %v7221
    %v8278 = vpack.c.b16 %v7238, %v7222
    %v8279 = vpack.c.b16 %v7239, %v7223
    %v8280 = vpack.c.b16 %v7240, %v7224
    %v8281 = vpack.c.b16 %v7241, %v7225
    %v8282 = vpack.c.b16 %v7242, %v7226
    %v8283 = vpack.c.b16 %v7243, %v7227
    %v8284 = vpack.c.b16 %v7260, %v7244
    %v8285 = vpack.c.b16 %v7261, %v7245
    %v8286 = vpack.c.b16 %v7262, %v7246
    %v8287 = vpack.c.b16 %v7263, %v7247
    %v8288 = vpack.c.b16 %v7264, %v7248
    %v8289 = vpack.c.b16 %v7265, %v7249
    %v8290 = vpack.c.b16 %v7266, %v7250
    %v8291 = vpack.c.b16 %v7267, %v7251
    %v8292 = vpack.c.b16 %v7268, %v7252
    %v8293 = vpack.c.b16 %v7269, %v7253
    %v8294 = vpack.c.b16 %v7270, %v7254
    %v8295 = vpack.c.b16 %v7271, %v7255
    %v8296 = vpack.c.b16 %v7272, %v7256
    %v8297 = vpack.c.b16 %v7273, %v7257
    %v8298 = vpack.c.b16 %v7274, %v7258
    %v8299 = vpack.c.b16 %v7275, %v7259
    %9324 = vmatpush.bf16.msra.mxu0 %v7388
    %9325 = vmatpush.bf16.msra.mxu0 %v7372
    %9326 = vmatpush.bf16.msra.mxu0 %v7356
    %9327 = vmatpush.bf16.msra.mxu0 %v7340
    %9328 = vmatpush.bf16.msra.mxu0 %v7324
    %9329 = vmatpush.bf16.msra.mxu0 %v7308
    %9330 = vmatpush.bf16.msra.mxu0 %v7292
    %9331 = vmatpush.bf16.msra.mxu0 %v7276
    %9332 = vmatmul.bf16.gmra.mxu0 %v4196
    %v9333 = vpop.f32.mrf.mxu0
    %v9334 = vadd.f32 0.0, %v9333
    %v9335 = vpop.f32.mrf.mxu0
    %9336 = vdwg.mxu0
    %9337 = vmatpush.bf16.msra.mxu0 %v7516
    %9338 = vmatpush.bf16.msra.mxu0 %v7500
    %9339 = vmatpush.bf16.msra.mxu0 %v7484
    %9340 = vmatpush.bf16.msra.mxu0 %v7468
    %9341 = vmatpush.bf16.msra.mxu0 %v7452
    %9342 = vmatpush.bf16.msra.mxu0 %v7436
    %9343 = vmatpush.bf16.msra.mxu0 %v7420
    %9344 = vmatpush.bf16.msra.mxu0 %v7404
    %9345 = vmatmul.bf16.gmra.mxu0 %v4197
    %v9346 = vpop.f32.mrf.mxu0
    %v9347 = vadd.f32 %v9334, %v9346
    %v9348 = vpop.f32.mrf.mxu0
    %9349 = vdwg.mxu0
    %9350 = vmatpush.bf16.msra.mxu0 %v7644
    %9351 = vmatpush.bf16.msra.mxu0 %v7628
    %9352 = vmatpush.bf16.msra.mxu0 %v7612
    %9353 = vmatpush.bf16.msra.mxu0 %v7596
    %9354 = vmatpush.bf16.msra.mxu0 %v7580
    %9355 = vmatpush.bf16.msra.mxu0 %v7564
    %9356 = vmatpush.bf16.msra.mxu0 %v7548
    %9357 = vmatpush.bf16.msra.mxu0 %v7532
    %9358 = vmatmul.bf16.gmra.mxu0 %v4198
    %v9359 = vpop.f32.mrf.mxu0
    %v9360 = vadd.f32 %v9347, %v9359
    %v9361 = vpop.f32.mrf.mxu0
    %9362 = vdwg.mxu0
    %9363 = vmatpush.bf16.msra.mxu0 %v7772
    %9364 = vmatpush.bf16.msra.mxu0 %v7756
    %9365 = vmatpush.bf16.msra.mxu0 %v7740
    %9366 = vmatpush.bf16.msra.mxu0 %v7724
    %9367 = vmatpush.bf16.msra.mxu0 %v7708
    %9368 = vmatpush.bf16.msra.mxu0 %v7692
    %9369 = vmatpush.bf16.msra.mxu0 %v7676
    %9370 = vmatpush.bf16.msra.mxu0 %v7660
    %9371 = vmatmul.bf16.gmra.mxu0 %v4199
    %v9372 = vpop.f32.mrf.mxu0
    %v9373 = vadd.f32 %v9360, %v9372
    %v9374 = vpop.f32.mrf.mxu0
    %9375 = vdwg.mxu0
    %9376 = vmatpush.bf16.msra.mxu0 %v7900
    %9377 = vmatpush.bf16.msra.mxu0 %v7884
    %9378 = vmatpush.bf16.msra.mxu0 %v7868
    %9379 = vmatpush.bf16.msra.mxu0 %v7852
    %9380 = vmatpush.bf16.msra.mxu0 %v7836
    %9381 = vmatpush.bf16.msra.mxu0 %v7820
    %9382 = vmatpush.bf16.msra.mxu0 %v7804
    %9383 = vmatpush.bf16.msra.mxu0 %v7788
    %9384 = vmatmul.bf16.gmra.mxu0 %v4200
    %v9385 = vpop.f32.mrf.mxu0
    %v9386 = vadd.f32 %v9373, %v9385
    %v9387 = vpop.f32.mrf.mxu0
    %9388 = vdwg.mxu0
    %9389 = vmatpush.bf16.msra.mxu0 %v8028
    %9390 = vmatpush.bf16.msra.mxu0 %v8012
    %9391 = vmatpush.bf16.msra.mxu0 %v7996
    %9392 = vmatpush.bf16.msra.mxu0 %v7980
    %9393 = vmatpush.bf16.msra.mxu0 %v7964
    %9394 = vmatpush.bf16.msra.mxu0 %v7948
    %9395 = vmatpush.bf16.msra.mxu0 %v7932
    %9396 = vmatpush.bf16.msra.mxu0 %v7916
    %9397 = vmatmul.bf16.gmra.mxu0 %v4201
    %v9398 = vpop.f32.mrf.mxu0
    %v9399 = vadd.f32 %v9386, %v9398
    %v9400 = vpop.f32.mrf.mxu0
    %9401 = vdwg.mxu0
    %9402 = vmatpush.bf16.msra.mxu0 %v8156
    %9403 = vmatpush.bf16.msra.mxu0 %v8140
    %9404 = vmatpush.bf16.msra.mxu0 %v8124
    %9405 = vmatpush.bf16.msra.mxu0 %v8108
    %9406 = vmatpush.bf16.msra.mxu0 %v8092
    %9407 = vmatpush.bf16.msra.mxu0 %v8076
    %9408 = vmatpush.bf16.msra.mxu0 %v8060
    %9409 = vmatpush.bf16.msra.mxu0 %v8044
    %9410 = vmatmul.bf16.gmra.mxu0 %v4202
    %v9411 = vpop.f32.mrf.mxu0
    %v9412 = vadd.f32 %v9399, %v9411
    %v9413 = vpop.f32.mrf.mxu0
    %9414 = vdwg.mxu0
    %9415 = vmatpush.bf16.msra.mxu0 %v8284
    %9416 = vmatpush.bf16.msra.mxu0 %v8268
    %9417 = vmatpush.bf16.msra.mxu0 %v8252
    %9418 = vmatpush.bf16.msra.mxu0 %v8236
    %9419 = vmatpush.bf16.msra.mxu0 %v8220
    %9420 = vmatpush.bf16.msra.mxu0 %v8204
    %9421 = vmatpush.bf16.msra.mxu0 %v8188
    %9422 = vmatpush.bf16.msra.mxu0 %v8172
    %9423 = vmatmul.bf16.gmra.mxu0 %v4203
    %v9424 = vpop.f32.mrf.mxu0
    %v9425 = vadd.f32 %v9412, %v9424
    %v9426 = vpop.f32.mrf.mxu0
    %9427 = vdwg.mxu0
    %9428 = vmatpush.bf16.msra.mxu0 %v7389
    %9429 = vmatpush.bf16.msra.mxu0 %v7373
    %9430 = vmatpush.bf16.msra.mxu0 %v7357
    %9431 = vmatpush.bf16.msra.mxu0 %v7341
    %9432 = vmatpush.bf16.msra.mxu0 %v7325
    %9433 = vmatpush.bf16.msra.mxu0 %v7309
    %9434 = vmatpush.bf16.msra.mxu0 %v7293
    %9435 = vmatpush.bf16.msra.mxu0 %v7277
    %9436 = vmatmul.bf16.gmra.mxu0 %v4196
    %v9437 = vpop.f32.mrf.mxu0
    %v9438 = vadd.f32 0.0, %v9437
    %v9439 = vpop.f32.mrf.mxu0
    %9440 = vdwg.mxu0
    %9441 = vmatpush.bf16.msra.mxu0 %v7517
    %9442 = vmatpush.bf16.msra.mxu0 %v7501
    %9443 = vmatpush.bf16.msra.mxu0 %v7485
    %9444 = vmatpush.bf16.msra.mxu0 %v7469
    %9445 = vmatpush.bf16.msra.mxu0 %v7453
    %9446 = vmatpush.bf16.msra.mxu0 %v7437
    %9447 = vmatpush.bf16.msra.mxu0 %v7421
    %9448 = vmatpush.bf16.msra.mxu0 %v7405
    %9449 = vmatmul.bf16.gmra.mxu0 %v4197
    %v9450 = vpop.f32.mrf.mxu0
    %v9451 = vadd.f32 %v9438, %v9450
    %v9452 = vpop.f32.mrf.mxu0
    %9453 = vdwg.mxu0
    %9454 = vmatpush.bf16.msra.mxu0 %v7645
    %9455 = vmatpush.bf16.msra.mxu0 %v7629
    %9456 = vmatpush.bf16.msra.mxu0 %v7613
    %9457 = vmatpush.bf16.msra.mxu0 %v7597
    %9458 = vmatpush.bf16.msra.mxu0 %v7581
    %9459 = vmatpush.bf16.msra.mxu0 %v7565
    %9460 = vmatpush.bf16.msra.mxu0 %v7549
    %9461 = vmatpush.bf16.msra.mxu0 %v7533
    %9462 = vmatmul.bf16.gmra.mxu0 %v4198
    %v9463 = vpop.f32.mrf.mxu0
    %v9464 = vadd.f32 %v9451, %v9463
    %v9465 = vpop.f32.mrf.mxu0
    %9466 = vdwg.mxu0
    %9467 = vmatpush.bf16.msra.mxu0 %v7773
    %9468 = vmatpush.bf16.msra.mxu0 %v7757
    %9469 = vmatpush.bf16.msra.mxu0 %v7741
    %9470 = vmatpush.bf16.msra.mxu0 %v7725
    %9471 = vmatpush.bf16.msra.mxu0 %v7709
    %9472 = vmatpush.bf16.msra.mxu0 %v7693
    %9473 = vmatpush.bf16.msra.mxu0 %v7677
    %9474 = vmatpush.bf16.msra.mxu0 %v7661
    %9475 = vmatmul.bf16.gmra.mxu0 %v4199
    %v9476 = vpop.f32.mrf.mxu0
    %v9477 = vadd.f32 %v9464, %v9476
    %v9478 = vpop.f32.mrf.mxu0
    %9479 = vdwg.mxu0
    %9480 = vmatpush.bf16.msra.mxu0 %v7901
    %9481 = vmatpush.bf16.msra.mxu0 %v7885
    %9482 = vmatpush.bf16.msra.mxu0 %v7869
    %9483 = vmatpush.bf16.msra.mxu0 %v7853
    %9484 = vmatpush.bf16.msra.mxu0 %v7837
    %9485 = vmatpush.bf16.msra.mxu0 %v7821
    %9486 = vmatpush.bf16.msra.mxu0 %v7805
    %9487 = vmatpush.bf16.msra.mxu0 %v7789
    %9488 = vmatmul.bf16.gmra.mxu0 %v4200
    %v9489 = vpop.f32.mrf.mxu0
    %v9490 = vadd.f32 %v9477, %v9489
    %v9491 = vpop.f32.mrf.mxu0
    %9492 = vdwg.mxu0
    %9493 = vmatpush.bf16.msra.mxu0 %v8029
    %9494 = vmatpush.bf16.msra.mxu0 %v8013
    %9495 = vmatpush.bf16.msra.mxu0 %v7997
    %9496 = vmatpush.bf16.msra.mxu0 %v7981
    %9497 = vmatpush.bf16.msra.mxu0 %v7965
    %9498 = vmatpush.bf16.msra.mxu0 %v7949
    %9499 = vmatpush.bf16.msra.mxu0 %v7933
    %9500 = vmatpush.bf16.msra.mxu0 %v7917
    %9501 = vmatmul.bf16.gmra.mxu0 %v4201
    %v9502 = vpop.f32.mrf.mxu0
    %v9503 = vadd.f32 %v9490, %v9502
    %v9504 = vpop.f32.mrf.mxu0
    %9505 = vdwg.mxu0
    %9506 = vmatpush.bf16.msra.mxu0 %v8157
    %9507 = vmatpush.bf16.msra.mxu0 %v8141
    %9508 = vmatpush.bf16.msra.mxu0 %v8125
    %9509 = vmatpush.bf16.msra.mxu0 %v8109
    %9510 = vmatpush.bf16.msra.mxu0 %v8093
    %9511 = vmatpush.bf16.msra.mxu0 %v8077
    %9512 = vmatpush.bf16.msra.mxu0 %v8061
    %9513 = vmatpush.bf16.msra.mxu0 %v8045
    %9514 = vmatmul.bf16.gmra.mxu0 %v4202
    %v9515 = vpop.f32.mrf.mxu0
    %v9516 = vadd.f32 %v9503, %v9515
    %v9517 = vpop.f32.mrf.mxu0
    %9518 = vdwg.mxu0
    %9519 = vmatpush.bf16.msra.mxu0 %v8285
    %9520 = vmatpush.bf16.msra.mxu0 %v8269
    %9521 = vmatpush.bf16.msra.mxu0 %v8253
    %9522 = vmatpush.bf16.msra.mxu0 %v8237
    %9523 = vmatpush.bf16.msra.mxu0 %v8221
    %9524 = vmatpush.bf16.msra.mxu0 %v8205
    %9525 = vmatpush.bf16.msra.mxu0 %v8189
    %9526 = vmatpush.bf16.msra.mxu0 %v8173
    %9527 = vmatmul.bf16.gmra.mxu0 %v4203
    %v9528 = vpop.f32.mrf.mxu0
    %v9529 = vadd.f32 %v9516, %v9528
    %v9530 = vpop.f32.mrf.mxu0
    %9531 = vdwg.mxu0
    %9532 = vmatpush.bf16.msra.mxu0 %v7390
    %9533 = vmatpush.bf16.msra.mxu0 %v7374
    %9534 = vmatpush.bf16.msra.mxu0 %v7358
    %9535 = vmatpush.bf16.msra.mxu0 %v7342
    %9536 = vmatpush.bf16.msra.mxu0 %v7326
    %9537 = vmatpush.bf16.msra.mxu0 %v7310
    %9538 = vmatpush.bf16.msra.mxu0 %v7294
    %9539 = vmatpush.bf16.msra.mxu0 %v7278
    %9540 = vmatmul.bf16.gmra.mxu0 %v4196
    %v9541 = vpop.f32.mrf.mxu0
    %v9542 = vadd.f32 0.0, %v9541
    %v9543 = vpop.f32.mrf.mxu0
    %9544 = vdwg.mxu0
    %9545 = vmatpush.bf16.msra.mxu0 %v7518
    %9546 = vmatpush.bf16.msra.mxu0 %v7502
    %9547 = vmatpush.bf16.msra.mxu0 %v7486
    %9548 = vmatpush.bf16.msra.mxu0 %v7470
    %9549 = vmatpush.bf16.msra.mxu0 %v7454
    %9550 = vmatpush.bf16.msra.mxu0 %v7438
    %9551 = vmatpush.bf16.msra.mxu0 %v7422
    %9552 = vmatpush.bf16.msra.mxu0 %v7406
    %9553 = vmatmul.bf16.gmra.mxu0 %v4197
    %v9554 = vpop.f32.mrf.mxu0
    %v9555 = vadd.f32 %v9542, %v9554
    %v9556 = vpop.f32.mrf.mxu0
    %9557 = vdwg.mxu0
    %9558 = vmatpush.bf16.msra.mxu0 %v7646
    %9559 = vmatpush.bf16.msra.mxu0 %v7630
    %9560 = vmatpush.bf16.msra.mxu0 %v7614
    %9561 = vmatpush.bf16.msra.mxu0 %v7598
    %9562 = vmatpush.bf16.msra.mxu0 %v7582
    %9563 = vmatpush.bf16.msra.mxu0 %v7566
    %9564 = vmatpush.bf16.msra.mxu0 %v7550
    %9565 = vmatpush.bf16.msra.mxu0 %v7534
    %9566 = vmatmul.bf16.gmra.mxu0 %v4198
    %v9567 = vpop.f32.mrf.mxu0
    %v9568 = vadd.f32 %v9555, %v9567
    %v9569 = vpop.f32.mrf.mxu0
    %9570 = vdwg.mxu0
    %9571 = vmatpush.bf16.msra.mxu0 %v7774
    %9572 = vmatpush.bf16.msra.mxu0 %v7758
    %9573 = vmatpush.bf16.msra.mxu0 %v7742
    %9574 = vmatpush.bf16.msra.mxu0 %v7726
    %9575 = vmatpush.bf16.msra.mxu0 %v7710
    %9576 = vmatpush.bf16.msra.mxu0 %v7694
    %9577 = vmatpush.bf16.msra.mxu0 %v7678
    %9578 = vmatpush.bf16.msra.mxu0 %v7662
    %9579 = vmatmul.bf16.gmra.mxu0 %v4199
    %v9580 = vpop.f32.mrf.mxu0
    %v9581 = vadd.f32 %v9568, %v9580
    %v9582 = vpop.f32.mrf.mxu0
    %9583 = vdwg.mxu0
    %9584 = vmatpush.bf16.msra.mxu0 %v7902
    %9585 = vmatpush.bf16.msra.mxu0 %v7886
    %9586 = vmatpush.bf16.msra.mxu0 %v7870
    %9587 = vmatpush.bf16.msra.mxu0 %v7854
    %9588 = vmatpush.bf16.msra.mxu0 %v7838
    %9589 = vmatpush.bf16.msra.mxu0 %v7822
    %9590 = vmatpush.bf16.msra.mxu0 %v7806
    %9591 = vmatpush.bf16.msra.mxu0 %v7790
    %9592 = vmatmul.bf16.gmra.mxu0 %v4200
    %v9593 = vpop.f32.mrf.mxu0
    %v9594 = vadd.f32 %v9581, %v9593
    %v9595 = vpop.f32.mrf.mxu0
    %9596 = vdwg.mxu0
    %9597 = vmatpush.bf16.msra.mxu0 %v8030
    %9598 = vmatpush.bf16.msra.mxu0 %v8014
    %9599 = vmatpush.bf16.msra.mxu0 %v7998
    %9600 = vmatpush.bf16.msra.mxu0 %v7982
    %9601 = vmatpush.bf16.msra.mxu0 %v7966
    %9602 = vmatpush.bf16.msra.mxu0 %v7950
    %9603 = vmatpush.bf16.msra.mxu0 %v7934
    %9604 = vmatpush.bf16.msra.mxu0 %v7918
    %9605 = vmatmul.bf16.gmra.mxu0 %v4201
    %v9606 = vpop.f32.mrf.mxu0
    %v9607 = vadd.f32 %v9594, %v9606
    %v9608 = vpop.f32.mrf.mxu0
    %9609 = vdwg.mxu0
    %9610 = vmatpush.bf16.msra.mxu0 %v8158
    %9611 = vmatpush.bf16.msra.mxu0 %v8142
    %9612 = vmatpush.bf16.msra.mxu0 %v8126
    %9613 = vmatpush.bf16.msra.mxu0 %v8110
    %9614 = vmatpush.bf16.msra.mxu0 %v8094
    %9615 = vmatpush.bf16.msra.mxu0 %v8078
    %9616 = vmatpush.bf16.msra.mxu0 %v8062
    %9617 = vmatpush.bf16.msra.mxu0 %v8046
    %9618 = vmatmul.bf16.gmra.mxu0 %v4202
    %v9619 = vpop.f32.mrf.mxu0
    %v9620 = vadd.f32 %v9607, %v9619
    %v9621 = vpop.f32.mrf.mxu0
    %9622 = vdwg.mxu0
    %9623 = vmatpush.bf16.msra.mxu0 %v8286
    %9624 = vmatpush.bf16.msra.mxu0 %v8270
    %9625 = vmatpush.bf16.msra.mxu0 %v8254
    %9626 = vmatpush.bf16.msra.mxu0 %v8238
    %9627 = vmatpush.bf16.msra.mxu0 %v8222
    %9628 = vmatpush.bf16.msra.mxu0 %v8206
    %9629 = vmatpush.bf16.msra.mxu0 %v8190
    %9630 = vmatpush.bf16.msra.mxu0 %v8174
    %9631 = vmatmul.bf16.gmra.mxu0 %v4203
    %v9632 = vpop.f32.mrf.mxu0
    %v9633 = vadd.f32 %v9620, %v9632
    %v9634 = vpop.f32.mrf.mxu0
    %9635 = vdwg.mxu0
    %9636 = vmatpush.bf16.msra.mxu0 %v7391
    %9637 = vmatpush.bf16.msra.mxu0 %v7375
    %9638 = vmatpush.bf16.msra.mxu0 %v7359
    %9639 = vmatpush.bf16.msra.mxu0 %v7343
    %9640 = vmatpush.bf16.msra.mxu0 %v7327
    %9641 = vmatpush.bf16.msra.mxu0 %v7311
    %9642 = vmatpush.bf16.msra.mxu0 %v7295
    %9643 = vmatpush.bf16.msra.mxu0 %v7279
    %9644 = vmatmul.bf16.gmra.mxu0 %v4196
    %v9645 = vpop.f32.mrf.mxu0
    %v9646 = vadd.f32 0.0, %v9645
    %v9647 = vpop.f32.mrf.mxu0
    %9648 = vdwg.mxu0
    %9649 = vmatpush.bf16.msra.mxu0 %v7519
    %9650 = vmatpush.bf16.msra.mxu0 %v7503
    %9651 = vmatpush.bf16.msra.mxu0 %v7487
    %9652 = vmatpush.bf16.msra.mxu0 %v7471
    %9653 = vmatpush.bf16.msra.mxu0 %v7455
    %9654 = vmatpush.bf16.msra.mxu0 %v7439
    %9655 = vmatpush.bf16.msra.mxu0 %v7423
    %9656 = vmatpush.bf16.msra.mxu0 %v7407
    %9657 = vmatmul.bf16.gmra.mxu0 %v4197
    %v9658 = vpop.f32.mrf.mxu0
    %v9659 = vadd.f32 %v9646, %v9658
    %v9660 = vpop.f32.mrf.mxu0
    %9661 = vdwg.mxu0
    %9662 = vmatpush.bf16.msra.mxu0 %v7647
    %9663 = vmatpush.bf16.msra.mxu0 %v7631
    %9664 = vmatpush.bf16.msra.mxu0 %v7615
    %9665 = vmatpush.bf16.msra.mxu0 %v7599
    %9666 = vmatpush.bf16.msra.mxu0 %v7583
    %9667 = vmatpush.bf16.msra.mxu0 %v7567
    %9668 = vmatpush.bf16.msra.mxu0 %v7551
    %9669 = vmatpush.bf16.msra.mxu0 %v7535
    %9670 = vmatmul.bf16.gmra.mxu0 %v4198
    %v9671 = vpop.f32.mrf.mxu0
    %v9672 = vadd.f32 %v9659, %v9671
    %v9673 = vpop.f32.mrf.mxu0
    %9674 = vdwg.mxu0
    %9675 = vmatpush.bf16.msra.mxu0 %v7775
    %9676 = vmatpush.bf16.msra.mxu0 %v7759
    %9677 = vmatpush.bf16.msra.mxu0 %v7743
    %9678 = vmatpush.bf16.msra.mxu0 %v7727
    %9679 = vmatpush.bf16.msra.mxu0 %v7711
    %9680 = vmatpush.bf16.msra.mxu0 %v7695
    %9681 = vmatpush.bf16.msra.mxu0 %v7679
    %9682 = vmatpush.bf16.msra.mxu0 %v7663
    %9683 = vmatmul.bf16.gmra.mxu0 %v4199
    %v9684 = vpop.f32.mrf.mxu0
    %v9685 = vadd.f32 %v9672, %v9684
    %v9686 = vpop.f32.mrf.mxu0
    %9687 = vdwg.mxu0
    %9688 = vmatpush.bf16.msra.mxu0 %v7903
    %9689 = vmatpush.bf16.msra.mxu0 %v7887
    %9690 = vmatpush.bf16.msra.mxu0 %v7871
    %9691 = vmatpush.bf16.msra.mxu0 %v7855
    %9692 = vmatpush.bf16.msra.mxu0 %v7839
    %9693 = vmatpush.bf16.msra.mxu0 %v7823
    %9694 = vmatpush.bf16.msra.mxu0 %v7807
    %9695 = vmatpush.bf16.msra.mxu0 %v7791
    %9696 = vmatmul.bf16.gmra.mxu0 %v4200
    %v9697 = vpop.f32.mrf.mxu0
    %v9698 = vadd.f32 %v9685, %v9697
    %v9699 = vpop.f32.mrf.mxu0
    %9700 = vdwg.mxu0
    %9701 = vmatpush.bf16.msra.mxu0 %v8031
    %9702 = vmatpush.bf16.msra.mxu0 %v8015
    %9703 = vmatpush.bf16.msra.mxu0 %v7999
    %9704 = vmatpush.bf16.msra.mxu0 %v7983
    %9705 = vmatpush.bf16.msra.mxu0 %v7967
    %9706 = vmatpush.bf16.msra.mxu0 %v7951
    %9707 = vmatpush.bf16.msra.mxu0 %v7935
    %9708 = vmatpush.bf16.msra.mxu0 %v7919
    %9709 = vmatmul.bf16.gmra.mxu0 %v4201
    %v9710 = vpop.f32.mrf.mxu0
    %v9711 = vadd.f32 %v9698, %v9710
    %v9712 = vpop.f32.mrf.mxu0
    %9713 = vdwg.mxu0
    %9714 = vmatpush.bf16.msra.mxu0 %v8159
    %9715 = vmatpush.bf16.msra.mxu0 %v8143
    %9716 = vmatpush.bf16.msra.mxu0 %v8127
    %9717 = vmatpush.bf16.msra.mxu0 %v8111
    %9718 = vmatpush.bf16.msra.mxu0 %v8095
    %9719 = vmatpush.bf16.msra.mxu0 %v8079
    %9720 = vmatpush.bf16.msra.mxu0 %v8063
    %9721 = vmatpush.bf16.msra.mxu0 %v8047
    %9722 = vmatmul.bf16.gmra.mxu0 %v4202
    %v9723 = vpop.f32.mrf.mxu0
    %v9724 = vadd.f32 %v9711, %v9723
    %v9725 = vpop.f32.mrf.mxu0
    %9726 = vdwg.mxu0
    %9727 = vmatpush.bf16.msra.mxu0 %v8287
    %9728 = vmatpush.bf16.msra.mxu0 %v8271
    %9729 = vmatpush.bf16.msra.mxu0 %v8255
    %9730 = vmatpush.bf16.msra.mxu0 %v8239
    %9731 = vmatpush.bf16.msra.mxu0 %v8223
    %9732 = vmatpush.bf16.msra.mxu0 %v8207
    %9733 = vmatpush.bf16.msra.mxu0 %v8191
    %9734 = vmatpush.bf16.msra.mxu0 %v8175
    %9735 = vmatmul.bf16.gmra.mxu0 %v4203
    %v9736 = vpop.f32.mrf.mxu0
    %v9737 = vadd.f32 %v9724, %v9736
    %v9738 = vpop.f32.mrf.mxu0
    %9739 = vdwg.mxu0
    %9740 = vmatpush.bf16.msra.mxu0 %v7392
    %9741 = vmatpush.bf16.msra.mxu0 %v7376
    %9742 = vmatpush.bf16.msra.mxu0 %v7360
    %9743 = vmatpush.bf16.msra.mxu0 %v7344
    %9744 = vmatpush.bf16.msra.mxu0 %v7328
    %9745 = vmatpush.bf16.msra.mxu0 %v7312
    %9746 = vmatpush.bf16.msra.mxu0 %v7296
    %9747 = vmatpush.bf16.msra.mxu0 %v7280
    %9748 = vmatmul.bf16.gmra.mxu0 %v4196
    %v9749 = vpop.f32.mrf.mxu0
    %v9750 = vadd.f32 0.0, %v9749
    %v9751 = vpop.f32.mrf.mxu0
    %9752 = vdwg.mxu0
    %9753 = vmatpush.bf16.msra.mxu0 %v7520
    %9754 = vmatpush.bf16.msra.mxu0 %v7504
    %9755 = vmatpush.bf16.msra.mxu0 %v7488
    %9756 = vmatpush.bf16.msra.mxu0 %v7472
    %9757 = vmatpush.bf16.msra.mxu0 %v7456
    %9758 = vmatpush.bf16.msra.mxu0 %v7440
    %9759 = vmatpush.bf16.msra.mxu0 %v7424
    %9760 = vmatpush.bf16.msra.mxu0 %v7408
    %9761 = vmatmul.bf16.gmra.mxu0 %v4197
    %v9762 = vpop.f32.mrf.mxu0
    %v9763 = vadd.f32 %v9750, %v9762
    %v9764 = vpop.f32.mrf.mxu0
    %9765 = vdwg.mxu0
    %9766 = vmatpush.bf16.msra.mxu0 %v7648
    %9767 = vmatpush.bf16.msra.mxu0 %v7632
    %9768 = vmatpush.bf16.msra.mxu0 %v7616
    %9769 = vmatpush.bf16.msra.mxu0 %v7600
    %9770 = vmatpush.bf16.msra.mxu0 %v7584
    %9771 = vmatpush.bf16.msra.mxu0 %v7568
    %9772 = vmatpush.bf16.msra.mxu0 %v7552
    %9773 = vmatpush.bf16.msra.mxu0 %v7536
    %9774 = vmatmul.bf16.gmra.mxu0 %v4198
    %v9775 = vpop.f32.mrf.mxu0
    %v9776 = vadd.f32 %v9763, %v9775
    %v9777 = vpop.f32.mrf.mxu0
    %9778 = vdwg.mxu0
    %9779 = vmatpush.bf16.msra.mxu0 %v7776
    %9780 = vmatpush.bf16.msra.mxu0 %v7760
    %9781 = vmatpush.bf16.msra.mxu0 %v7744
    %9782 = vmatpush.bf16.msra.mxu0 %v7728
    %9783 = vmatpush.bf16.msra.mxu0 %v7712
    %9784 = vmatpush.bf16.msra.mxu0 %v7696
    %9785 = vmatpush.bf16.msra.mxu0 %v7680
    %9786 = vmatpush.bf16.msra.mxu0 %v7664
    %9787 = vmatmul.bf16.gmra.mxu0 %v4199
    %v9788 = vpop.f32.mrf.mxu0
    %v9789 = vadd.f32 %v9776, %v9788
    %v9790 = vpop.f32.mrf.mxu0
    %9791 = vdwg.mxu0
    %9792 = vmatpush.bf16.msra.mxu0 %v7904
    %9793 = vmatpush.bf16.msra.mxu0 %v7888
    %9794 = vmatpush.bf16.msra.mxu0 %v7872
    %9795 = vmatpush.bf16.msra.mxu0 %v7856
    %9796 = vmatpush.bf16.msra.mxu0 %v7840
    %9797 = vmatpush.bf16.msra.mxu0 %v7824
    %9798 = vmatpush.bf16.msra.mxu0 %v7808
    %9799 = vmatpush.bf16.msra.mxu0 %v7792
    %9800 = vmatmul.bf16.gmra.mxu0 %v4200
    %v9801 = vpop.f32.mrf.mxu0
    %v9802 = vadd.f32 %v9789, %v9801
    %v9803 = vpop.f32.mrf.mxu0
    %9804 = vdwg.mxu0
    %9805 = vmatpush.bf16.msra.mxu0 %v8032
    %9806 = vmatpush.bf16.msra.mxu0 %v8016
    %9807 = vmatpush.bf16.msra.mxu0 %v8000
    %9808 = vmatpush.bf16.msra.mxu0 %v7984
    %9809 = vmatpush.bf16.msra.mxu0 %v7968
    %9810 = vmatpush.bf16.msra.mxu0 %v7952
    %9811 = vmatpush.bf16.msra.mxu0 %v7936
    %9812 = vmatpush.bf16.msra.mxu0 %v7920
    %9813 = vmatmul.bf16.gmra.mxu0 %v4201
    %v9814 = vpop.f32.mrf.mxu0
    %v9815 = vadd.f32 %v9802, %v9814
    %v9816 = vpop.f32.mrf.mxu0
    %9817 = vdwg.mxu0
    %9818 = vmatpush.bf16.msra.mxu0 %v8160
    %9819 = vmatpush.bf16.msra.mxu0 %v8144
    %9820 = vmatpush.bf16.msra.mxu0 %v8128
    %9821 = vmatpush.bf16.msra.mxu0 %v8112
    %9822 = vmatpush.bf16.msra.mxu0 %v8096
    %9823 = vmatpush.bf16.msra.mxu0 %v8080
    %9824 = vmatpush.bf16.msra.mxu0 %v8064
    %9825 = vmatpush.bf16.msra.mxu0 %v8048
    %9826 = vmatmul.bf16.gmra.mxu0 %v4202
    %v9827 = vpop.f32.mrf.mxu0
    %v9828 = vadd.f32 %v9815, %v9827
    %v9829 = vpop.f32.mrf.mxu0
    %9830 = vdwg.mxu0
    %9831 = vmatpush.bf16.msra.mxu0 %v8288
    %9832 = vmatpush.bf16.msra.mxu0 %v8272
    %9833 = vmatpush.bf16.msra.mxu0 %v8256
    %9834 = vmatpush.bf16.msra.mxu0 %v8240
    %9835 = vmatpush.bf16.msra.mxu0 %v8224
    %9836 = vmatpush.bf16.msra.mxu0 %v8208
    %9837 = vmatpush.bf16.msra.mxu0 %v8192
    %9838 = vmatpush.bf16.msra.mxu0 %v8176
    %9839 = vmatmul.bf16.gmra.mxu0 %v4203
    %v9840 = vpop.f32.mrf.mxu0
    %v9841 = vadd.f32 %v9828, %v9840
    %v9842 = vpop.f32.mrf.mxu0
    %9843 = vdwg.mxu0
    %9844 = vmatpush.bf16.msra.mxu0 %v7393
    %9845 = vmatpush.bf16.msra.mxu0 %v7377
    %9846 = vmatpush.bf16.msra.mxu0 %v7361
    %9847 = vmatpush.bf16.msra.mxu0 %v7345
    %9848 = vmatpush.bf16.msra.mxu0 %v7329
    %9849 = vmatpush.bf16.msra.mxu0 %v7313
    %9850 = vmatpush.bf16.msra.mxu0 %v7297
    %9851 = vmatpush.bf16.msra.mxu0 %v7281
    %9852 = vmatmul.bf16.gmra.mxu0 %v4196
    %v9853 = vpop.f32.mrf.mxu0
    %v9854 = vadd.f32 0.0, %v9853
    %v9855 = vpop.f32.mrf.mxu0
    %9856 = vdwg.mxu0
    %9857 = vmatpush.bf16.msra.mxu0 %v7521
    %9858 = vmatpush.bf16.msra.mxu0 %v7505
    %9859 = vmatpush.bf16.msra.mxu0 %v7489
    %9860 = vmatpush.bf16.msra.mxu0 %v7473
    %9861 = vmatpush.bf16.msra.mxu0 %v7457
    %9862 = vmatpush.bf16.msra.mxu0 %v7441
    %9863 = vmatpush.bf16.msra.mxu0 %v7425
    %9864 = vmatpush.bf16.msra.mxu0 %v7409
    %9865 = vmatmul.bf16.gmra.mxu0 %v4197
    %v9866 = vpop.f32.mrf.mxu0
    %v9867 = vadd.f32 %v9854, %v9866
    %v9868 = vpop.f32.mrf.mxu0
    %9869 = vdwg.mxu0
    %9870 = vmatpush.bf16.msra.mxu0 %v7649
    %9871 = vmatpush.bf16.msra.mxu0 %v7633
    %9872 = vmatpush.bf16.msra.mxu0 %v7617
    %9873 = vmatpush.bf16.msra.mxu0 %v7601
    %9874 = vmatpush.bf16.msra.mxu0 %v7585
    %9875 = vmatpush.bf16.msra.mxu0 %v7569
    %9876 = vmatpush.bf16.msra.mxu0 %v7553
    %9877 = vmatpush.bf16.msra.mxu0 %v7537
    %9878 = vmatmul.bf16.gmra.mxu0 %v4198
    %v9879 = vpop.f32.mrf.mxu0
    %v9880 = vadd.f32 %v9867, %v9879
    %v9881 = vpop.f32.mrf.mxu0
    %9882 = vdwg.mxu0
    %9883 = vmatpush.bf16.msra.mxu0 %v7777
    %9884 = vmatpush.bf16.msra.mxu0 %v7761
    %9885 = vmatpush.bf16.msra.mxu0 %v7745
    %9886 = vmatpush.bf16.msra.mxu0 %v7729
    %9887 = vmatpush.bf16.msra.mxu0 %v7713
    %9888 = vmatpush.bf16.msra.mxu0 %v7697
    %9889 = vmatpush.bf16.msra.mxu0 %v7681
    %9890 = vmatpush.bf16.msra.mxu0 %v7665
    %9891 = vmatmul.bf16.gmra.mxu0 %v4199
    %v9892 = vpop.f32.mrf.mxu0
    %v9893 = vadd.f32 %v9880, %v9892
    %v9894 = vpop.f32.mrf.mxu0
    %9895 = vdwg.mxu0
    %9896 = vmatpush.bf16.msra.mxu0 %v7905
    %9897 = vmatpush.bf16.msra.mxu0 %v7889
    %9898 = vmatpush.bf16.msra.mxu0 %v7873
    %9899 = vmatpush.bf16.msra.mxu0 %v7857
    %9900 = vmatpush.bf16.msra.mxu0 %v7841
    %9901 = vmatpush.bf16.msra.mxu0 %v7825
    %9902 = vmatpush.bf16.msra.mxu0 %v7809
    %9903 = vmatpush.bf16.msra.mxu0 %v7793
    %9904 = vmatmul.bf16.gmra.mxu0 %v4200
    %v9905 = vpop.f32.mrf.mxu0
    %v9906 = vadd.f32 %v9893, %v9905
    %v9907 = vpop.f32.mrf.mxu0
    %9908 = vdwg.mxu0
    %9909 = vmatpush.bf16.msra.mxu0 %v8033
    %9910 = vmatpush.bf16.msra.mxu0 %v8017
    %9911 = vmatpush.bf16.msra.mxu0 %v8001
    %9912 = vmatpush.bf16.msra.mxu0 %v7985
    %9913 = vmatpush.bf16.msra.mxu0 %v7969
    %9914 = vmatpush.bf16.msra.mxu0 %v7953
    %9915 = vmatpush.bf16.msra.mxu0 %v7937
    %9916 = vmatpush.bf16.msra.mxu0 %v7921
    %9917 = vmatmul.bf16.gmra.mxu0 %v4201
    %v9918 = vpop.f32.mrf.mxu0
    %v9919 = vadd.f32 %v9906, %v9918
    %v9920 = vpop.f32.mrf.mxu0
    %9921 = vdwg.mxu0
    %9922 = vmatpush.bf16.msra.mxu0 %v8161
    %9923 = vmatpush.bf16.msra.mxu0 %v8145
    %9924 = vmatpush.bf16.msra.mxu0 %v8129
    %9925 = vmatpush.bf16.msra.mxu0 %v8113
    %9926 = vmatpush.bf16.msra.mxu0 %v8097
    %9927 = vmatpush.bf16.msra.mxu0 %v8081
    %9928 = vmatpush.bf16.msra.mxu0 %v8065
    %9929 = vmatpush.bf16.msra.mxu0 %v8049
    %9930 = vmatmul.bf16.gmra.mxu0 %v4202
    %v9931 = vpop.f32.mrf.mxu0
    %v9932 = vadd.f32 %v9919, %v9931
    %v9933 = vpop.f32.mrf.mxu0
    %9934 = vdwg.mxu0
    %9935 = vmatpush.bf16.msra.mxu0 %v8289
    %9936 = vmatpush.bf16.msra.mxu0 %v8273
    %9937 = vmatpush.bf16.msra.mxu0 %v8257
    %9938 = vmatpush.bf16.msra.mxu0 %v8241
    %9939 = vmatpush.bf16.msra.mxu0 %v8225
    %9940 = vmatpush.bf16.msra.mxu0 %v8209
    %9941 = vmatpush.bf16.msra.mxu0 %v8193
    %9942 = vmatpush.bf16.msra.mxu0 %v8177
    %9943 = vmatmul.bf16.gmra.mxu0 %v4203
    %v9944 = vpop.f32.mrf.mxu0
    %v9945 = vadd.f32 %v9932, %v9944
    %v9946 = vpop.f32.mrf.mxu0
    %9947 = vdwg.mxu0
    %9948 = vmatpush.bf16.msra.mxu0 %v7394
    %9949 = vmatpush.bf16.msra.mxu0 %v7378
    %9950 = vmatpush.bf16.msra.mxu0 %v7362
    %9951 = vmatpush.bf16.msra.mxu0 %v7346
    %9952 = vmatpush.bf16.msra.mxu0 %v7330
    %9953 = vmatpush.bf16.msra.mxu0 %v7314
    %9954 = vmatpush.bf16.msra.mxu0 %v7298
    %9955 = vmatpush.bf16.msra.mxu0 %v7282
    %9956 = vmatmul.bf16.gmra.mxu0 %v4196
    %v9957 = vpop.f32.mrf.mxu0
    %v9958 = vadd.f32 0.0, %v9957
    %v9959 = vpop.f32.mrf.mxu0
    %9960 = vdwg.mxu0
    %9961 = vmatpush.bf16.msra.mxu0 %v7522
    %9962 = vmatpush.bf16.msra.mxu0 %v7506
    %9963 = vmatpush.bf16.msra.mxu0 %v7490
    %9964 = vmatpush.bf16.msra.mxu0 %v7474
    %9965 = vmatpush.bf16.msra.mxu0 %v7458
    %9966 = vmatpush.bf16.msra.mxu0 %v7442
    %9967 = vmatpush.bf16.msra.mxu0 %v7426
    %9968 = vmatpush.bf16.msra.mxu0 %v7410
    %9969 = vmatmul.bf16.gmra.mxu0 %v4197
    %v9970 = vpop.f32.mrf.mxu0
    %v9971 = vadd.f32 %v9958, %v9970
    %v9972 = vpop.f32.mrf.mxu0
    %9973 = vdwg.mxu0
    %9974 = vmatpush.bf16.msra.mxu0 %v7650
    %9975 = vmatpush.bf16.msra.mxu0 %v7634
    %9976 = vmatpush.bf16.msra.mxu0 %v7618
    %9977 = vmatpush.bf16.msra.mxu0 %v7602
    %9978 = vmatpush.bf16.msra.mxu0 %v7586
    %9979 = vmatpush.bf16.msra.mxu0 %v7570
    %9980 = vmatpush.bf16.msra.mxu0 %v7554
    %9981 = vmatpush.bf16.msra.mxu0 %v7538
    %9982 = vmatmul.bf16.gmra.mxu0 %v4198
    %v9983 = vpop.f32.mrf.mxu0
    %v9984 = vadd.f32 %v9971, %v9983
    %v9985 = vpop.f32.mrf.mxu0
    %9986 = vdwg.mxu0
    %9987 = vmatpush.bf16.msra.mxu0 %v7778
    %9988 = vmatpush.bf16.msra.mxu0 %v7762
    %9989 = vmatpush.bf16.msra.mxu0 %v7746
    %9990 = vmatpush.bf16.msra.mxu0 %v7730
    %9991 = vmatpush.bf16.msra.mxu0 %v7714
    %9992 = vmatpush.bf16.msra.mxu0 %v7698
    %9993 = vmatpush.bf16.msra.mxu0 %v7682
    %9994 = vmatpush.bf16.msra.mxu0 %v7666
    %9995 = vmatmul.bf16.gmra.mxu0 %v4199
    %v9996 = vpop.f32.mrf.mxu0
    %v9997 = vadd.f32 %v9984, %v9996
    %v9998 = vpop.f32.mrf.mxu0
    %9999 = vdwg.mxu0
    %10000 = vmatpush.bf16.msra.mxu0 %v7906
    %10001 = vmatpush.bf16.msra.mxu0 %v7890
    %10002 = vmatpush.bf16.msra.mxu0 %v7874
    %10003 = vmatpush.bf16.msra.mxu0 %v7858
    %10004 = vmatpush.bf16.msra.mxu0 %v7842
    %10005 = vmatpush.bf16.msra.mxu0 %v7826
    %10006 = vmatpush.bf16.msra.mxu0 %v7810
    %10007 = vmatpush.bf16.msra.mxu0 %v7794
    %10008 = vmatmul.bf16.gmra.mxu0 %v4200
    %v10009 = vpop.f32.mrf.mxu0
    %v10010 = vadd.f32 %v9997, %v10009
    %v10011 = vpop.f32.mrf.mxu0
    %10012 = vdwg.mxu0
    %10013 = vmatpush.bf16.msra.mxu0 %v8034
    %10014 = vmatpush.bf16.msra.mxu0 %v8018
    %10015 = vmatpush.bf16.msra.mxu0 %v8002
    %10016 = vmatpush.bf16.msra.mxu0 %v7986
    %10017 = vmatpush.bf16.msra.mxu0 %v7970
    %10018 = vmatpush.bf16.msra.mxu0 %v7954
    %10019 = vmatpush.bf16.msra.mxu0 %v7938
    %10020 = vmatpush.bf16.msra.mxu0 %v7922
    %10021 = vmatmul.bf16.gmra.mxu0 %v4201
    %v10022 = vpop.f32.mrf.mxu0
    %v10023 = vadd.f32 %v10010, %v10022
    %v10024 = vpop.f32.mrf.mxu0
    %10025 = vdwg.mxu0
    %10026 = vmatpush.bf16.msra.mxu0 %v8162
    %10027 = vmatpush.bf16.msra.mxu0 %v8146
    %10028 = vmatpush.bf16.msra.mxu0 %v8130
    %10029 = vmatpush.bf16.msra.mxu0 %v8114
    %10030 = vmatpush.bf16.msra.mxu0 %v8098
    %10031 = vmatpush.bf16.msra.mxu0 %v8082
    %10032 = vmatpush.bf16.msra.mxu0 %v8066
    %10033 = vmatpush.bf16.msra.mxu0 %v8050
    %10034 = vmatmul.bf16.gmra.mxu0 %v4202
    %v10035 = vpop.f32.mrf.mxu0
    %v10036 = vadd.f32 %v10023, %v10035
    %v10037 = vpop.f32.mrf.mxu0
    %10038 = vdwg.mxu0
    %10039 = vmatpush.bf16.msra.mxu0 %v8290
    %10040 = vmatpush.bf16.msra.mxu0 %v8274
    %10041 = vmatpush.bf16.msra.mxu0 %v8258
    %10042 = vmatpush.bf16.msra.mxu0 %v8242
    %10043 = vmatpush.bf16.msra.mxu0 %v8226
    %10044 = vmatpush.bf16.msra.mxu0 %v8210
    %10045 = vmatpush.bf16.msra.mxu0 %v8194
    %10046 = vmatpush.bf16.msra.mxu0 %v8178
    %10047 = vmatmul.bf16.gmra.mxu0 %v4203
    %v10048 = vpop.f32.mrf.mxu0
    %v10049 = vadd.f32 %v10036, %v10048
    %v10050 = vpop.f32.mrf.mxu0
    %10051 = vdwg.mxu0
    %10052 = vmatpush.bf16.msra.mxu0 %v7395
    %10053 = vmatpush.bf16.msra.mxu0 %v7379
    %10054 = vmatpush.bf16.msra.mxu0 %v7363
    %10055 = vmatpush.bf16.msra.mxu0 %v7347
    %10056 = vmatpush.bf16.msra.mxu0 %v7331
    %10057 = vmatpush.bf16.msra.mxu0 %v7315
    %10058 = vmatpush.bf16.msra.mxu0 %v7299
    %10059 = vmatpush.bf16.msra.mxu0 %v7283
    %10060 = vmatmul.bf16.gmra.mxu0 %v4196
    %v10061 = vpop.f32.mrf.mxu0
    %v10062 = vadd.f32 0.0, %v10061
    %v10063 = vpop.f32.mrf.mxu0
    %10064 = vdwg.mxu0
    %10065 = vmatpush.bf16.msra.mxu0 %v7523
    %10066 = vmatpush.bf16.msra.mxu0 %v7507
    %10067 = vmatpush.bf16.msra.mxu0 %v7491
    %10068 = vmatpush.bf16.msra.mxu0 %v7475
    %10069 = vmatpush.bf16.msra.mxu0 %v7459
    %10070 = vmatpush.bf16.msra.mxu0 %v7443
    %10071 = vmatpush.bf16.msra.mxu0 %v7427
    %10072 = vmatpush.bf16.msra.mxu0 %v7411
    %10073 = vmatmul.bf16.gmra.mxu0 %v4197
    %v10074 = vpop.f32.mrf.mxu0
    %v10075 = vadd.f32 %v10062, %v10074
    %v10076 = vpop.f32.mrf.mxu0
    %10077 = vdwg.mxu0
    %10078 = vmatpush.bf16.msra.mxu0 %v7651
    %10079 = vmatpush.bf16.msra.mxu0 %v7635
    %10080 = vmatpush.bf16.msra.mxu0 %v7619
    %10081 = vmatpush.bf16.msra.mxu0 %v7603
    %10082 = vmatpush.bf16.msra.mxu0 %v7587
    %10083 = vmatpush.bf16.msra.mxu0 %v7571
    %10084 = vmatpush.bf16.msra.mxu0 %v7555
    %10085 = vmatpush.bf16.msra.mxu0 %v7539
    %10086 = vmatmul.bf16.gmra.mxu0 %v4198
    %v10087 = vpop.f32.mrf.mxu0
    %v10088 = vadd.f32 %v10075, %v10087
    %v10089 = vpop.f32.mrf.mxu0
    %10090 = vdwg.mxu0
    %10091 = vmatpush.bf16.msra.mxu0 %v7779
    %10092 = vmatpush.bf16.msra.mxu0 %v7763
    %10093 = vmatpush.bf16.msra.mxu0 %v7747
    %10094 = vmatpush.bf16.msra.mxu0 %v7731
    %10095 = vmatpush.bf16.msra.mxu0 %v7715
    %10096 = vmatpush.bf16.msra.mxu0 %v7699
    %10097 = vmatpush.bf16.msra.mxu0 %v7683
    %10098 = vmatpush.bf16.msra.mxu0 %v7667
    %10099 = vmatmul.bf16.gmra.mxu0 %v4199
    %v10100 = vpop.f32.mrf.mxu0
    %v10101 = vadd.f32 %v10088, %v10100
    %v10102 = vpop.f32.mrf.mxu0
    %10103 = vdwg.mxu0
    %10104 = vmatpush.bf16.msra.mxu0 %v7907
    %10105 = vmatpush.bf16.msra.mxu0 %v7891
    %10106 = vmatpush.bf16.msra.mxu0 %v7875
    %10107 = vmatpush.bf16.msra.mxu0 %v7859
    %10108 = vmatpush.bf16.msra.mxu0 %v7843
    %10109 = vmatpush.bf16.msra.mxu0 %v7827
    %10110 = vmatpush.bf16.msra.mxu0 %v7811
    %10111 = vmatpush.bf16.msra.mxu0 %v7795
    %10112 = vmatmul.bf16.gmra.mxu0 %v4200
    %v10113 = vpop.f32.mrf.mxu0
    %v10114 = vadd.f32 %v10101, %v10113
    %v10115 = vpop.f32.mrf.mxu0
    %10116 = vdwg.mxu0
    %10117 = vmatpush.bf16.msra.mxu0 %v8035
    %10118 = vmatpush.bf16.msra.mxu0 %v8019
    %10119 = vmatpush.bf16.msra.mxu0 %v8003
    %10120 = vmatpush.bf16.msra.mxu0 %v7987
    %10121 = vmatpush.bf16.msra.mxu0 %v7971
    %10122 = vmatpush.bf16.msra.mxu0 %v7955
    %10123 = vmatpush.bf16.msra.mxu0 %v7939
    %10124 = vmatpush.bf16.msra.mxu0 %v7923
    %10125 = vmatmul.bf16.gmra.mxu0 %v4201
    %v10126 = vpop.f32.mrf.mxu0
    %v10127 = vadd.f32 %v10114, %v10126
    %v10128 = vpop.f32.mrf.mxu0
    %10129 = vdwg.mxu0
    %10130 = vmatpush.bf16.msra.mxu0 %v8163
    %10131 = vmatpush.bf16.msra.mxu0 %v8147
    %10132 = vmatpush.bf16.msra.mxu0 %v8131
    %10133 = vmatpush.bf16.msra.mxu0 %v8115
    %10134 = vmatpush.bf16.msra.mxu0 %v8099
    %10135 = vmatpush.bf16.msra.mxu0 %v8083
    %10136 = vmatpush.bf16.msra.mxu0 %v8067
    %10137 = vmatpush.bf16.msra.mxu0 %v8051
    %10138 = vmatmul.bf16.gmra.mxu0 %v4202
    %v10139 = vpop.f32.mrf.mxu0
    %v10140 = vadd.f32 %v10127, %v10139
    %v10141 = vpop.f32.mrf.mxu0
    %10142 = vdwg.mxu0
    %10143 = vmatpush.bf16.msra.mxu0 %v8291
    %10144 = vmatpush.bf16.msra.mxu0 %v8275
    %10145 = vmatpush.bf16.msra.mxu0 %v8259
    %10146 = vmatpush.bf16.msra.mxu0 %v8243
    %10147 = vmatpush.bf16.msra.mxu0 %v8227
    %10148 = vmatpush.bf16.msra.mxu0 %v8211
    %10149 = vmatpush.bf16.msra.mxu0 %v8195
    %10150 = vmatpush.bf16.msra.mxu0 %v8179
    %10151 = vmatmul.bf16.gmra.mxu0 %v4203
    %v10152 = vpop.f32.mrf.mxu0
    %v10153 = vadd.f32 %v10140, %v10152
    %v10154 = vpop.f32.mrf.mxu0
    %10155 = vdwg.mxu0
    %10156 = vmatpush.bf16.msra.mxu0 %v7396
    %10157 = vmatpush.bf16.msra.mxu0 %v7380
    %10158 = vmatpush.bf16.msra.mxu0 %v7364
    %10159 = vmatpush.bf16.msra.mxu0 %v7348
    %10160 = vmatpush.bf16.msra.mxu0 %v7332
    %10161 = vmatpush.bf16.msra.mxu0 %v7316
    %10162 = vmatpush.bf16.msra.mxu0 %v7300
    %10163 = vmatpush.bf16.msra.mxu0 %v7284
    %10164 = vmatmul.bf16.gmra.mxu0 %v4196
    %v10165 = vpop.f32.mrf.mxu0
    %v10166 = vadd.f32 0.0, %v10165
    %v10167 = vpop.f32.mrf.mxu0
    %10168 = vdwg.mxu0
    %10169 = vmatpush.bf16.msra.mxu0 %v7524
    %10170 = vmatpush.bf16.msra.mxu0 %v7508
    %10171 = vmatpush.bf16.msra.mxu0 %v7492
    %10172 = vmatpush.bf16.msra.mxu0 %v7476
    %10173 = vmatpush.bf16.msra.mxu0 %v7460
    %10174 = vmatpush.bf16.msra.mxu0 %v7444
    %10175 = vmatpush.bf16.msra.mxu0 %v7428
    %10176 = vmatpush.bf16.msra.mxu0 %v7412
    %10177 = vmatmul.bf16.gmra.mxu0 %v4197
    %v10178 = vpop.f32.mrf.mxu0
    %v10179 = vadd.f32 %v10166, %v10178
    %v10180 = vpop.f32.mrf.mxu0
    %10181 = vdwg.mxu0
    %10182 = vmatpush.bf16.msra.mxu0 %v7652
    %10183 = vmatpush.bf16.msra.mxu0 %v7636
    %10184 = vmatpush.bf16.msra.mxu0 %v7620
    %10185 = vmatpush.bf16.msra.mxu0 %v7604
    %10186 = vmatpush.bf16.msra.mxu0 %v7588
    %10187 = vmatpush.bf16.msra.mxu0 %v7572
    %10188 = vmatpush.bf16.msra.mxu0 %v7556
    %10189 = vmatpush.bf16.msra.mxu0 %v7540
    %10190 = vmatmul.bf16.gmra.mxu0 %v4198
    %v10191 = vpop.f32.mrf.mxu0
    %v10192 = vadd.f32 %v10179, %v10191
    %v10193 = vpop.f32.mrf.mxu0
    %10194 = vdwg.mxu0
    %10195 = vmatpush.bf16.msra.mxu0 %v7780
    %10196 = vmatpush.bf16.msra.mxu0 %v7764
    %10197 = vmatpush.bf16.msra.mxu0 %v7748
    %10198 = vmatpush.bf16.msra.mxu0 %v7732
    %10199 = vmatpush.bf16.msra.mxu0 %v7716
    %10200 = vmatpush.bf16.msra.mxu0 %v7700
    %10201 = vmatpush.bf16.msra.mxu0 %v7684
    %10202 = vmatpush.bf16.msra.mxu0 %v7668
    %10203 = vmatmul.bf16.gmra.mxu0 %v4199
    %v10204 = vpop.f32.mrf.mxu0
    %v10205 = vadd.f32 %v10192, %v10204
    %v10206 = vpop.f32.mrf.mxu0
    %10207 = vdwg.mxu0
    %10208 = vmatpush.bf16.msra.mxu0 %v7908
    %10209 = vmatpush.bf16.msra.mxu0 %v7892
    %10210 = vmatpush.bf16.msra.mxu0 %v7876
    %10211 = vmatpush.bf16.msra.mxu0 %v7860
    %10212 = vmatpush.bf16.msra.mxu0 %v7844
    %10213 = vmatpush.bf16.msra.mxu0 %v7828
    %10214 = vmatpush.bf16.msra.mxu0 %v7812
    %10215 = vmatpush.bf16.msra.mxu0 %v7796
    %10216 = vmatmul.bf16.gmra.mxu0 %v4200
    %v10217 = vpop.f32.mrf.mxu0
    %v10218 = vadd.f32 %v10205, %v10217
    %v10219 = vpop.f32.mrf.mxu0
    %10220 = vdwg.mxu0
    %10221 = vmatpush.bf16.msra.mxu0 %v8036
    %10222 = vmatpush.bf16.msra.mxu0 %v8020
    %10223 = vmatpush.bf16.msra.mxu0 %v8004
    %10224 = vmatpush.bf16.msra.mxu0 %v7988
    %10225 = vmatpush.bf16.msra.mxu0 %v7972
    %10226 = vmatpush.bf16.msra.mxu0 %v7956
    %10227 = vmatpush.bf16.msra.mxu0 %v7940
    %10228 = vmatpush.bf16.msra.mxu0 %v7924
    %10229 = vmatmul.bf16.gmra.mxu0 %v4201
    %v10230 = vpop.f32.mrf.mxu0
    %v10231 = vadd.f32 %v10218, %v10230
    %v10232 = vpop.f32.mrf.mxu0
    %10233 = vdwg.mxu0
    %10234 = vmatpush.bf16.msra.mxu0 %v8164
    %10235 = vmatpush.bf16.msra.mxu0 %v8148
    %10236 = vmatpush.bf16.msra.mxu0 %v8132
    %10237 = vmatpush.bf16.msra.mxu0 %v8116
    %10238 = vmatpush.bf16.msra.mxu0 %v8100
    %10239 = vmatpush.bf16.msra.mxu0 %v8084
    %10240 = vmatpush.bf16.msra.mxu0 %v8068
    %10241 = vmatpush.bf16.msra.mxu0 %v8052
    %10242 = vmatmul.bf16.gmra.mxu0 %v4202
    %v10243 = vpop.f32.mrf.mxu0
    %v10244 = vadd.f32 %v10231, %v10243
    %v10245 = vpop.f32.mrf.mxu0
    %10246 = vdwg.mxu0
    %10247 = vmatpush.bf16.msra.mxu0 %v8292
    %10248 = vmatpush.bf16.msra.mxu0 %v8276
    %10249 = vmatpush.bf16.msra.mxu0 %v8260
    %10250 = vmatpush.bf16.msra.mxu0 %v8244
    %10251 = vmatpush.bf16.msra.mxu0 %v8228
    %10252 = vmatpush.bf16.msra.mxu0 %v8212
    %10253 = vmatpush.bf16.msra.mxu0 %v8196
    %10254 = vmatpush.bf16.msra.mxu0 %v8180
    %10255 = vmatmul.bf16.gmra.mxu0 %v4203
    %v10256 = vpop.f32.mrf.mxu0
    %v10257 = vadd.f32 %v10244, %v10256
    %v10258 = vpop.f32.mrf.mxu0
    %10259 = vdwg.mxu0
    %10260 = vmatpush.bf16.msra.mxu0 %v7397
    %10261 = vmatpush.bf16.msra.mxu0 %v7381
    %10262 = vmatpush.bf16.msra.mxu0 %v7365
    %10263 = vmatpush.bf16.msra.mxu0 %v7349
    %10264 = vmatpush.bf16.msra.mxu0 %v7333
    %10265 = vmatpush.bf16.msra.mxu0 %v7317
    %10266 = vmatpush.bf16.msra.mxu0 %v7301
    %10267 = vmatpush.bf16.msra.mxu0 %v7285
    %10268 = vmatmul.bf16.gmra.mxu0 %v4196
    %v10269 = vpop.f32.mrf.mxu0
    %v10270 = vadd.f32 0.0, %v10269
    %v10271 = vpop.f32.mrf.mxu0
    %10272 = vdwg.mxu0
    %10273 = vmatpush.bf16.msra.mxu0 %v7525
    %10274 = vmatpush.bf16.msra.mxu0 %v7509
    %10275 = vmatpush.bf16.msra.mxu0 %v7493
    %10276 = vmatpush.bf16.msra.mxu0 %v7477
    %10277 = vmatpush.bf16.msra.mxu0 %v7461
    %10278 = vmatpush.bf16.msra.mxu0 %v7445
    %10279 = vmatpush.bf16.msra.mxu0 %v7429
    %10280 = vmatpush.bf16.msra.mxu0 %v7413
    %10281 = vmatmul.bf16.gmra.mxu0 %v4197
    %v10282 = vpop.f32.mrf.mxu0
    %v10283 = vadd.f32 %v10270, %v10282
    %v10284 = vpop.f32.mrf.mxu0
    %10285 = vdwg.mxu0
    %10286 = vmatpush.bf16.msra.mxu0 %v7653
    %10287 = vmatpush.bf16.msra.mxu0 %v7637
    %10288 = vmatpush.bf16.msra.mxu0 %v7621
    %10289 = vmatpush.bf16.msra.mxu0 %v7605
    %10290 = vmatpush.bf16.msra.mxu0 %v7589
    %10291 = vmatpush.bf16.msra.mxu0 %v7573
    %10292 = vmatpush.bf16.msra.mxu0 %v7557
    %10293 = vmatpush.bf16.msra.mxu0 %v7541
    %10294 = vmatmul.bf16.gmra.mxu0 %v4198
    %v10295 = vpop.f32.mrf.mxu0
    %v10296 = vadd.f32 %v10283, %v10295
    %v10297 = vpop.f32.mrf.mxu0
    %10298 = vdwg.mxu0
    %10299 = vmatpush.bf16.msra.mxu0 %v7781
    %10300 = vmatpush.bf16.msra.mxu0 %v7765
    %10301 = vmatpush.bf16.msra.mxu0 %v7749
    %10302 = vmatpush.bf16.msra.mxu0 %v7733
    %10303 = vmatpush.bf16.msra.mxu0 %v7717
    %10304 = vmatpush.bf16.msra.mxu0 %v7701
    %10305 = vmatpush.bf16.msra.mxu0 %v7685
    %10306 = vmatpush.bf16.msra.mxu0 %v7669
    %10307 = vmatmul.bf16.gmra.mxu0 %v4199
    %v10308 = vpop.f32.mrf.mxu0
    %v10309 = vadd.f32 %v10296, %v10308
    %v10310 = vpop.f32.mrf.mxu0
    %10311 = vdwg.mxu0
    %10312 = vmatpush.bf16.msra.mxu0 %v7909
    %10313 = vmatpush.bf16.msra.mxu0 %v7893
    %10314 = vmatpush.bf16.msra.mxu0 %v7877
    %10315 = vmatpush.bf16.msra.mxu0 %v7861
    %10316 = vmatpush.bf16.msra.mxu0 %v7845
    %10317 = vmatpush.bf16.msra.mxu0 %v7829
    %10318 = vmatpush.bf16.msra.mxu0 %v7813
    %10319 = vmatpush.bf16.msra.mxu0 %v7797
    %10320 = vmatmul.bf16.gmra.mxu0 %v4200
    %v10321 = vpop.f32.mrf.mxu0
    %v10322 = vadd.f32 %v10309, %v10321
    %v10323 = vpop.f32.mrf.mxu0
    %10324 = vdwg.mxu0
    %10325 = vmatpush.bf16.msra.mxu0 %v8037
    %10326 = vmatpush.bf16.msra.mxu0 %v8021
    %10327 = vmatpush.bf16.msra.mxu0 %v8005
    %10328 = vmatpush.bf16.msra.mxu0 %v7989
    %10329 = vmatpush.bf16.msra.mxu0 %v7973
    %10330 = vmatpush.bf16.msra.mxu0 %v7957
    %10331 = vmatpush.bf16.msra.mxu0 %v7941
    %10332 = vmatpush.bf16.msra.mxu0 %v7925
    %10333 = vmatmul.bf16.gmra.mxu0 %v4201
    %v10334 = vpop.f32.mrf.mxu0
    %v10335 = vadd.f32 %v10322, %v10334
    %v10336 = vpop.f32.mrf.mxu0
    %10337 = vdwg.mxu0
    %10338 = vmatpush.bf16.msra.mxu0 %v8165
    %10339 = vmatpush.bf16.msra.mxu0 %v8149
    %10340 = vmatpush.bf16.msra.mxu0 %v8133
    %10341 = vmatpush.bf16.msra.mxu0 %v8117
    %10342 = vmatpush.bf16.msra.mxu0 %v8101
    %10343 = vmatpush.bf16.msra.mxu0 %v8085
    %10344 = vmatpush.bf16.msra.mxu0 %v8069
    %10345 = vmatpush.bf16.msra.mxu0 %v8053
    %10346 = vmatmul.bf16.gmra.mxu0 %v4202
    %v10347 = vpop.f32.mrf.mxu0
    %v10348 = vadd.f32 %v10335, %v10347
    %v10349 = vpop.f32.mrf.mxu0
    %10350 = vdwg.mxu0
    %10351 = vmatpush.bf16.msra.mxu0 %v8293
    %10352 = vmatpush.bf16.msra.mxu0 %v8277
    %10353 = vmatpush.bf16.msra.mxu0 %v8261
    %10354 = vmatpush.bf16.msra.mxu0 %v8245
    %10355 = vmatpush.bf16.msra.mxu0 %v8229
    %10356 = vmatpush.bf16.msra.mxu0 %v8213
    %10357 = vmatpush.bf16.msra.mxu0 %v8197
    %10358 = vmatpush.bf16.msra.mxu0 %v8181
    %10359 = vmatmul.bf16.gmra.mxu0 %v4203
    %v10360 = vpop.f32.mrf.mxu0
    %v10361 = vadd.f32 %v10348, %v10360
    %v10362 = vpop.f32.mrf.mxu0
    %10363 = vdwg.mxu0
    %10364 = vmatpush.bf16.msra.mxu0 %v7398
    %10365 = vmatpush.bf16.msra.mxu0 %v7382
    %10366 = vmatpush.bf16.msra.mxu0 %v7366
    %10367 = vmatpush.bf16.msra.mxu0 %v7350
    %10368 = vmatpush.bf16.msra.mxu0 %v7334
    %10369 = vmatpush.bf16.msra.mxu0 %v7318
    %10370 = vmatpush.bf16.msra.mxu0 %v7302
    %10371 = vmatpush.bf16.msra.mxu0 %v7286
    %10372 = vmatmul.bf16.gmra.mxu0 %v4196
    %v10373 = vpop.f32.mrf.mxu0
    %v10374 = vadd.f32 0.0, %v10373
    %v10375 = vpop.f32.mrf.mxu0
    %10376 = vdwg.mxu0
    %10377 = vmatpush.bf16.msra.mxu0 %v7526
    %10378 = vmatpush.bf16.msra.mxu0 %v7510
    %10379 = vmatpush.bf16.msra.mxu0 %v7494
    %10380 = vmatpush.bf16.msra.mxu0 %v7478
    %10381 = vmatpush.bf16.msra.mxu0 %v7462
    %10382 = vmatpush.bf16.msra.mxu0 %v7446
    %10383 = vmatpush.bf16.msra.mxu0 %v7430
    %10384 = vmatpush.bf16.msra.mxu0 %v7414
    %10385 = vmatmul.bf16.gmra.mxu0 %v4197
    %v10386 = vpop.f32.mrf.mxu0
    %v10387 = vadd.f32 %v10374, %v10386
    %v10388 = vpop.f32.mrf.mxu0
    %10389 = vdwg.mxu0
    %10390 = vmatpush.bf16.msra.mxu0 %v7654
    %10391 = vmatpush.bf16.msra.mxu0 %v7638
    %10392 = vmatpush.bf16.msra.mxu0 %v7622
    %10393 = vmatpush.bf16.msra.mxu0 %v7606
    %10394 = vmatpush.bf16.msra.mxu0 %v7590
    %10395 = vmatpush.bf16.msra.mxu0 %v7574
    %10396 = vmatpush.bf16.msra.mxu0 %v7558
    %10397 = vmatpush.bf16.msra.mxu0 %v7542
    %10398 = vmatmul.bf16.gmra.mxu0 %v4198
    %v10399 = vpop.f32.mrf.mxu0
    %v10400 = vadd.f32 %v10387, %v10399
    %v10401 = vpop.f32.mrf.mxu0
    %10402 = vdwg.mxu0
    %10403 = vmatpush.bf16.msra.mxu0 %v7782
    %10404 = vmatpush.bf16.msra.mxu0 %v7766
    %10405 = vmatpush.bf16.msra.mxu0 %v7750
    %10406 = vmatpush.bf16.msra.mxu0 %v7734
    %10407 = vmatpush.bf16.msra.mxu0 %v7718
    %10408 = vmatpush.bf16.msra.mxu0 %v7702
    %10409 = vmatpush.bf16.msra.mxu0 %v7686
    %10410 = vmatpush.bf16.msra.mxu0 %v7670
    %10411 = vmatmul.bf16.gmra.mxu0 %v4199
    %v10412 = vpop.f32.mrf.mxu0
    %v10413 = vadd.f32 %v10400, %v10412
    %v10414 = vpop.f32.mrf.mxu0
    %10415 = vdwg.mxu0
    %10416 = vmatpush.bf16.msra.mxu0 %v7910
    %10417 = vmatpush.bf16.msra.mxu0 %v7894
    %10418 = vmatpush.bf16.msra.mxu0 %v7878
    %10419 = vmatpush.bf16.msra.mxu0 %v7862
    %10420 = vmatpush.bf16.msra.mxu0 %v7846
    %10421 = vmatpush.bf16.msra.mxu0 %v7830
    %10422 = vmatpush.bf16.msra.mxu0 %v7814
    %10423 = vmatpush.bf16.msra.mxu0 %v7798
    %10424 = vmatmul.bf16.gmra.mxu0 %v4200
    %v10425 = vpop.f32.mrf.mxu0
    %v10426 = vadd.f32 %v10413, %v10425
    %v10427 = vpop.f32.mrf.mxu0
    %10428 = vdwg.mxu0
    %10429 = vmatpush.bf16.msra.mxu0 %v8038
    %10430 = vmatpush.bf16.msra.mxu0 %v8022
    %10431 = vmatpush.bf16.msra.mxu0 %v8006
    %10432 = vmatpush.bf16.msra.mxu0 %v7990
    %10433 = vmatpush.bf16.msra.mxu0 %v7974
    %10434 = vmatpush.bf16.msra.mxu0 %v7958
    %10435 = vmatpush.bf16.msra.mxu0 %v7942
    %10436 = vmatpush.bf16.msra.mxu0 %v7926
    %10437 = vmatmul.bf16.gmra.mxu0 %v4201
    %v10438 = vpop.f32.mrf.mxu0
    %v10439 = vadd.f32 %v10426, %v10438
    %v10440 = vpop.f32.mrf.mxu0
    %10441 = vdwg.mxu0
    %10442 = vmatpush.bf16.msra.mxu0 %v8166
    %10443 = vmatpush.bf16.msra.mxu0 %v8150
    %10444 = vmatpush.bf16.msra.mxu0 %v8134
    %10445 = vmatpush.bf16.msra.mxu0 %v8118
    %10446 = vmatpush.bf16.msra.mxu0 %v8102
    %10447 = vmatpush.bf16.msra.mxu0 %v8086
    %10448 = vmatpush.bf16.msra.mxu0 %v8070
    %10449 = vmatpush.bf16.msra.mxu0 %v8054
    %10450 = vmatmul.bf16.gmra.mxu0 %v4202
    %v10451 = vpop.f32.mrf.mxu0
    %v10452 = vadd.f32 %v10439, %v10451
    %v10453 = vpop.f32.mrf.mxu0
    %10454 = vdwg.mxu0
    %10455 = vmatpush.bf16.msra.mxu0 %v8294
    %10456 = vmatpush.bf16.msra.mxu0 %v8278
    %10457 = vmatpush.bf16.msra.mxu0 %v8262
    %10458 = vmatpush.bf16.msra.mxu0 %v8246
    %10459 = vmatpush.bf16.msra.mxu0 %v8230
    %10460 = vmatpush.bf16.msra.mxu0 %v8214
    %10461 = vmatpush.bf16.msra.mxu0 %v8198
    %10462 = vmatpush.bf16.msra.mxu0 %v8182
    %10463 = vmatmul.bf16.gmra.mxu0 %v4203
    %v10464 = vpop.f32.mrf.mxu0
    %v10465 = vadd.f32 %v10452, %v10464
    %v10466 = vpop.f32.mrf.mxu0
    %10467 = vdwg.mxu0
    %10468 = vmatpush.bf16.msra.mxu0 %v7399
    %10469 = vmatpush.bf16.msra.mxu0 %v7383
    %10470 = vmatpush.bf16.msra.mxu0 %v7367
    %10471 = vmatpush.bf16.msra.mxu0 %v7351
    %10472 = vmatpush.bf16.msra.mxu0 %v7335
    %10473 = vmatpush.bf16.msra.mxu0 %v7319
    %10474 = vmatpush.bf16.msra.mxu0 %v7303
    %10475 = vmatpush.bf16.msra.mxu0 %v7287
    %10476 = vmatmul.bf16.gmra.mxu0 %v4196
    %v10477 = vpop.f32.mrf.mxu0
    %v10478 = vadd.f32 0.0, %v10477
    %v10479 = vpop.f32.mrf.mxu0
    %10480 = vdwg.mxu0
    %10481 = vmatpush.bf16.msra.mxu0 %v7527
    %10482 = vmatpush.bf16.msra.mxu0 %v7511
    %10483 = vmatpush.bf16.msra.mxu0 %v7495
    %10484 = vmatpush.bf16.msra.mxu0 %v7479
    %10485 = vmatpush.bf16.msra.mxu0 %v7463
    %10486 = vmatpush.bf16.msra.mxu0 %v7447
    %10487 = vmatpush.bf16.msra.mxu0 %v7431
    %10488 = vmatpush.bf16.msra.mxu0 %v7415
    %10489 = vmatmul.bf16.gmra.mxu0 %v4197
    %v10490 = vpop.f32.mrf.mxu0
    %v10491 = vadd.f32 %v10478, %v10490
    %v10492 = vpop.f32.mrf.mxu0
    %10493 = vdwg.mxu0
    %10494 = vmatpush.bf16.msra.mxu0 %v7655
    %10495 = vmatpush.bf16.msra.mxu0 %v7639
    %10496 = vmatpush.bf16.msra.mxu0 %v7623
    %10497 = vmatpush.bf16.msra.mxu0 %v7607
    %10498 = vmatpush.bf16.msra.mxu0 %v7591
    %10499 = vmatpush.bf16.msra.mxu0 %v7575
    %10500 = vmatpush.bf16.msra.mxu0 %v7559
    %10501 = vmatpush.bf16.msra.mxu0 %v7543
    %10502 = vmatmul.bf16.gmra.mxu0 %v4198
    %v10503 = vpop.f32.mrf.mxu0
    %v10504 = vadd.f32 %v10491, %v10503
    %v10505 = vpop.f32.mrf.mxu0
    %10506 = vdwg.mxu0
    %10507 = vmatpush.bf16.msra.mxu0 %v7783
    %10508 = vmatpush.bf16.msra.mxu0 %v7767
    %10509 = vmatpush.bf16.msra.mxu0 %v7751
    %10510 = vmatpush.bf16.msra.mxu0 %v7735
    %10511 = vmatpush.bf16.msra.mxu0 %v7719
    %10512 = vmatpush.bf16.msra.mxu0 %v7703
    %10513 = vmatpush.bf16.msra.mxu0 %v7687
    %10514 = vmatpush.bf16.msra.mxu0 %v7671
    %10515 = vmatmul.bf16.gmra.mxu0 %v4199
    %v10516 = vpop.f32.mrf.mxu0
    %v10517 = vadd.f32 %v10504, %v10516
    %v10518 = vpop.f32.mrf.mxu0
    %10519 = vdwg.mxu0
    %10520 = vmatpush.bf16.msra.mxu0 %v7911
    %10521 = vmatpush.bf16.msra.mxu0 %v7895
    %10522 = vmatpush.bf16.msra.mxu0 %v7879
    %10523 = vmatpush.bf16.msra.mxu0 %v7863
    %10524 = vmatpush.bf16.msra.mxu0 %v7847
    %10525 = vmatpush.bf16.msra.mxu0 %v7831
    %10526 = vmatpush.bf16.msra.mxu0 %v7815
    %10527 = vmatpush.bf16.msra.mxu0 %v7799
    %10528 = vmatmul.bf16.gmra.mxu0 %v4200
    %v10529 = vpop.f32.mrf.mxu0
    %v10530 = vadd.f32 %v10517, %v10529
    %v10531 = vpop.f32.mrf.mxu0
    %10532 = vdwg.mxu0
    %10533 = vmatpush.bf16.msra.mxu0 %v8039
    %10534 = vmatpush.bf16.msra.mxu0 %v8023
    %10535 = vmatpush.bf16.msra.mxu0 %v8007
    %10536 = vmatpush.bf16.msra.mxu0 %v7991
    %10537 = vmatpush.bf16.msra.mxu0 %v7975
    %10538 = vmatpush.bf16.msra.mxu0 %v7959
    %10539 = vmatpush.bf16.msra.mxu0 %v7943
    %10540 = vmatpush.bf16.msra.mxu0 %v7927
    %10541 = vmatmul.bf16.gmra.mxu0 %v4201
    %v10542 = vpop.f32.mrf.mxu0
    %v10543 = vadd.f32 %v10530, %v10542
    %v10544 = vpop.f32.mrf.mxu0
    %10545 = vdwg.mxu0
    %10546 = vmatpush.bf16.msra.mxu0 %v8167
    %10547 = vmatpush.bf16.msra.mxu0 %v8151
    %10548 = vmatpush.bf16.msra.mxu0 %v8135
    %10549 = vmatpush.bf16.msra.mxu0 %v8119
    %10550 = vmatpush.bf16.msra.mxu0 %v8103
    %10551 = vmatpush.bf16.msra.mxu0 %v8087
    %10552 = vmatpush.bf16.msra.mxu0 %v8071
    %10553 = vmatpush.bf16.msra.mxu0 %v8055
    %10554 = vmatmul.bf16.gmra.mxu0 %v4202
    %v10555 = vpop.f32.mrf.mxu0
    %v10556 = vadd.f32 %v10543, %v10555
    %v10557 = vpop.f32.mrf.mxu0
    %10558 = vdwg.mxu0
    %10559 = vmatpush.bf16.msra.mxu0 %v8295
    %10560 = vmatpush.bf16.msra.mxu0 %v8279
    %10561 = vmatpush.bf16.msra.mxu0 %v8263
    %10562 = vmatpush.bf16.msra.mxu0 %v8247
    %10563 = vmatpush.bf16.msra.mxu0 %v8231
    %10564 = vmatpush.bf16.msra.mxu0 %v8215
    %10565 = vmatpush.bf16.msra.mxu0 %v8199
    %10566 = vmatpush.bf16.msra.mxu0 %v8183
    %10567 = vmatmul.bf16.gmra.mxu0 %v4203
    %v10568 = vpop.f32.mrf.mxu0
    %v10569 = vadd.f32 %v10556, %v10568
    %v10570 = vpop.f32.mrf.mxu0
    %10571 = vdwg.mxu0
    %10572 = vmatpush.bf16.msra.mxu0 %v7400
    %10573 = vmatpush.bf16.msra.mxu0 %v7384
    %10574 = vmatpush.bf16.msra.mxu0 %v7368
    %10575 = vmatpush.bf16.msra.mxu0 %v7352
    %10576 = vmatpush.bf16.msra.mxu0 %v7336
    %10577 = vmatpush.bf16.msra.mxu0 %v7320
    %10578 = vmatpush.bf16.msra.mxu0 %v7304
    %10579 = vmatpush.bf16.msra.mxu0 %v7288
    %10580 = vmatmul.bf16.gmra.mxu0 %v4196
    %v10581 = vpop.f32.mrf.mxu0
    %v10582 = vadd.f32 0.0, %v10581
    %v10583 = vpop.f32.mrf.mxu0
    %10584 = vdwg.mxu0
    %10585 = vmatpush.bf16.msra.mxu0 %v7528
    %10586 = vmatpush.bf16.msra.mxu0 %v7512
    %10587 = vmatpush.bf16.msra.mxu0 %v7496
    %10588 = vmatpush.bf16.msra.mxu0 %v7480
    %10589 = vmatpush.bf16.msra.mxu0 %v7464
    %10590 = vmatpush.bf16.msra.mxu0 %v7448
    %10591 = vmatpush.bf16.msra.mxu0 %v7432
    %10592 = vmatpush.bf16.msra.mxu0 %v7416
    %10593 = vmatmul.bf16.gmra.mxu0 %v4197
    %v10594 = vpop.f32.mrf.mxu0
    %v10595 = vadd.f32 %v10582, %v10594
    %v10596 = vpop.f32.mrf.mxu0
    %10597 = vdwg.mxu0
    %10598 = vmatpush.bf16.msra.mxu0 %v7656
    %10599 = vmatpush.bf16.msra.mxu0 %v7640
    %10600 = vmatpush.bf16.msra.mxu0 %v7624
    %10601 = vmatpush.bf16.msra.mxu0 %v7608
    %10602 = vmatpush.bf16.msra.mxu0 %v7592
    %10603 = vmatpush.bf16.msra.mxu0 %v7576
    %10604 = vmatpush.bf16.msra.mxu0 %v7560
    %10605 = vmatpush.bf16.msra.mxu0 %v7544
    %10606 = vmatmul.bf16.gmra.mxu0 %v4198
    %v10607 = vpop.f32.mrf.mxu0
    %v10608 = vadd.f32 %v10595, %v10607
    %v10609 = vpop.f32.mrf.mxu0
    %10610 = vdwg.mxu0
    %10611 = vmatpush.bf16.msra.mxu0 %v7784
    %10612 = vmatpush.bf16.msra.mxu0 %v7768
    %10613 = vmatpush.bf16.msra.mxu0 %v7752
    %10614 = vmatpush.bf16.msra.mxu0 %v7736
    %10615 = vmatpush.bf16.msra.mxu0 %v7720
    %10616 = vmatpush.bf16.msra.mxu0 %v7704
    %10617 = vmatpush.bf16.msra.mxu0 %v7688
    %10618 = vmatpush.bf16.msra.mxu0 %v7672
    %10619 = vmatmul.bf16.gmra.mxu0 %v4199
    %v10620 = vpop.f32.mrf.mxu0
    %v10621 = vadd.f32 %v10608, %v10620
    %v10622 = vpop.f32.mrf.mxu0
    %10623 = vdwg.mxu0
    %10624 = vmatpush.bf16.msra.mxu0 %v7912
    %10625 = vmatpush.bf16.msra.mxu0 %v7896
    %10626 = vmatpush.bf16.msra.mxu0 %v7880
    %10627 = vmatpush.bf16.msra.mxu0 %v7864
    %10628 = vmatpush.bf16.msra.mxu0 %v7848
    %10629 = vmatpush.bf16.msra.mxu0 %v7832
    %10630 = vmatpush.bf16.msra.mxu0 %v7816
    %10631 = vmatpush.bf16.msra.mxu0 %v7800
    %10632 = vmatmul.bf16.gmra.mxu0 %v4200
    %v10633 = vpop.f32.mrf.mxu0
    %v10634 = vadd.f32 %v10621, %v10633
    %v10635 = vpop.f32.mrf.mxu0
    %10636 = vdwg.mxu0
    %10637 = vmatpush.bf16.msra.mxu0 %v8040
    %10638 = vmatpush.bf16.msra.mxu0 %v8024
    %10639 = vmatpush.bf16.msra.mxu0 %v8008
    %10640 = vmatpush.bf16.msra.mxu0 %v7992
    %10641 = vmatpush.bf16.msra.mxu0 %v7976
    %10642 = vmatpush.bf16.msra.mxu0 %v7960
    %10643 = vmatpush.bf16.msra.mxu0 %v7944
    %10644 = vmatpush.bf16.msra.mxu0 %v7928
    %10645 = vmatmul.bf16.gmra.mxu0 %v4201
    %v10646 = vpop.f32.mrf.mxu0
    %v10647 = vadd.f32 %v10634, %v10646
    %v10648 = vpop.f32.mrf.mxu0
    %10649 = vdwg.mxu0
    %10650 = vmatpush.bf16.msra.mxu0 %v8168
    %10651 = vmatpush.bf16.msra.mxu0 %v8152
    %10652 = vmatpush.bf16.msra.mxu0 %v8136
    %10653 = vmatpush.bf16.msra.mxu0 %v8120
    %10654 = vmatpush.bf16.msra.mxu0 %v8104
    %10655 = vmatpush.bf16.msra.mxu0 %v8088
    %10656 = vmatpush.bf16.msra.mxu0 %v8072
    %10657 = vmatpush.bf16.msra.mxu0 %v8056
    %10658 = vmatmul.bf16.gmra.mxu0 %v4202
    %v10659 = vpop.f32.mrf.mxu0
    %v10660 = vadd.f32 %v10647, %v10659
    %v10661 = vpop.f32.mrf.mxu0
    %10662 = vdwg.mxu0
    %10663 = vmatpush.bf16.msra.mxu0 %v8296
    %10664 = vmatpush.bf16.msra.mxu0 %v8280
    %10665 = vmatpush.bf16.msra.mxu0 %v8264
    %10666 = vmatpush.bf16.msra.mxu0 %v8248
    %10667 = vmatpush.bf16.msra.mxu0 %v8232
    %10668 = vmatpush.bf16.msra.mxu0 %v8216
    %10669 = vmatpush.bf16.msra.mxu0 %v8200
    %10670 = vmatpush.bf16.msra.mxu0 %v8184
    %10671 = vmatmul.bf16.gmra.mxu0 %v4203
    %v10672 = vpop.f32.mrf.mxu0
    %v10673 = vadd.f32 %v10660, %v10672
    %v10674 = vpop.f32.mrf.mxu0
    %10675 = vdwg.mxu0
    %10676 = vmatpush.bf16.msra.mxu0 %v7401
    %10677 = vmatpush.bf16.msra.mxu0 %v7385
    %10678 = vmatpush.bf16.msra.mxu0 %v7369
    %10679 = vmatpush.bf16.msra.mxu0 %v7353
    %10680 = vmatpush.bf16.msra.mxu0 %v7337
    %10681 = vmatpush.bf16.msra.mxu0 %v7321
    %10682 = vmatpush.bf16.msra.mxu0 %v7305
    %10683 = vmatpush.bf16.msra.mxu0 %v7289
    %10684 = vmatmul.bf16.gmra.mxu0 %v4196
    %v10685 = vpop.f32.mrf.mxu0
    %v10686 = vadd.f32 0.0, %v10685
    %v10687 = vpop.f32.mrf.mxu0
    %10688 = vdwg.mxu0
    %10689 = vmatpush.bf16.msra.mxu0 %v7529
    %10690 = vmatpush.bf16.msra.mxu0 %v7513
    %10691 = vmatpush.bf16.msra.mxu0 %v7497
    %10692 = vmatpush.bf16.msra.mxu0 %v7481
    %10693 = vmatpush.bf16.msra.mxu0 %v7465
    %10694 = vmatpush.bf16.msra.mxu0 %v7449
    %10695 = vmatpush.bf16.msra.mxu0 %v7433
    %10696 = vmatpush.bf16.msra.mxu0 %v7417
    %10697 = vmatmul.bf16.gmra.mxu0 %v4197
    %v10698 = vpop.f32.mrf.mxu0
    %v10699 = vadd.f32 %v10686, %v10698
    %v10700 = vpop.f32.mrf.mxu0
    %10701 = vdwg.mxu0
    %10702 = vmatpush.bf16.msra.mxu0 %v7657
    %10703 = vmatpush.bf16.msra.mxu0 %v7641
    %10704 = vmatpush.bf16.msra.mxu0 %v7625
    %10705 = vmatpush.bf16.msra.mxu0 %v7609
    %10706 = vmatpush.bf16.msra.mxu0 %v7593
    %10707 = vmatpush.bf16.msra.mxu0 %v7577
    %10708 = vmatpush.bf16.msra.mxu0 %v7561
    %10709 = vmatpush.bf16.msra.mxu0 %v7545
    %10710 = vmatmul.bf16.gmra.mxu0 %v4198
    %v10711 = vpop.f32.mrf.mxu0
    %v10712 = vadd.f32 %v10699, %v10711
    %v10713 = vpop.f32.mrf.mxu0
    %10714 = vdwg.mxu0
    %10715 = vmatpush.bf16.msra.mxu0 %v7785
    %10716 = vmatpush.bf16.msra.mxu0 %v7769
    %10717 = vmatpush.bf16.msra.mxu0 %v7753
    %10718 = vmatpush.bf16.msra.mxu0 %v7737
    %10719 = vmatpush.bf16.msra.mxu0 %v7721
    %10720 = vmatpush.bf16.msra.mxu0 %v7705
    %10721 = vmatpush.bf16.msra.mxu0 %v7689
    %10722 = vmatpush.bf16.msra.mxu0 %v7673
    %10723 = vmatmul.bf16.gmra.mxu0 %v4199
    %v10724 = vpop.f32.mrf.mxu0
    %v10725 = vadd.f32 %v10712, %v10724
    %v10726 = vpop.f32.mrf.mxu0
    %10727 = vdwg.mxu0
    %10728 = vmatpush.bf16.msra.mxu0 %v7913
    %10729 = vmatpush.bf16.msra.mxu0 %v7897
    %10730 = vmatpush.bf16.msra.mxu0 %v7881
    %10731 = vmatpush.bf16.msra.mxu0 %v7865
    %10732 = vmatpush.bf16.msra.mxu0 %v7849
    %10733 = vmatpush.bf16.msra.mxu0 %v7833
    %10734 = vmatpush.bf16.msra.mxu0 %v7817
    %10735 = vmatpush.bf16.msra.mxu0 %v7801
    %10736 = vmatmul.bf16.gmra.mxu0 %v4200
    %v10737 = vpop.f32.mrf.mxu0
    %v10738 = vadd.f32 %v10725, %v10737
    %v10739 = vpop.f32.mrf.mxu0
    %10740 = vdwg.mxu0
    %10741 = vmatpush.bf16.msra.mxu0 %v8041
    %10742 = vmatpush.bf16.msra.mxu0 %v8025
    %10743 = vmatpush.bf16.msra.mxu0 %v8009
    %10744 = vmatpush.bf16.msra.mxu0 %v7993
    %10745 = vmatpush.bf16.msra.mxu0 %v7977
    %10746 = vmatpush.bf16.msra.mxu0 %v7961
    %10747 = vmatpush.bf16.msra.mxu0 %v7945
    %10748 = vmatpush.bf16.msra.mxu0 %v7929
    %10749 = vmatmul.bf16.gmra.mxu0 %v4201
    %v10750 = vpop.f32.mrf.mxu0
    %v10751 = vadd.f32 %v10738, %v10750
    %v10752 = vpop.f32.mrf.mxu0
    %10753 = vdwg.mxu0
    %10754 = vmatpush.bf16.msra.mxu0 %v8169
    %10755 = vmatpush.bf16.msra.mxu0 %v8153
    %10756 = vmatpush.bf16.msra.mxu0 %v8137
    %10757 = vmatpush.bf16.msra.mxu0 %v8121
    %10758 = vmatpush.bf16.msra.mxu0 %v8105
    %10759 = vmatpush.bf16.msra.mxu0 %v8089
    %10760 = vmatpush.bf16.msra.mxu0 %v8073
    %10761 = vmatpush.bf16.msra.mxu0 %v8057
    %10762 = vmatmul.bf16.gmra.mxu0 %v4202
    %v10763 = vpop.f32.mrf.mxu0
    %v10764 = vadd.f32 %v10751, %v10763
    %v10765 = vpop.f32.mrf.mxu0
    %10766 = vdwg.mxu0
    %10767 = vmatpush.bf16.msra.mxu0 %v8297
    %10768 = vmatpush.bf16.msra.mxu0 %v8281
    %10769 = vmatpush.bf16.msra.mxu0 %v8265
    %10770 = vmatpush.bf16.msra.mxu0 %v8249
    %10771 = vmatpush.bf16.msra.mxu0 %v8233
    %10772 = vmatpush.bf16.msra.mxu0 %v8217
    %10773 = vmatpush.bf16.msra.mxu0 %v8201
    %10774 = vmatpush.bf16.msra.mxu0 %v8185
    %10775 = vmatmul.bf16.gmra.mxu0 %v4203
    %v10776 = vpop.f32.mrf.mxu0
    %v10777 = vadd.f32 %v10764, %v10776
    %v10778 = vpop.f32.mrf.mxu0
    %10779 = vdwg.mxu0
    %10780 = vmatpush.bf16.msra.mxu0 %v7402
    %10781 = vmatpush.bf16.msra.mxu0 %v7386
    %10782 = vmatpush.bf16.msra.mxu0 %v7370
    %10783 = vmatpush.bf16.msra.mxu0 %v7354
    %10784 = vmatpush.bf16.msra.mxu0 %v7338
    %10785 = vmatpush.bf16.msra.mxu0 %v7322
    %10786 = vmatpush.bf16.msra.mxu0 %v7306
    %10787 = vmatpush.bf16.msra.mxu0 %v7290
    %10788 = vmatmul.bf16.gmra.mxu0 %v4196
    %v10789 = vpop.f32.mrf.mxu0
    %v10790 = vadd.f32 0.0, %v10789
    %v10791 = vpop.f32.mrf.mxu0
    %10792 = vdwg.mxu0
    %10793 = vmatpush.bf16.msra.mxu0 %v7530
    %10794 = vmatpush.bf16.msra.mxu0 %v7514
    %10795 = vmatpush.bf16.msra.mxu0 %v7498
    %10796 = vmatpush.bf16.msra.mxu0 %v7482
    %10797 = vmatpush.bf16.msra.mxu0 %v7466
    %10798 = vmatpush.bf16.msra.mxu0 %v7450
    %10799 = vmatpush.bf16.msra.mxu0 %v7434
    %10800 = vmatpush.bf16.msra.mxu0 %v7418
    %10801 = vmatmul.bf16.gmra.mxu0 %v4197
    %v10802 = vpop.f32.mrf.mxu0
    %v10803 = vadd.f32 %v10790, %v10802
    %v10804 = vpop.f32.mrf.mxu0
    %10805 = vdwg.mxu0
    %10806 = vmatpush.bf16.msra.mxu0 %v7658
    %10807 = vmatpush.bf16.msra.mxu0 %v7642
    %10808 = vmatpush.bf16.msra.mxu0 %v7626
    %10809 = vmatpush.bf16.msra.mxu0 %v7610
    %10810 = vmatpush.bf16.msra.mxu0 %v7594
    %10811 = vmatpush.bf16.msra.mxu0 %v7578
    %10812 = vmatpush.bf16.msra.mxu0 %v7562
    %10813 = vmatpush.bf16.msra.mxu0 %v7546
    %10814 = vmatmul.bf16.gmra.mxu0 %v4198
    %v10815 = vpop.f32.mrf.mxu0
    %v10816 = vadd.f32 %v10803, %v10815
    %v10817 = vpop.f32.mrf.mxu0
    %10818 = vdwg.mxu0
    %10819 = vmatpush.bf16.msra.mxu0 %v7786
    %10820 = vmatpush.bf16.msra.mxu0 %v7770
    %10821 = vmatpush.bf16.msra.mxu0 %v7754
    %10822 = vmatpush.bf16.msra.mxu0 %v7738
    %10823 = vmatpush.bf16.msra.mxu0 %v7722
    %10824 = vmatpush.bf16.msra.mxu0 %v7706
    %10825 = vmatpush.bf16.msra.mxu0 %v7690
    %10826 = vmatpush.bf16.msra.mxu0 %v7674
    %10827 = vmatmul.bf16.gmra.mxu0 %v4199
    %v10828 = vpop.f32.mrf.mxu0
    %v10829 = vadd.f32 %v10816, %v10828
    %v10830 = vpop.f32.mrf.mxu0
    %10831 = vdwg.mxu0
    %10832 = vmatpush.bf16.msra.mxu0 %v7914
    %10833 = vmatpush.bf16.msra.mxu0 %v7898
    %10834 = vmatpush.bf16.msra.mxu0 %v7882
    %10835 = vmatpush.bf16.msra.mxu0 %v7866
    %10836 = vmatpush.bf16.msra.mxu0 %v7850
    %10837 = vmatpush.bf16.msra.mxu0 %v7834
    %10838 = vmatpush.bf16.msra.mxu0 %v7818
    %10839 = vmatpush.bf16.msra.mxu0 %v7802
    %10840 = vmatmul.bf16.gmra.mxu0 %v4200
    %v10841 = vpop.f32.mrf.mxu0
    %v10842 = vadd.f32 %v10829, %v10841
    %v10843 = vpop.f32.mrf.mxu0
    %10844 = vdwg.mxu0
    %10845 = vmatpush.bf16.msra.mxu0 %v8042
    %10846 = vmatpush.bf16.msra.mxu0 %v8026
    %10847 = vmatpush.bf16.msra.mxu0 %v8010
    %10848 = vmatpush.bf16.msra.mxu0 %v7994
    %10849 = vmatpush.bf16.msra.mxu0 %v7978
    %10850 = vmatpush.bf16.msra.mxu0 %v7962
    %10851 = vmatpush.bf16.msra.mxu0 %v7946
    %10852 = vmatpush.bf16.msra.mxu0 %v7930
    %10853 = vmatmul.bf16.gmra.mxu0 %v4201
    %v10854 = vpop.f32.mrf.mxu0
    %v10855 = vadd.f32 %v10842, %v10854
    %v10856 = vpop.f32.mrf.mxu0
    %10857 = vdwg.mxu0
    %10858 = vmatpush.bf16.msra.mxu0 %v8170
    %10859 = vmatpush.bf16.msra.mxu0 %v8154
    %10860 = vmatpush.bf16.msra.mxu0 %v8138
    %10861 = vmatpush.bf16.msra.mxu0 %v8122
    %10862 = vmatpush.bf16.msra.mxu0 %v8106
    %10863 = vmatpush.bf16.msra.mxu0 %v8090
    %10864 = vmatpush.bf16.msra.mxu0 %v8074
    %10865 = vmatpush.bf16.msra.mxu0 %v8058
    %10866 = vmatmul.bf16.gmra.mxu0 %v4202
    %v10867 = vpop.f32.mrf.mxu0
    %v10868 = vadd.f32 %v10855, %v10867
    %v10869 = vpop.f32.mrf.mxu0
    %10870 = vdwg.mxu0
    %10871 = vmatpush.bf16.msra.mxu0 %v8298
    %10872 = vmatpush.bf16.msra.mxu0 %v8282
    %10873 = vmatpush.bf16.msra.mxu0 %v8266
    %10874 = vmatpush.bf16.msra.mxu0 %v8250
    %10875 = vmatpush.bf16.msra.mxu0 %v8234
    %10876 = vmatpush.bf16.msra.mxu0 %v8218
    %10877 = vmatpush.bf16.msra.mxu0 %v8202
    %10878 = vmatpush.bf16.msra.mxu0 %v8186
    %10879 = vmatmul.bf16.gmra.mxu0 %v4203
    %v10880 = vpop.f32.mrf.mxu0
    %v10881 = vadd.f32 %v10868, %v10880
    %v10882 = vpop.f32.mrf.mxu0
    %10883 = vdwg.mxu0
    %10884 = vmatpush.bf16.msra.mxu0 %v7403
    %10885 = vmatpush.bf16.msra.mxu0 %v7387
    %10886 = vmatpush.bf16.msra.mxu0 %v7371
    %10887 = vmatpush.bf16.msra.mxu0 %v7355
    %10888 = vmatpush.bf16.msra.mxu0 %v7339
    %10889 = vmatpush.bf16.msra.mxu0 %v7323
    %10890 = vmatpush.bf16.msra.mxu0 %v7307
    %10891 = vmatpush.bf16.msra.mxu0 %v7291
    %10892 = vmatmul.bf16.gmra.mxu0 %v4196
    %v10893 = vpop.f32.mrf.mxu0
    %v10894 = vadd.f32 0.0, %v10893
    %v10895 = vpop.f32.mrf.mxu0
    %10896 = vdwg.mxu0
    %10897 = vmatpush.bf16.msra.mxu0 %v7531
    %10898 = vmatpush.bf16.msra.mxu0 %v7515
    %10899 = vmatpush.bf16.msra.mxu0 %v7499
    %10900 = vmatpush.bf16.msra.mxu0 %v7483
    %10901 = vmatpush.bf16.msra.mxu0 %v7467
    %10902 = vmatpush.bf16.msra.mxu0 %v7451
    %10903 = vmatpush.bf16.msra.mxu0 %v7435
    %10904 = vmatpush.bf16.msra.mxu0 %v7419
    %10905 = vmatmul.bf16.gmra.mxu0 %v4197
    %v10906 = vpop.f32.mrf.mxu0
    %v10907 = vadd.f32 %v10894, %v10906
    %v10908 = vpop.f32.mrf.mxu0
    %10909 = vdwg.mxu0
    %10910 = vmatpush.bf16.msra.mxu0 %v7659
    %10911 = vmatpush.bf16.msra.mxu0 %v7643
    %10912 = vmatpush.bf16.msra.mxu0 %v7627
    %10913 = vmatpush.bf16.msra.mxu0 %v7611
    %10914 = vmatpush.bf16.msra.mxu0 %v7595
    %10915 = vmatpush.bf16.msra.mxu0 %v7579
    %10916 = vmatpush.bf16.msra.mxu0 %v7563
    %10917 = vmatpush.bf16.msra.mxu0 %v7547
    %10918 = vmatmul.bf16.gmra.mxu0 %v4198
    %v10919 = vpop.f32.mrf.mxu0
    %v10920 = vadd.f32 %v10907, %v10919
    %v10921 = vpop.f32.mrf.mxu0
    %10922 = vdwg.mxu0
    %10923 = vmatpush.bf16.msra.mxu0 %v7787
    %10924 = vmatpush.bf16.msra.mxu0 %v7771
    %10925 = vmatpush.bf16.msra.mxu0 %v7755
    %10926 = vmatpush.bf16.msra.mxu0 %v7739
    %10927 = vmatpush.bf16.msra.mxu0 %v7723
    %10928 = vmatpush.bf16.msra.mxu0 %v7707
    %10929 = vmatpush.bf16.msra.mxu0 %v7691
    %10930 = vmatpush.bf16.msra.mxu0 %v7675
    %10931 = vmatmul.bf16.gmra.mxu0 %v4199
    %v10932 = vpop.f32.mrf.mxu0
    %v10933 = vadd.f32 %v10920, %v10932
    %v10934 = vpop.f32.mrf.mxu0
    %10935 = vdwg.mxu0
    %10936 = vmatpush.bf16.msra.mxu0 %v7915
    %10937 = vmatpush.bf16.msra.mxu0 %v7899
    %10938 = vmatpush.bf16.msra.mxu0 %v7883
    %10939 = vmatpush.bf16.msra.mxu0 %v7867
    %10940 = vmatpush.bf16.msra.mxu0 %v7851
    %10941 = vmatpush.bf16.msra.mxu0 %v7835
    %10942 = vmatpush.bf16.msra.mxu0 %v7819
    %10943 = vmatpush.bf16.msra.mxu0 %v7803
    %10944 = vmatmul.bf16.gmra.mxu0 %v4200
    %v10945 = vpop.f32.mrf.mxu0
    %v10946 = vadd.f32 %v10933, %v10945
    %v10947 = vpop.f32.mrf.mxu0
    %10948 = vdwg.mxu0
    %10949 = vmatpush.bf16.msra.mxu0 %v8043
    %10950 = vmatpush.bf16.msra.mxu0 %v8027
    %10951 = vmatpush.bf16.msra.mxu0 %v8011
    %10952 = vmatpush.bf16.msra.mxu0 %v7995
    %10953 = vmatpush.bf16.msra.mxu0 %v7979
    %10954 = vmatpush.bf16.msra.mxu0 %v7963
    %10955 = vmatpush.bf16.msra.mxu0 %v7947
    %10956 = vmatpush.bf16.msra.mxu0 %v7931
    %10957 = vmatmul.bf16.gmra.mxu0 %v4201
    %v10958 = vpop.f32.mrf.mxu0
    %v10959 = vadd.f32 %v10946, %v10958
    %v10960 = vpop.f32.mrf.mxu0
    %10961 = vdwg.mxu0
    %10962 = vmatpush.bf16.msra.mxu0 %v8171
    %10963 = vmatpush.bf16.msra.mxu0 %v8155
    %10964 = vmatpush.bf16.msra.mxu0 %v8139
    %10965 = vmatpush.bf16.msra.mxu0 %v8123
    %10966 = vmatpush.bf16.msra.mxu0 %v8107
    %10967 = vmatpush.bf16.msra.mxu0 %v8091
    %10968 = vmatpush.bf16.msra.mxu0 %v8075
    %10969 = vmatpush.bf16.msra.mxu0 %v8059
    %10970 = vmatmul.bf16.gmra.mxu0 %v4202
    %v10971 = vpop.f32.mrf.mxu0
    %v10972 = vadd.f32 %v10959, %v10971
    %v10973 = vpop.f32.mrf.mxu0
    %10974 = vdwg.mxu0
    %10975 = vmatpush.bf16.msra.mxu0 %v8299
    %10976 = vmatpush.bf16.msra.mxu0 %v8283
    %10977 = vmatpush.bf16.msra.mxu0 %v8267
    %10978 = vmatpush.bf16.msra.mxu0 %v8251
    %10979 = vmatpush.bf16.msra.mxu0 %v8235
    %10980 = vmatpush.bf16.msra.mxu0 %v8219
    %10981 = vmatpush.bf16.msra.mxu0 %v8203
    %10982 = vmatpush.bf16.msra.mxu0 %v8187
    %10983 = vmatmul.bf16.gmra.mxu0 %v4203
    %v10984 = vpop.f32.mrf.mxu0
    %v10985 = vadd.f32 %v10972, %v10984
    %v10986 = vpop.f32.mrf.mxu0
    %10987 = vdwg.mxu0
    %v10988 = vld [vmem:[#allocation8 + $0x1a] sm:$0xff]
    %v10989 = vld [vmem:[#allocation8 + $0x22] sm:$0xff]
    %v10990 = vld [vmem:[#allocation8 + $0x2a] sm:$0xff]
    %v10991 = vld [vmem:[#allocation8 + $0x32] sm:$0xff]
    %v10992 = vrot.slane %v9425, 4
    %v10993 = vadd.f32 %v9425, %v10992
    %v10994 = vrot.slane %v10993, 2
    %v10995 = vadd.f32 %v10993, %v10994
    %v10996 = vrot.slane %v10995, 1
    %v10997 = vadd.f32 %v10995, %v10996
    %v10998 = vrot.slane %v9529, 4
    %v10999 = vadd.f32 %v9529, %v10998
    %v11000 = vrot.slane %v10999, 2
    %v11001 = vadd.f32 %v10999, %v11000
    %v11002 = vrot.slane %v11001, 1
    %v11003 = vadd.f32 %v11001, %v11002
    %v11004 = vrot.slane %v9633, 4
    %v11005 = vadd.f32 %v9633, %v11004
    %v11006 = vrot.slane %v11005, 2
    %v11007 = vadd.f32 %v11005, %v11006
    %v11008 = vrot.slane %v11007, 1
    %v11009 = vadd.f32 %v11007, %v11008
    %v11010 = vrot.slane %v9737, 4
    %v11011 = vadd.f32 %v9737, %v11010
    %v11012 = vrot.slane %v11011, 2
    %v11013 = vadd.f32 %v11011, %v11012
    %v11014 = vrot.slane %v11013, 1
    %v11015 = vadd.f32 %v11013, %v11014
    %v11016 = vrot.slane %v9841, 4
    %v11017 = vadd.f32 %v9841, %v11016
    %v11018 = vrot.slane %v11017, 2
    %v11019 = vadd.f32 %v11017, %v11018
    %v11020 = vrot.slane %v11019, 1
    %v11021 = vadd.f32 %v11019, %v11020
    %v11022 = vrot.slane %v9945, 4
    %v11023 = vadd.f32 %v9945, %v11022
    %v11024 = vrot.slane %v11023, 2
    %v11025 = vadd.f32 %v11023, %v11024
    %v11026 = vrot.slane %v11025, 1
    %v11027 = vadd.f32 %v11025, %v11026
    %v11028 = vrot.slane %v10049, 4
    %v11029 = vadd.f32 %v10049, %v11028
    %v11030 = vrot.slane %v11029, 2
    %v11031 = vadd.f32 %v11029, %v11030
    %v11032 = vrot.slane %v11031, 1
    %v11033 = vadd.f32 %v11031, %v11032
    %v11034 = vrot.slane %v10153, 4
    %v11035 = vadd.f32 %v10153, %v11034
    %v11036 = vrot.slane %v11035, 2
    %v11037 = vadd.f32 %v11035, %v11036
    %v11038 = vrot.slane %v11037, 1
    %v11039 = vadd.f32 %v11037, %v11038
    %v11040 = vrot.slane %v10257, 4
    %v11041 = vadd.f32 %v10257, %v11040
    %v11042 = vrot.slane %v11041, 2
    %v11043 = vadd.f32 %v11041, %v11042
    %v11044 = vrot.slane %v11043, 1
    %v11045 = vadd.f32 %v11043, %v11044
    %v11046 = vrot.slane %v10361, 4
    %v11047 = vadd.f32 %v10361, %v11046
    %v11048 = vrot.slane %v11047, 2
    %v11049 = vadd.f32 %v11047, %v11048
    %v11050 = vrot.slane %v11049, 1
    %v11051 = vadd.f32 %v11049, %v11050
    %v11052 = vrot.slane %v10465, 4
    %v11053 = vadd.f32 %v10465, %v11052
    %v11054 = vrot.slane %v11053, 2
    %v11055 = vadd.f32 %v11053, %v11054
    %v11056 = vrot.slane %v11055, 1
    %v11057 = vadd.f32 %v11055, %v11056
    %v11058 = vrot.slane %v10569, 4
    %v11059 = vadd.f32 %v10569, %v11058
    %v11060 = vrot.slane %v11059, 2
    %v11061 = vadd.f32 %v11059, %v11060
    %v11062 = vrot.slane %v11061, 1
    %v11063 = vadd.f32 %v11061, %v11062
    %v11064 = vrot.slane %v10673, 4
    %v11065 = vadd.f32 %v10673, %v11064
    %v11066 = vrot.slane %v11065, 2
    %v11067 = vadd.f32 %v11065, %v11066
    %v11068 = vrot.slane %v11067, 1
    %v11069 = vadd.f32 %v11067, %v11068
    %v11070 = vrot.slane %v10777, 4
    %v11071 = vadd.f32 %v10777, %v11070
    %v11072 = vrot.slane %v11071, 2
    %v11073 = vadd.f32 %v11071, %v11072
    %v11074 = vrot.slane %v11073, 1
    %v11075 = vadd.f32 %v11073, %v11074
    %v11076 = vrot.slane %v10881, 4
    %v11077 = vadd.f32 %v10881, %v11076
    %v11078 = vrot.slane %v11077, 2
    %v11079 = vadd.f32 %v11077, %v11078
    %v11080 = vrot.slane %v11079, 1
    %v11081 = vadd.f32 %v11079, %v11080
    %v11082 = vrot.slane %v10985, 4
    %v11083 = vadd.f32 %v10985, %v11082
    %v11084 = vrot.slane %v11083, 2
    %v11085 = vadd.f32 %v11083, %v11084
    %v11086 = vrot.slane %v11085, 1
    %v11087 = vadd.f32 %v11085, %v11086
    %v11088 = vmul.f32 %v10997, %v778
    %v11089 = vmul.f32 %v11003, %v778
    %v11090 = vmul.f32 %v11009, %v778
    %v11091 = vmul.f32 %v11015, %v778
    %v11092 = vmul.f32 %v11021, %v778
    %v11093 = vmul.f32 %v11027, %v778
    %v11094 = vmul.f32 %v11033, %v778
    %v11095 = vmul.f32 %v11039, %v778
    %v11096 = vmul.f32 %v11045, %v778
    %v11097 = vmul.f32 %v11051, %v778
    %v11098 = vmul.f32 %v11057, %v778
    %v11099 = vmul.f32 %v11063, %v778
    %v11100 = vmul.f32 %v11069, %v778
    %v11101 = vmul.f32 %v11075, %v778
    %v11102 = vmul.f32 %v11081, %v778
    %v11103 = vmul.f32 %v11087, %v778
    %v11104 = vsub.f32 %v9425, %v11088
    %v11105 = vsub.f32 %v9529, %v11089
    %v11106 = vsub.f32 %v9633, %v11090
    %v11107 = vsub.f32 %v9737, %v11091
    %v11108 = vsub.f32 %v9841, %v11092
    %v11109 = vsub.f32 %v9945, %v11093
    %v11110 = vsub.f32 %v10049, %v11094
    %v11111 = vsub.f32 %v10153, %v11095
    %v11112 = vsub.f32 %v10257, %v11096
    %v11113 = vsub.f32 %v10361, %v11097
    %v11114 = vsub.f32 %v10465, %v11098
    %v11115 = vsub.f32 %v10569, %v11099
    %v11116 = vsub.f32 %v10673, %v11100
    %v11117 = vsub.f32 %v10777, %v11101
    %v11118 = vsub.f32 %v10881, %v11102
    %v11119 = vsub.f32 %v10985, %v11103
    %v11120 = vmul.f32 %v11104, %v11104
    %v11121 = vmul.f32 %v11105, %v11105
    %v11122 = vmul.f32 %v11106, %v11106
    %v11123 = vmul.f32 %v11107, %v11107
    %v11124 = vmul.f32 %v11108, %v11108
    %v11125 = vmul.f32 %v11109, %v11109
    %v11126 = vmul.f32 %v11110, %v11110
    %v11127 = vmul.f32 %v11111, %v11111
    %v11128 = vmul.f32 %v11112, %v11112
    %v11129 = vmul.f32 %v11113, %v11113
    %v11130 = vmul.f32 %v11114, %v11114
    %v11131 = vmul.f32 %v11115, %v11115
    %v11132 = vmul.f32 %v11116, %v11116
    %v11133 = vmul.f32 %v11117, %v11117
    %v11134 = vmul.f32 %v11118, %v11118
    %v11135 = vmul.f32 %v11119, %v11119
    %v11136 = vrot.slane %v11120, 4
    %v11137 = vadd.f32 %v11120, %v11136
    %v11138 = vrot.slane %v11137, 2
    %v11139 = vadd.f32 %v11137, %v11138
    %v11140 = vrot.slane %v11139, 1
    %v11141 = vadd.f32 %v11139, %v11140
    %v11142 = vrot.slane %v11121, 4
    %v11143 = vadd.f32 %v11121, %v11142
    %v11144 = vrot.slane %v11143, 2
    %v11145 = vadd.f32 %v11143, %v11144
    %v11146 = vrot.slane %v11145, 1
    %v11147 = vadd.f32 %v11145, %v11146
    %v11148 = vrot.slane %v11122, 4
    %v11149 = vadd.f32 %v11122, %v11148
    %v11150 = vrot.slane %v11149, 2
    %v11151 = vadd.f32 %v11149, %v11150
    %v11152 = vrot.slane %v11151, 1
    %v11153 = vadd.f32 %v11151, %v11152
    %v11154 = vrot.slane %v11123, 4
    %v11155 = vadd.f32 %v11123, %v11154
    %v11156 = vrot.slane %v11155, 2
    %v11157 = vadd.f32 %v11155, %v11156
    %v11158 = vrot.slane %v11157, 1
    %v11159 = vadd.f32 %v11157, %v11158
    %v11160 = vrot.slane %v11124, 4
    %v11161 = vadd.f32 %v11124, %v11160
    %v11162 = vrot.slane %v11161, 2
    %v11163 = vadd.f32 %v11161, %v11162
    %v11164 = vrot.slane %v11163, 1
    %v11165 = vadd.f32 %v11163, %v11164
    %v11166 = vrot.slane %v11125, 4
    %v11167 = vadd.f32 %v11125, %v11166
    %v11168 = vrot.slane %v11167, 2
    %v11169 = vadd.f32 %v11167, %v11168
    %v11170 = vrot.slane %v11169, 1
    %v11171 = vadd.f32 %v11169, %v11170
    %v11172 = vrot.slane %v11126, 4
    %v11173 = vadd.f32 %v11126, %v11172
    %v11174 = vrot.slane %v11173, 2
    %v11175 = vadd.f32 %v11173, %v11174
    %v11176 = vrot.slane %v11175, 1
    %v11177 = vadd.f32 %v11175, %v11176
    %v11178 = vrot.slane %v11127, 4
    %v11179 = vadd.f32 %v11127, %v11178
    %v11180 = vrot.slane %v11179, 2
    %v11181 = vadd.f32 %v11179, %v11180
    %v11182 = vrot.slane %v11181, 1
    %v11183 = vadd.f32 %v11181, %v11182
    %v11184 = vrot.slane %v11128, 4
    %v11185 = vadd.f32 %v11128, %v11184
    %v11186 = vrot.slane %v11185, 2
    %v11187 = vadd.f32 %v11185, %v11186
    %v11188 = vrot.slane %v11187, 1
    %v11189 = vadd.f32 %v11187, %v11188
    %v11190 = vrot.slane %v11129, 4
    %v11191 = vadd.f32 %v11129, %v11190
    %v11192 = vrot.slane %v11191, 2
    %v11193 = vadd.f32 %v11191, %v11192
    %v11194 = vrot.slane %v11193, 1
    %v11195 = vadd.f32 %v11193, %v11194
    %v11196 = vrot.slane %v11130, 4
    %v11197 = vadd.f32 %v11130, %v11196
    %v11198 = vrot.slane %v11197, 2
    %v11199 = vadd.f32 %v11197, %v11198
    %v11200 = vrot.slane %v11199, 1
    %v11201 = vadd.f32 %v11199, %v11200
    %v11202 = vrot.slane %v11131, 4
    %v11203 = vadd.f32 %v11131, %v11202
    %v11204 = vrot.slane %v11203, 2
    %v11205 = vadd.f32 %v11203, %v11204
    %v11206 = vrot.slane %v11205, 1
    %v11207 = vadd.f32 %v11205, %v11206
    %v11208 = vrot.slane %v11132, 4
    %v11209 = vadd.f32 %v11132, %v11208
    %v11210 = vrot.slane %v11209, 2
    %v11211 = vadd.f32 %v11209, %v11210
    %v11212 = vrot.slane %v11211, 1
    %v11213 = vadd.f32 %v11211, %v11212
    %v11214 = vrot.slane %v11133, 4
    %v11215 = vadd.f32 %v11133, %v11214
    %v11216 = vrot.slane %v11215, 2
    %v11217 = vadd.f32 %v11215, %v11216
    %v11218 = vrot.slane %v11217, 1
    %v11219 = vadd.f32 %v11217, %v11218
    %v11220 = vrot.slane %v11134, 4
    %v11221 = vadd.f32 %v11134, %v11220
    %v11222 = vrot.slane %v11221, 2
    %v11223 = vadd.f32 %v11221, %v11222
    %v11224 = vrot.slane %v11223, 1
    %v11225 = vadd.f32 %v11223, %v11224
    %v11226 = vrot.slane %v11135, 4
    %v11227 = vadd.f32 %v11135, %v11226
    %v11228 = vrot.slane %v11227, 2
    %v11229 = vadd.f32 %v11227, %v11228
    %v11230 = vrot.slane %v11229, 1
    %v11231 = vadd.f32 %v11229, %v11230
    %v11232 = vmul.f32 %v11141, %v778
    %v11233 = vmul.f32 %v11147, %v778
    %v11234 = vmul.f32 %v11153, %v778
    %v11235 = vmul.f32 %v11159, %v778
    %v11236 = vmul.f32 %v11165, %v778
    %v11237 = vmul.f32 %v11171, %v778
    %v11238 = vmul.f32 %v11177, %v778
    %v11239 = vmul.f32 %v11183, %v778
    %v11240 = vmul.f32 %v11189, %v778
    %v11241 = vmul.f32 %v11195, %v778
    %v11242 = vmul.f32 %v11201, %v778
    %v11243 = vmul.f32 %v11207, %v778
    %v11244 = vmul.f32 %v11213, %v778
    %v11245 = vmul.f32 %v11219, %v778
    %v11246 = vmul.f32 %v11225, %v778
    %v11247 = vmul.f32 %v11231, %v778
    %v11248 = vadd.f32 %v11232, 1e-05
    %v11249 = vadd.f32 %v11233, 1e-05
    %v11250 = vadd.f32 %v11234, 1e-05
    %v11251 = vadd.f32 %v11235, 1e-05
    %v11252 = vadd.f32 %v11236, 1e-05
    %v11253 = vadd.f32 %v11237, 1e-05
    %v11254 = vadd.f32 %v11238, 1e-05
    %v11255 = vadd.f32 %v11239, 1e-05
    %v11256 = vadd.f32 %v11240, 1e-05
    %v11257 = vadd.f32 %v11241, 1e-05
    %v11258 = vadd.f32 %v11242, 1e-05
    %v11259 = vadd.f32 %v11243, 1e-05
    %v11260 = vadd.f32 %v11244, 1e-05
    %v11261 = vadd.f32 %v11245, 1e-05
    %v11262 = vadd.f32 %v11246, 1e-05
    %v11263 = vadd.f32 %v11247, 1e-05
    %v11264 = vrsqrt.pop %v11248
    %v11265 = vmul.f32 %v11264, %v11248
    %v11266 = vmul.f32 %v11265, %v11264
    %v11267 = vmul.f32 0.5, %v11266
    %v11268 = vsub.f32 1.5, %v11267
    %v11269 = vmul.f32 %v11264, %v11268
    %vm11270 = vweird.f32 %v11248
    %vm11271 = vweird.f32 %v11264
    %vm11272 = vmor %vm11270, %vm11271
    %v11273 = vsel %vm11272, %v11264, %v11269
    %v11274 = vrsqrt.pop %v11249
    %v11275 = vmul.f32 %v11274, %v11249
    %v11276 = vmul.f32 %v11275, %v11274
    %v11277 = vmul.f32 0.5, %v11276
    %v11278 = vsub.f32 1.5, %v11277
    %v11279 = vmul.f32 %v11274, %v11278
    %vm11280 = vweird.f32 %v11249
    %vm11281 = vweird.f32 %v11274
    %vm11282 = vmor %vm11280, %vm11281
    %v11283 = vsel %vm11282, %v11274, %v11279
    %v11284 = vrsqrt.pop %v11250
    %v11285 = vmul.f32 %v11284, %v11250
    %v11286 = vmul.f32 %v11285, %v11284
    %v11287 = vmul.f32 0.5, %v11286
    %v11288 = vsub.f32 1.5, %v11287
    %v11289 = vmul.f32 %v11284, %v11288
    %vm11290 = vweird.f32 %v11250
    %vm11291 = vweird.f32 %v11284
    %vm11292 = vmor %vm11290, %vm11291
    %v11293 = vsel %vm11292, %v11284, %v11289
    %v11294 = vrsqrt.pop %v11251
    %v11295 = vmul.f32 %v11294, %v11251
    %v11296 = vmul.f32 %v11295, %v11294
    %v11297 = vmul.f32 0.5, %v11296
    %v11298 = vsub.f32 1.5, %v11297
    %v11299 = vmul.f32 %v11294, %v11298
    %vm11300 = vweird.f32 %v11251
    %vm11301 = vweird.f32 %v11294
    %vm11302 = vmor %vm11300, %vm11301
    %v11303 = vsel %vm11302, %v11294, %v11299
    %v11304 = vrsqrt.pop %v11252
    %v11305 = vmul.f32 %v11304, %v11252
    %v11306 = vmul.f32 %v11305, %v11304
    %v11307 = vmul.f32 0.5, %v11306
    %v11308 = vsub.f32 1.5, %v11307
    %v11309 = vmul.f32 %v11304, %v11308
    %vm11310 = vweird.f32 %v11252
    %vm11311 = vweird.f32 %v11304
    %vm11312 = vmor %vm11310, %vm11311
    %v11313 = vsel %vm11312, %v11304, %v11309
    %v11314 = vrsqrt.pop %v11253
    %v11315 = vmul.f32 %v11314, %v11253
    %v11316 = vmul.f32 %v11315, %v11314
    %v11317 = vmul.f32 0.5, %v11316
    %v11318 = vsub.f32 1.5, %v11317
    %v11319 = vmul.f32 %v11314, %v11318
    %vm11320 = vweird.f32 %v11253
    %vm11321 = vweird.f32 %v11314
    %vm11322 = vmor %vm11320, %vm11321
    %v11323 = vsel %vm11322, %v11314, %v11319
    %v11324 = vrsqrt.pop %v11254
    %v11325 = vmul.f32 %v11324, %v11254
    %v11326 = vmul.f32 %v11325, %v11324
    %v11327 = vmul.f32 0.5, %v11326
    %v11328 = vsub.f32 1.5, %v11327
    %v11329 = vmul.f32 %v11324, %v11328
    %vm11330 = vweird.f32 %v11254
    %vm11331 = vweird.f32 %v11324
    %vm11332 = vmor %vm11330, %vm11331
    %v11333 = vsel %vm11332, %v11324, %v11329
    %v11334 = vrsqrt.pop %v11255
    %v11335 = vmul.f32 %v11334, %v11255
    %v11336 = vmul.f32 %v11335, %v11334
    %v11337 = vmul.f32 0.5, %v11336
    %v11338 = vsub.f32 1.5, %v11337
    %v11339 = vmul.f32 %v11334, %v11338
    %vm11340 = vweird.f32 %v11255
    %vm11341 = vweird.f32 %v11334
    %vm11342 = vmor %vm11340, %vm11341
    %v11343 = vsel %vm11342, %v11334, %v11339
    %v11344 = vrsqrt.pop %v11256
    %v11345 = vmul.f32 %v11344, %v11256
    %v11346 = vmul.f32 %v11345, %v11344
    %v11347 = vmul.f32 0.5, %v11346
    %v11348 = vsub.f32 1.5, %v11347
    %v11349 = vmul.f32 %v11344, %v11348
    %vm11350 = vweird.f32 %v11256
    %vm11351 = vweird.f32 %v11344
    %vm11352 = vmor %vm11350, %vm11351
    %v11353 = vsel %vm11352, %v11344, %v11349
    %v11354 = vrsqrt.pop %v11257
    %v11355 = vmul.f32 %v11354, %v11257
    %v11356 = vmul.f32 %v11355, %v11354
    %v11357 = vmul.f32 0.5, %v11356
    %v11358 = vsub.f32 1.5, %v11357
    %v11359 = vmul.f32 %v11354, %v11358
    %vm11360 = vweird.f32 %v11257
    %vm11361 = vweird.f32 %v11354
    %vm11362 = vmor %vm11360, %vm11361
    %v11363 = vsel %vm11362, %v11354, %v11359
    %v11364 = vrsqrt.pop %v11258
    %v11365 = vmul.f32 %v11364, %v11258
    %v11366 = vmul.f32 %v11365, %v11364
    %v11367 = vmul.f32 0.5, %v11366
    %v11368 = vsub.f32 1.5, %v11367
    %v11369 = vmul.f32 %v11364, %v11368
    %vm11370 = vweird.f32 %v11258
    %vm11371 = vweird.f32 %v11364
    %vm11372 = vmor %vm11370, %vm11371
    %v11373 = vsel %vm11372, %v11364, %v11369
    %v11374 = vrsqrt.pop %v11259
    %v11375 = vmul.f32 %v11374, %v11259
    %v11376 = vmul.f32 %v11375, %v11374
    %v11377 = vmul.f32 0.5, %v11376
    %v11378 = vsub.f32 1.5, %v11377
    %v11379 = vmul.f32 %v11374, %v11378
    %vm11380 = vweird.f32 %v11259
    %vm11381 = vweird.f32 %v11374
    %vm11382 = vmor %vm11380, %vm11381
    %v11383 = vsel %vm11382, %v11374, %v11379
    %v11384 = vrsqrt.pop %v11260
    %v11385 = vmul.f32 %v11384, %v11260
    %v11386 = vmul.f32 %v11385, %v11384
    %v11387 = vmul.f32 0.5, %v11386
    %v11388 = vsub.f32 1.5, %v11387
    %v11389 = vmul.f32 %v11384, %v11388
    %vm11390 = vweird.f32 %v11260
    %vm11391 = vweird.f32 %v11384
    %vm11392 = vmor %vm11390, %vm11391
    %v11393 = vsel %vm11392, %v11384, %v11389
    %v11394 = vrsqrt.pop %v11261
    %v11395 = vmul.f32 %v11394, %v11261
    %v11396 = vmul.f32 %v11395, %v11394
    %v11397 = vmul.f32 0.5, %v11396
    %v11398 = vsub.f32 1.5, %v11397
    %v11399 = vmul.f32 %v11394, %v11398
    %vm11400 = vweird.f32 %v11261
    %vm11401 = vweird.f32 %v11394
    %vm11402 = vmor %vm11400, %vm11401
    %v11403 = vsel %vm11402, %v11394, %v11399
    %v11404 = vrsqrt.pop %v11262
    %v11405 = vmul.f32 %v11404, %v11262
    %v11406 = vmul.f32 %v11405, %v11404
    %v11407 = vmul.f32 0.5, %v11406
    %v11408 = vsub.f32 1.5, %v11407
    %v11409 = vmul.f32 %v11404, %v11408
    %vm11410 = vweird.f32 %v11262
    %vm11411 = vweird.f32 %v11404
    %vm11412 = vmor %vm11410, %vm11411
    %v11413 = vsel %vm11412, %v11404, %v11409
    %v11414 = vrsqrt.pop %v11263
    %v11415 = vmul.f32 %v11414, %v11263
    %v11416 = vmul.f32 %v11415, %v11414
    %v11417 = vmul.f32 0.5, %v11416
    %v11418 = vsub.f32 1.5, %v11417
    %v11419 = vmul.f32 %v11414, %v11418
    %vm11420 = vweird.f32 %v11263
    %vm11421 = vweird.f32 %v11414
    %vm11422 = vmor %vm11420, %vm11421
    %v11423 = vsel %vm11422, %v11414, %v11419
    %v11440 = vrot.slane %v11283, 7
    %v11441 = vrot.slane %v11293, 6
    %v11442 = vrot.slane %v11303, 5
    %v11443 = vrot.slane %v11313, 4
    %v11444 = vrot.slane %v11323, 3
    %v11445 = vrot.slane %v11333, 2
    %v11446 = vrot.slane %v11343, 1
    %v11447 = vrot.slane %v11363, 7
    %v11448 = vrot.slane %v11373, 6
    %v11449 = vrot.slane %v11383, 5
    %v11450 = vrot.slane %v11393, 4
    %v11451 = vrot.slane %v11403, 3
    %v11452 = vrot.slane %v11413, 2
    %v11453 = vrot.slane %v11423, 1
    %v11454 = vsel %vm870, %v11273, %v11440
    %v11455 = vsel %vm872, %v11441, %v11442
    %v11456 = vsel %vm874, %v11454, %v11455
    %v11457 = vsel %vm3100, %v11443, %v11444
    %v11458 = vsel %vm3102, %v11445, %v11446
    %v11459 = vsel %vm3104, %v11457, %v11458
    %v11460 = vsel %vm3106, %v11456, %v11459
    %v11461 = vsel %vm870, %v11353, %v11447
    %v11462 = vsel %vm872, %v11448, %v11449
    %v11463 = vsel %vm874, %v11461, %v11462
    %v11464 = vsel %vm3100, %v11450, %v11451
    %v11465 = vsel %vm3102, %v11452, %v11453
    %v11466 = vsel %vm3104, %v11464, %v11465
    %v11467 = vsel %vm3106, %v11463, %v11466
    %v11470 = vmul.f32 %v10988, %v11460
    %v11471 = vmul.f32 %v10989, %v11467
    %v11474 = vperm.slane %v11470, 0
    %v11475 = vperm.slane %v11470, 1
    %v11476 = vperm.slane %v11470, 2
    %v11477 = vperm.slane %v11470, 3
    %v11478 = vperm.slane %v11470, 4
    %v11479 = vperm.slane %v11470, 5
    %v11480 = vperm.slane %v11470, 6
    %v11481 = vperm.slane %v11470, 7
    %v11482 = vperm.slane %v11471, 0
    %v11483 = vperm.slane %v11471, 1
    %v11484 = vperm.slane %v11471, 2
    %v11485 = vperm.slane %v11471, 3
    %v11486 = vperm.slane %v11471, 4
    %v11487 = vperm.slane %v11471, 5
    %v11488 = vperm.slane %v11471, 6
    %v11489 = vperm.slane %v11471, 7
    %v11506 = vmul.f32 %v11104, %v11474
    %v11507 = vmul.f32 %v11105, %v11475
    %v11508 = vmul.f32 %v11106, %v11476
    %v11509 = vmul.f32 %v11107, %v11477
    %v11510 = vmul.f32 %v11108, %v11478
    %v11511 = vmul.f32 %v11109, %v11479
    %v11512 = vmul.f32 %v11110, %v11480
    %v11513 = vmul.f32 %v11111, %v11481
    %v11514 = vmul.f32 %v11112, %v11482
    %v11515 = vmul.f32 %v11113, %v11483
    %v11516 = vmul.f32 %v11114, %v11484
    %v11517 = vmul.f32 %v11115, %v11485
    %v11518 = vmul.f32 %v11116, %v11486
    %v11519 = vmul.f32 %v11117, %v11487
    %v11520 = vmul.f32 %v11118, %v11488
    %v11521 = vmul.f32 %v11119, %v11489
    %v11524 = vperm.slane %v10990, 0
    %v11525 = vperm.slane %v10990, 1
    %v11526 = vperm.slane %v10990, 2
    %v11527 = vperm.slane %v10990, 3
    %v11528 = vperm.slane %v10990, 4
    %v11529 = vperm.slane %v10990, 5
    %v11530 = vperm.slane %v10990, 6
    %v11531 = vperm.slane %v10990, 7
    %v11532 = vperm.slane %v10991, 0
    %v11533 = vperm.slane %v10991, 1
    %v11534 = vperm.slane %v10991, 2
    %v11535 = vperm.slane %v10991, 3
    %v11536 = vperm.slane %v10991, 4
    %v11537 = vperm.slane %v10991, 5
    %v11538 = vperm.slane %v10991, 6
    %v11539 = vperm.slane %v10991, 7
    %v11556 = vadd.f32 %v11506, %v11524
    %v11557 = vadd.f32 %v11507, %v11525
    %v11558 = vadd.f32 %v11508, %v11526
    %v11559 = vadd.f32 %v11509, %v11527
    %v11560 = vadd.f32 %v11510, %v11528
    %v11561 = vadd.f32 %v11511, %v11529
    %v11562 = vadd.f32 %v11512, %v11530
    %v11563 = vadd.f32 %v11513, %v11531
    %v11564 = vadd.f32 %v11514, %v11532
    %v11565 = vadd.f32 %v11515, %v11533
    %v11566 = vadd.f32 %v11516, %v11534
    %v11567 = vadd.f32 %v11517, %v11535
    %v11568 = vadd.f32 %v11518, %v11536
    %v11569 = vadd.f32 %v11519, %v11537
    %v11570 = vadd.f32 %v11520, %v11538
    %v11571 = vadd.f32 %v11521, %v11539
    %v11572 = vmax.f32 %v11556, 0.0
    %v11573 = vmax.f32 %v11557, 0.0
    %v11574 = vmax.f32 %v11558, 0.0
    %v11575 = vmax.f32 %v11559, 0.0
    %v11576 = vmax.f32 %v11560, 0.0
    %v11577 = vmax.f32 %v11561, 0.0
    %v11578 = vmax.f32 %v11562, 0.0
    %v11579 = vmax.f32 %v11563, 0.0
    %v11580 = vmax.f32 %v11564, 0.0
    %v11581 = vmax.f32 %v11565, 0.0
    %v11582 = vmax.f32 %v11566, 0.0
    %v11583 = vmax.f32 %v11567, 0.0
    %v11584 = vmax.f32 %v11568, 0.0
    %v11585 = vmax.f32 %v11569, 0.0
    %v11586 = vmax.f32 %v11570, 0.0
    %v11587 = vmax.f32 %v11571, 0.0
    %s11588 = smul.u32 4, 256
    %s11589 = smul.u32 %s11588, 1
    %s11590 = sshll.u32 %s11589, 4
    %11591 = dma.done %s110, %s11590
    %v11592 = vld [vmem:[#allocation3] sm:$0xf]
    %v11593 = vld [vmem:[#allocation3 + $0x4] sm:$0xf]
    %v11594 = vld [vmem:[#allocation3 + $0x8] sm:$0xf]
    %v11595 = vld [vmem:[#allocation3 + $0xc] sm:$0xf]
    %v11596 = vld [vmem:[#allocation3 + $0x10] sm:$0xf]
    %v11597 = vld [vmem:[#allocation3 + $0x14] sm:$0xf]
    %v11598 = vld [vmem:[#allocation3 + $0x18] sm:$0xf]
    %v11599 = vld [vmem:[#allocation3 + $0x1c] sm:$0xf]
    %v11600 = vld [vmem:[#allocation3 + $0x20] sm:$0xf]
    %v11601 = vld [vmem:[#allocation3 + $0x24] sm:$0xf]
    %v11602 = vld [vmem:[#allocation3 + $0x28] sm:$0xf]
    %v11603 = vld [vmem:[#allocation3 + $0x2c] sm:$0xf]
    %v11604 = vld [vmem:[#allocation3 + $0x30] sm:$0xf]
    %v11605 = vld [vmem:[#allocation3 + $0x34] sm:$0xf]
    %v11606 = vld [vmem:[#allocation3 + $0x38] sm:$0xf]
    %v11607 = vld [vmem:[#allocation3 + $0x3c] sm:$0xf]
    %v11608 = vld [vmem:[#allocation3 + $0x40] sm:$0xf]
    %v11609 = vld [vmem:[#allocation3 + $0x44] sm:$0xf]
    %v11610 = vld [vmem:[#allocation3 + $0x48] sm:$0xf]
    %v11611 = vld [vmem:[#allocation3 + $0x4c] sm:$0xf]
    %v11612 = vld [vmem:[#allocation3 + $0x50] sm:$0xf]
    %v11613 = vld [vmem:[#allocation3 + $0x54] sm:$0xf]
    %v11614 = vld [vmem:[#allocation3 + $0x58] sm:$0xf]
    %v11615 = vld [vmem:[#allocation3 + $0x5c] sm:$0xf]
    %v11616 = vld [vmem:[#allocation3 + $0x60] sm:$0xf]
    %v11617 = vld [vmem:[#allocation3 + $0x64] sm:$0xf]
    %v11618 = vld [vmem:[#allocation3 + $0x68] sm:$0xf]
    %v11619 = vld [vmem:[#allocation3 + $0x6c] sm:$0xf]
    %v11620 = vld [vmem:[#allocation3 + $0x70] sm:$0xf]
    %v11621 = vld [vmem:[#allocation3 + $0x74] sm:$0xf]
    %v11622 = vld [vmem:[#allocation3 + $0x78] sm:$0xf]
    %v11623 = vld [vmem:[#allocation3 + $0x7c] sm:$0xf]
    %v11624 = vld [vmem:[#allocation3 + $0x80] sm:$0xf]
    %v11625 = vld [vmem:[#allocation3 + $0x84] sm:$0xf]
    %v11626 = vld [vmem:[#allocation3 + $0x88] sm:$0xf]
    %v11627 = vld [vmem:[#allocation3 + $0x8c] sm:$0xf]
    %v11628 = vld [vmem:[#allocation3 + $0x90] sm:$0xf]
    %v11629 = vld [vmem:[#allocation3 + $0x94] sm:$0xf]
    %v11630 = vld [vmem:[#allocation3 + $0x98] sm:$0xf]
    %v11631 = vld [vmem:[#allocation3 + $0x9c] sm:$0xf]
    %v11632 = vld [vmem:[#allocation3 + $0xa0] sm:$0xf]
    %v11633 = vld [vmem:[#allocation3 + $0xa4] sm:$0xf]
    %v11634 = vld [vmem:[#allocation3 + $0xa8] sm:$0xf]
    %v11635 = vld [vmem:[#allocation3 + $0xac] sm:$0xf]
    %v11636 = vld [vmem:[#allocation3 + $0xb0] sm:$0xf]
    %v11637 = vld [vmem:[#allocation3 + $0xb4] sm:$0xf]
    %v11638 = vld [vmem:[#allocation3 + $0xb8] sm:$0xf]
    %v11639 = vld [vmem:[#allocation3 + $0xbc] sm:$0xf]
    %v11640 = vld [vmem:[#allocation3 + $0xc0] sm:$0xf]
    %v11641 = vld [vmem:[#allocation3 + $0xc4] sm:$0xf]
    %v11642 = vld [vmem:[#allocation3 + $0xc8] sm:$0xf]
    %v11643 = vld [vmem:[#allocation3 + $0xcc] sm:$0xf]
    %v11644 = vld [vmem:[#allocation3 + $0xd0] sm:$0xf]
    %v11645 = vld [vmem:[#allocation3 + $0xd4] sm:$0xf]
    %v11646 = vld [vmem:[#allocation3 + $0xd8] sm:$0xf]
    %v11647 = vld [vmem:[#allocation3 + $0xdc] sm:$0xf]
    %v11648 = vld [vmem:[#allocation3 + $0xe0] sm:$0xf]
    %v11649 = vld [vmem:[#allocation3 + $0xe4] sm:$0xf]
    %v11650 = vld [vmem:[#allocation3 + $0xe8] sm:$0xf]
    %v11651 = vld [vmem:[#allocation3 + $0xec] sm:$0xf]
    %v11652 = vld [vmem:[#allocation3 + $0xf0] sm:$0xf]
    %v11653 = vld [vmem:[#allocation3 + $0xf4] sm:$0xf]
    %v11654 = vld [vmem:[#allocation3 + $0xf8] sm:$0xf]
    %v11655 = vld [vmem:[#allocation3 + $0xfc] sm:$0xf]
    %v11656 = vld [vmem:[#allocation3 + $0x100] sm:$0xf]
    %v11657 = vld [vmem:[#allocation3 + $0x104] sm:$0xf]
    %v11658 = vld [vmem:[#allocation3 + $0x108] sm:$0xf]
    %v11659 = vld [vmem:[#allocation3 + $0x10c] sm:$0xf]
    %v11660 = vld [vmem:[#allocation3 + $0x110] sm:$0xf]
    %v11661 = vld [vmem:[#allocation3 + $0x114] sm:$0xf]
    %v11662 = vld [vmem:[#allocation3 + $0x118] sm:$0xf]
    %v11663 = vld [vmem:[#allocation3 + $0x11c] sm:$0xf]
    %v11664 = vld [vmem:[#allocation3 + $0x120] sm:$0xf]
    %v11665 = vld [vmem:[#allocation3 + $0x124] sm:$0xf]
    %v11666 = vld [vmem:[#allocation3 + $0x128] sm:$0xf]
    %v11667 = vld [vmem:[#allocation3 + $0x12c] sm:$0xf]
    %v11668 = vld [vmem:[#allocation3 + $0x130] sm:$0xf]
    %v11669 = vld [vmem:[#allocation3 + $0x134] sm:$0xf]
    %v11670 = vld [vmem:[#allocation3 + $0x138] sm:$0xf]
    %v11671 = vld [vmem:[#allocation3 + $0x13c] sm:$0xf]
    %v11672 = vld [vmem:[#allocation3 + $0x140] sm:$0xf]
    %v11673 = vld [vmem:[#allocation3 + $0x144] sm:$0xf]
    %v11674 = vld [vmem:[#allocation3 + $0x148] sm:$0xf]
    %v11675 = vld [vmem:[#allocation3 + $0x14c] sm:$0xf]
    %v11676 = vld [vmem:[#allocation3 + $0x150] sm:$0xf]
    %v11677 = vld [vmem:[#allocation3 + $0x154] sm:$0xf]
    %v11678 = vld [vmem:[#allocation3 + $0x158] sm:$0xf]
    %v11679 = vld [vmem:[#allocation3 + $0x15c] sm:$0xf]
    %v11680 = vld [vmem:[#allocation3 + $0x160] sm:$0xf]
    %v11681 = vld [vmem:[#allocation3 + $0x164] sm:$0xf]
    %v11682 = vld [vmem:[#allocation3 + $0x168] sm:$0xf]
    %v11683 = vld [vmem:[#allocation3 + $0x16c] sm:$0xf]
    %v11684 = vld [vmem:[#allocation3 + $0x170] sm:$0xf]
    %v11685 = vld [vmem:[#allocation3 + $0x174] sm:$0xf]
    %v11686 = vld [vmem:[#allocation3 + $0x178] sm:$0xf]
    %v11687 = vld [vmem:[#allocation3 + $0x17c] sm:$0xf]
    %v11688 = vld [vmem:[#allocation3 + $0x180] sm:$0xf]
    %v11689 = vld [vmem:[#allocation3 + $0x184] sm:$0xf]
    %v11690 = vld [vmem:[#allocation3 + $0x188] sm:$0xf]
    %v11691 = vld [vmem:[#allocation3 + $0x18c] sm:$0xf]
    %v11692 = vld [vmem:[#allocation3 + $0x190] sm:$0xf]
    %v11693 = vld [vmem:[#allocation3 + $0x194] sm:$0xf]
    %v11694 = vld [vmem:[#allocation3 + $0x198] sm:$0xf]
    %v11695 = vld [vmem:[#allocation3 + $0x19c] sm:$0xf]
    %v11696 = vld [vmem:[#allocation3 + $0x1a0] sm:$0xf]
    %v11697 = vld [vmem:[#allocation3 + $0x1a4] sm:$0xf]
    %v11698 = vld [vmem:[#allocation3 + $0x1a8] sm:$0xf]
    %v11699 = vld [vmem:[#allocation3 + $0x1ac] sm:$0xf]
    %v11700 = vld [vmem:[#allocation3 + $0x1b0] sm:$0xf]
    %v11701 = vld [vmem:[#allocation3 + $0x1b4] sm:$0xf]
    %v11702 = vld [vmem:[#allocation3 + $0x1b8] sm:$0xf]
    %v11703 = vld [vmem:[#allocation3 + $0x1bc] sm:$0xf]
    %v11704 = vld [vmem:[#allocation3 + $0x1c0] sm:$0xf]
    %v11705 = vld [vmem:[#allocation3 + $0x1c4] sm:$0xf]
    %v11706 = vld [vmem:[#allocation3 + $0x1c8] sm:$0xf]
    %v11707 = vld [vmem:[#allocation3 + $0x1cc] sm:$0xf]
    %v11708 = vld [vmem:[#allocation3 + $0x1d0] sm:$0xf]
    %v11709 = vld [vmem:[#allocation3 + $0x1d4] sm:$0xf]
    %v11710 = vld [vmem:[#allocation3 + $0x1d8] sm:$0xf]
    %v11711 = vld [vmem:[#allocation3 + $0x1dc] sm:$0xf]
    %v11712 = vld [vmem:[#allocation3 + $0x1e0] sm:$0xf]
    %v11713 = vld [vmem:[#allocation3 + $0x1e4] sm:$0xf]
    %v11714 = vld [vmem:[#allocation3 + $0x1e8] sm:$0xf]
    %v11715 = vld [vmem:[#allocation3 + $0x1ec] sm:$0xf]
    %v11716 = vld [vmem:[#allocation3 + $0x1f0] sm:$0xf]
    %v11717 = vld [vmem:[#allocation3 + $0x1f4] sm:$0xf]
    %v11718 = vld [vmem:[#allocation3 + $0x1f8] sm:$0xf]
    %v11719 = vld [vmem:[#allocation3 + $0x1fc] sm:$0xf]
    %v11720 = vld [vmem:[#allocation3 + $0x200] sm:$0xf]
    %v11721 = vld [vmem:[#allocation3 + $0x204] sm:$0xf]
    %v11722 = vld [vmem:[#allocation3 + $0x208] sm:$0xf]
    %v11723 = vld [vmem:[#allocation3 + $0x20c] sm:$0xf]
    %v11724 = vld [vmem:[#allocation3 + $0x210] sm:$0xf]
    %v11725 = vld [vmem:[#allocation3 + $0x214] sm:$0xf]
    %v11726 = vld [vmem:[#allocation3 + $0x218] sm:$0xf]
    %v11727 = vld [vmem:[#allocation3 + $0x21c] sm:$0xf]
    %v11728 = vld [vmem:[#allocation3 + $0x220] sm:$0xf]
    %v11729 = vld [vmem:[#allocation3 + $0x224] sm:$0xf]
    %v11730 = vld [vmem:[#allocation3 + $0x228] sm:$0xf]
    %v11731 = vld [vmem:[#allocation3 + $0x22c] sm:$0xf]
    %v11732 = vld [vmem:[#allocation3 + $0x230] sm:$0xf]
    %v11733 = vld [vmem:[#allocation3 + $0x234] sm:$0xf]
    %v11734 = vld [vmem:[#allocation3 + $0x238] sm:$0xf]
    %v11735 = vld [vmem:[#allocation3 + $0x23c] sm:$0xf]
    %v11736 = vld [vmem:[#allocation3 + $0x240] sm:$0xf]
    %v11737 = vld [vmem:[#allocation3 + $0x244] sm:$0xf]
    %v11738 = vld [vmem:[#allocation3 + $0x248] sm:$0xf]
    %v11739 = vld [vmem:[#allocation3 + $0x24c] sm:$0xf]
    %v11740 = vld [vmem:[#allocation3 + $0x250] sm:$0xf]
    %v11741 = vld [vmem:[#allocation3 + $0x254] sm:$0xf]
    %v11742 = vld [vmem:[#allocation3 + $0x258] sm:$0xf]
    %v11743 = vld [vmem:[#allocation3 + $0x25c] sm:$0xf]
    %v11744 = vld [vmem:[#allocation3 + $0x260] sm:$0xf]
    %v11745 = vld [vmem:[#allocation3 + $0x264] sm:$0xf]
    %v11746 = vld [vmem:[#allocation3 + $0x268] sm:$0xf]
    %v11747 = vld [vmem:[#allocation3 + $0x26c] sm:$0xf]
    %v11748 = vld [vmem:[#allocation3 + $0x270] sm:$0xf]
    %v11749 = vld [vmem:[#allocation3 + $0x274] sm:$0xf]
    %v11750 = vld [vmem:[#allocation3 + $0x278] sm:$0xf]
    %v11751 = vld [vmem:[#allocation3 + $0x27c] sm:$0xf]
    %v11752 = vld [vmem:[#allocation3 + $0x280] sm:$0xf]
    %v11753 = vld [vmem:[#allocation3 + $0x284] sm:$0xf]
    %v11754 = vld [vmem:[#allocation3 + $0x288] sm:$0xf]
    %v11755 = vld [vmem:[#allocation3 + $0x28c] sm:$0xf]
    %v11756 = vld [vmem:[#allocation3 + $0x290] sm:$0xf]
    %v11757 = vld [vmem:[#allocation3 + $0x294] sm:$0xf]
    %v11758 = vld [vmem:[#allocation3 + $0x298] sm:$0xf]
    %v11759 = vld [vmem:[#allocation3 + $0x29c] sm:$0xf]
    %v11760 = vld [vmem:[#allocation3 + $0x2a0] sm:$0xf]
    %v11761 = vld [vmem:[#allocation3 + $0x2a4] sm:$0xf]
    %v11762 = vld [vmem:[#allocation3 + $0x2a8] sm:$0xf]
    %v11763 = vld [vmem:[#allocation3 + $0x2ac] sm:$0xf]
    %v11764 = vld [vmem:[#allocation3 + $0x2b0] sm:$0xf]
    %v11765 = vld [vmem:[#allocation3 + $0x2b4] sm:$0xf]
    %v11766 = vld [vmem:[#allocation3 + $0x2b8] sm:$0xf]
    %v11767 = vld [vmem:[#allocation3 + $0x2bc] sm:$0xf]
    %v11768 = vld [vmem:[#allocation3 + $0x2c0] sm:$0xf]
    %v11769 = vld [vmem:[#allocation3 + $0x2c4] sm:$0xf]
    %v11770 = vld [vmem:[#allocation3 + $0x2c8] sm:$0xf]
    %v11771 = vld [vmem:[#allocation3 + $0x2cc] sm:$0xf]
    %v11772 = vld [vmem:[#allocation3 + $0x2d0] sm:$0xf]
    %v11773 = vld [vmem:[#allocation3 + $0x2d4] sm:$0xf]
    %v11774 = vld [vmem:[#allocation3 + $0x2d8] sm:$0xf]
    %v11775 = vld [vmem:[#allocation3 + $0x2dc] sm:$0xf]
    %v11776 = vld [vmem:[#allocation3 + $0x2e0] sm:$0xf]
    %v11777 = vld [vmem:[#allocation3 + $0x2e4] sm:$0xf]
    %v11778 = vld [vmem:[#allocation3 + $0x2e8] sm:$0xf]
    %v11779 = vld [vmem:[#allocation3 + $0x2ec] sm:$0xf]
    %v11780 = vld [vmem:[#allocation3 + $0x2f0] sm:$0xf]
    %v11781 = vld [vmem:[#allocation3 + $0x2f4] sm:$0xf]
    %v11782 = vld [vmem:[#allocation3 + $0x2f8] sm:$0xf]
    %v11783 = vld [vmem:[#allocation3 + $0x2fc] sm:$0xf]
    %v11784 = vld [vmem:[#allocation3 + $0x300] sm:$0xf]
    %v11785 = vld [vmem:[#allocation3 + $0x304] sm:$0xf]
    %v11786 = vld [vmem:[#allocation3 + $0x308] sm:$0xf]
    %v11787 = vld [vmem:[#allocation3 + $0x30c] sm:$0xf]
    %v11788 = vld [vmem:[#allocation3 + $0x310] sm:$0xf]
    %v11789 = vld [vmem:[#allocation3 + $0x314] sm:$0xf]
    %v11790 = vld [vmem:[#allocation3 + $0x318] sm:$0xf]
    %v11791 = vld [vmem:[#allocation3 + $0x31c] sm:$0xf]
    %v11792 = vld [vmem:[#allocation3 + $0x320] sm:$0xf]
    %v11793 = vld [vmem:[#allocation3 + $0x324] sm:$0xf]
    %v11794 = vld [vmem:[#allocation3 + $0x328] sm:$0xf]
    %v11795 = vld [vmem:[#allocation3 + $0x32c] sm:$0xf]
    %v11796 = vld [vmem:[#allocation3 + $0x330] sm:$0xf]
    %v11797 = vld [vmem:[#allocation3 + $0x334] sm:$0xf]
    %v11798 = vld [vmem:[#allocation3 + $0x338] sm:$0xf]
    %v11799 = vld [vmem:[#allocation3 + $0x33c] sm:$0xf]
    %v11800 = vld [vmem:[#allocation3 + $0x340] sm:$0xf]
    %v11801 = vld [vmem:[#allocation3 + $0x344] sm:$0xf]
    %v11802 = vld [vmem:[#allocation3 + $0x348] sm:$0xf]
    %v11803 = vld [vmem:[#allocation3 + $0x34c] sm:$0xf]
    %v11804 = vld [vmem:[#allocation3 + $0x350] sm:$0xf]
    %v11805 = vld [vmem:[#allocation3 + $0x354] sm:$0xf]
    %v11806 = vld [vmem:[#allocation3 + $0x358] sm:$0xf]
    %v11807 = vld [vmem:[#allocation3 + $0x35c] sm:$0xf]
    %v11808 = vld [vmem:[#allocation3 + $0x360] sm:$0xf]
    %v11809 = vld [vmem:[#allocation3 + $0x364] sm:$0xf]
    %v11810 = vld [vmem:[#allocation3 + $0x368] sm:$0xf]
    %v11811 = vld [vmem:[#allocation3 + $0x36c] sm:$0xf]
    %v11812 = vld [vmem:[#allocation3 + $0x370] sm:$0xf]
    %v11813 = vld [vmem:[#allocation3 + $0x374] sm:$0xf]
    %v11814 = vld [vmem:[#allocation3 + $0x378] sm:$0xf]
    %v11815 = vld [vmem:[#allocation3 + $0x37c] sm:$0xf]
    %v11816 = vld [vmem:[#allocation3 + $0x380] sm:$0xf]
    %v11817 = vld [vmem:[#allocation3 + $0x384] sm:$0xf]
    %v11818 = vld [vmem:[#allocation3 + $0x388] sm:$0xf]
    %v11819 = vld [vmem:[#allocation3 + $0x38c] sm:$0xf]
    %v11820 = vld [vmem:[#allocation3 + $0x390] sm:$0xf]
    %v11821 = vld [vmem:[#allocation3 + $0x394] sm:$0xf]
    %v11822 = vld [vmem:[#allocation3 + $0x398] sm:$0xf]
    %v11823 = vld [vmem:[#allocation3 + $0x39c] sm:$0xf]
    %v11824 = vld [vmem:[#allocation3 + $0x3a0] sm:$0xf]
    %v11825 = vld [vmem:[#allocation3 + $0x3a4] sm:$0xf]
    %v11826 = vld [vmem:[#allocation3 + $0x3a8] sm:$0xf]
    %v11827 = vld [vmem:[#allocation3 + $0x3ac] sm:$0xf]
    %v11828 = vld [vmem:[#allocation3 + $0x3b0] sm:$0xf]
    %v11829 = vld [vmem:[#allocation3 + $0x3b4] sm:$0xf]
    %v11830 = vld [vmem:[#allocation3 + $0x3b8] sm:$0xf]
    %v11831 = vld [vmem:[#allocation3 + $0x3bc] sm:$0xf]
    %v11832 = vld [vmem:[#allocation3 + $0x3c0] sm:$0xf]
    %v11833 = vld [vmem:[#allocation3 + $0x3c4] sm:$0xf]
    %v11834 = vld [vmem:[#allocation3 + $0x3c8] sm:$0xf]
    %v11835 = vld [vmem:[#allocation3 + $0x3cc] sm:$0xf]
    %v11836 = vld [vmem:[#allocation3 + $0x3d0] sm:$0xf]
    %v11837 = vld [vmem:[#allocation3 + $0x3d4] sm:$0xf]
    %v11838 = vld [vmem:[#allocation3 + $0x3d8] sm:$0xf]
    %v11839 = vld [vmem:[#allocation3 + $0x3dc] sm:$0xf]
    %v11840 = vld [vmem:[#allocation3 + $0x3e0] sm:$0xf]
    %v11841 = vld [vmem:[#allocation3 + $0x3e4] sm:$0xf]
    %v11842 = vld [vmem:[#allocation3 + $0x3e8] sm:$0xf]
    %v11843 = vld [vmem:[#allocation3 + $0x3ec] sm:$0xf]
    %v11844 = vld [vmem:[#allocation3 + $0x3f0] sm:$0xf]
    %v11845 = vld [vmem:[#allocation3 + $0x3f4] sm:$0xf]
    %v11846 = vld [vmem:[#allocation3 + $0x3f8] sm:$0xf]
    %v11847 = vld [vmem:[#allocation3 + $0x3fc] sm:$0xf]
    %v11848 = vld [vmem:[#allocation8 + $0x3a] sm:$0x1]
    %v11849 = vpack.c.bf16 %v11572, %v11572
    %v11850 = vpack.c.bf16 %v11573, %v11573
    %v11851 = vpack.c.bf16 %v11574, %v11574
    %v11852 = vpack.c.bf16 %v11575, %v11575
    %v11853 = vpack.c.bf16 %v11576, %v11576
    %v11854 = vpack.c.bf16 %v11577, %v11577
    %v11855 = vpack.c.bf16 %v11578, %v11578
    %v11856 = vpack.c.bf16 %v11579, %v11579
    %v11857 = vpack.c.bf16 %v11580, %v11580
    %v11858 = vpack.c.bf16 %v11581, %v11581
    %v11859 = vpack.c.bf16 %v11582, %v11582
    %v11860 = vpack.c.bf16 %v11583, %v11583
    %v11861 = vpack.c.bf16 %v11584, %v11584
    %v11862 = vpack.c.bf16 %v11585, %v11585
    %v11863 = vpack.c.bf16 %v11586, %v11586
    %v11864 = vpack.c.bf16 %v11587, %v11587
    %v11866 = vperm.slane %v11848, 0
    %v12124 = vunpack.c.l.b16 %v11592
    %v12125 = vunpack.c.l.b16 %v11593
    %v12126 = vunpack.c.l.b16 %v11594
    %v12127 = vunpack.c.l.b16 %v11595
    %v12128 = vunpack.c.l.b16 %v11596
    %v12129 = vunpack.c.l.b16 %v11597
    %v12130 = vunpack.c.l.b16 %v11598
    %v12131 = vunpack.c.l.b16 %v11599
    %v12132 = vunpack.c.l.b16 %v11600
    %v12133 = vunpack.c.l.b16 %v11601
    %v12134 = vunpack.c.l.b16 %v11602
    %v12135 = vunpack.c.l.b16 %v11603
    %v12136 = vunpack.c.l.b16 %v11604
    %v12137 = vunpack.c.l.b16 %v11605
    %v12138 = vunpack.c.l.b16 %v11606
    %v12139 = vunpack.c.l.b16 %v11607
    %v12140 = vunpack.c.l.b16 %v11608
    %v12141 = vunpack.c.l.b16 %v11609
    %v12142 = vunpack.c.l.b16 %v11610
    %v12143 = vunpack.c.l.b16 %v11611
    %v12144 = vunpack.c.l.b16 %v11612
    %v12145 = vunpack.c.l.b16 %v11613
    %v12146 = vunpack.c.l.b16 %v11614
    %v12147 = vunpack.c.l.b16 %v11615
    %v12148 = vunpack.c.l.b16 %v11616
    %v12149 = vunpack.c.l.b16 %v11617
    %v12150 = vunpack.c.l.b16 %v11618
    %v12151 = vunpack.c.l.b16 %v11619
    %v12152 = vunpack.c.l.b16 %v11620
    %v12153 = vunpack.c.l.b16 %v11621
    %v12154 = vunpack.c.l.b16 %v11622
    %v12155 = vunpack.c.l.b16 %v11623
    %v12156 = vunpack.c.l.b16 %v11624
    %v12157 = vunpack.c.l.b16 %v11625
    %v12158 = vunpack.c.l.b16 %v11626
    %v12159 = vunpack.c.l.b16 %v11627
    %v12160 = vunpack.c.l.b16 %v11628
    %v12161 = vunpack.c.l.b16 %v11629
    %v12162 = vunpack.c.l.b16 %v11630
    %v12163 = vunpack.c.l.b16 %v11631
    %v12164 = vunpack.c.l.b16 %v11632
    %v12165 = vunpack.c.l.b16 %v11633
    %v12166 = vunpack.c.l.b16 %v11634
    %v12167 = vunpack.c.l.b16 %v11635
    %v12168 = vunpack.c.l.b16 %v11636
    %v12169 = vunpack.c.l.b16 %v11637
    %v12170 = vunpack.c.l.b16 %v11638
    %v12171 = vunpack.c.l.b16 %v11639
    %v12172 = vunpack.c.l.b16 %v11640
    %v12173 = vunpack.c.l.b16 %v11641
    %v12174 = vunpack.c.l.b16 %v11642
    %v12175 = vunpack.c.l.b16 %v11643
    %v12176 = vunpack.c.l.b16 %v11644
    %v12177 = vunpack.c.l.b16 %v11645
    %v12178 = vunpack.c.l.b16 %v11646
    %v12179 = vunpack.c.l.b16 %v11647
    %v12180 = vunpack.c.l.b16 %v11648
    %v12181 = vunpack.c.l.b16 %v11649
    %v12182 = vunpack.c.l.b16 %v11650
    %v12183 = vunpack.c.l.b16 %v11651
    %v12184 = vunpack.c.l.b16 %v11652
    %v12185 = vunpack.c.l.b16 %v11653
    %v12186 = vunpack.c.l.b16 %v11654
    %v12187 = vunpack.c.l.b16 %v11655
    %v12188 = vunpack.c.l.b16 %v11656
    %v12189 = vunpack.c.l.b16 %v11657
    %v12190 = vunpack.c.l.b16 %v11658
    %v12191 = vunpack.c.l.b16 %v11659
    %v12192 = vunpack.c.l.b16 %v11660
    %v12193 = vunpack.c.l.b16 %v11661
    %v12194 = vunpack.c.l.b16 %v11662
    %v12195 = vunpack.c.l.b16 %v11663
    %v12196 = vunpack.c.l.b16 %v11664
    %v12197 = vunpack.c.l.b16 %v11665
    %v12198 = vunpack.c.l.b16 %v11666
    %v12199 = vunpack.c.l.b16 %v11667
    %v12200 = vunpack.c.l.b16 %v11668
    %v12201 = vunpack.c.l.b16 %v11669
    %v12202 = vunpack.c.l.b16 %v11670
    %v12203 = vunpack.c.l.b16 %v11671
    %v12204 = vunpack.c.l.b16 %v11672
    %v12205 = vunpack.c.l.b16 %v11673
    %v12206 = vunpack.c.l.b16 %v11674
    %v12207 = vunpack.c.l.b16 %v11675
    %v12208 = vunpack.c.l.b16 %v11676
    %v12209 = vunpack.c.l.b16 %v11677
    %v12210 = vunpack.c.l.b16 %v11678
    %v12211 = vunpack.c.l.b16 %v11679
    %v12212 = vunpack.c.l.b16 %v11680
    %v12213 = vunpack.c.l.b16 %v11681
    %v12214 = vunpack.c.l.b16 %v11682
    %v12215 = vunpack.c.l.b16 %v11683
    %v12216 = vunpack.c.l.b16 %v11684
    %v12217 = vunpack.c.l.b16 %v11685
    %v12218 = vunpack.c.l.b16 %v11686
    %v12219 = vunpack.c.l.b16 %v11687
    %v12220 = vunpack.c.l.b16 %v11688
    %v12221 = vunpack.c.l.b16 %v11689
    %v12222 = vunpack.c.l.b16 %v11690
    %v12223 = vunpack.c.l.b16 %v11691
    %v12224 = vunpack.c.l.b16 %v11692
    %v12225 = vunpack.c.l.b16 %v11693
    %v12226 = vunpack.c.l.b16 %v11694
    %v12227 = vunpack.c.l.b16 %v11695
    %v12228 = vunpack.c.l.b16 %v11696
    %v12229 = vunpack.c.l.b16 %v11697
    %v12230 = vunpack.c.l.b16 %v11698
    %v12231 = vunpack.c.l.b16 %v11699
    %v12232 = vunpack.c.l.b16 %v11700
    %v12233 = vunpack.c.l.b16 %v11701
    %v12234 = vunpack.c.l.b16 %v11702
    %v12235 = vunpack.c.l.b16 %v11703
    %v12236 = vunpack.c.l.b16 %v11704
    %v12237 = vunpack.c.l.b16 %v11705
    %v12238 = vunpack.c.l.b16 %v11706
    %v12239 = vunpack.c.l.b16 %v11707
    %v12240 = vunpack.c.l.b16 %v11708
    %v12241 = vunpack.c.l.b16 %v11709
    %v12242 = vunpack.c.l.b16 %v11710
    %v12243 = vunpack.c.l.b16 %v11711
    %v12244 = vunpack.c.l.b16 %v11712
    %v12245 = vunpack.c.l.b16 %v11713
    %v12246 = vunpack.c.l.b16 %v11714
    %v12247 = vunpack.c.l.b16 %v11715
    %v12248 = vunpack.c.l.b16 %v11716
    %v12249 = vunpack.c.l.b16 %v11717
    %v12250 = vunpack.c.l.b16 %v11718
    %v12251 = vunpack.c.l.b16 %v11719
    %v12252 = vunpack.c.l.b16 %v11720
    %v12253 = vunpack.c.l.b16 %v11721
    %v12254 = vunpack.c.l.b16 %v11722
    %v12255 = vunpack.c.l.b16 %v11723
    %v12256 = vunpack.c.l.b16 %v11724
    %v12257 = vunpack.c.l.b16 %v11725
    %v12258 = vunpack.c.l.b16 %v11726
    %v12259 = vunpack.c.l.b16 %v11727
    %v12260 = vunpack.c.l.b16 %v11728
    %v12261 = vunpack.c.l.b16 %v11729
    %v12262 = vunpack.c.l.b16 %v11730
    %v12263 = vunpack.c.l.b16 %v11731
    %v12264 = vunpack.c.l.b16 %v11732
    %v12265 = vunpack.c.l.b16 %v11733
    %v12266 = vunpack.c.l.b16 %v11734
    %v12267 = vunpack.c.l.b16 %v11735
    %v12268 = vunpack.c.l.b16 %v11736
    %v12269 = vunpack.c.l.b16 %v11737
    %v12270 = vunpack.c.l.b16 %v11738
    %v12271 = vunpack.c.l.b16 %v11739
    %v12272 = vunpack.c.l.b16 %v11740
    %v12273 = vunpack.c.l.b16 %v11741
    %v12274 = vunpack.c.l.b16 %v11742
    %v12275 = vunpack.c.l.b16 %v11743
    %v12276 = vunpack.c.l.b16 %v11744
    %v12277 = vunpack.c.l.b16 %v11745
    %v12278 = vunpack.c.l.b16 %v11746
    %v12279 = vunpack.c.l.b16 %v11747
    %v12280 = vunpack.c.l.b16 %v11748
    %v12281 = vunpack.c.l.b16 %v11749
    %v12282 = vunpack.c.l.b16 %v11750
    %v12283 = vunpack.c.l.b16 %v11751
    %v12284 = vunpack.c.l.b16 %v11752
    %v12285 = vunpack.c.l.b16 %v11753
    %v12286 = vunpack.c.l.b16 %v11754
    %v12287 = vunpack.c.l.b16 %v11755
    %v12288 = vunpack.c.l.b16 %v11756
    %v12289 = vunpack.c.l.b16 %v11757
    %v12290 = vunpack.c.l.b16 %v11758
    %v12291 = vunpack.c.l.b16 %v11759
    %v12292 = vunpack.c.l.b16 %v11760
    %v12293 = vunpack.c.l.b16 %v11761
    %v12294 = vunpack.c.l.b16 %v11762
    %v12295 = vunpack.c.l.b16 %v11763
    %v12296 = vunpack.c.l.b16 %v11764
    %v12297 = vunpack.c.l.b16 %v11765
    %v12298 = vunpack.c.l.b16 %v11766
    %v12299 = vunpack.c.l.b16 %v11767
    %v12300 = vunpack.c.l.b16 %v11768
    %v12301 = vunpack.c.l.b16 %v11769
    %v12302 = vunpack.c.l.b16 %v11770
    %v12303 = vunpack.c.l.b16 %v11771
    %v12304 = vunpack.c.l.b16 %v11772
    %v12305 = vunpack.c.l.b16 %v11773
    %v12306 = vunpack.c.l.b16 %v11774
    %v12307 = vunpack.c.l.b16 %v11775
    %v12308 = vunpack.c.l.b16 %v11776
    %v12309 = vunpack.c.l.b16 %v11777
    %v12310 = vunpack.c.l.b16 %v11778
    %v12311 = vunpack.c.l.b16 %v11779
    %v12312 = vunpack.c.l.b16 %v11780
    %v12313 = vunpack.c.l.b16 %v11781
    %v12314 = vunpack.c.l.b16 %v11782
    %v12315 = vunpack.c.l.b16 %v11783
    %v12316 = vunpack.c.l.b16 %v11784
    %v12317 = vunpack.c.l.b16 %v11785
    %v12318 = vunpack.c.l.b16 %v11786
    %v12319 = vunpack.c.l.b16 %v11787
    %v12320 = vunpack.c.l.b16 %v11788
    %v12321 = vunpack.c.l.b16 %v11789
    %v12322 = vunpack.c.l.b16 %v11790
    %v12323 = vunpack.c.l.b16 %v11791
    %v12324 = vunpack.c.l.b16 %v11792
    %v12325 = vunpack.c.l.b16 %v11793
    %v12326 = vunpack.c.l.b16 %v11794
    %v12327 = vunpack.c.l.b16 %v11795
    %v12328 = vunpack.c.l.b16 %v11796
    %v12329 = vunpack.c.l.b16 %v11797
    %v12330 = vunpack.c.l.b16 %v11798
    %v12331 = vunpack.c.l.b16 %v11799
    %v12332 = vunpack.c.l.b16 %v11800
    %v12333 = vunpack.c.l.b16 %v11801
    %v12334 = vunpack.c.l.b16 %v11802
    %v12335 = vunpack.c.l.b16 %v11803
    %v12336 = vunpack.c.l.b16 %v11804
    %v12337 = vunpack.c.l.b16 %v11805
    %v12338 = vunpack.c.l.b16 %v11806
    %v12339 = vunpack.c.l.b16 %v11807
    %v12340 = vunpack.c.l.b16 %v11808
    %v12341 = vunpack.c.l.b16 %v11809
    %v12342 = vunpack.c.l.b16 %v11810
    %v12343 = vunpack.c.l.b16 %v11811
    %v12344 = vunpack.c.l.b16 %v11812
    %v12345 = vunpack.c.l.b16 %v11813
    %v12346 = vunpack.c.l.b16 %v11814
    %v12347 = vunpack.c.l.b16 %v11815
    %v12348 = vunpack.c.l.b16 %v11816
    %v12349 = vunpack.c.l.b16 %v11817
    %v12350 = vunpack.c.l.b16 %v11818
    %v12351 = vunpack.c.l.b16 %v11819
    %v12352 = vunpack.c.l.b16 %v11820
    %v12353 = vunpack.c.l.b16 %v11821
    %v12354 = vunpack.c.l.b16 %v11822
    %v12355 = vunpack.c.l.b16 %v11823
    %v12356 = vunpack.c.l.b16 %v11824
    %v12357 = vunpack.c.l.b16 %v11825
    %v12358 = vunpack.c.l.b16 %v11826
    %v12359 = vunpack.c.l.b16 %v11827
    %v12360 = vunpack.c.l.b16 %v11828
    %v12361 = vunpack.c.l.b16 %v11829
    %v12362 = vunpack.c.l.b16 %v11830
    %v12363 = vunpack.c.l.b16 %v11831
    %v12364 = vunpack.c.l.b16 %v11832
    %v12365 = vunpack.c.l.b16 %v11833
    %v12366 = vunpack.c.l.b16 %v11834
    %v12367 = vunpack.c.l.b16 %v11835
    %v12368 = vunpack.c.l.b16 %v11836
    %v12369 = vunpack.c.l.b16 %v11837
    %v12370 = vunpack.c.l.b16 %v11838
    %v12371 = vunpack.c.l.b16 %v11839
    %v12372 = vunpack.c.l.b16 %v11840
    %v12373 = vunpack.c.l.b16 %v11841
    %v12374 = vunpack.c.l.b16 %v11842
    %v12375 = vunpack.c.l.b16 %v11843
    %v12376 = vunpack.c.l.b16 %v11844
    %v12377 = vunpack.c.l.b16 %v11845
    %v12378 = vunpack.c.l.b16 %v11846
    %v12379 = vunpack.c.l.b16 %v11847
    %v12380 = vpack.c.b16 %v12125, %v12124
    %v12381 = vpack.c.b16 %v12127, %v12126
    %v12382 = vpack.c.b16 %v12129, %v12128
    %v12383 = vpack.c.b16 %v12131, %v12130
    %v12384 = vpack.c.b16 %v12133, %v12132
    %v12385 = vpack.c.b16 %v12135, %v12134
    %v12386 = vpack.c.b16 %v12137, %v12136
    %v12387 = vpack.c.b16 %v12139, %v12138
    %v12388 = vpack.c.b16 %v12141, %v12140
    %v12389 = vpack.c.b16 %v12143, %v12142
    %v12390 = vpack.c.b16 %v12145, %v12144
    %v12391 = vpack.c.b16 %v12147, %v12146
    %v12392 = vpack.c.b16 %v12149, %v12148
    %v12393 = vpack.c.b16 %v12151, %v12150
    %v12394 = vpack.c.b16 %v12153, %v12152
    %v12395 = vpack.c.b16 %v12155, %v12154
    %v12396 = vpack.c.b16 %v12157, %v12156
    %v12397 = vpack.c.b16 %v12159, %v12158
    %v12398 = vpack.c.b16 %v12161, %v12160
    %v12399 = vpack.c.b16 %v12163, %v12162
    %v12400 = vpack.c.b16 %v12165, %v12164
    %v12401 = vpack.c.b16 %v12167, %v12166
    %v12402 = vpack.c.b16 %v12169, %v12168
    %v12403 = vpack.c.b16 %v12171, %v12170
    %v12404 = vpack.c.b16 %v12173, %v12172
    %v12405 = vpack.c.b16 %v12175, %v12174
    %v12406 = vpack.c.b16 %v12177, %v12176
    %v12407 = vpack.c.b16 %v12179, %v12178
    %v12408 = vpack.c.b16 %v12181, %v12180
    %v12409 = vpack.c.b16 %v12183, %v12182
    %v12410 = vpack.c.b16 %v12185, %v12184
    %v12411 = vpack.c.b16 %v12187, %v12186
    %v12412 = vpack.c.b16 %v12189, %v12188
    %v12413 = vpack.c.b16 %v12191, %v12190
    %v12414 = vpack.c.b16 %v12193, %v12192
    %v12415 = vpack.c.b16 %v12195, %v12194
    %v12416 = vpack.c.b16 %v12197, %v12196
    %v12417 = vpack.c.b16 %v12199, %v12198
    %v12418 = vpack.c.b16 %v12201, %v12200
    %v12419 = vpack.c.b16 %v12203, %v12202
    %v12420 = vpack.c.b16 %v12205, %v12204
    %v12421 = vpack.c.b16 %v12207, %v12206
    %v12422 = vpack.c.b16 %v12209, %v12208
    %v12423 = vpack.c.b16 %v12211, %v12210
    %v12424 = vpack.c.b16 %v12213, %v12212
    %v12425 = vpack.c.b16 %v12215, %v12214
    %v12426 = vpack.c.b16 %v12217, %v12216
    %v12427 = vpack.c.b16 %v12219, %v12218
    %v12428 = vpack.c.b16 %v12221, %v12220
    %v12429 = vpack.c.b16 %v12223, %v12222
    %v12430 = vpack.c.b16 %v12225, %v12224
    %v12431 = vpack.c.b16 %v12227, %v12226
    %v12432 = vpack.c.b16 %v12229, %v12228
    %v12433 = vpack.c.b16 %v12231, %v12230
    %v12434 = vpack.c.b16 %v12233, %v12232
    %v12435 = vpack.c.b16 %v12235, %v12234
    %v12436 = vpack.c.b16 %v12237, %v12236
    %v12437 = vpack.c.b16 %v12239, %v12238
    %v12438 = vpack.c.b16 %v12241, %v12240
    %v12439 = vpack.c.b16 %v12243, %v12242
    %v12440 = vpack.c.b16 %v12245, %v12244
    %v12441 = vpack.c.b16 %v12247, %v12246
    %v12442 = vpack.c.b16 %v12249, %v12248
    %v12443 = vpack.c.b16 %v12251, %v12250
    %v12444 = vpack.c.b16 %v12253, %v12252
    %v12445 = vpack.c.b16 %v12255, %v12254
    %v12446 = vpack.c.b16 %v12257, %v12256
    %v12447 = vpack.c.b16 %v12259, %v12258
    %v12448 = vpack.c.b16 %v12261, %v12260
    %v12449 = vpack.c.b16 %v12263, %v12262
    %v12450 = vpack.c.b16 %v12265, %v12264
    %v12451 = vpack.c.b16 %v12267, %v12266
    %v12452 = vpack.c.b16 %v12269, %v12268
    %v12453 = vpack.c.b16 %v12271, %v12270
    %v12454 = vpack.c.b16 %v12273, %v12272
    %v12455 = vpack.c.b16 %v12275, %v12274
    %v12456 = vpack.c.b16 %v12277, %v12276
    %v12457 = vpack.c.b16 %v12279, %v12278
    %v12458 = vpack.c.b16 %v12281, %v12280
    %v12459 = vpack.c.b16 %v12283, %v12282
    %v12460 = vpack.c.b16 %v12285, %v12284
    %v12461 = vpack.c.b16 %v12287, %v12286
    %v12462 = vpack.c.b16 %v12289, %v12288
    %v12463 = vpack.c.b16 %v12291, %v12290
    %v12464 = vpack.c.b16 %v12293, %v12292
    %v12465 = vpack.c.b16 %v12295, %v12294
    %v12466 = vpack.c.b16 %v12297, %v12296
    %v12467 = vpack.c.b16 %v12299, %v12298
    %v12468 = vpack.c.b16 %v12301, %v12300
    %v12469 = vpack.c.b16 %v12303, %v12302
    %v12470 = vpack.c.b16 %v12305, %v12304
    %v12471 = vpack.c.b16 %v12307, %v12306
    %v12472 = vpack.c.b16 %v12309, %v12308
    %v12473 = vpack.c.b16 %v12311, %v12310
    %v12474 = vpack.c.b16 %v12313, %v12312
    %v12475 = vpack.c.b16 %v12315, %v12314
    %v12476 = vpack.c.b16 %v12317, %v12316
    %v12477 = vpack.c.b16 %v12319, %v12318
    %v12478 = vpack.c.b16 %v12321, %v12320
    %v12479 = vpack.c.b16 %v12323, %v12322
    %v12480 = vpack.c.b16 %v12325, %v12324
    %v12481 = vpack.c.b16 %v12327, %v12326
    %v12482 = vpack.c.b16 %v12329, %v12328
    %v12483 = vpack.c.b16 %v12331, %v12330
    %v12484 = vpack.c.b16 %v12333, %v12332
    %v12485 = vpack.c.b16 %v12335, %v12334
    %v12486 = vpack.c.b16 %v12337, %v12336
    %v12487 = vpack.c.b16 %v12339, %v12338
    %v12488 = vpack.c.b16 %v12341, %v12340
    %v12489 = vpack.c.b16 %v12343, %v12342
    %v12490 = vpack.c.b16 %v12345, %v12344
    %v12491 = vpack.c.b16 %v12347, %v12346
    %v12492 = vpack.c.b16 %v12349, %v12348
    %v12493 = vpack.c.b16 %v12351, %v12350
    %v12494 = vpack.c.b16 %v12353, %v12352
    %v12495 = vpack.c.b16 %v12355, %v12354
    %v12496 = vpack.c.b16 %v12357, %v12356
    %v12497 = vpack.c.b16 %v12359, %v12358
    %v12498 = vpack.c.b16 %v12361, %v12360
    %v12499 = vpack.c.b16 %v12363, %v12362
    %v12500 = vpack.c.b16 %v12365, %v12364
    %v12501 = vpack.c.b16 %v12367, %v12366
    %v12502 = vpack.c.b16 %v12369, %v12368
    %v12503 = vpack.c.b16 %v12371, %v12370
    %v12504 = vpack.c.b16 %v12373, %v12372
    %v12505 = vpack.c.b16 %v12375, %v12374
    %v12506 = vpack.c.b16 %v12377, %v12376
    %v12507 = vpack.c.b16 %v12379, %v12378
    %12636 = vmatpush.bf16.msra.mxu0 %v12387
    %12637 = vmatpush.bf16.msra.mxu0 %v12386
    %12638 = vmatpush.bf16.msra.mxu0 %v12385
    %12639 = vmatpush.bf16.msra.mxu0 %v12384
    %12640 = vmatpush.bf16.msra.mxu0 %v12383
    %12641 = vmatpush.bf16.msra.mxu0 %v12382
    %12642 = vmatpush.bf16.msra.mxu0 %v12381
    %12643 = vmatpush.bf16.msra.mxu0 %v12380
    %12644 = vmatmul.bf16.gmra.mxu0 %v11849
    %v12645 = vpop.f32.mrf.mxu0
    %v12646 = vadd.f32 %v11866, %v12645
    %v12647 = vpop.f32.mrf.mxu0
    %12648 = vdwg.mxu0
    %12649 = vmatpush.bf16.msra.mxu0 %v12395
    %12650 = vmatpush.bf16.msra.mxu0 %v12394
    %12651 = vmatpush.bf16.msra.mxu0 %v12393
    %12652 = vmatpush.bf16.msra.mxu0 %v12392
    %12653 = vmatpush.bf16.msra.mxu0 %v12391
    %12654 = vmatpush.bf16.msra.mxu0 %v12390
    %12655 = vmatpush.bf16.msra.mxu0 %v12389
    %12656 = vmatpush.bf16.msra.mxu0 %v12388
    %12657 = vmatmul.bf16.gmra.mxu0 %v11850
    %v12658 = vpop.f32.mrf.mxu0
    %v12659 = vadd.f32 %v12646, %v12658
    %v12660 = vpop.f32.mrf.mxu0
    %12661 = vdwg.mxu0
    %12662 = vmatpush.bf16.msra.mxu0 %v12403
    %12663 = vmatpush.bf16.msra.mxu0 %v12402
    %12664 = vmatpush.bf16.msra.mxu0 %v12401
    %12665 = vmatpush.bf16.msra.mxu0 %v12400
    %12666 = vmatpush.bf16.msra.mxu0 %v12399
    %12667 = vmatpush.bf16.msra.mxu0 %v12398
    %12668 = vmatpush.bf16.msra.mxu0 %v12397
    %12669 = vmatpush.bf16.msra.mxu0 %v12396
    %12670 = vmatmul.bf16.gmra.mxu0 %v11851
    %v12671 = vpop.f32.mrf.mxu0
    %v12672 = vadd.f32 %v12659, %v12671
    %v12673 = vpop.f32.mrf.mxu0
    %12674 = vdwg.mxu0
    %12675 = vmatpush.bf16.msra.mxu0 %v12411
    %12676 = vmatpush.bf16.msra.mxu0 %v12410
    %12677 = vmatpush.bf16.msra.mxu0 %v12409
    %12678 = vmatpush.bf16.msra.mxu0 %v12408
    %12679 = vmatpush.bf16.msra.mxu0 %v12407
    %12680 = vmatpush.bf16.msra.mxu0 %v12406
    %12681 = vmatpush.bf16.msra.mxu0 %v12405
    %12682 = vmatpush.bf16.msra.mxu0 %v12404
    %12683 = vmatmul.bf16.gmra.mxu0 %v11852
    %v12684 = vpop.f32.mrf.mxu0
    %v12685 = vadd.f32 %v12672, %v12684
    %v12686 = vpop.f32.mrf.mxu0
    %12687 = vdwg.mxu0
    %12688 = vmatpush.bf16.msra.mxu0 %v12419
    %12689 = vmatpush.bf16.msra.mxu0 %v12418
    %12690 = vmatpush.bf16.msra.mxu0 %v12417
    %12691 = vmatpush.bf16.msra.mxu0 %v12416
    %12692 = vmatpush.bf16.msra.mxu0 %v12415
    %12693 = vmatpush.bf16.msra.mxu0 %v12414
    %12694 = vmatpush.bf16.msra.mxu0 %v12413
    %12695 = vmatpush.bf16.msra.mxu0 %v12412
    %12696 = vmatmul.bf16.gmra.mxu0 %v11853
    %v12697 = vpop.f32.mrf.mxu0
    %v12698 = vadd.f32 %v12685, %v12697
    %v12699 = vpop.f32.mrf.mxu0
    %12700 = vdwg.mxu0
    %12701 = vmatpush.bf16.msra.mxu0 %v12427
    %12702 = vmatpush.bf16.msra.mxu0 %v12426
    %12703 = vmatpush.bf16.msra.mxu0 %v12425
    %12704 = vmatpush.bf16.msra.mxu0 %v12424
    %12705 = vmatpush.bf16.msra.mxu0 %v12423
    %12706 = vmatpush.bf16.msra.mxu0 %v12422
    %12707 = vmatpush.bf16.msra.mxu0 %v12421
    %12708 = vmatpush.bf16.msra.mxu0 %v12420
    %12709 = vmatmul.bf16.gmra.mxu0 %v11854
    %v12710 = vpop.f32.mrf.mxu0
    %v12711 = vadd.f32 %v12698, %v12710
    %v12712 = vpop.f32.mrf.mxu0
    %12713 = vdwg.mxu0
    %12714 = vmatpush.bf16.msra.mxu0 %v12435
    %12715 = vmatpush.bf16.msra.mxu0 %v12434
    %12716 = vmatpush.bf16.msra.mxu0 %v12433
    %12717 = vmatpush.bf16.msra.mxu0 %v12432
    %12718 = vmatpush.bf16.msra.mxu0 %v12431
    %12719 = vmatpush.bf16.msra.mxu0 %v12430
    %12720 = vmatpush.bf16.msra.mxu0 %v12429
    %12721 = vmatpush.bf16.msra.mxu0 %v12428
    %12722 = vmatmul.bf16.gmra.mxu0 %v11855
    %v12723 = vpop.f32.mrf.mxu0
    %v12724 = vadd.f32 %v12711, %v12723
    %v12725 = vpop.f32.mrf.mxu0
    %12726 = vdwg.mxu0
    %12727 = vmatpush.bf16.msra.mxu0 %v12443
    %12728 = vmatpush.bf16.msra.mxu0 %v12442
    %12729 = vmatpush.bf16.msra.mxu0 %v12441
    %12730 = vmatpush.bf16.msra.mxu0 %v12440
    %12731 = vmatpush.bf16.msra.mxu0 %v12439
    %12732 = vmatpush.bf16.msra.mxu0 %v12438
    %12733 = vmatpush.bf16.msra.mxu0 %v12437
    %12734 = vmatpush.bf16.msra.mxu0 %v12436
    %12735 = vmatmul.bf16.gmra.mxu0 %v11856
    %v12736 = vpop.f32.mrf.mxu0
    %v12737 = vadd.f32 %v12724, %v12736
    %v12738 = vpop.f32.mrf.mxu0
    %12739 = vdwg.mxu0
    %12740 = vmatpush.bf16.msra.mxu0 %v12451
    %12741 = vmatpush.bf16.msra.mxu0 %v12450
    %12742 = vmatpush.bf16.msra.mxu0 %v12449
    %12743 = vmatpush.bf16.msra.mxu0 %v12448
    %12744 = vmatpush.bf16.msra.mxu0 %v12447
    %12745 = vmatpush.bf16.msra.mxu0 %v12446
    %12746 = vmatpush.bf16.msra.mxu0 %v12445
    %12747 = vmatpush.bf16.msra.mxu0 %v12444
    %12748 = vmatmul.bf16.gmra.mxu0 %v11857
    %v12749 = vpop.f32.mrf.mxu0
    %v12750 = vadd.f32 %v12737, %v12749
    %v12751 = vpop.f32.mrf.mxu0
    %12752 = vdwg.mxu0
    %12753 = vmatpush.bf16.msra.mxu0 %v12459
    %12754 = vmatpush.bf16.msra.mxu0 %v12458
    %12755 = vmatpush.bf16.msra.mxu0 %v12457
    %12756 = vmatpush.bf16.msra.mxu0 %v12456
    %12757 = vmatpush.bf16.msra.mxu0 %v12455
    %12758 = vmatpush.bf16.msra.mxu0 %v12454
    %12759 = vmatpush.bf16.msra.mxu0 %v12453
    %12760 = vmatpush.bf16.msra.mxu0 %v12452
    %12761 = vmatmul.bf16.gmra.mxu0 %v11858
    %v12762 = vpop.f32.mrf.mxu0
    %v12763 = vadd.f32 %v12750, %v12762
    %v12764 = vpop.f32.mrf.mxu0
    %12765 = vdwg.mxu0
    %12766 = vmatpush.bf16.msra.mxu0 %v12467
    %12767 = vmatpush.bf16.msra.mxu0 %v12466
    %12768 = vmatpush.bf16.msra.mxu0 %v12465
    %12769 = vmatpush.bf16.msra.mxu0 %v12464
    %12770 = vmatpush.bf16.msra.mxu0 %v12463
    %12771 = vmatpush.bf16.msra.mxu0 %v12462
    %12772 = vmatpush.bf16.msra.mxu0 %v12461
    %12773 = vmatpush.bf16.msra.mxu0 %v12460
    %12774 = vmatmul.bf16.gmra.mxu0 %v11859
    %v12775 = vpop.f32.mrf.mxu0
    %v12776 = vadd.f32 %v12763, %v12775
    %v12777 = vpop.f32.mrf.mxu0
    %12778 = vdwg.mxu0
    %12779 = vmatpush.bf16.msra.mxu0 %v12475
    %12780 = vmatpush.bf16.msra.mxu0 %v12474
    %12781 = vmatpush.bf16.msra.mxu0 %v12473
    %12782 = vmatpush.bf16.msra.mxu0 %v12472
    %12783 = vmatpush.bf16.msra.mxu0 %v12471
    %12784 = vmatpush.bf16.msra.mxu0 %v12470
    %12785 = vmatpush.bf16.msra.mxu0 %v12469
    %12786 = vmatpush.bf16.msra.mxu0 %v12468
    %12787 = vmatmul.bf16.gmra.mxu0 %v11860
    %v12788 = vpop.f32.mrf.mxu0
    %v12789 = vadd.f32 %v12776, %v12788
    %v12790 = vpop.f32.mrf.mxu0
    %12791 = vdwg.mxu0
    %12792 = vmatpush.bf16.msra.mxu0 %v12483
    %12793 = vmatpush.bf16.msra.mxu0 %v12482
    %12794 = vmatpush.bf16.msra.mxu0 %v12481
    %12795 = vmatpush.bf16.msra.mxu0 %v12480
    %12796 = vmatpush.bf16.msra.mxu0 %v12479
    %12797 = vmatpush.bf16.msra.mxu0 %v12478
    %12798 = vmatpush.bf16.msra.mxu0 %v12477
    %12799 = vmatpush.bf16.msra.mxu0 %v12476
    %12800 = vmatmul.bf16.gmra.mxu0 %v11861
    %v12801 = vpop.f32.mrf.mxu0
    %v12802 = vadd.f32 %v12789, %v12801
    %v12803 = vpop.f32.mrf.mxu0
    %12804 = vdwg.mxu0
    %12805 = vmatpush.bf16.msra.mxu0 %v12491
    %12806 = vmatpush.bf16.msra.mxu0 %v12490
    %12807 = vmatpush.bf16.msra.mxu0 %v12489
    %12808 = vmatpush.bf16.msra.mxu0 %v12488
    %12809 = vmatpush.bf16.msra.mxu0 %v12487
    %12810 = vmatpush.bf16.msra.mxu0 %v12486
    %12811 = vmatpush.bf16.msra.mxu0 %v12485
    %12812 = vmatpush.bf16.msra.mxu0 %v12484
    %12813 = vmatmul.bf16.gmra.mxu0 %v11862
    %v12814 = vpop.f32.mrf.mxu0
    %v12815 = vadd.f32 %v12802, %v12814
    %v12816 = vpop.f32.mrf.mxu0
    %12817 = vdwg.mxu0
    %12818 = vmatpush.bf16.msra.mxu0 %v12499
    %12819 = vmatpush.bf16.msra.mxu0 %v12498
    %12820 = vmatpush.bf16.msra.mxu0 %v12497
    %12821 = vmatpush.bf16.msra.mxu0 %v12496
    %12822 = vmatpush.bf16.msra.mxu0 %v12495
    %12823 = vmatpush.bf16.msra.mxu0 %v12494
    %12824 = vmatpush.bf16.msra.mxu0 %v12493
    %12825 = vmatpush.bf16.msra.mxu0 %v12492
    %12826 = vmatmul.bf16.gmra.mxu0 %v11863
    %v12827 = vpop.f32.mrf.mxu0
    %v12828 = vadd.f32 %v12815, %v12827
    %v12829 = vpop.f32.mrf.mxu0
    %12830 = vdwg.mxu0
    %12831 = vmatpush.bf16.msra.mxu0 %v12507
    %12832 = vmatpush.bf16.msra.mxu0 %v12506
    %12833 = vmatpush.bf16.msra.mxu0 %v12505
    %12834 = vmatpush.bf16.msra.mxu0 %v12504
    %12835 = vmatpush.bf16.msra.mxu0 %v12503
    %12836 = vmatpush.bf16.msra.mxu0 %v12502
    %12837 = vmatpush.bf16.msra.mxu0 %v12501
    %12838 = vmatpush.bf16.msra.mxu0 %v12500
    %12839 = vmatmul.bf16.gmra.mxu0 %v11864
    %v12840 = vpop.f32.mrf.mxu0
    %v12841 = vadd.f32 %v12828, %v12840
    %v12842 = vpop.f32.mrf.mxu0
    %12843 = vdwg.mxu0
    %v12844 = vtanh.pop %v12841
    %12845 = vst [vmem:[#allocation14] sm:$0xff] %v12844
    // Predicated region
    $region50: #{tpu_custom_call.1} parent=1 // pred_check
      _
    $region51: #{tpu_custom_call.1} parent=1 // pred_check_branch
      %12847 = sbr.rel (0) target = $region53
    $region52: #{tpu_custom_call.1} parent=1 // pred_region
      %12849 = vsyncadd [#allocation7], 0
      %s12851 = sshll.u32 [#allocation14], 4
      %s12852 = int_to_ptr.vmem [resolvable:$true] %s12851
      %s12853 = sshll.u32 %s7, 4
      %s12854 = int_to_ptr.hbm [resolvable:$true] %s12853
      %12856 = dma.vmem_to_hbm [thread:$0]  %s12852, 128, %s12854, [#allocation7]
    $region53: #{tpu_custom_call.1} parent=1 // pred_fallthru
      _
    // Predicated region
    $region54: #{tpu_custom_call.1} parent=1 // pred_check
      _
    $region55: #{tpu_custom_call.1} parent=1 // pred_check_branch
      %12858 = sbr.rel (0) target = $region57
    $region56: #{tpu_custom_call.1} parent=1 // pred_region
      %12860 = dma.done [#allocation7], 128
    $region57: #{tpu_custom_call.1} parent=1 // pred_fallthru
      _
    %12861 = vsyncpa [#allocation6], 1
    %12862 = vsyncpa [#allocation9], 1
    %12863 = vsyncpa [#allocation12], 1
    %12864 = vsyncpa [#allocation7], 1
  %12865 = vsyncmov [#allocation4]
  %s12866 = vpop.sfrf %12865
  %p12867 = scmp.eq.s32.totalorder %s12866, 0
  %p12868 = pneg %p12867
  %12870 = shalt.err (%p12868)
  %s12871 = scalar_lea.sflag [#allocation4], 1
  %12872 = vsyncmov %s12871
  %s12873 = vpop.sfrf %12872
  %p12874 = scmp.eq.s32.totalorder %s12873, 0
  %p12875 = pneg %p12874
  %12877 = shalt.err (%p12875)

</llo_original>
